<compile_context>
chip_gen: v5e
topology: v5e:2x2
jax: 0.10.0
libtpu: 0.0.40
codegen_flags: <defaults>
</compile_context>

<pallas_src>
import functools

import jax
import jax.numpy as jnp
from jax import lax
from jax.experimental import pallas as pl
from jax.experimental.pallas import tpu as pltpu


# ---------------------------- fused decoder-block kernel ----------------------------

def _decoder_block_kernel(skip_ref, dnn_ref, pm_ref, im_ref,
                          wt_ref, w1s_ref, w1u_ref, g1_ref, b1_ref,
                          w2_ref, g2_ref, b2_ref,
                          o_ref, up_scr, y1_scr, *, n_batch, hu, wu):
    # skip_ref: (N, Cs,  E) bf16  guarded flat slab of the pooled skip (zero-padded image)
    # dnn_ref : (N, Cin, E) bf16  guarded flat slab of the 2x nearest-neighbour duplicated d
    # pm_ref  : (4, Mp) f32  parity masks (interior AND output parity (a,b)),  ab = a*2 + b
    # im_ref  : (1, Mp) f32  interior mask of the padded grid
    # wt_ref  : (4, Cup, Cin) bf16   ConvTranspose2d weight per output parity
    # w1s/w1u : (9, Cout, Cs/Cup) bf16   conv1 weight split into skip / up row blocks, per tap
    # w2      : (9, Cout, Cout) bf16
    # g*/b*   : (Cout, 1) f32   BatchNorm affine
    # o_ref   : (N, Cout, Mp) f32   output on the padded grid (zero border ring)
    # up_scr  : (N, Cup,  E) bf16   scratch slab for the transposed-conv output
    # y1_scr  : (N, Cout, E) bf16   scratch slab for conv1->BN->ReLU output
    wp = wu + 2
    mp = (hu + 2) * wp
    gpad = wp + 1                      # guard band so every 3x3 tap is one contiguous lane slice
    cout = o_ref.shape[1]
    cup = up_scr.shape[1]
    count = float(n_batch * hu * wu)   # BatchNorm averages over N*H*W (training-mode stats)

    imask = im_ref[...]                # (1, mp)
    pmask = pm_ref[...]                # (4, mp)

    # zero ONLY the guard bands of the internal slabs (review item 6): the interior is fully
    # overwritten and the padded border ring inside [gpad, gpad+mp) is zeroed by the masks.
    for scr in (up_scr, y1_scr):
        nb, cc, _ = scr.shape
        scr[:, :, :gpad] = jnp.zeros((nb, cc, gpad), scr.dtype)
        scr[:, :, gpad + mp:] = jnp.zeros((nb, cc, gpad), scr.dtype)

    # ---- ConvTranspose2d(k=2, s=2, no bias), fused ----
    # up[co, Y, X] = sum_ci Wt[ci, co, Y%2, X%2] * d[ci, Y//2, X//2].  The dnn slab already
    # holds d duplicated to the (Hu, Wu) grid, so each output parity is a 1x1 matmul over the
    # full-resolution grid selected by a lane parity mask (lane-dense output, no scatter).
    for n in range(n_batch):
        d_nn = dnn_ref[n, :, gpad:gpad + mp]          # (Cin, mp) bf16, zero border ring
        up = jnp.zeros((cup, mp), jnp.float32)
        for ab in range(4):
            t = jnp.dot(wt_ref[ab], d_nn, preferred_element_type=jnp.float32)
            up = up + pmask[ab:ab + 1] * t
        up_scr[n, :, gpad:gpad + mp] = up.astype(up_scr.dtype)

    def conv3x3(src_ref, w_taps_ref, n):
        # 3x3 "SAME" conv on the padded grid: 9 accumulating matmuls on contiguous lane slices.
        acc = jnp.zeros((cout, mp), jnp.float32)
        for dy in range(3):
            for dx in range(3):
                t = dy * 3 + dx
                off = dy * wp + dx
                acc = acc + jnp.dot(w_taps_ref[t], src_ref[n, :, off:off + mp],
                                    preferred_element_type=jnp.float32)
        return acc

    def bn_relu(zs, gamma_ref, beta_ref):
        # BatchNorm2d training-mode batch stats (biased var, eps=1e-5), interior-masked, f32.
        s = sum(jnp.sum(z * imask, axis=1, keepdims=True) for z in zs)
        mean = s / count
        v = sum(jnp.sum(imask * jnp.square(z - mean), axis=1, keepdims=True) for z in zs)
        var = v / count
        scale = gamma_ref[...] * lax.rsqrt(var + 1e-5)
        shift = beta_ref[...] - mean * scale
        # mask zeroes the border ring (garbage there) so the next conv's halo reads zeros
        return [imask * jnp.maximum(z * scale + shift, 0.0) for z in zs]

    # ---- Conv1 (split skip/up weights: conv(cat(s,u)) == conv_s(s) + conv_u(u)) + BN1 + ReLU
    z1 = [conv3x3(skip_ref, w1s_ref, n) + conv3x3(up_scr, w1u_ref, n) for n in range(n_batch)]
    y1 = bn_relu(z1, g1_ref, b1_ref)
    for n in range(n_batch):
        y1_scr[n, :, gpad:gpad + mp] = y1[n].astype(y1_scr.dtype)

    # ---- Conv2 + BN2 + ReLU  (Dropout(p=0.0) is an exact identity) ----
    z2 = [conv3x3(y1_scr, w2_ref, n) for n in range(n_batch)]
    y2 = bn_relu(z2, g2_ref, b2_ref)
    for n in range(n_batch):
        o_ref[n, :, :] = y2[n].astype(o_ref.dtype)


# ---------------------------- thin XLA glue (pure data movement) ----------------------------

def maxpool2x2(x):
    # nn.MaxPool2d(kernel_size=2, stride=2): reviewer-endorsed XLA strided-slice max.
    return jnp.maximum(jnp.maximum(x[:, :, 0::2, 0::2], x[:, :, 0::2, 1::2]),
                       jnp.maximum(x[:, :, 1::2, 0::2], x[:, :, 1::2, 1::2]))


def _to_slab(x):
    # (N, C, H, W) f32 -> (N, C, (H+2)*(W+2) + 2*(W+3)) bf16: zero-padded image flattened
    # row-major plus (W+3)-wide zero guard bands, so every 3x3 tap in the kernel is one
    # contiguous lane slice.  Cast to bf16 once here (review item 7).
    n, c, h, w = x.shape
    wp = w + 2
    guard = wp + 1
    xp = jnp.pad(x, ((0, 0), (0, 0), (1, 1), (1, 1)))
    xf = xp.reshape(n, c, (h + 2) * wp)
    return jnp.pad(xf, ((0, 0), (0, 0), (guard, guard))).astype(jnp.bfloat16)


def _pad_masks(hu, wu):
    # lane masks over the flattened padded grid: 4 output-parity masks (interior included)
    # for the fused transposed conv, plus the interior mask for BN stats / border zeroing.
    wp = wu + 2
    mp = (hu + 2) * wp
    q = jnp.arange(mp, dtype=jnp.int32)
    row = q // wp
    col = q % wp
    interior = (row >= 1) & (row <= hu) & (col >= 1) & (col <= wu)
    pm = jnp.stack([interior & ((row % 2) == ((1 + a) % 2)) & ((col % 2) == ((1 + b) % 2))
                    for a in (0, 1) for b in (0, 1)])
    return pm.astype(jnp.float32), interior.astype(jnp.float32)[None, :]


def decoder_block(p, d, skip):
    # d: (N, Cin, Hd, Wd), skip: (N, Cs, Hu, Wu), Hu = 2*Hd, Wu = 2*Wd  (NCHW, f32)
    n, cin, hd, wd = d.shape
    hu, wu = 2 * hd, 2 * wd
    cout = p["w1s"].shape[1]
    cup = p["wt"].shape[1]
    wp = wu + 2
    mp = (hu + 2) * wp
    guard = wp + 1
    e = mp + 2 * guard

    # nearest-neighbour 2x duplication (pure data movement; the transposed-conv matmul itself
    # runs inside the fused kernel)
    d_nn = jnp.broadcast_to(d[:, :, :, None, :, None],
                            (n, cin, hd, 2, wd, 2)).reshape(n, cin, hu, wu)

    skip_slab = _to_slab(skip)          # (N, Cs,  E) bf16
    dnn_slab = _to_slab(d_nn)           # (N, Cin, E) bf16
    pmask, imask = _pad_masks(hu, wu)   # (4, Mp), (1, Mp) f32

    kernel = functools.partial(_decoder_block_kernel, n_batch=n, hu=hu, wu=wu)

    def full_spec(shape):
        nd = len(shape)
        return pl.BlockSpec(shape, lambda i, nd=nd: (0,) * nd)

    out_pad = pl.pallas_call(
        kernel,
        out_shape=jax.ShapeDtypeStruct((n, cout, mp), jnp.float32),
        grid=(1,),  # single step: BN needs global batch stats; activations are tiny here.
        in_specs=[full_spec(skip_slab.shape),
                  full_spec(dnn_slab.shape),
                  full_spec(pmask.shape),
                  full_spec(imask.shape),
                  full_spec(p["wt"].shape),
                  full_spec(p["w1s"].shape),
                  full_spec(p["w1u"].shape),
                  full_spec(p["bn1_g"].shape),
                  full_spec(p["bn1_b"].shape),
                  full_spec(p["w2"].shape),
                  full_spec(p["bn2_g"].shape),
                  full_spec(p["bn2_b"].shape)],
        out_specs=full_spec((n, cout, mp)),
        scratch_shapes=[pltpu.VMEM((n, cup, e), jnp.bfloat16),    # transposed-conv slab
                        pltpu.VMEM((n, cout, e), jnp.bfloat16)],  # conv1 output slab
        compiler_params=pltpu.CompilerParams(
            dimension_semantics=("arbitrary",),
            # usage here is < 1 MiB; when M gets tiled at real sizes raise this toward the
            # per-generation ceiling (v5e/v6e ~96-112 MiB usable, v7x ~48-56 MiB).
            vmem_limit_bytes=32 * 1024 * 1024),
    )(skip_slab, dnn_slab, pmask, imask, p["wt"], p["w1s"], p["w1u"],
      p["bn1_g"], p["bn1_b"], p["w2"], p["bn2_g"], p["bn2_b"])

    # drop the zero border ring: padded grid -> (N, Cout, Hu, Wu)
    return out_pad.reshape(n, cout, hu + 2, wp)[:, :, 1:-1, 1:-1]


def decoder_blocks_forward(packed_params, x_out, c):
    # DecoderBlocks.forward with backbone=None
    d = maxpool2x2(c)
    for i, p in enumerate(packed_params):
        skip = maxpool2x2(x_out[-1 - i])
        d = decoder_block(p, d, skip)
    return d


# ---------------------------- parameters ----------------------------

def init_params(key, filters):
    # deterministic, PyTorch-layout f32 parameters
    params = []
    for i in range(len(filters) - 1):
        cin = filters[-1 - i]
        cout = filters[-2 - i]
        key, k1, k2, k3 = jax.random.split(key, 4)
        params.append({
            "trans_w": jax.random.normal(k1, (cin, cout, 2, 2), jnp.float32)
                       * (2.0 / (cin * 4)) ** 0.5,
            "conv1_w": jax.random.normal(k2, (cout, cin, 3, 3), jnp.float32)
                       * (2.0 / (cin * 9)) ** 0.5,
            "bn1_g": jnp.ones((cout,), jnp.float32),
            "bn1_b": jnp.zeros((cout,), jnp.float32),
            "conv2_w": jax.random.normal(k3, (cout, cout, 3, 3), jnp.float32)
                       * (2.0 / (cout * 9)) ** 0.5,
            "bn2_g": jnp.ones((cout,), jnp.float32),
            "bn2_b": jnp.zeros((cout,), jnp.float32),
        })
    return params


def pack_params(params):
    # repack PyTorch-layout weights into kernel layouts (bf16 MXU operands; BN affine f32)
    packed = []
    for p in params:
        cin, cout = p["trans_w"].shape[0], p["trans_w"].shape[1]
        cs = cout  # torch.cat([skip, up], 1): skip channels first, then the upsampled channels
        packed.append({
            # ConvTranspose2d (Cin, Cup, 2, 2) -> (4, Cup, Cin), row index ab = a*2 + b
            "wt": jnp.transpose(p["trans_w"], (2, 3, 1, 0))
                    .reshape(4, cout, cin).astype(jnp.bfloat16),
            # Conv2d (Cout, Ccat, 3, 3) split into skip / up blocks, per-tap (9, Cout, C)
            "w1s": jnp.transpose(p["conv1_w"][:, :cs], (2, 3, 0, 1))
                     .reshape(9, cout, cs).astype(jnp.bfloat16),
            "w1u": jnp.transpose(p["conv1_w"][:, cs:], (2, 3, 0, 1))
                     .reshape(9, cout, cin - cs).astype(jnp.bfloat16),
            "w2": jnp.transpose(p["conv2_w"], (2, 3, 0, 1))
                    .reshape(9, cout, cout).astype(jnp.bfloat16),
            "bn1_g": p["bn1_g"].reshape(cout, 1),
            "bn1_b": p["bn1_b"].reshape(cout, 1),
            "bn2_g": p["bn2_g"].reshape(cout, 1),
            "bn2_b": p["bn2_b"].reshape(cout, 1),
        })
    return packed


# ---------------------------- pure-JAX reference (f32) ----------------------------

def _ref_forward(params, x_out, c):
    def conv3x3(x, w):
        return lax.conv_general_dilated(x, w, (1, 1), "SAME",
                                        dimension_numbers=("NCHW", "OIHW", "NCHW"))

    def bn_relu(x, g, b):
        mean = jnp.mean(x, axis=(0, 2, 3), keepdims=True)
        var = jnp.mean(jnp.square(x - mean), axis=(0, 2, 3), keepdims=True)
        y = (x - mean) * lax.rsqrt(var + 1e-5) * g.reshape(1, -1, 1, 1) + b.reshape(1, -1, 1, 1)
        return jnp.maximum(y, 0.0)

    def conv_t(x, w):
        n, _, h, ww = x.shape
        co = w.shape[1]
        y = jnp.einsum("nchw,coab->nohawb", x, w)
        return y.reshape(n, co, 2 * h, 2 * ww)

    d = maxpool2x2(c)
    for i, p in enumerate(params):
        skip = maxpool2x2(x_out[-1 - i])
        up = conv_t(d, p["trans_w"])
        x = jnp.concatenate([skip, up], axis=1)
        x = bn_relu(conv3x3(x, p["conv1_w"]), p["bn1_g"], p["bn1_b"])
        x = bn_relu(conv3x3(x, p["conv2_w"]), p["bn2_g"], p["bn2_b"])
        d = x
    return d


# ---------------------------- main ----------------------------

if __name__ == "__main__":
    filters = [4, 8, 16]
    N, S = 2, 8  # batch, spatial size of the bottleneck feature map `c`

    key = jax.random.PRNGKey(0)
    kp, kc, k0, k1 = jax.random.split(key, 4)
    params = init_params(kp, filters)
    packed = pack_params(params)

    # PyTorch-convention NCHW inputs (kernels work natively in NCHW: spatial maps to lanes)
    c = jax.random.normal(kc, (N, filters[-1], S, S), jnp.float32)                  # (2, 16, 8, 8)
    x_out = [jax.random.normal(k0, (N, filters[0], 4 * S, 4 * S), jnp.float32),     # (2, 4, 32, 32)
             jax.random.normal(k1, (N, filters[1], 2 * S, 2 * S), jnp.float32)]     # (2, 8, 16, 16)

    fwd = jax.jit(decoder_blocks_forward)
    out = fwd(packed, x_out, c)
    jax.block_until_ready(out)

    assert out.shape == (N, filters[0], 2 * S, 2 * S)
    assert bool(jnp.all(jnp.isfinite(out)))

    # numerical check against a pure-JAX/XLA f32 reference (kernels use bf16 MXU operands and
    # slabs, so the tolerance is loose but still catches any layout/packing bug)
    ref = _ref_forward(params, x_out, c)
    err = float(jnp.max(jnp.abs(out - ref)))
    assert err < 0.2, f"max abs error vs reference too large: {err}"

    print("KERNEL_OK")
</pallas_src>

<mosaic_0001>
module attributes {stable_mosaic.version = 11 : i64} {
  func.func @_decoder_block_kernel(%arg0: i32, %arg1: memref<2x8x122xbf16, #tpu.memory_space<vmem>>, %arg2: memref<2x16x122xbf16, #tpu.memory_space<vmem>>, %arg3: memref<4x100xf32, #tpu.memory_space<vmem>>, %arg4: memref<1x100xf32, #tpu.memory_space<vmem>>, %arg5: memref<4x8x16xbf16, #tpu.memory_space<vmem>>, %arg6: memref<9x8x8xbf16, #tpu.memory_space<vmem>>, %arg7: memref<9x8x8xbf16, #tpu.memory_space<vmem>>, %arg8: memref<8x1xf32, #tpu.memory_space<vmem>>, %arg9: memref<8x1xf32, #tpu.memory_space<vmem>>, %arg10: memref<9x8x8xbf16, #tpu.memory_space<vmem>>, %arg11: memref<8x1xf32, #tpu.memory_space<vmem>>, %arg12: memref<8x1xf32, #tpu.memory_space<vmem>>, %arg13: memref<2x8x100xf32, #tpu.memory_space<vmem>>, %arg14: memref<2x8x122xbf16, #tpu.memory_space<vmem>>, %arg15: memref<2x8x122xbf16, #tpu.memory_space<vmem>>) attributes {dimension_semantics = [#tpu.dimension_semantics<arbitrary>], iteration_bounds = array<i64: 1>, scalar_prefetch = 0 : i64, scratch_operands = 2 : i64, tpu.core_type = #tpu.core_type<tc>, window_params = [{pipeline_mode = #tpu.pipeline_mode<synchronous>, transform_indices = @transform_0, window_bounds = array<i64: 2, 8, 122>}, {pipeline_mode = #tpu.pipeline_mode<synchronous>, transform_indices = @transform_1, window_bounds = array<i64: 2, 16, 122>}, {pipeline_mode = #tpu.pipeline_mode<synchronous>, transform_indices = @transform_2, window_bounds = array<i64: 4, 100>}, {pipeline_mode = #tpu.pipeline_mode<synchronous>, transform_indices = @transform_3, window_bounds = array<i64: 1, 100>}, {pipeline_mode = #tpu.pipeline_mode<synchronous>, transform_indices = @transform_4, window_bounds = array<i64: 4, 8, 16>}, {pipeline_mode = #tpu.pipeline_mode<synchronous>, transform_indices = @transform_5, window_bounds = array<i64: 9, 8, 8>}, {pipeline_mode = #tpu.pipeline_mode<synchronous>, transform_indices = @transform_6, window_bounds = array<i64: 9, 8, 8>}, {pipeline_mode = #tpu.pipeline_mode<synchronous>, transform_indices = @transform_7, window_bounds = array<i64: 8, 1>}, {pipeline_mode = #tpu.pipeline_mode<synchronous>, transform_indices = @transform_8, window_bounds = array<i64: 8, 1>}, {pipeline_mode = #tpu.pipeline_mode<synchronous>, transform_indices = @transform_9, window_bounds = array<i64: 9, 8, 8>}, {pipeline_mode = #tpu.pipeline_mode<synchronous>, transform_indices = @transform_10, window_bounds = array<i64: 8, 1>}, {pipeline_mode = #tpu.pipeline_mode<synchronous>, transform_indices = @transform_11, window_bounds = array<i64: 8, 1>}, {pipeline_mode = #tpu.pipeline_mode<synchronous>, transform_indices = @transform_12, window_bounds = array<i64: 2, 8, 100>}]} {
    %c0 = arith.constant 0 : index
    %c0_0 = arith.constant 0 : index
    %0 = vector.load %arg4[%c0, %c0_0] : memref<1x100xf32, #tpu.memory_space<vmem>>, vector<1x100xf32>
    %c0_1 = arith.constant 0 : index
    %c0_2 = arith.constant 0 : index
    %1 = vector.load %arg3[%c0_1, %c0_2] : memref<4x100xf32, #tpu.memory_space<vmem>>, vector<4x100xf32>
    %cst = arith.constant 0.000000e+00 : bf16
    %2 = vector.broadcast %cst : bf16 to vector<2x8x11xbf16>
    %c0_3 = arith.constant 0 : index
    %c0_4 = arith.constant 0 : index
    %c0_5 = arith.constant 0 : index
    %3 = vector.load %arg14[%c0_3, %c0_4, %c0_5] : memref<2x8x122xbf16, #tpu.memory_space<vmem>>, vector<2x8x11xbf16>
    tpu.vector_store %arg14[%c0_3, %c0_4, %c0_5], %2 {strides = array<i32>} : memref<2x8x122xbf16, #tpu.memory_space<vmem>>, vector<2x8x11xbf16>,
    %cst_6 = arith.constant 0.000000e+00 : bf16
    %4 = vector.broadcast %cst_6 : bf16 to vector<2x8x11xbf16>
    %c0_7 = arith.constant 0 : index
    %c0_8 = arith.constant 0 : index
    %c111 = arith.constant 111 : index
    %5 = vector.load %arg14[%c0_7, %c0_8, %c111] : memref<2x8x122xbf16, #tpu.memory_space<vmem>>, vector<2x8x11xbf16>
    tpu.vector_store %arg14[%c0_7, %c0_8, %c111], %4 {strides = array<i32>} : memref<2x8x122xbf16, #tpu.memory_space<vmem>>, vector<2x8x11xbf16>,
    %cst_9 = arith.constant 0.000000e+00 : bf16
    %6 = vector.broadcast %cst_9 : bf16 to vector<2x8x11xbf16>
    %c0_10 = arith.constant 0 : index
    %c0_11 = arith.constant 0 : index
    %c0_12 = arith.constant 0 : index
    %7 = vector.load %arg15[%c0_10, %c0_11, %c0_12] : memref<2x8x122xbf16, #tpu.memory_space<vmem>>, vector<2x8x11xbf16>
    tpu.vector_store %arg15[%c0_10, %c0_11, %c0_12], %6 {strides = array<i32>} : memref<2x8x122xbf16, #tpu.memory_space<vmem>>, vector<2x8x11xbf16>,
    %cst_13 = arith.constant 0.000000e+00 : bf16
    %8 = vector.broadcast %cst_13 : bf16 to vector<2x8x11xbf16>
    %c0_14 = arith.constant 0 : index
    %c0_15 = arith.constant 0 : index
    %c111_16 = arith.constant 111 : index
    %9 = vector.load %arg15[%c0_14, %c0_15, %c111_16] : memref<2x8x122xbf16, #tpu.memory_space<vmem>>, vector<2x8x11xbf16>
    tpu.vector_store %arg15[%c0_14, %c0_15, %c111_16], %8 {strides = array<i32>} : memref<2x8x122xbf16, #tpu.memory_space<vmem>>, vector<2x8x11xbf16>,
    %c0_17 = arith.constant 0 : index
    %c0_18 = arith.constant 0 : index
    %c11 = arith.constant 11 : index
    %10 = vector.load %arg2[%c0_17, %c0_18, %c11] : memref<2x16x122xbf16, #tpu.memory_space<vmem>>, vector<1x16x100xbf16>
    %11 = vector.shape_cast %10 : vector<1x16x100xbf16> to vector<16x100xbf16>
    %cst_19 = arith.constant 0.000000e+00 : f32
    %12 = vector.broadcast %cst_19 : f32 to vector<8x100xf32>
    %c0_20 = arith.constant 0 : index
    %c0_21 = arith.constant 0 : index
    %c0_22 = arith.constant 0 : index
    %13 = vector.load %arg5[%c0_20, %c0_21, %c0_22] : memref<4x8x16xbf16, #tpu.memory_space<vmem>>, vector<1x8x16xbf16>
    %14 = vector.shape_cast %13 : vector<1x8x16xbf16> to vector<8x16xbf16>
    %cst_23 = arith.constant dense<0.000000e+00> : vector<8x100xf32>
    %15 = tpu.matmul %14, %11, %cst_23 {dimension_numbers = #tpu.dot_dimension_numbers<[1], [0], [0], [1], [0, 0, 1, 1], [], []>} : vector<8x16xbf16>, vector<16x100xbf16>, vector<8x100xf32> -> vector<8x100xf32>
    %16 = vector.extract_strided_slice %1 {offsets = [0, 0], sizes = [1, 100], strides = [1, 1]} : vector<4x100xf32> to vector<1x100xf32>
    %17 = vector.broadcast %16 : vector<1x100xf32> to vector<8x100xf32>
    %18 = arith.mulf %17, %15 : vector<8x100xf32>
    %19 = arith.addf %12, %18 : vector<8x100xf32>
    %c1 = arith.constant 1 : index
    %c0_24 = arith.constant 0 : index
    %c0_25 = arith.constant 0 : index
    %20 = vector.load %arg5[%c1, %c0_24, %c0_25] : memref<4x8x16xbf16, #tpu.memory_space<vmem>>, vector<1x8x16xbf16>
    %21 = vector.shape_cast %20 : vector<1x8x16xbf16> to vector<8x16xbf16>
    %cst_26 = arith.constant dense<0.000000e+00> : vector<8x100xf32>
    %22 = tpu.matmul %21, %11, %cst_26 {dimension_numbers = #tpu.dot_dimension_numbers<[1], [0], [0], [1], [0, 0, 1, 1], [], []>} : vector<8x16xbf16>, vector<16x100xbf16>, vector<8x100xf32> -> vector<8x100xf32>
    %23 = vector.extract_strided_slice %1 {offsets = [1, 0], sizes = [1, 100], strides = [1, 1]} : vector<4x100xf32> to vector<1x100xf32>
    %24 = vector.broadcast %23 : vector<1x100xf32> to vector<8x100xf32>
    %25 = arith.mulf %24, %22 : vector<8x100xf32>
    %26 = arith.addf %19, %25 : vector<8x100xf32>
    %c2 = arith.constant 2 : index
    %c0_27 = arith.constant 0 : index
    %c0_28 = arith.constant 0 : index
    %27 = vector.load %arg5[%c2, %c0_27, %c0_28] : memref<4x8x16xbf16, #tpu.memory_space<vmem>>, vector<1x8x16xbf16>
    %28 = vector.shape_cast %27 : vector<1x8x16xbf16> to vector<8x16xbf16>
    %cst_29 = arith.constant dense<0.000000e+00> : vector<8x100xf32>
    %29 = tpu.matmul %28, %11, %cst_29 {dimension_numbers = #tpu.dot_dimension_numbers<[1], [0], [0], [1], [0, 0, 1, 1], [], []>} : vector<8x16xbf16>, vector<16x100xbf16>, vector<8x100xf32> -> vector<8x100xf32>
    %30 = vector.extract_strided_slice %1 {offsets = [2, 0], sizes = [1, 100], strides = [1, 1]} : vector<4x100xf32> to vector<1x100xf32>
    %31 = vector.broadcast %30 : vector<1x100xf32> to vector<8x100xf32>
    %32 = arith.mulf %31, %29 : vector<8x100xf32>
    %33 = arith.addf %26, %32 : vector<8x100xf32>
    %c3 = arith.constant 3 : index
    %c0_30 = arith.constant 0 : index
    %c0_31 = arith.constant 0 : index
    %34 = vector.load %arg5[%c3, %c0_30, %c0_31] : memref<4x8x16xbf16, #tpu.memory_space<vmem>>, vector<1x8x16xbf16>
    %35 = vector.shape_cast %34 : vector<1x8x16xbf16> to vector<8x16xbf16>
    %cst_32 = arith.constant dense<0.000000e+00> : vector<8x100xf32>
    %36 = tpu.matmul %35, %11, %cst_32 {dimension_numbers = #tpu.dot_dimension_numbers<[1], [0], [0], [1], [0, 0, 1, 1], [], []>} : vector<8x16xbf16>, vector<16x100xbf16>, vector<8x100xf32> -> vector<8x100xf32>
    %37 = vector.extract_strided_slice %1 {offsets = [3, 0], sizes = [1, 100], strides = [1, 1]} : vector<4x100xf32> to vector<1x100xf32>
    %38 = vector.broadcast %37 : vector<1x100xf32> to vector<8x100xf32>
    %39 = arith.mulf %38, %36 : vector<8x100xf32>
    %40 = arith.addf %33, %39 : vector<8x100xf32>
    %41 = arith.truncf %40 : vector<8x100xf32> to vector<8x100xbf16>
    %c0_33 = arith.constant 0 : index
    %c0_34 = arith.constant 0 : index
    %c11_35 = arith.constant 11 : index
    %42 = vector.load %arg14[%c0_33, %c0_34, %c11_35] : memref<2x8x122xbf16, #tpu.memory_space<vmem>>, vector<1x8x100xbf16>
    %43 = vector.shape_cast %42 : vector<1x8x100xbf16> to vector<8x100xbf16>
    %44 = vector.shape_cast %41 : vector<8x100xbf16> to vector<1x8x100xbf16>
    tpu.vector_store %arg14[%c0_33, %c0_34, %c11_35], %44 {strides = array<i32>} : memref<2x8x122xbf16, #tpu.memory_space<vmem>>, vector<1x8x100xbf16>,
    %c1_36 = arith.constant 1 : index
    %c0_37 = arith.constant 0 : index
    %c11_38 = arith.constant 11 : index
    %45 = vector.load %arg2[%c1_36, %c0_37, %c11_38] : memref<2x16x122xbf16, #tpu.memory_space<vmem>>, vector<1x16x100xbf16>
    %46 = vector.shape_cast %45 : vector<1x16x100xbf16> to vector<16x100xbf16>
    %cst_39 = arith.constant 0.000000e+00 : f32
    %47 = vector.broadcast %cst_39 : f32 to vector<8x100xf32>
    %c0_40 = arith.constant 0 : index
    %c0_41 = arith.constant 0 : index
    %c0_42 = arith.constant 0 : index
    %48 = vector.load %arg5[%c0_40, %c0_41, %c0_42] : memref<4x8x16xbf16, #tpu.memory_space<vmem>>, vector<1x8x16xbf16>
    %49 = vector.shape_cast %48 : vector<1x8x16xbf16> to vector<8x16xbf16>
    %cst_43 = arith.constant dense<0.000000e+00> : vector<8x100xf32>
    %50 = tpu.matmul %49, %46, %cst_43 {dimension_numbers = #tpu.dot_dimension_numbers<[1], [0], [0], [1], [0, 0, 1, 1], [], []>} : vector<8x16xbf16>, vector<16x100xbf16>, vector<8x100xf32> -> vector<8x100xf32>
    %51 = vector.extract_strided_slice %1 {offsets = [0, 0], sizes = [1, 100], strides = [1, 1]} : vector<4x100xf32> to vector<1x100xf32>
    %52 = vector.broadcast %51 : vector<1x100xf32> to vector<8x100xf32>
    %53 = arith.mulf %52, %50 : vector<8x100xf32>
    %54 = arith.addf %47, %53 : vector<8x100xf32>
    %c1_44 = arith.constant 1 : index
    %c0_45 = arith.constant 0 : index
    %c0_46 = arith.constant 0 : index
    %55 = vector.load %arg5[%c1_44, %c0_45, %c0_46] : memref<4x8x16xbf16, #tpu.memory_space<vmem>>, vector<1x8x16xbf16>
    %56 = vector.shape_cast %55 : vector<1x8x16xbf16> to vector<8x16xbf16>
    %cst_47 = arith.constant dense<0.000000e+00> : vector<8x100xf32>
    %57 = tpu.matmul %56, %46, %cst_47 {dimension_numbers = #tpu.dot_dimension_numbers<[1], [0], [0], [1], [0, 0, 1, 1], [], []>} : vector<8x16xbf16>, vector<16x100xbf16>, vector<8x100xf32> -> vector<8x100xf32>
    %58 = vector.extract_strided_slice %1 {offsets = [1, 0], sizes = [1, 100], strides = [1, 1]} : vector<4x100xf32> to vector<1x100xf32>
    %59 = vector.broadcast %58 : vector<1x100xf32> to vector<8x100xf32>
    %60 = arith.mulf %59, %57 : vector<8x100xf32>
    %61 = arith.addf %54, %60 : vector<8x100xf32>
    %c2_48 = arith.constant 2 : index
    %c0_49 = arith.constant 0 : index
    %c0_50 = arith.constant 0 : index
    %62 = vector.load %arg5[%c2_48, %c0_49, %c0_50] : memref<4x8x16xbf16, #tpu.memory_space<vmem>>, vector<1x8x16xbf16>
    %63 = vector.shape_cast %62 : vector<1x8x16xbf16> to vector<8x16xbf16>
    %cst_51 = arith.constant dense<0.000000e+00> : vector<8x100xf32>
    %64 = tpu.matmul %63, %46, %cst_51 {dimension_numbers = #tpu.dot_dimension_numbers<[1], [0], [0], [1], [0, 0, 1, 1], [], []>} : vector<8x16xbf16>, vector<16x100xbf16>, vector<8x100xf32> -> vector<8x100xf32>
    %65 = vector.extract_strided_slice %1 {offsets = [2, 0], sizes = [1, 100], strides = [1, 1]} : vector<4x100xf32> to vector<1x100xf32>
    %66 = vector.broadcast %65 : vector<1x100xf32> to vector<8x100xf32>
    %67 = arith.mulf %66, %64 : vector<8x100xf32>
    %68 = arith.addf %61, %67 : vector<8x100xf32>
    %c3_52 = arith.constant 3 : index
    %c0_53 = arith.constant 0 : index
    %c0_54 = arith.constant 0 : index
    %69 = vector.load %arg5[%c3_52, %c0_53, %c0_54] : memref<4x8x16xbf16, #tpu.memory_space<vmem>>, vector<1x8x16xbf16>
    %70 = vector.shape_cast %69 : vector<1x8x16xbf16> to vector<8x16xbf16>
    %cst_55 = arith.constant dense<0.000000e+00> : vector<8x100xf32>
    %71 = tpu.matmul %70, %46, %cst_55 {dimension_numbers = #tpu.dot_dimension_numbers<[1], [0], [0], [1], [0, 0, 1, 1], [], []>} : vector<8x16xbf16>, vector<16x100xbf16>, vector<8x100xf32> -> vector<8x100xf32>
    %72 = vector.extract_strided_slice %1 {offsets = [3, 0], sizes = [1, 100], strides = [1, 1]} : vector<4x100xf32> to vector<1x100xf32>
    %73 = vector.broadcast %72 : vector<1x100xf32> to vector<8x100xf32>
    %74 = arith.mulf %73, %71 : vector<8x100xf32>
    %75 = arith.addf %68, %74 : vector<8x100xf32>
    %76 = arith.truncf %75 : vector<8x100xf32> to vector<8x100xbf16>
    %c1_56 = arith.constant 1 : index
    %c0_57 = arith.constant 0 : index
    %c11_58 = arith.constant 11 : index
    %77 = vector.load %arg14[%c1_56, %c0_57, %c11_58] : memref<2x8x122xbf16, #tpu.memory_space<vmem>>, vector<1x8x100xbf16>
    %78 = vector.shape_cast %77 : vector<1x8x100xbf16> to vector<8x100xbf16>
    %79 = vector.shape_cast %76 : vector<8x100xbf16> to vector<1x8x100xbf16>
    tpu.vector_store %arg14[%c1_56, %c0_57, %c11_58], %79 {strides = array<i32>} : memref<2x8x122xbf16, #tpu.memory_space<vmem>>, vector<1x8x100xbf16>,
    %cst_59 = arith.constant 0.000000e+00 : f32
    %80 = vector.broadcast %cst_59 : f32 to vector<8x100xf32>
    %c0_60 = arith.constant 0 : index
    %c0_61 = arith.constant 0 : index
    %c0_62 = arith.constant 0 : index
    %81 = vector.load %arg6[%c0_60, %c0_61, %c0_62] : memref<9x8x8xbf16, #tpu.memory_space<vmem>>, vector<1x8x8xbf16>
    %82 = vector.shape_cast %81 : vector<1x8x8xbf16> to vector<8x8xbf16>
    %c0_63 = arith.constant 0 : index
    %c0_64 = arith.constant 0 : index
    %c0_65 = arith.constant 0 : index
    %83 = vector.load %arg1[%c0_63, %c0_64, %c0_65] : memref<2x8x122xbf16, #tpu.memory_space<vmem>>, vector<1x8x100xbf16>
    %84 = vector.shape_cast %83 : vector<1x8x100xbf16> to vector<8x100xbf16>
    %cst_66 = arith.constant dense<0.000000e+00> : vector<8x100xf32>
    %85 = tpu.matmul %82, %84, %cst_66 {dimension_numbers = #tpu.dot_dimension_numbers<[1], [0], [0], [1], [0, 0, 1, 1], [], []>} : vector<8x8xbf16>, vector<8x100xbf16>, vector<8x100xf32> -> vector<8x100xf32>
    %86 = arith.addf %80, %85 : vector<8x100xf32>
    %c1_67 = arith.constant 1 : index
    %c0_68 = arith.constant 0 : index
    %c0_69 = arith.constant 0 : index
    %87 = vector.load %arg6[%c1_67, %c0_68, %c0_69] : memref<9x8x8xbf16, #tpu.memory_space<vmem>>, vector<1x8x8xbf16>
    %88 = vector.shape_cast %87 : vector<1x8x8xbf16> to vector<8x8xbf16>
    %c0_70 = arith.constant 0 : index
    %c0_71 = arith.constant 0 : index
    %c1_72 = arith.constant 1 : index
    %89 = vector.load %arg1[%c0_70, %c0_71, %c1_72] : memref<2x8x122xbf16, #tpu.memory_space<vmem>>, vector<1x8x100xbf16>
    %90 = vector.shape_cast %89 : vector<1x8x100xbf16> to vector<8x100xbf16>
    %cst_73 = arith.constant dense<0.000000e+00> : vector<8x100xf32>
    %91 = tpu.matmul %88, %90, %cst_73 {dimension_numbers = #tpu.dot_dimension_numbers<[1], [0], [0], [1], [0, 0, 1, 1], [], []>} : vector<8x8xbf16>, vector<8x100xbf16>, vector<8x100xf32> -> vector<8x100xf32>
    %92 = arith.addf %86, %91 : vector<8x100xf32>
    %c2_74 = arith.constant 2 : index
    %c0_75 = arith.constant 0 : index
    %c0_76 = arith.constant 0 : index
    %93 = vector.load %arg6[%c2_74, %c0_75, %c0_76] : memref<9x8x8xbf16, #tpu.memory_space<vmem>>, vector<1x8x8xbf16>
    %94 = vector.shape_cast %93 : vector<1x8x8xbf16> to vector<8x8xbf16>
    %c0_77 = arith.constant 0 : index
    %c0_78 = arith.constant 0 : index
    %c2_79 = arith.constant 2 : index
    %95 = vector.load %arg1[%c0_77, %c0_78, %c2_79] : memref<2x8x122xbf16, #tpu.memory_space<vmem>>, vector<1x8x100xbf16>
    %96 = vector.shape_cast %95 : vector<1x8x100xbf16> to vector<8x100xbf16>
    %cst_80 = arith.constant dense<0.000000e+00> : vector<8x100xf32>
    %97 = tpu.matmul %94, %96, %cst_80 {dimension_numbers = #tpu.dot_dimension_numbers<[1], [0], [0], [1], [0, 0, 1, 1], [], []>} : vector<8x8xbf16>, vector<8x100xbf16>, vector<8x100xf32> -> vector<8x100xf32>
    %98 = arith.addf %92, %97 : vector<8x100xf32>
    %c3_81 = arith.constant 3 : index
    %c0_82 = arith.constant 0 : index
    %c0_83 = arith.constant 0 : index
    %99 = vector.load %arg6[%c3_81, %c0_82, %c0_83] : memref<9x8x8xbf16, #tpu.memory_space<vmem>>, vector<1x8x8xbf16>
    %100 = vector.shape_cast %99 : vector<1x8x8xbf16> to vector<8x8xbf16>
    %c0_84 = arith.constant 0 : index
    %c0_85 = arith.constant 0 : index
    %c10 = arith.constant 10 : index
    %101 = vector.load %arg1[%c0_84, %c0_85, %c10] : memref<2x8x122xbf16, #tpu.memory_space<vmem>>, vector<1x8x100xbf16>
    %102 = vector.shape_cast %101 : vector<1x8x100xbf16> to vector<8x100xbf16>
    %cst_86 = arith.constant dense<0.000000e+00> : vector<8x100xf32>
    %103 = tpu.matmul %100, %102, %cst_86 {dimension_numbers = #tpu.dot_dimension_numbers<[1], [0], [0], [1], [0, 0, 1, 1], [], []>} : vector<8x8xbf16>, vector<8x100xbf16>, vector<8x100xf32> -> vector<8x100xf32>
    %104 = arith.addf %98, %103 : vector<8x100xf32>
    %c4 = arith.constant 4 : index
    %c0_87 = arith.constant 0 : index
    %c0_88 = arith.constant 0 : index
    %105 = vector.load %arg6[%c4, %c0_87, %c0_88] : memref<9x8x8xbf16, #tpu.memory_space<vmem>>, vector<1x8x8xbf16>
    %106 = vector.shape_cast %105 : vector<1x8x8xbf16> to vector<8x8xbf16>
    %c0_89 = arith.constant 0 : index
    %c0_90 = arith.constant 0 : index
    %c11_91 = arith.constant 11 : index
    %107 = vector.load %arg1[%c0_89, %c0_90, %c11_91] : memref<2x8x122xbf16, #tpu.memory_space<vmem>>, vector<1x8x100xbf16>
    %108 = vector.shape_cast %107 : vector<1x8x100xbf16> to vector<8x100xbf16>
    %cst_92 = arith.constant dense<0.000000e+00> : vector<8x100xf32>
    %109 = tpu.matmul %106, %108, %cst_92 {dimension_numbers = #tpu.dot_dimension_numbers<[1], [0], [0], [1], [0, 0, 1, 1], [], []>} : vector<8x8xbf16>, vector<8x100xbf16>, vector<8x100xf32> -> vector<8x100xf32>
    %110 = arith.addf %104, %109 : vector<8x100xf32>
    %c5 = arith.constant 5 : index
    %c0_93 = arith.constant 0 : index
    %c0_94 = arith.constant 0 : index
    %111 = vector.load %arg6[%c5, %c0_93, %c0_94] : memref<9x8x8xbf16, #tpu.memory_space<vmem>>, vector<1x8x8xbf16>
    %112 = vector.shape_cast %111 : vector<1x8x8xbf16> to vector<8x8xbf16>
    %c0_95 = arith.constant 0 : index
    %c0_96 = arith.constant 0 : index
    %c12 = arith.constant 12 : index
    %113 = vector.load %arg1[%c0_95, %c0_96, %c12] : memref<2x8x122xbf16, #tpu.memory_space<vmem>>, vector<1x8x100xbf16>
    %114 = vector.shape_cast %113 : vector<1x8x100xbf16> to vector<8x100xbf16>
    %cst_97 = arith.constant dense<0.000000e+00> : vector<8x100xf32>
    %115 = tpu.matmul %112, %114, %cst_97 {dimension_numbers = #tpu.dot_dimension_numbers<[1], [0], [0], [1], [0, 0, 1, 1], [], []>} : vector<8x8xbf16>, vector<8x100xbf16>, vector<8x100xf32> -> vector<8x100xf32>
    %116 = arith.addf %110, %115 : vector<8x100xf32>
    %c6 = arith.constant 6 : index
    %c0_98 = arith.constant 0 : index
    %c0_99 = arith.constant 0 : index
    %117 = vector.load %arg6[%c6, %c0_98, %c0_99] : memref<9x8x8xbf16, #tpu.memory_space<vmem>>, vector<1x8x8xbf16>
    %118 = vector.shape_cast %117 : vector<1x8x8xbf16> to vector<8x8xbf16>
    %c0_100 = arith.constant 0 : index
    %c0_101 = arith.constant 0 : index
    %c20 = arith.constant 20 : index
    %119 = vector.load %arg1[%c0_100, %c0_101, %c20] : memref<2x8x122xbf16, #tpu.memory_space<vmem>>, vector<1x8x100xbf16>
    %120 = vector.shape_cast %119 : vector<1x8x100xbf16> to vector<8x100xbf16>
    %cst_102 = arith.constant dense<0.000000e+00> : vector<8x100xf32>
    %121 = tpu.matmul %118, %120, %cst_102 {dimension_numbers = #tpu.dot_dimension_numbers<[1], [0], [0], [1], [0, 0, 1, 1], [], []>} : vector<8x8xbf16>, vector<8x100xbf16>, vector<8x100xf32> -> vector<8x100xf32>
    %122 = arith.addf %116, %121 : vector<8x100xf32>
    %c7 = arith.constant 7 : index
    %c0_103 = arith.constant 0 : index
    %c0_104 = arith.constant 0 : index
    %123 = vector.load %arg6[%c7, %c0_103, %c0_104] : memref<9x8x8xbf16, #tpu.memory_space<vmem>>, vector<1x8x8xbf16>
    %124 = vector.shape_cast %123 : vector<1x8x8xbf16> to vector<8x8xbf16>
    %c0_105 = arith.constant 0 : index
    %c0_106 = arith.constant 0 : index
    %c21 = arith.constant 21 : index
    %125 = vector.load %arg1[%c0_105, %c0_106, %c21] : memref<2x8x122xbf16, #tpu.memory_space<vmem>>, vector<1x8x100xbf16>
    %126 = vector.shape_cast %125 : vector<1x8x100xbf16> to vector<8x100xbf16>
    %cst_107 = arith.constant dense<0.000000e+00> : vector<8x100xf32>
    %127 = tpu.matmul %124, %126, %cst_107 {dimension_numbers = #tpu.dot_dimension_numbers<[1], [0], [0], [1], [0, 0, 1, 1], [], []>} : vector<8x8xbf16>, vector<8x100xbf16>, vector<8x100xf32> -> vector<8x100xf32>
    %128 = arith.addf %122, %127 : vector<8x100xf32>
    %c8 = arith.constant 8 : index
    %c0_108 = arith.constant 0 : index
    %c0_109 = arith.constant 0 : index
    %129 = vector.load %arg6[%c8, %c0_108, %c0_109] : memref<9x8x8xbf16, #tpu.memory_space<vmem>>, vector<1x8x8xbf16>
    %130 = vector.shape_cast %129 : vector<1x8x8xbf16> to vector<8x8xbf16>
    %c0_110 = arith.constant 0 : index
    %c0_111 = arith.constant 0 : index
    %c22 = arith.constant 22 : index
    %131 = vector.load %arg1[%c0_110, %c0_111, %c22] : memref<2x8x122xbf16, #tpu.memory_space<vmem>>, vector<1x8x100xbf16>
    %132 = vector.shape_cast %131 : vector<1x8x100xbf16> to vector<8x100xbf16>
    %cst_112 = arith.constant dense<0.000000e+00> : vector<8x100xf32>
    %133 = tpu.matmul %130, %132, %cst_112 {dimension_numbers = #tpu.dot_dimension_numbers<[1], [0], [0], [1], [0, 0, 1, 1], [], []>} : vector<8x8xbf16>, vector<8x100xbf16>, vector<8x100xf32> -> vector<8x100xf32>
    %134 = arith.addf %128, %133 : vector<8x100xf32>
    %cst_113 = arith.constant 0.000000e+00 : f32
    %135 = vector.broadcast %cst_113 : f32 to vector<8x100xf32>
    %c0_114 = arith.constant 0 : index
    %c0_115 = arith.constant 0 : index
    %c0_116 = arith.constant 0 : index
    %136 = vector.load %arg7[%c0_114, %c0_115, %c0_116] : memref<9x8x8xbf16, #tpu.memory_space<vmem>>, vector<1x8x8xbf16>
    %137 = vector.shape_cast %136 : vector<1x8x8xbf16> to vector<8x8xbf16>
    %c0_117 = arith.constant 0 : index
    %c0_118 = arith.constant 0 : index
    %c0_119 = arith.constant 0 : index
    %138 = vector.load %arg14[%c0_117, %c0_118, %c0_119] : memref<2x8x122xbf16, #tpu.memory_space<vmem>>, vector<1x8x100xbf16>
    %139 = vector.shape_cast %138 : vector<1x8x100xbf16> to vector<8x100xbf16>
    %cst_120 = arith.constant dense<0.000000e+00> : vector<8x100xf32>
    %140 = tpu.matmul %137, %139, %cst_120 {dimension_numbers = #tpu.dot_dimension_numbers<[1], [0], [0], [1], [0, 0, 1, 1], [], []>} : vector<8x8xbf16>, vector<8x100xbf16>, vector<8x100xf32> -> vector<8x100xf32>
    %141 = arith.addf %135, %140 : vector<8x100xf32>
    %c1_121 = arith.constant 1 : index
    %c0_122 = arith.constant 0 : index
    %c0_123 = arith.constant 0 : index
    %142 = vector.load %arg7[%c1_121, %c0_122, %c0_123] : memref<9x8x8xbf16, #tpu.memory_space<vmem>>, vector<1x8x8xbf16>
    %143 = vector.shape_cast %142 : vector<1x8x8xbf16> to vector<8x8xbf16>
    %c0_124 = arith.constant 0 : index
    %c0_125 = arith.constant 0 : index
    %c1_126 = arith.constant 1 : index
    %144 = vector.load %arg14[%c0_124, %c0_125, %c1_126] : memref<2x8x122xbf16, #tpu.memory_space<vmem>>, vector<1x8x100xbf16>
    %145 = vector.shape_cast %144 : vector<1x8x100xbf16> to vector<8x100xbf16>
    %cst_127 = arith.constant dense<0.000000e+00> : vector<8x100xf32>
    %146 = tpu.matmul %143, %145, %cst_127 {dimension_numbers = #tpu.dot_dimension_numbers<[1], [0], [0], [1], [0, 0, 1, 1], [], []>} : vector<8x8xbf16>, vector<8x100xbf16>, vector<8x100xf32> -> vector<8x100xf32>
    %147 = arith.addf %141, %146 : vector<8x100xf32>
    %c2_128 = arith.constant 2 : index
    %c0_129 = arith.constant 0 : index
    %c0_130 = arith.constant 0 : index
    %148 = vector.load %arg7[%c2_128, %c0_129, %c0_130] : memref<9x8x8xbf16, #tpu.memory_space<vmem>>, vector<1x8x8xbf16>
    %149 = vector.shape_cast %148 : vector<1x8x8xbf16> to vector<8x8xbf16>
    %c0_131 = arith.constant 0 : index
    %c0_132 = arith.constant 0 : index
    %c2_133 = arith.constant 2 : index
    %150 = vector.load %arg14[%c0_131, %c0_132, %c2_133] : memref<2x8x122xbf16, #tpu.memory_space<vmem>>, vector<1x8x100xbf16>
    %151 = vector.shape_cast %150 : vector<1x8x100xbf16> to vector<8x100xbf16>
    %cst_134 = arith.constant dense<0.000000e+00> : vector<8x100xf32>
    %152 = tpu.matmul %149, %151, %cst_134 {dimension_numbers = #tpu.dot_dimension_numbers<[1], [0], [0], [1], [0, 0, 1, 1], [], []>} : vector<8x8xbf16>, vector<8x100xbf16>, vector<8x100xf32> -> vector<8x100xf32>
    %153 = arith.addf %147, %152 : vector<8x100xf32>
    %c3_135 = arith.constant 3 : index
    %c0_136 = arith.constant 0 : index
    %c0_137 = arith.constant 0 : index
    %154 = vector.load %arg7[%c3_135, %c0_136, %c0_137] : memref<9x8x8xbf16, #tpu.memory_space<vmem>>, vector<1x8x8xbf16>
    %155 = vector.shape_cast %154 : vector<1x8x8xbf16> to vector<8x8xbf16>
    %c0_138 = arith.constant 0 : index
    %c0_139 = arith.constant 0 : index
    %c10_140 = arith.constant 10 : index
    %156 = vector.load %arg14[%c0_138, %c0_139, %c10_140] : memref<2x8x122xbf16, #tpu.memory_space<vmem>>, vector<1x8x100xbf16>
    %157 = vector.shape_cast %156 : vector<1x8x100xbf16> to vector<8x100xbf16>
    %cst_141 = arith.constant dense<0.000000e+00> : vector<8x100xf32>
    %158 = tpu.matmul %155, %157, %cst_141 {dimension_numbers = #tpu.dot_dimension_numbers<[1], [0], [0], [1], [0, 0, 1, 1], [], []>} : vector<8x8xbf16>, vector<8x100xbf16>, vector<8x100xf32> -> vector<8x100xf32>
    %159 = arith.addf %153, %158 : vector<8x100xf32>
    %c4_142 = arith.constant 4 : index
    %c0_143 = arith.constant 0 : index
    %c0_144 = arith.constant 0 : index
    %160 = vector.load %arg7[%c4_142, %c0_143, %c0_144] : memref<9x8x8xbf16, #tpu.memory_space<vmem>>, vector<1x8x8xbf16>
    %161 = vector.shape_cast %160 : vector<1x8x8xbf16> to vector<8x8xbf16>
    %c0_145 = arith.constant 0 : index
    %c0_146 = arith.constant 0 : index
    %c11_147 = arith.constant 11 : index
    %162 = vector.load %arg14[%c0_145, %c0_146, %c11_147] : memref<2x8x122xbf16, #tpu.memory_space<vmem>>, vector<1x8x100xbf16>
    %163 = vector.shape_cast %162 : vector<1x8x100xbf16> to vector<8x100xbf16>
    %cst_148 = arith.constant dense<0.000000e+00> : vector<8x100xf32>
    %164 = tpu.matmul %161, %163, %cst_148 {dimension_numbers = #tpu.dot_dimension_numbers<[1], [0], [0], [1], [0, 0, 1, 1], [], []>} : vector<8x8xbf16>, vector<8x100xbf16>, vector<8x100xf32> -> vector<8x100xf32>
    %165 = arith.addf %159, %164 : vector<8x100xf32>
    %c5_149 = arith.constant 5 : index
    %c0_150 = arith.constant 0 : index
    %c0_151 = arith.constant 0 : index
    %166 = vector.load %arg7[%c5_149, %c0_150, %c0_151] : memref<9x8x8xbf16, #tpu.memory_space<vmem>>, vector<1x8x8xbf16>
    %167 = vector.shape_cast %166 : vector<1x8x8xbf16> to vector<8x8xbf16>
    %c0_152 = arith.constant 0 : index
    %c0_153 = arith.constant 0 : index
    %c12_154 = arith.constant 12 : index
    %168 = vector.load %arg14[%c0_152, %c0_153, %c12_154] : memref<2x8x122xbf16, #tpu.memory_space<vmem>>, vector<1x8x100xbf16>
    %169 = vector.shape_cast %168 : vector<1x8x100xbf16> to vector<8x100xbf16>
    %cst_155 = arith.constant dense<0.000000e+00> : vector<8x100xf32>
    %170 = tpu.matmul %167, %169, %cst_155 {dimension_numbers = #tpu.dot_dimension_numbers<[1], [0], [0], [1], [0, 0, 1, 1], [], []>} : vector<8x8xbf16>, vector<8x100xbf16>, vector<8x100xf32> -> vector<8x100xf32>
    %171 = arith.addf %165, %170 : vector<8x100xf32>
    %c6_156 = arith.constant 6 : index
    %c0_157 = arith.constant 0 : index
    %c0_158 = arith.constant 0 : index
    %172 = vector.load %arg7[%c6_156, %c0_157, %c0_158] : memref<9x8x8xbf16, #tpu.memory_space<vmem>>, vector<1x8x8xbf16>
    %173 = vector.shape_cast %172 : vector<1x8x8xbf16> to vector<8x8xbf16>
    %c0_159 = arith.constant 0 : index
    %c0_160 = arith.constant 0 : index
    %c20_161 = arith.constant 20 : index
    %174 = vector.load %arg14[%c0_159, %c0_160, %c20_161] : memref<2x8x122xbf16, #tpu.memory_space<vmem>>, vector<1x8x100xbf16>
    %175 = vector.shape_cast %174 : vector<1x8x100xbf16> to vector<8x100xbf16>
    %cst_162 = arith.constant dense<0.000000e+00> : vector<8x100xf32>
    %176 = tpu.matmul %173, %175, %cst_162 {dimension_numbers = #tpu.dot_dimension_numbers<[1], [0], [0], [1], [0, 0, 1, 1], [], []>} : vector<8x8xbf16>, vector<8x100xbf16>, vector<8x100xf32> -> vector<8x100xf32>
    %177 = arith.addf %171, %176 : vector<8x100xf32>
    %c7_163 = arith.constant 7 : index
    %c0_164 = arith.constant 0 : index
    %c0_165 = arith.constant 0 : index
    %178 = vector.load %arg7[%c7_163, %c0_164, %c0_165] : memref<9x8x8xbf16, #tpu.memory_space<vmem>>, vector<1x8x8xbf16>
    %179 = vector.shape_cast %178 : vector<1x8x8xbf16> to vector<8x8xbf16>
    %c0_166 = arith.constant 0 : index
    %c0_167 = arith.constant 0 : index
    %c21_168 = arith.constant 21 : index
    %180 = vector.load %arg14[%c0_166, %c0_167, %c21_168] : memref<2x8x122xbf16, #tpu.memory_space<vmem>>, vector<1x8x100xbf16>
    %181 = vector.shape_cast %180 : vector<1x8x100xbf16> to vector<8x100xbf16>
    %cst_169 = arith.constant dense<0.000000e+00> : vector<8x100xf32>
    %182 = tpu.matmul %179, %181, %cst_169 {dimension_numbers = #tpu.dot_dimension_numbers<[1], [0], [0], [1], [0, 0, 1, 1], [], []>} : vector<8x8xbf16>, vector<8x100xbf16>, vector<8x100xf32> -> vector<8x100xf32>
    %183 = arith.addf %177, %182 : vector<8x100xf32>
    %c8_170 = arith.constant 8 : index
    %c0_171 = arith.constant 0 : index
    %c0_172 = arith.constant 0 : index
    %184 = vector.load %arg7[%c8_170, %c0_171, %c0_172] : memref<9x8x8xbf16, #tpu.memory_space<vmem>>, vector<1x8x8xbf16>
    %185 = vector.shape_cast %184 : vector<1x8x8xbf16> to vector<8x8xbf16>
    %c0_173 = arith.constant 0 : index
    %c0_174 = arith.constant 0 : index
    %c22_175 = arith.constant 22 : index
    %186 = vector.load %arg14[%c0_173, %c0_174, %c22_175] : memref<2x8x122xbf16, #tpu.memory_space<vmem>>, vector<1x8x100xbf16>
    %187 = vector.shape_cast %186 : vector<1x8x100xbf16> to vector<8x100xbf16>
    %cst_176 = arith.constant dense<0.000000e+00> : vector<8x100xf32>
    %188 = tpu.matmul %185, %187, %cst_176 {dimension_numbers = #tpu.dot_dimension_numbers<[1], [0], [0], [1], [0, 0, 1, 1], [], []>} : vector<8x8xbf16>, vector<8x100xbf16>, vector<8x100xf32> -> vector<8x100xf32>
    %189 = arith.addf %183, %188 : vector<8x100xf32>
    %190 = arith.addf %134, %189 : vector<8x100xf32>
    %cst_177 = arith.constant 0.000000e+00 : f32
    %191 = vector.broadcast %cst_177 : f32 to vector<8x100xf32>
    %c0_178 = arith.constant 0 : index
    %c0_179 = arith.constant 0 : index
    %c0_180 = arith.constant 0 : index
    %192 = vector.load %arg6[%c0_178, %c0_179, %c0_180] : memref<9x8x8xbf16, #tpu.memory_space<vmem>>, vector<1x8x8xbf16>
    %193 = vector.shape_cast %192 : vector<1x8x8xbf16> to vector<8x8xbf16>
    %c1_181 = arith.constant 1 : index
    %c0_182 = arith.constant 0 : index
    %c0_183 = arith.constant 0 : index
    %194 = vector.load %arg1[%c1_181, %c0_182, %c0_183] : memref<2x8x122xbf16, #tpu.memory_space<vmem>>, vector<1x8x100xbf16>
    %195 = vector.shape_cast %194 : vector<1x8x100xbf16> to vector<8x100xbf16>
    %cst_184 = arith.constant dense<0.000000e+00> : vector<8x100xf32>
    %196 = tpu.matmul %193, %195, %cst_184 {dimension_numbers = #tpu.dot_dimension_numbers<[1], [0], [0], [1], [0, 0, 1, 1], [], []>} : vector<8x8xbf16>, vector<8x100xbf16>, vector<8x100xf32> -> vector<8x100xf32>
    %197 = arith.addf %191, %196 : vector<8x100xf32>
    %c1_185 = arith.constant 1 : index
    %c0_186 = arith.constant 0 : index
    %c0_187 = arith.constant 0 : index
    %198 = vector.load %arg6[%c1_185, %c0_186, %c0_187] : memref<9x8x8xbf16, #tpu.memory_space<vmem>>, vector<1x8x8xbf16>
    %199 = vector.shape_cast %198 : vector<1x8x8xbf16> to vector<8x8xbf16>
    %c1_188 = arith.constant 1 : index
    %c0_189 = arith.constant 0 : index
    %c1_190 = arith.constant 1 : index
    %200 = vector.load %arg1[%c1_188, %c0_189, %c1_190] : memref<2x8x122xbf16, #tpu.memory_space<vmem>>, vector<1x8x100xbf16>
    %201 = vector.shape_cast %200 : vector<1x8x100xbf16> to vector<8x100xbf16>
    %cst_191 = arith.constant dense<0.000000e+00> : vector<8x100xf32>
    %202 = tpu.matmul %199, %201, %cst_191 {dimension_numbers = #tpu.dot_dimension_numbers<[1], [0], [0], [1], [0, 0, 1, 1], [], []>} : vector<8x8xbf16>, vector<8x100xbf16>, vector<8x100xf32> -> vector<8x100xf32>
    %203 = arith.addf %197, %202 : vector<8x100xf32>
    %c2_192 = arith.constant 2 : index
    %c0_193 = arith.constant 0 : index
    %c0_194 = arith.constant 0 : index
    %204 = vector.load %arg6[%c2_192, %c0_193, %c0_194] : memref<9x8x8xbf16, #tpu.memory_space<vmem>>, vector<1x8x8xbf16>
    %205 = vector.shape_cast %204 : vector<1x8x8xbf16> to vector<8x8xbf16>
    %c1_195 = arith.constant 1 : index
    %c0_196 = arith.constant 0 : index
    %c2_197 = arith.constant 2 : index
    %206 = vector.load %arg1[%c1_195, %c0_196, %c2_197] : memref<2x8x122xbf16, #tpu.memory_space<vmem>>, vector<1x8x100xbf16>
    %207 = vector.shape_cast %206 : vector<1x8x100xbf16> to vector<8x100xbf16>
    %cst_198 = arith.constant dense<0.000000e+00> : vector<8x100xf32>
    %208 = tpu.matmul %205, %207, %cst_198 {dimension_numbers = #tpu.dot_dimension_numbers<[1], [0], [0], [1], [0, 0, 1, 1], [], []>} : vector<8x8xbf16>, vector<8x100xbf16>, vector<8x100xf32> -> vector<8x100xf32>
    %209 = arith.addf %203, %208 : vector<8x100xf32>
    %c3_199 = arith.constant 3 : index
    %c0_200 = arith.constant 0 : index
    %c0_201 = arith.constant 0 : index
    %210 = vector.load %arg6[%c3_199, %c0_200, %c0_201] : memref<9x8x8xbf16, #tpu.memory_space<vmem>>, vector<1x8x8xbf16>
    %211 = vector.shape_cast %210 : vector<1x8x8xbf16> to vector<8x8xbf16>
    %c1_202 = arith.constant 1 : index
    %c0_203 = arith.constant 0 : index
    %c10_204 = arith.constant 10 : index
    %212 = vector.load %arg1[%c1_202, %c0_203, %c10_204] : memref<2x8x122xbf16, #tpu.memory_space<vmem>>, vector<1x8x100xbf16>
    %213 = vector.shape_cast %212 : vector<1x8x100xbf16> to vector<8x100xbf16>
    %cst_205 = arith.constant dense<0.000000e+00> : vector<8x100xf32>
    %214 = tpu.matmul %211, %213, %cst_205 {dimension_numbers = #tpu.dot_dimension_numbers<[1], [0], [0], [1], [0, 0, 1, 1], [], []>} : vector<8x8xbf16>, vector<8x100xbf16>, vector<8x100xf32> -> vector<8x100xf32>
    %215 = arith.addf %209, %214 : vector<8x100xf32>
    %c4_206 = arith.constant 4 : index
    %c0_207 = arith.constant 0 : index
    %c0_208 = arith.constant 0 : index
    %216 = vector.load %arg6[%c4_206, %c0_207, %c0_208] : memref<9x8x8xbf16, #tpu.memory_space<vmem>>, vector<1x8x8xbf16>
    %217 = vector.shape_cast %216 : vector<1x8x8xbf16> to vector<8x8xbf16>
    %c1_209 = arith.constant 1 : index
    %c0_210 = arith.constant 0 : index
    %c11_211 = arith.constant 11 : index
    %218 = vector.load %arg1[%c1_209, %c0_210, %c11_211] : memref<2x8x122xbf16, #tpu.memory_space<vmem>>, vector<1x8x100xbf16>
    %219 = vector.shape_cast %218 : vector<1x8x100xbf16> to vector<8x100xbf16>
    %cst_212 = arith.constant dense<0.000000e+00> : vector<8x100xf32>
    %220 = tpu.matmul %217, %219, %cst_212 {dimension_numbers = #tpu.dot_dimension_numbers<[1], [0], [0], [1], [0, 0, 1, 1], [], []>} : vector<8x8xbf16>, vector<8x100xbf16>, vector<8x100xf32> -> vector<8x100xf32>
    %221 = arith.addf %215, %220 : vector<8x100xf32>
    %c5_213 = arith.constant 5 : index
    %c0_214 = arith.constant 0 : index
    %c0_215 = arith.constant 0 : index
    %222 = vector.load %arg6[%c5_213, %c0_214, %c0_215] : memref<9x8x8xbf16, #tpu.memory_space<vmem>>, vector<1x8x8xbf16>
    %223 = vector.shape_cast %222 : vector<1x8x8xbf16> to vector<8x8xbf16>
    %c1_216 = arith.constant 1 : index
    %c0_217 = arith.constant 0 : index
    %c12_218 = arith.constant 12 : index
    %224 = vector.load %arg1[%c1_216, %c0_217, %c12_218] : memref<2x8x122xbf16, #tpu.memory_space<vmem>>, vector<1x8x100xbf16>
    %225 = vector.shape_cast %224 : vector<1x8x100xbf16> to vector<8x100xbf16>
    %cst_219 = arith.constant dense<0.000000e+00> : vector<8x100xf32>
    %226 = tpu.matmul %223, %225, %cst_219 {dimension_numbers = #tpu.dot_dimension_numbers<[1], [0], [0], [1], [0, 0, 1, 1], [], []>} : vector<8x8xbf16>, vector<8x100xbf16>, vector<8x100xf32> -> vector<8x100xf32>
    %227 = arith.addf %221, %226 : vector<8x100xf32>
    %c6_220 = arith.constant 6 : index
    %c0_221 = arith.constant 0 : index
    %c0_222 = arith.constant 0 : index
    %228 = vector.load %arg6[%c6_220, %c0_221, %c0_222] : memref<9x8x8xbf16, #tpu.memory_space<vmem>>, vector<1x8x8xbf16>
    %229 = vector.shape_cast %228 : vector<1x8x8xbf16> to vector<8x8xbf16>
    %c1_223 = arith.constant 1 : index
    %c0_224 = arith.constant 0 : index
    %c20_225 = arith.constant 20 : index
    %230 = vector.load %arg1[%c1_223, %c0_224, %c20_225] : memref<2x8x122xbf16, #tpu.memory_space<vmem>>, vector<1x8x100xbf16>
    %231 = vector.shape_cast %230 : vector<1x8x100xbf16> to vector<8x100xbf16>
    %cst_226 = arith.constant dense<0.000000e+00> : vector<8x100xf32>
    %232 = tpu.matmul %229, %231, %cst_226 {dimension_numbers = #tpu.dot_dimension_numbers<[1], [0], [0], [1], [0, 0, 1, 1], [], []>} : vector<8x8xbf16>, vector<8x100xbf16>, vector<8x100xf32> -> vector<8x100xf32>
    %233 = arith.addf %227, %232 : vector<8x100xf32>
    %c7_227 = arith.constant 7 : index
    %c0_228 = arith.constant 0 : index
    %c0_229 = arith.constant 0 : index
    %234 = vector.load %arg6[%c7_227, %c0_228, %c0_229] : memref<9x8x8xbf16, #tpu.memory_space<vmem>>, vector<1x8x8xbf16>
    %235 = vector.shape_cast %234 : vector<1x8x8xbf16> to vector<8x8xbf16>
    %c1_230 = arith.constant 1 : index
    %c0_231 = arith.constant 0 : index
    %c21_232 = arith.constant 21 : index
    %236 = vector.load %arg1[%c1_230, %c0_231, %c21_232] : memref<2x8x122xbf16, #tpu.memory_space<vmem>>, vector<1x8x100xbf16>
    %237 = vector.shape_cast %236 : vector<1x8x100xbf16> to vector<8x100xbf16>
    %cst_233 = arith.constant dense<0.000000e+00> : vector<8x100xf32>
    %238 = tpu.matmul %235, %237, %cst_233 {dimension_numbers = #tpu.dot_dimension_numbers<[1], [0], [0], [1], [0, 0, 1, 1], [], []>} : vector<8x8xbf16>, vector<8x100xbf16>, vector<8x100xf32> -> vector<8x100xf32>
    %239 = arith.addf %233, %238 : vector<8x100xf32>
    %c8_234 = arith.constant 8 : index
    %c0_235 = arith.constant 0 : index
    %c0_236 = arith.constant 0 : index
    %240 = vector.load %arg6[%c8_234, %c0_235, %c0_236] : memref<9x8x8xbf16, #tpu.memory_space<vmem>>, vector<1x8x8xbf16>
    %241 = vector.shape_cast %240 : vector<1x8x8xbf16> to vector<8x8xbf16>
    %c1_237 = arith.constant 1 : index
    %c0_238 = arith.constant 0 : index
    %c22_239 = arith.constant 22 : index
    %242 = vector.load %arg1[%c1_237, %c0_238, %c22_239] : memref<2x8x122xbf16, #tpu.memory_space<vmem>>, vector<1x8x100xbf16>
    %243 = vector.shape_cast %242 : vector<1x8x100xbf16> to vector<8x100xbf16>
    %cst_240 = arith.constant dense<0.000000e+00> : vector<8x100xf32>
    %244 = tpu.matmul %241, %243, %cst_240 {dimension_numbers = #tpu.dot_dimension_numbers<[1], [0], [0], [1], [0, 0, 1, 1], [], []>} : vector<8x8xbf16>, vector<8x100xbf16>, vector<8x100xf32> -> vector<8x100xf32>
    %245 = arith.addf %239, %244 : vector<8x100xf32>
    %cst_241 = arith.constant 0.000000e+00 : f32
    %246 = vector.broadcast %cst_241 : f32 to vector<8x100xf32>
    %c0_242 = arith.constant 0 : index
    %c0_243 = arith.constant 0 : index
    %c0_244 = arith.constant 0 : index
    %247 = vector.load %arg7[%c0_242, %c0_243, %c0_244] : memref<9x8x8xbf16, #tpu.memory_space<vmem>>, vector<1x8x8xbf16>
    %248 = vector.shape_cast %247 : vector<1x8x8xbf16> to vector<8x8xbf16>
    %c1_245 = arith.constant 1 : index
    %c0_246 = arith.constant 0 : index
    %c0_247 = arith.constant 0 : index
    %249 = vector.load %arg14[%c1_245, %c0_246, %c0_247] : memref<2x8x122xbf16, #tpu.memory_space<vmem>>, vector<1x8x100xbf16>
    %250 = vector.shape_cast %249 : vector<1x8x100xbf16> to vector<8x100xbf16>
    %cst_248 = arith.constant dense<0.000000e+00> : vector<8x100xf32>
    %251 = tpu.matmul %248, %250, %cst_248 {dimension_numbers = #tpu.dot_dimension_numbers<[1], [0], [0], [1], [0, 0, 1, 1], [], []>} : vector<8x8xbf16>, vector<8x100xbf16>, vector<8x100xf32> -> vector<8x100xf32>
    %252 = arith.addf %246, %251 : vector<8x100xf32>
    %c1_249 = arith.constant 1 : index
    %c0_250 = arith.constant 0 : index
    %c0_251 = arith.constant 0 : index
    %253 = vector.load %arg7[%c1_249, %c0_250, %c0_251] : memref<9x8x8xbf16, #tpu.memory_space<vmem>>, vector<1x8x8xbf16>
    %254 = vector.shape_cast %253 : vector<1x8x8xbf16> to vector<8x8xbf16>
    %c1_252 = arith.constant 1 : index
    %c0_253 = arith.constant 0 : index
    %c1_254 = arith.constant 1 : index
    %255 = vector.load %arg14[%c1_252, %c0_253, %c1_254] : memref<2x8x122xbf16, #tpu.memory_space<vmem>>, vector<1x8x100xbf16>
    %256 = vector.shape_cast %255 : vector<1x8x100xbf16> to vector<8x100xbf16>
    %cst_255 = arith.constant dense<0.000000e+00> : vector<8x100xf32>
    %257 = tpu.matmul %254, %256, %cst_255 {dimension_numbers = #tpu.dot_dimension_numbers<[1], [0], [0], [1], [0, 0, 1, 1], [], []>} : vector<8x8xbf16>, vector<8x100xbf16>, vector<8x100xf32> -> vector<8x100xf32>
    %258 = arith.addf %252, %257 : vector<8x100xf32>
    %c2_256 = arith.constant 2 : index
    %c0_257 = arith.constant 0 : index
    %c0_258 = arith.constant 0 : index
    %259 = vector.load %arg7[%c2_256, %c0_257, %c0_258] : memref<9x8x8xbf16, #tpu.memory_space<vmem>>, vector<1x8x8xbf16>
    %260 = vector.shape_cast %259 : vector<1x8x8xbf16> to vector<8x8xbf16>
    %c1_259 = arith.constant 1 : index
    %c0_260 = arith.constant 0 : index
    %c2_261 = arith.constant 2 : index
    %261 = vector.load %arg14[%c1_259, %c0_260, %c2_261] : memref<2x8x122xbf16, #tpu.memory_space<vmem>>, vector<1x8x100xbf16>
    %262 = vector.shape_cast %261 : vector<1x8x100xbf16> to vector<8x100xbf16>
    %cst_262 = arith.constant dense<0.000000e+00> : vector<8x100xf32>
    %263 = tpu.matmul %260, %262, %cst_262 {dimension_numbers = #tpu.dot_dimension_numbers<[1], [0], [0], [1], [0, 0, 1, 1], [], []>} : vector<8x8xbf16>, vector<8x100xbf16>, vector<8x100xf32> -> vector<8x100xf32>
    %264 = arith.addf %258, %263 : vector<8x100xf32>
    %c3_263 = arith.constant 3 : index
    %c0_264 = arith.constant 0 : index
    %c0_265 = arith.constant 0 : index
    %265 = vector.load %arg7[%c3_263, %c0_264, %c0_265] : memref<9x8x8xbf16, #tpu.memory_space<vmem>>, vector<1x8x8xbf16>
    %266 = vector.shape_cast %265 : vector<1x8x8xbf16> to vector<8x8xbf16>
    %c1_266 = arith.constant 1 : index
    %c0_267 = arith.constant 0 : index
    %c10_268 = arith.constant 10 : index
    %267 = vector.load %arg14[%c1_266, %c0_267, %c10_268] : memref<2x8x122xbf16, #tpu.memory_space<vmem>>, vector<1x8x100xbf16>
    %268 = vector.shape_cast %267 : vector<1x8x100xbf16> to vector<8x100xbf16>
    %cst_269 = arith.constant dense<0.000000e+00> : vector<8x100xf32>
    %269 = tpu.matmul %266, %268, %cst_269 {dimension_numbers = #tpu.dot_dimension_numbers<[1], [0], [0], [1], [0, 0, 1, 1], [], []>} : vector<8x8xbf16>, vector<8x100xbf16>, vector<8x100xf32> -> vector<8x100xf32>
    %270 = arith.addf %264, %269 : vector<8x100xf32>
    %c4_270 = arith.constant 4 : index
    %c0_271 = arith.constant 0 : index
    %c0_272 = arith.constant 0 : index
    %271 = vector.load %arg7[%c4_270, %c0_271, %c0_272] : memref<9x8x8xbf16, #tpu.memory_space<vmem>>, vector<1x8x8xbf16>
    %272 = vector.shape_cast %271 : vector<1x8x8xbf16> to vector<8x8xbf16>
    %c1_273 = arith.constant 1 : index
    %c0_274 = arith.constant 0 : index
    %c11_275 = arith.constant 11 : index
    %273 = vector.load %arg14[%c1_273, %c0_274, %c11_275] : memref<2x8x122xbf16, #tpu.memory_space<vmem>>, vector<1x8x100xbf16>
    %274 = vector.shape_cast %273 : vector<1x8x100xbf16> to vector<8x100xbf16>
    %cst_276 = arith.constant dense<0.000000e+00> : vector<8x100xf32>
    %275 = tpu.matmul %272, %274, %cst_276 {dimension_numbers = #tpu.dot_dimension_numbers<[1], [0], [0], [1], [0, 0, 1, 1], [], []>} : vector<8x8xbf16>, vector<8x100xbf16>, vector<8x100xf32> -> vector<8x100xf32>
    %276 = arith.addf %270, %275 : vector<8x100xf32>
    %c5_277 = arith.constant 5 : index
    %c0_278 = arith.constant 0 : index
    %c0_279 = arith.constant 0 : index
    %277 = vector.load %arg7[%c5_277, %c0_278, %c0_279] : memref<9x8x8xbf16, #tpu.memory_space<vmem>>, vector<1x8x8xbf16>
    %278 = vector.shape_cast %277 : vector<1x8x8xbf16> to vector<8x8xbf16>
    %c1_280 = arith.constant 1 : index
    %c0_281 = arith.constant 0 : index
    %c12_282 = arith.constant 12 : index
    %279 = vector.load %arg14[%c1_280, %c0_281, %c12_282] : memref<2x8x122xbf16, #tpu.memory_space<vmem>>, vector<1x8x100xbf16>
    %280 = vector.shape_cast %279 : vector<1x8x100xbf16> to vector<8x100xbf16>
    %cst_283 = arith.constant dense<0.000000e+00> : vector<8x100xf32>
    %281 = tpu.matmul %278, %280, %cst_283 {dimension_numbers = #tpu.dot_dimension_numbers<[1], [0], [0], [1], [0, 0, 1, 1], [], []>} : vector<8x8xbf16>, vector<8x100xbf16>, vector<8x100xf32> -> vector<8x100xf32>
    %282 = arith.addf %276, %281 : vector<8x100xf32>
    %c6_284 = arith.constant 6 : index
    %c0_285 = arith.constant 0 : index
    %c0_286 = arith.constant 0 : index
    %283 = vector.load %arg7[%c6_284, %c0_285, %c0_286] : memref<9x8x8xbf16, #tpu.memory_space<vmem>>, vector<1x8x8xbf16>
    %284 = vector.shape_cast %283 : vector<1x8x8xbf16> to vector<8x8xbf16>
    %c1_287 = arith.constant 1 : index
    %c0_288 = arith.constant 0 : index
    %c20_289 = arith.constant 20 : index
    %285 = vector.load %arg14[%c1_287, %c0_288, %c20_289] : memref<2x8x122xbf16, #tpu.memory_space<vmem>>, vector<1x8x100xbf16>
    %286 = vector.shape_cast %285 : vector<1x8x100xbf16> to vector<8x100xbf16>
    %cst_290 = arith.constant dense<0.000000e+00> : vector<8x100xf32>
    %287 = tpu.matmul %284, %286, %cst_290 {dimension_numbers = #tpu.dot_dimension_numbers<[1], [0], [0], [1], [0, 0, 1, 1], [], []>} : vector<8x8xbf16>, vector<8x100xbf16>, vector<8x100xf32> -> vector<8x100xf32>
    %288 = arith.addf %282, %287 : vector<8x100xf32>
    %c7_291 = arith.constant 7 : index
    %c0_292 = arith.constant 0 : index
    %c0_293 = arith.constant 0 : index
    %289 = vector.load %arg7[%c7_291, %c0_292, %c0_293] : memref<9x8x8xbf16, #tpu.memory_space<vmem>>, vector<1x8x8xbf16>
    %290 = vector.shape_cast %289 : vector<1x8x8xbf16> to vector<8x8xbf16>
    %c1_294 = arith.constant 1 : index
    %c0_295 = arith.constant 0 : index
    %c21_296 = arith.constant 21 : index
    %291 = vector.load %arg14[%c1_294, %c0_295, %c21_296] : memref<2x8x122xbf16, #tpu.memory_space<vmem>>, vector<1x8x100xbf16>
    %292 = vector.shape_cast %291 : vector<1x8x100xbf16> to vector<8x100xbf16>
    %cst_297 = arith.constant dense<0.000000e+00> : vector<8x100xf32>
    %293 = tpu.matmul %290, %292, %cst_297 {dimension_numbers = #tpu.dot_dimension_numbers<[1], [0], [0], [1], [0, 0, 1, 1], [], []>} : vector<8x8xbf16>, vector<8x100xbf16>, vector<8x100xf32> -> vector<8x100xf32>
    %294 = arith.addf %288, %293 : vector<8x100xf32>
    %c8_298 = arith.constant 8 : index
    %c0_299 = arith.constant 0 : index
    %c0_300 = arith.constant 0 : index
    %295 = vector.load %arg7[%c8_298, %c0_299, %c0_300] : memref<9x8x8xbf16, #tpu.memory_space<vmem>>, vector<1x8x8xbf16>
    %296 = vector.shape_cast %295 : vector<1x8x8xbf16> to vector<8x8xbf16>
    %c1_301 = arith.constant 1 : index
    %c0_302 = arith.constant 0 : index
    %c22_303 = arith.constant 22 : index
    %297 = vector.load %arg14[%c1_301, %c0_302, %c22_303] : memref<2x8x122xbf16, #tpu.memory_space<vmem>>, vector<1x8x100xbf16>
    %298 = vector.shape_cast %297 : vector<1x8x100xbf16> to vector<8x100xbf16>
    %cst_304 = arith.constant dense<0.000000e+00> : vector<8x100xf32>
    %299 = tpu.matmul %296, %298, %cst_304 {dimension_numbers = #tpu.dot_dimension_numbers<[1], [0], [0], [1], [0, 0, 1, 1], [], []>} : vector<8x8xbf16>, vector<8x100xbf16>, vector<8x100xf32> -> vector<8x100xf32>
    %300 = arith.addf %294, %299 : vector<8x100xf32>
    %301 = arith.addf %245, %300 : vector<8x100xf32>
    %302 = vector.broadcast %0 : vector<1x100xf32> to vector<8x100xf32>
    %303 = arith.mulf %190, %302 : vector<8x100xf32>
    %cst_305 = arith.constant dense<0.000000e+00> : vector<8xf32>
    %304 = vector.multi_reduction <add>, %303, %cst_305 [1] : vector<8x100xf32> to vector<8xf32>
    %305 = vector.shape_cast %304 : vector<8xf32> to vector<8x1xf32>
    %cst_306 = arith.constant 0.000000e+00 : f32
    %306 = vector.broadcast %cst_306 : f32 to vector<8x1xf32>
    %307 = arith.addf %306, %305 : vector<8x1xf32>
    %308 = vector.broadcast %0 : vector<1x100xf32> to vector<8x100xf32>
    %309 = arith.mulf %301, %308 : vector<8x100xf32>
    %cst_307 = arith.constant dense<0.000000e+00> : vector<8xf32>
    %310 = vector.multi_reduction <add>, %309, %cst_307 [1] : vector<8x100xf32> to vector<8xf32>
    %311 = vector.shape_cast %310 : vector<8xf32> to vector<8x1xf32>
    %312 = arith.addf %307, %311 : vector<8x1xf32>
    %cst_308 = arith.constant 1.280000e+02 : f32
    %313 = vector.broadcast %cst_308 : f32 to vector<8x1xf32>
    %314 = arith.divf %312, %313 : vector<8x1xf32>
    %315 = vector.broadcast %314 : vector<8x1xf32> to vector<8x100xf32>
    %316 = arith.subf %190, %315 : vector<8x100xf32>
    %317 = arith.mulf %316, %316 : vector<8x100xf32>
    %318 = vector.broadcast %0 : vector<1x100xf32> to vector<8x100xf32>
    %319 = arith.mulf %318, %317 : vector<8x100xf32>
    %cst_309 = arith.constant dense<0.000000e+00> : vector<8xf32>
    %320 = vector.multi_reduction <add>, %319, %cst_309 [1] : vector<8x100xf32> to vector<8xf32>
    %321 = vector.shape_cast %320 : vector<8xf32> to vector<8x1xf32>
    %cst_310 = arith.constant 0.000000e+00 : f32
    %322 = vector.broadcast %cst_310 : f32 to vector<8x1xf32>
    %323 = arith.addf %322, %321 : vector<8x1xf32>
    %324 = vector.broadcast %314 : vector<8x1xf32> to vector<8x100xf32>
    %325 = arith.subf %301, %324 : vector<8x100xf32>
    %326 = arith.mulf %325, %325 : vector<8x100xf32>
    %327 = vector.broadcast %0 : vector<1x100xf32> to vector<8x100xf32>
    %328 = arith.mulf %327, %326 : vector<8x100xf32>
    %cst_311 = arith.constant dense<0.000000e+00> : vector<8xf32>
    %329 = vector.multi_reduction <add>, %328, %cst_311 [1] : vector<8x100xf32> to vector<8xf32>
    %330 = vector.shape_cast %329 : vector<8xf32> to vector<8x1xf32>
    %331 = arith.addf %323, %330 : vector<8x1xf32>
    %cst_312 = arith.constant 1.280000e+02 : f32
    %332 = vector.broadcast %cst_312 : f32 to vector<8x1xf32>
    %333 = arith.divf %331, %332 : vector<8x1xf32>
    %c0_313 = arith.constant 0 : index
    %c0_314 = arith.constant 0 : index
    %334 = vector.load %arg8[%c0_313, %c0_314] : memref<8x1xf32, #tpu.memory_space<vmem>>, vector<8x1xf32>
    %cst_315 = arith.constant 9.99999974E-6 : f32
    %335 = vector.broadcast %cst_315 : f32 to vector<8x1xf32>
    %336 = arith.addf %333, %335 : vector<8x1xf32>
    %337 = math.rsqrt %336 : vector<8x1xf32>
    %338 = arith.mulf %334, %337 : vector<8x1xf32>
    %c0_316 = arith.constant 0 : index
    %c0_317 = arith.constant 0 : index
    %339 = vector.load %arg9[%c0_316, %c0_317] : memref<8x1xf32, #tpu.memory_space<vmem>>, vector<8x1xf32>
    %340 = arith.mulf %314, %338 : vector<8x1xf32>
    %341 = arith.subf %339, %340 : vector<8x1xf32>
    %342 = vector.broadcast %338 : vector<8x1xf32> to vector<8x100xf32>
    %343 = arith.mulf %190, %342 : vector<8x100xf32>
    %344 = vector.broadcast %341 : vector<8x1xf32> to vector<8x100xf32>
    %345 = arith.addf %343, %344 : vector<8x100xf32>
    %cst_318 = arith.constant 0.000000e+00 : f32
    %346 = vector.broadcast %cst_318 : f32 to vector<8x100xf32>
    %347 = arith.maximumf %345, %346 : vector<8x100xf32>
    %348 = vector.broadcast %0 : vector<1x100xf32> to vector<8x100xf32>
    %349 = arith.mulf %348, %347 : vector<8x100xf32>
    %350 = vector.broadcast %338 : vector<8x1xf32> to vector<8x100xf32>
    %351 = arith.mulf %301, %350 : vector<8x100xf32>
    %352 = vector.broadcast %341 : vector<8x1xf32> to vector<8x100xf32>
    %353 = arith.addf %351, %352 : vector<8x100xf32>
    %cst_319 = arith.constant 0.000000e+00 : f32
    %354 = vector.broadcast %cst_319 : f32 to vector<8x100xf32>
    %355 = arith.maximumf %353, %354 : vector<8x100xf32>
    %356 = vector.broadcast %0 : vector<1x100xf32> to vector<8x100xf32>
    %357 = arith.mulf %356, %355 : vector<8x100xf32>
    %358 = arith.truncf %349 : vector<8x100xf32> to vector<8x100xbf16>
    %c0_320 = arith.constant 0 : index
    %c0_321 = arith.constant 0 : index
    %c11_322 = arith.constant 11 : index
    %359 = vector.load %arg15[%c0_320, %c0_321, %c11_322] : memref<2x8x122xbf16, #tpu.memory_space<vmem>>, vector<1x8x100xbf16>
    %360 = vector.shape_cast %359 : vector<1x8x100xbf16> to vector<8x100xbf16>
    %361 = vector.shape_cast %358 : vector<8x100xbf16> to vector<1x8x100xbf16>
    tpu.vector_store %arg15[%c0_320, %c0_321, %c11_322], %361 {strides = array<i32>} : memref<2x8x122xbf16, #tpu.memory_space<vmem>>, vector<1x8x100xbf16>,
    %362 = arith.truncf %357 : vector<8x100xf32> to vector<8x100xbf16>
    %c1_323 = arith.constant 1 : index
    %c0_324 = arith.constant 0 : index
    %c11_325 = arith.constant 11 : index
    %363 = vector.load %arg15[%c1_323, %c0_324, %c11_325] : memref<2x8x122xbf16, #tpu.memory_space<vmem>>, vector<1x8x100xbf16>
    %364 = vector.shape_cast %363 : vector<1x8x100xbf16> to vector<8x100xbf16>
    %365 = vector.shape_cast %362 : vector<8x100xbf16> to vector<1x8x100xbf16>
    tpu.vector_store %arg15[%c1_323, %c0_324, %c11_325], %365 {strides = array<i32>} : memref<2x8x122xbf16, #tpu.memory_space<vmem>>, vector<1x8x100xbf16>,
    %cst_326 = arith.constant 0.000000e+00 : f32
    %366 = vector.broadcast %cst_326 : f32 to vector<8x100xf32>
    %c0_327 = arith.constant 0 : index
    %c0_328 = arith.constant 0 : index
    %c0_329 = arith.constant 0 : index
    %367 = vector.load %arg10[%c0_327, %c0_328, %c0_329] : memref<9x8x8xbf16, #tpu.memory_space<vmem>>, vector<1x8x8xbf16>
    %368 = vector.shape_cast %367 : vector<1x8x8xbf16> to vector<8x8xbf16>
    %c0_330 = arith.constant 0 : index
    %c0_331 = arith.constant 0 : index
    %c0_332 = arith.constant 0 : index
    %369 = vector.load %arg15[%c0_330, %c0_331, %c0_332] : memref<2x8x122xbf16, #tpu.memory_space<vmem>>, vector<1x8x100xbf16>
    %370 = vector.shape_cast %369 : vector<1x8x100xbf16> to vector<8x100xbf16>
    %cst_333 = arith.constant dense<0.000000e+00> : vector<8x100xf32>
    %371 = tpu.matmul %368, %370, %cst_333 {dimension_numbers = #tpu.dot_dimension_numbers<[1], [0], [0], [1], [0, 0, 1, 1], [], []>} : vector<8x8xbf16>, vector<8x100xbf16>, vector<8x100xf32> -> vector<8x100xf32>
    %372 = arith.addf %366, %371 : vector<8x100xf32>
    %c1_334 = arith.constant 1 : index
    %c0_335 = arith.constant 0 : index
    %c0_336 = arith.constant 0 : index
    %373 = vector.load %arg10[%c1_334, %c0_335, %c0_336] : memref<9x8x8xbf16, #tpu.memory_space<vmem>>, vector<1x8x8xbf16>
    %374 = vector.shape_cast %373 : vector<1x8x8xbf16> to vector<8x8xbf16>
    %c0_337 = arith.constant 0 : index
    %c0_338 = arith.constant 0 : index
    %c1_339 = arith.constant 1 : index
    %375 = vector.load %arg15[%c0_337, %c0_338, %c1_339] : memref<2x8x122xbf16, #tpu.memory_space<vmem>>, vector<1x8x100xbf16>
    %376 = vector.shape_cast %375 : vector<1x8x100xbf16> to vector<8x100xbf16>
    %cst_340 = arith.constant dense<0.000000e+00> : vector<8x100xf32>
    %377 = tpu.matmul %374, %376, %cst_340 {dimension_numbers = #tpu.dot_dimension_numbers<[1], [0], [0], [1], [0, 0, 1, 1], [], []>} : vector<8x8xbf16>, vector<8x100xbf16>, vector<8x100xf32> -> vector<8x100xf32>
    %378 = arith.addf %372, %377 : vector<8x100xf32>
    %c2_341 = arith.constant 2 : index
    %c0_342 = arith.constant 0 : index
    %c0_343 = arith.constant 0 : index
    %379 = vector.load %arg10[%c2_341, %c0_342, %c0_343] : memref<9x8x8xbf16, #tpu.memory_space<vmem>>, vector<1x8x8xbf16>
    %380 = vector.shape_cast %379 : vector<1x8x8xbf16> to vector<8x8xbf16>
    %c0_344 = arith.constant 0 : index
    %c0_345 = arith.constant 0 : index
    %c2_346 = arith.constant 2 : index
    %381 = vector.load %arg15[%c0_344, %c0_345, %c2_346] : memref<2x8x122xbf16, #tpu.memory_space<vmem>>, vector<1x8x100xbf16>
    %382 = vector.shape_cast %381 : vector<1x8x100xbf16> to vector<8x100xbf16>
    %cst_347 = arith.constant dense<0.000000e+00> : vector<8x100xf32>
    %383 = tpu.matmul %380, %382, %cst_347 {dimension_numbers = #tpu.dot_dimension_numbers<[1], [0], [0], [1], [0, 0, 1, 1], [], []>} : vector<8x8xbf16>, vector<8x100xbf16>, vector<8x100xf32> -> vector<8x100xf32>
    %384 = arith.addf %378, %383 : vector<8x100xf32>
    %c3_348 = arith.constant 3 : index
    %c0_349 = arith.constant 0 : index
    %c0_350 = arith.constant 0 : index
    %385 = vector.load %arg10[%c3_348, %c0_349, %c0_350] : memref<9x8x8xbf16, #tpu.memory_space<vmem>>, vector<1x8x8xbf16>
    %386 = vector.shape_cast %385 : vector<1x8x8xbf16> to vector<8x8xbf16>
    %c0_351 = arith.constant 0 : index
    %c0_352 = arith.constant 0 : index
    %c10_353 = arith.constant 10 : index
    %387 = vector.load %arg15[%c0_351, %c0_352, %c10_353] : memref<2x8x122xbf16, #tpu.memory_space<vmem>>, vector<1x8x100xbf16>
    %388 = vector.shape_cast %387 : vector<1x8x100xbf16> to vector<8x100xbf16>
    %cst_354 = arith.constant dense<0.000000e+00> : vector<8x100xf32>
    %389 = tpu.matmul %386, %388, %cst_354 {dimension_numbers = #tpu.dot_dimension_numbers<[1], [0], [0], [1], [0, 0, 1, 1], [], []>} : vector<8x8xbf16>, vector<8x100xbf16>, vector<8x100xf32> -> vector<8x100xf32>
    %390 = arith.addf %384, %389 : vector<8x100xf32>
    %c4_355 = arith.constant 4 : index
    %c0_356 = arith.constant 0 : index
    %c0_357 = arith.constant 0 : index
    %391 = vector.load %arg10[%c4_355, %c0_356, %c0_357] : memref<9x8x8xbf16, #tpu.memory_space<vmem>>, vector<1x8x8xbf16>
    %392 = vector.shape_cast %391 : vector<1x8x8xbf16> to vector<8x8xbf16>
    %c0_358 = arith.constant 0 : index
    %c0_359 = arith.constant 0 : index
    %c11_360 = arith.constant 11 : index
    %393 = vector.load %arg15[%c0_358, %c0_359, %c11_360] : memref<2x8x122xbf16, #tpu.memory_space<vmem>>, vector<1x8x100xbf16>
    %394 = vector.shape_cast %393 : vector<1x8x100xbf16> to vector<8x100xbf16>
    %cst_361 = arith.constant dense<0.000000e+00> : vector<8x100xf32>
    %395 = tpu.matmul %392, %394, %cst_361 {dimension_numbers = #tpu.dot_dimension_numbers<[1], [0], [0], [1], [0, 0, 1, 1], [], []>} : vector<8x8xbf16>, vector<8x100xbf16>, vector<8x100xf32> -> vector<8x100xf32>
    %396 = arith.addf %390, %395 : vector<8x100xf32>
    %c5_362 = arith.constant 5 : index
    %c0_363 = arith.constant 0 : index
    %c0_364 = arith.constant 0 : index
    %397 = vector.load %arg10[%c5_362, %c0_363, %c0_364] : memref<9x8x8xbf16, #tpu.memory_space<vmem>>, vector<1x8x8xbf16>
    %398 = vector.shape_cast %397 : vector<1x8x8xbf16> to vector<8x8xbf16>
    %c0_365 = arith.constant 0 : index
    %c0_366 = arith.constant 0 : index
    %c12_367 = arith.constant 12 : index
    %399 = vector.load %arg15[%c0_365, %c0_366, %c12_367] : memref<2x8x122xbf16, #tpu.memory_space<vmem>>, vector<1x8x100xbf16>
    %400 = vector.shape_cast %399 : vector<1x8x100xbf16> to vector<8x100xbf16>
    %cst_368 = arith.constant dense<0.000000e+00> : vector<8x100xf32>
    %401 = tpu.matmul %398, %400, %cst_368 {dimension_numbers = #tpu.dot_dimension_numbers<[1], [0], [0], [1], [0, 0, 1, 1], [], []>} : vector<8x8xbf16>, vector<8x100xbf16>, vector<8x100xf32> -> vector<8x100xf32>
    %402 = arith.addf %396, %401 : vector<8x100xf32>
    %c6_369 = arith.constant 6 : index
    %c0_370 = arith.constant 0 : index
    %c0_371 = arith.constant 0 : index
    %403 = vector.load %arg10[%c6_369, %c0_370, %c0_371] : memref<9x8x8xbf16, #tpu.memory_space<vmem>>, vector<1x8x8xbf16>
    %404 = vector.shape_cast %403 : vector<1x8x8xbf16> to vector<8x8xbf16>
    %c0_372 = arith.constant 0 : index
    %c0_373 = arith.constant 0 : index
    %c20_374 = arith.constant 20 : index
    %405 = vector.load %arg15[%c0_372, %c0_373, %c20_374] : memref<2x8x122xbf16, #tpu.memory_space<vmem>>, vector<1x8x100xbf16>
    %406 = vector.shape_cast %405 : vector<1x8x100xbf16> to vector<8x100xbf16>
    %cst_375 = arith.constant dense<0.000000e+00> : vector<8x100xf32>
    %407 = tpu.matmul %404, %406, %cst_375 {dimension_numbers = #tpu.dot_dimension_numbers<[1], [0], [0], [1], [0, 0, 1, 1], [], []>} : vector<8x8xbf16>, vector<8x100xbf16>, vector<8x100xf32> -> vector<8x100xf32>
    %408 = arith.addf %402, %407 : vector<8x100xf32>
    %c7_376 = arith.constant 7 : index
    %c0_377 = arith.constant 0 : index
    %c0_378 = arith.constant 0 : index
    %409 = vector.load %arg10[%c7_376, %c0_377, %c0_378] : memref<9x8x8xbf16, #tpu.memory_space<vmem>>, vector<1x8x8xbf16>
    %410 = vector.shape_cast %409 : vector<1x8x8xbf16> to vector<8x8xbf16>
    %c0_379 = arith.constant 0 : index
    %c0_380 = arith.constant 0 : index
    %c21_381 = arith.constant 21 : index
    %411 = vector.load %arg15[%c0_379, %c0_380, %c21_381] : memref<2x8x122xbf16, #tpu.memory_space<vmem>>, vector<1x8x100xbf16>
    %412 = vector.shape_cast %411 : vector<1x8x100xbf16> to vector<8x100xbf16>
    %cst_382 = arith.constant dense<0.000000e+00> : vector<8x100xf32>
    %413 = tpu.matmul %410, %412, %cst_382 {dimension_numbers = #tpu.dot_dimension_numbers<[1], [0], [0], [1], [0, 0, 1, 1], [], []>} : vector<8x8xbf16>, vector<8x100xbf16>, vector<8x100xf32> -> vector<8x100xf32>
    %414 = arith.addf %408, %413 : vector<8x100xf32>
    %c8_383 = arith.constant 8 : index
    %c0_384 = arith.constant 0 : index
    %c0_385 = arith.constant 0 : index
    %415 = vector.load %arg10[%c8_383, %c0_384, %c0_385] : memref<9x8x8xbf16, #tpu.memory_space<vmem>>, vector<1x8x8xbf16>
    %416 = vector.shape_cast %415 : vector<1x8x8xbf16> to vector<8x8xbf16>
    %c0_386 = arith.constant 0 : index
    %c0_387 = arith.constant 0 : index
    %c22_388 = arith.constant 22 : index
    %417 = vector.load %arg15[%c0_386, %c0_387, %c22_388] : memref<2x8x122xbf16, #tpu.memory_space<vmem>>, vector<1x8x100xbf16>
    %418 = vector.shape_cast %417 : vector<1x8x100xbf16> to vector<8x100xbf16>
    %cst_389 = arith.constant dense<0.000000e+00> : vector<8x100xf32>
    %419 = tpu.matmul %416, %418, %cst_389 {dimension_numbers = #tpu.dot_dimension_numbers<[1], [0], [0], [1], [0, 0, 1, 1], [], []>} : vector<8x8xbf16>, vector<8x100xbf16>, vector<8x100xf32> -> vector<8x100xf32>
    %420 = arith.addf %414, %419 : vector<8x100xf32>
    %cst_390 = arith.constant 0.000000e+00 : f32
    %421 = vector.broadcast %cst_390 : f32 to vector<8x100xf32>
    %c0_391 = arith.constant 0 : index
    %c0_392 = arith.constant 0 : index
    %c0_393 = arith.constant 0 : index
    %422 = vector.load %arg10[%c0_391, %c0_392, %c0_393] : memref<9x8x8xbf16, #tpu.memory_space<vmem>>, vector<1x8x8xbf16>
    %423 = vector.shape_cast %422 : vector<1x8x8xbf16> to vector<8x8xbf16>
    %c1_394 = arith.constant 1 : index
    %c0_395 = arith.constant 0 : index
    %c0_396 = arith.constant 0 : index
    %424 = vector.load %arg15[%c1_394, %c0_395, %c0_396] : memref<2x8x122xbf16, #tpu.memory_space<vmem>>, vector<1x8x100xbf16>
    %425 = vector.shape_cast %424 : vector<1x8x100xbf16> to vector<8x100xbf16>
    %cst_397 = arith.constant dense<0.000000e+00> : vector<8x100xf32>
    %426 = tpu.matmul %423, %425, %cst_397 {dimension_numbers = #tpu.dot_dimension_numbers<[1], [0], [0], [1], [0, 0, 1, 1], [], []>} : vector<8x8xbf16>, vector<8x100xbf16>, vector<8x100xf32> -> vector<8x100xf32>
    %427 = arith.addf %421, %426 : vector<8x100xf32>
    %c1_398 = arith.constant 1 : index
    %c0_399 = arith.constant 0 : index
    %c0_400 = arith.constant 0 : index
    %428 = vector.load %arg10[%c1_398, %c0_399, %c0_400] : memref<9x8x8xbf16, #tpu.memory_space<vmem>>, vector<1x8x8xbf16>
    %429 = vector.shape_cast %428 : vector<1x8x8xbf16> to vector<8x8xbf16>
    %c1_401 = arith.constant 1 : index
    %c0_402 = arith.constant 0 : index
    %c1_403 = arith.constant 1 : index
    %430 = vector.load %arg15[%c1_401, %c0_402, %c1_403] : memref<2x8x122xbf16, #tpu.memory_space<vmem>>, vector<1x8x100xbf16>
    %431 = vector.shape_cast %430 : vector<1x8x100xbf16> to vector<8x100xbf16>
    %cst_404 = arith.constant dense<0.000000e+00> : vector<8x100xf32>
    %432 = tpu.matmul %429, %431, %cst_404 {dimension_numbers = #tpu.dot_dimension_numbers<[1], [0], [0], [1], [0, 0, 1, 1], [], []>} : vector<8x8xbf16>, vector<8x100xbf16>, vector<8x100xf32> -> vector<8x100xf32>
    %433 = arith.addf %427, %432 : vector<8x100xf32>
    %c2_405 = arith.constant 2 : index
    %c0_406 = arith.constant 0 : index
    %c0_407 = arith.constant 0 : index
    %434 = vector.load %arg10[%c2_405, %c0_406, %c0_407] : memref<9x8x8xbf16, #tpu.memory_space<vmem>>, vector<1x8x8xbf16>
    %435 = vector.shape_cast %434 : vector<1x8x8xbf16> to vector<8x8xbf16>
    %c1_408 = arith.constant 1 : index
    %c0_409 = arith.constant 0 : index
    %c2_410 = arith.constant 2 : index
    %436 = vector.load %arg15[%c1_408, %c0_409, %c2_410] : memref<2x8x122xbf16, #tpu.memory_space<vmem>>, vector<1x8x100xbf16>
    %437 = vector.shape_cast %436 : vector<1x8x100xbf16> to vector<8x100xbf16>
    %cst_411 = arith.constant dense<0.000000e+00> : vector<8x100xf32>
    %438 = tpu.matmul %435, %437, %cst_411 {dimension_numbers = #tpu.dot_dimension_numbers<[1], [0], [0], [1], [0, 0, 1, 1], [], []>} : vector<8x8xbf16>, vector<8x100xbf16>, vector<8x100xf32> -> vector<8x100xf32>
    %439 = arith.addf %433, %438 : vector<8x100xf32>
    %c3_412 = arith.constant 3 : index
    %c0_413 = arith.constant 0 : index
    %c0_414 = arith.constant 0 : index
    %440 = vector.load %arg10[%c3_412, %c0_413, %c0_414] : memref<9x8x8xbf16, #tpu.memory_space<vmem>>, vector<1x8x8xbf16>
    %441 = vector.shape_cast %440 : vector<1x8x8xbf16> to vector<8x8xbf16>
    %c1_415 = arith.constant 1 : index
    %c0_416 = arith.constant 0 : index
    %c10_417 = arith.constant 10 : index
    %442 = vector.load %arg15[%c1_415, %c0_416, %c10_417] : memref<2x8x122xbf16, #tpu.memory_space<vmem>>, vector<1x8x100xbf16>
    %443 = vector.shape_cast %442 : vector<1x8x100xbf16> to vector<8x100xbf16>
    %cst_418 = arith.constant dense<0.000000e+00> : vector<8x100xf32>
    %444 = tpu.matmul %441, %443, %cst_418 {dimension_numbers = #tpu.dot_dimension_numbers<[1], [0], [0], [1], [0, 0, 1, 1], [], []>} : vector<8x8xbf16>, vector<8x100xbf16>, vector<8x100xf32> -> vector<8x100xf32>
    %445 = arith.addf %439, %444 : vector<8x100xf32>
    %c4_419 = arith.constant 4 : index
    %c0_420 = arith.constant 0 : index
    %c0_421 = arith.constant 0 : index
    %446 = vector.load %arg10[%c4_419, %c0_420, %c0_421] : memref<9x8x8xbf16, #tpu.memory_space<vmem>>, vector<1x8x8xbf16>
    %447 = vector.shape_cast %446 : vector<1x8x8xbf16> to vector<8x8xbf16>
    %c1_422 = arith.constant 1 : index
    %c0_423 = arith.constant 0 : index
    %c11_424 = arith.constant 11 : index
    %448 = vector.load %arg15[%c1_422, %c0_423, %c11_424] : memref<2x8x122xbf16, #tpu.memory_space<vmem>>, vector<1x8x100xbf16>
    %449 = vector.shape_cast %448 : vector<1x8x100xbf16> to vector<8x100xbf16>
    %cst_425 = arith.constant dense<0.000000e+00> : vector<8x100xf32>
    %450 = tpu.matmul %447, %449, %cst_425 {dimension_numbers = #tpu.dot_dimension_numbers<[1], [0], [0], [1], [0, 0, 1, 1], [], []>} : vector<8x8xbf16>, vector<8x100xbf16>, vector<8x100xf32> -> vector<8x100xf32>
    %451 = arith.addf %445, %450 : vector<8x100xf32>
    %c5_426 = arith.constant 5 : index
    %c0_427 = arith.constant 0 : index
    %c0_428 = arith.constant 0 : index
    %452 = vector.load %arg10[%c5_426, %c0_427, %c0_428] : memref<9x8x8xbf16, #tpu.memory_space<vmem>>, vector<1x8x8xbf16>
    %453 = vector.shape_cast %452 : vector<1x8x8xbf16> to vector<8x8xbf16>
    %c1_429 = arith.constant 1 : index
    %c0_430 = arith.constant 0 : index
    %c12_431 = arith.constant 12 : index
    %454 = vector.load %arg15[%c1_429, %c0_430, %c12_431] : memref<2x8x122xbf16, #tpu.memory_space<vmem>>, vector<1x8x100xbf16>
    %455 = vector.shape_cast %454 : vector<1x8x100xbf16> to vector<8x100xbf16>
    %cst_432 = arith.constant dense<0.000000e+00> : vector<8x100xf32>
    %456 = tpu.matmul %453, %455, %cst_432 {dimension_numbers = #tpu.dot_dimension_numbers<[1], [0], [0], [1], [0, 0, 1, 1], [], []>} : vector<8x8xbf16>, vector<8x100xbf16>, vector<8x100xf32> -> vector<8x100xf32>
    %457 = arith.addf %451, %456 : vector<8x100xf32>
    %c6_433 = arith.constant 6 : index
    %c0_434 = arith.constant 0 : index
    %c0_435 = arith.constant 0 : index
    %458 = vector.load %arg10[%c6_433, %c0_434, %c0_435] : memref<9x8x8xbf16, #tpu.memory_space<vmem>>, vector<1x8x8xbf16>
    %459 = vector.shape_cast %458 : vector<1x8x8xbf16> to vector<8x8xbf16>
    %c1_436 = arith.constant 1 : index
    %c0_437 = arith.constant 0 : index
    %c20_438 = arith.constant 20 : index
    %460 = vector.load %arg15[%c1_436, %c0_437, %c20_438] : memref<2x8x122xbf16, #tpu.memory_space<vmem>>, vector<1x8x100xbf16>
    %461 = vector.shape_cast %460 : vector<1x8x100xbf16> to vector<8x100xbf16>
    %cst_439 = arith.constant dense<0.000000e+00> : vector<8x100xf32>
    %462 = tpu.matmul %459, %461, %cst_439 {dimension_numbers = #tpu.dot_dimension_numbers<[1], [0], [0], [1], [0, 0, 1, 1], [], []>} : vector<8x8xbf16>, vector<8x100xbf16>, vector<8x100xf32> -> vector<8x100xf32>
    %463 = arith.addf %457, %462 : vector<8x100xf32>
    %c7_440 = arith.constant 7 : index
    %c0_441 = arith.constant 0 : index
    %c0_442 = arith.constant 0 : index
    %464 = vector.load %arg10[%c7_440, %c0_441, %c0_442] : memref<9x8x8xbf16, #tpu.memory_space<vmem>>, vector<1x8x8xbf16>
    %465 = vector.shape_cast %464 : vector<1x8x8xbf16> to vector<8x8xbf16>
    %c1_443 = arith.constant 1 : index
    %c0_444 = arith.constant 0 : index
    %c21_445 = arith.constant 21 : index
    %466 = vector.load %arg15[%c1_443, %c0_444, %c21_445] : memref<2x8x122xbf16, #tpu.memory_space<vmem>>, vector<1x8x100xbf16>
    %467 = vector.shape_cast %466 : vector<1x8x100xbf16> to vector<8x100xbf16>
    %cst_446 = arith.constant dense<0.000000e+00> : vector<8x100xf32>
    %468 = tpu.matmul %465, %467, %cst_446 {dimension_numbers = #tpu.dot_dimension_numbers<[1], [0], [0], [1], [0, 0, 1, 1], [], []>} : vector<8x8xbf16>, vector<8x100xbf16>, vector<8x100xf32> -> vector<8x100xf32>
    %469 = arith.addf %463, %468 : vector<8x100xf32>
    %c8_447 = arith.constant 8 : index
    %c0_448 = arith.constant 0 : index
    %c0_449 = arith.constant 0 : index
    %470 = vector.load %arg10[%c8_447, %c0_448, %c0_449] : memref<9x8x8xbf16, #tpu.memory_space<vmem>>, vector<1x8x8xbf16>
    %471 = vector.shape_cast %470 : vector<1x8x8xbf16> to vector<8x8xbf16>
    %c1_450 = arith.constant 1 : index
    %c0_451 = arith.constant 0 : index
    %c22_452 = arith.constant 22 : index
    %472 = vector.load %arg15[%c1_450, %c0_451, %c22_452] : memref<2x8x122xbf16, #tpu.memory_space<vmem>>, vector<1x8x100xbf16>
    %473 = vector.shape_cast %472 : vector<1x8x100xbf16> to vector<8x100xbf16>
    %cst_453 = arith.constant dense<0.000000e+00> : vector<8x100xf32>
    %474 = tpu.matmul %471, %473, %cst_453 {dimension_numbers = #tpu.dot_dimension_numbers<[1], [0], [0], [1], [0, 0, 1, 1], [], []>} : vector<8x8xbf16>, vector<8x100xbf16>, vector<8x100xf32> -> vector<8x100xf32>
    %475 = arith.addf %469, %474 : vector<8x100xf32>
    %476 = vector.broadcast %0 : vector<1x100xf32> to vector<8x100xf32>
    %477 = arith.mulf %420, %476 : vector<8x100xf32>
    %cst_454 = arith.constant dense<0.000000e+00> : vector<8xf32>
    %478 = vector.multi_reduction <add>, %477, %cst_454 [1] : vector<8x100xf32> to vector<8xf32>
    %479 = vector.shape_cast %478 : vector<8xf32> to vector<8x1xf32>
    %cst_455 = arith.constant 0.000000e+00 : f32
    %480 = vector.broadcast %cst_455 : f32 to vector<8x1xf32>
    %481 = arith.addf %480, %479 : vector<8x1xf32>
    %482 = vector.broadcast %0 : vector<1x100xf32> to vector<8x100xf32>
    %483 = arith.mulf %475, %482 : vector<8x100xf32>
    %cst_456 = arith.constant dense<0.000000e+00> : vector<8xf32>
    %484 = vector.multi_reduction <add>, %483, %cst_456 [1] : vector<8x100xf32> to vector<8xf32>
    %485 = vector.shape_cast %484 : vector<8xf32> to vector<8x1xf32>
    %486 = arith.addf %481, %485 : vector<8x1xf32>
    %cst_457 = arith.constant 1.280000e+02 : f32
    %487 = vector.broadcast %cst_457 : f32 to vector<8x1xf32>
    %488 = arith.divf %486, %487 : vector<8x1xf32>
    %489 = vector.broadcast %488 : vector<8x1xf32> to vector<8x100xf32>
    %490 = arith.subf %420, %489 : vector<8x100xf32>
    %491 = arith.mulf %490, %490 : vector<8x100xf32>
    %492 = vector.broadcast %0 : vector<1x100xf32> to vector<8x100xf32>
    %493 = arith.mulf %492, %491 : vector<8x100xf32>
    %cst_458 = arith.constant dense<0.000000e+00> : vector<8xf32>
    %494 = vector.multi_reduction <add>, %493, %cst_458 [1] : vector<8x100xf32> to vector<8xf32>
    %495 = vector.shape_cast %494 : vector<8xf32> to vector<8x1xf32>
    %cst_459 = arith.constant 0.000000e+00 : f32
    %496 = vector.broadcast %cst_459 : f32 to vector<8x1xf32>
    %497 = arith.addf %496, %495 : vector<8x1xf32>
    %498 = vector.broadcast %488 : vector<8x1xf32> to vector<8x100xf32>
    %499 = arith.subf %475, %498 : vector<8x100xf32>
    %500 = arith.mulf %499, %499 : vector<8x100xf32>
    %501 = vector.broadcast %0 : vector<1x100xf32> to vector<8x100xf32>
    %502 = arith.mulf %501, %500 : vector<8x100xf32>
    %cst_460 = arith.constant dense<0.000000e+00> : vector<8xf32>
    %503 = vector.multi_reduction <add>, %502, %cst_460 [1] : vector<8x100xf32> to vector<8xf32>
    %504 = vector.shape_cast %503 : vector<8xf32> to vector<8x1xf32>
    %505 = arith.addf %497, %504 : vector<8x1xf32>
    %cst_461 = arith.constant 1.280000e+02 : f32
    %506 = vector.broadcast %cst_461 : f32 to vector<8x1xf32>
    %507 = arith.divf %505, %506 : vector<8x1xf32>
    %c0_462 = arith.constant 0 : index
    %c0_463 = arith.constant 0 : index
    %508 = vector.load %arg11[%c0_462, %c0_463] : memref<8x1xf32, #tpu.memory_space<vmem>>, vector<8x1xf32>
    %cst_464 = arith.constant 9.99999974E-6 : f32
    %509 = vector.broadcast %cst_464 : f32 to vector<8x1xf32>
    %510 = arith.addf %507, %509 : vector<8x1xf32>
    %511 = math.rsqrt %510 : vector<8x1xf32>
    %512 = arith.mulf %508, %511 : vector<8x1xf32>
    %c0_465 = arith.constant 0 : index
    %c0_466 = arith.constant 0 : index
    %513 = vector.load %arg12[%c0_465, %c0_466] : memref<8x1xf32, #tpu.memory_space<vmem>>, vector<8x1xf32>
    %514 = arith.mulf %488, %512 : vector<8x1xf32>
    %515 = arith.subf %513, %514 : vector<8x1xf32>
    %516 = vector.broadcast %512 : vector<8x1xf32> to vector<8x100xf32>
    %517 = arith.mulf %420, %516 : vector<8x100xf32>
    %518 = vector.broadcast %515 : vector<8x1xf32> to vector<8x100xf32>
    %519 = arith.addf %517, %518 : vector<8x100xf32>
    %cst_467 = arith.constant 0.000000e+00 : f32
    %520 = vector.broadcast %cst_467 : f32 to vector<8x100xf32>
    %521 = arith.maximumf %519, %520 : vector<8x100xf32>
    %522 = vector.broadcast %0 : vector<1x100xf32> to vector<8x100xf32>
    %523 = arith.mulf %522, %521 : vector<8x100xf32>
    %524 = vector.broadcast %512 : vector<8x1xf32> to vector<8x100xf32>
    %525 = arith.mulf %475, %524 : vector<8x100xf32>
    %526 = vector.broadcast %515 : vector<8x1xf32> to vector<8x100xf32>
    %527 = arith.addf %525, %526 : vector<8x100xf32>
    %cst_468 = arith.constant 0.000000e+00 : f32
    %528 = vector.broadcast %cst_468 : f32 to vector<8x100xf32>
    %529 = arith.maximumf %527, %528 : vector<8x100xf32>
    %530 = vector.broadcast %0 : vector<1x100xf32> to vector<8x100xf32>
    %531 = arith.mulf %530, %529 : vector<8x100xf32>
    %c0_469 = arith.constant 0 : index
    %c0_470 = arith.constant 0 : index
    %c0_471 = arith.constant 0 : index
    %532 = vector.load %arg13[%c0_469, %c0_470, %c0_471] : memref<2x8x100xf32, #tpu.memory_space<vmem>>, vector<1x8x100xf32>
    %533 = vector.shape_cast %532 : vector<1x8x100xf32> to vector<8x100xf32>
    %534 = vector.shape_cast %523 : vector<8x100xf32> to vector<1x8x100xf32>
    tpu.vector_store %arg13[%c0_469, %c0_470, %c0_471], %534 {strides = array<i32>} : memref<2x8x100xf32, #tpu.memory_space<vmem>>, vector<1x8x100xf32>,
    %c1_472 = arith.constant 1 : index
    %c0_473 = arith.constant 0 : index
    %c0_474 = arith.constant 0 : index
    %535 = vector.load %arg13[%c1_472, %c0_473, %c0_474] : memref<2x8x100xf32, #tpu.memory_space<vmem>>, vector<1x8x100xf32>
    %536 = vector.shape_cast %535 : vector<1x8x100xf32> to vector<8x100xf32>
    %537 = vector.shape_cast %531 : vector<8x100xf32> to vector<1x8x100xf32>
    tpu.vector_store %arg13[%c1_472, %c0_473, %c0_474], %537 {strides = array<i32>} : memref<2x8x100xf32, #tpu.memory_space<vmem>>, vector<1x8x100xf32>,
    return
  }
  func.func @transform_0(%arg0: i32) -> (i32, i32, i32) {
    %c0_i32 = arith.constant 0 : i32
    %c0_i32_0 = arith.constant 0 : i32
    %c0_i32_1 = arith.constant 0 : i32
    %c0_i32_2 = arith.constant 0 : i32
    return %c0_i32, %c0_i32_0, %c0_i32_1 : i32, i32, i32
  }
  func.func @transform_1(%arg0: i32) -> (i32, i32, i32) {
    %c0_i32 = arith.constant 0 : i32
    %c0_i32_0 = arith.constant 0 : i32
    %c0_i32_1 = arith.constant 0 : i32
    %c0_i32_2 = arith.constant 0 : i32
    return %c0_i32, %c0_i32_0, %c0_i32_1 : i32, i32, i32
  }
  func.func @transform_2(%arg0: i32) -> (i32, i32) {
    %c0_i32 = arith.constant 0 : i32
    %c0_i32_0 = arith.constant 0 : i32
    %c0_i32_1 = arith.constant 0 : i32
    return %c0_i32, %c0_i32_0 : i32, i32
  }
  func.func @transform_3(%arg0: i32) -> (i32, i32) {
    %c0_i32 = arith.constant 0 : i32
    %c0_i32_0 = arith.constant 0 : i32
    %c0_i32_1 = arith.constant 0 : i32
    return %c0_i32, %c0_i32_0 : i32, i32
  }
  func.func @transform_4(%arg0: i32) -> (i32, i32, i32) {
    %c0_i32 = arith.constant 0 : i32
    %c0_i32_0 = arith.constant 0 : i32
    %c0_i32_1 = arith.constant 0 : i32
    %c0_i32_2 = arith.constant 0 : i32
    return %c0_i32, %c0_i32_0, %c0_i32_1 : i32, i32, i32
  }
  func.func @transform_5(%arg0: i32) -> (i32, i32, i32) {
    %c0_i32 = arith.constant 0 : i32
    %c0_i32_0 = arith.constant 0 : i32
    %c0_i32_1 = arith.constant 0 : i32
    %c0_i32_2 = arith.constant 0 : i32
    return %c0_i32, %c0_i32_0, %c0_i32_1 : i32, i32, i32
  }
  func.func @transform_6(%arg0: i32) -> (i32, i32, i32) {
    %c0_i32 = arith.constant 0 : i32
    %c0_i32_0 = arith.constant 0 : i32
    %c0_i32_1 = arith.constant 0 : i32
    %c0_i32_2 = arith.constant 0 : i32
    return %c0_i32, %c0_i32_0, %c0_i32_1 : i32, i32, i32
  }
  func.func @transform_7(%arg0: i32) -> (i32, i32) {
    %c0_i32 = arith.constant 0 : i32
    %c0_i32_0 = arith.constant 0 : i32
    %c0_i32_1 = arith.constant 0 : i32
    return %c0_i32, %c0_i32_0 : i32, i32
  }
  func.func @transform_8(%arg0: i32) -> (i32, i32) {
    %c0_i32 = arith.constant 0 : i32
    %c0_i32_0 = arith.constant 0 : i32
    %c0_i32_1 = arith.constant 0 : i32
    return %c0_i32, %c0_i32_0 : i32, i32
  }
  func.func @transform_9(%arg0: i32) -> (i32, i32, i32) {
    %c0_i32 = arith.constant 0 : i32
    %c0_i32_0 = arith.constant 0 : i32
    %c0_i32_1 = arith.constant 0 : i32
    %c0_i32_2 = arith.constant 0 : i32
    return %c0_i32, %c0_i32_0, %c0_i32_1 : i32, i32, i32
  }
  func.func @transform_10(%arg0: i32) -> (i32, i32) {
    %c0_i32 = arith.constant 0 : i32
    %c0_i32_0 = arith.constant 0 : i32
    %c0_i32_1 = arith.constant 0 : i32
    return %c0_i32, %c0_i32_0 : i32, i32
  }
  func.func @transform_11(%arg0: i32) -> (i32, i32) {
    %c0_i32 = arith.constant 0 : i32
    %c0_i32_0 = arith.constant 0 : i32
    %c0_i32_1 = arith.constant 0 : i32
    return %c0_i32, %c0_i32_0 : i32, i32
  }
  func.func @transform_12(%arg0: i32) -> (i32, i32, i32) {
    %c0_i32 = arith.constant 0 : i32
    %c0_i32_0 = arith.constant 0 : i32
    %c0_i32_1 = arith.constant 0 : i32
    %c0_i32_2 = arith.constant 0 : i32
    return %c0_i32, %c0_i32_0, %c0_i32_1 : i32, i32, i32
  }
}

module attributes {stable_mosaic.version = 11 : i64} {
  func.func @_decoder_block_kernel(%arg0: i32, %arg1: memref<2x4x362xbf16, #tpu.memory_space<vmem>>, %arg2: memref<2x8x362xbf16, #tpu.memory_space<vmem>>, %arg3: memref<4x324xf32, #tpu.memory_space<vmem>>, %arg4: memref<1x324xf32, #tpu.memory_space<vmem>>, %arg5: memref<4x4x8xbf16, #tpu.memory_space<vmem>>, %arg6: memref<9x4x4xbf16, #tpu.memory_space<vmem>>, %arg7: memref<9x4x4xbf16, #tpu.memory_space<vmem>>, %arg8: memref<4x1xf32, #tpu.memory_space<vmem>>, %arg9: memref<4x1xf32, #tpu.memory_space<vmem>>, %arg10: memref<9x4x4xbf16, #tpu.memory_space<vmem>>, %arg11: memref<4x1xf32, #tpu.memory_space<vmem>>, %arg12: memref<4x1xf32, #tpu.memory_space<vmem>>, %arg13: memref<2x4x324xf32, #tpu.memory_space<vmem>>, %arg14: memref<2x4x362xbf16, #tpu.memory_space<vmem>>, %arg15: memref<2x4x362xbf16, #tpu.memory_space<vmem>>) attributes {dimension_semantics = [#tpu.dimension_semantics<arbitrary>], iteration_bounds = array<i64: 1>, scalar_prefetch = 0 : i64, scratch_operands = 2 : i64, tpu.core_type = #tpu.core_type<tc>, window_params = [{pipeline_mode = #tpu.pipeline_mode<synchronous>, transform_indices = @transform_0, window_bounds = array<i64: 2, 4, 362>}, {pipeline_mode = #tpu.pipeline_mode<synchronous>, transform_indices = @transform_1, window_bounds = array<i64: 2, 8, 362>}, {pipeline_mode = #tpu.pipeline_mode<synchronous>, transform_indices = @transform_2, window_bounds = array<i64: 4, 324>}, {pipeline_mode = #tpu.pipeline_mode<synchronous>, transform_indices = @transform_3, window_bounds = array<i64: 1, 324>}, {pipeline_mode = #tpu.pipeline_mode<synchronous>, transform_indices = @transform_4, window_bounds = array<i64: 4, 4, 8>}, {pipeline_mode = #tpu.pipeline_mode<synchronous>, transform_indices = @transform_5, window_bounds = array<i64: 9, 4, 4>}, {pipeline_mode = #tpu.pipeline_mode<synchronous>, transform_indices = @transform_6, window_bounds = array<i64: 9, 4, 4>}, {pipeline_mode = #tpu.pipeline_mode<synchronous>, transform_indices = @transform_7, window_bounds = array<i64: 4, 1>}, {pipeline_mode = #tpu.pipeline_mode<synchronous>, transform_indices = @transform_8, window_bounds = array<i64: 4, 1>}, {pipeline_mode = #tpu.pipeline_mode<synchronous>, transform_indices = @transform_9, window_bounds = array<i64: 9, 4, 4>}, {pipeline_mode = #tpu.pipeline_mode<synchronous>, transform_indices = @transform_10, window_bounds = array<i64: 4, 1>}, {pipeline_mode = #tpu.pipeline_mode<synchronous>, transform_indices = @transform_11, window_bounds = array<i64: 4, 1>}, {pipeline_mode = #tpu.pipeline_mode<synchronous>, transform_indices = @transform_12, window_bounds = array<i64: 2, 4, 324>}]} {
    %c0 = arith.constant 0 : index
    %c0_0 = arith.constant 0 : index
    %0 = vector.load %arg4[%c0, %c0_0] : memref<1x324xf32, #tpu.memory_space<vmem>>, vector<1x324xf32>
    %c0_1 = arith.constant 0 : index
    %c0_2 = arith.constant 0 : index
    %1 = vector.load %arg3[%c0_1, %c0_2] : memref<4x324xf32, #tpu.memory_space<vmem>>, vector<4x324xf32>
    %cst = arith.constant 0.000000e+00 : bf16
    %2 = vector.broadcast %cst : bf16 to vector<2x4x19xbf16>
    %c0_3 = arith.constant 0 : index
    %c0_4 = arith.constant 0 : index
    %c0_5 = arith.constant 0 : index
    %3 = vector.load %arg14[%c0_3, %c0_4, %c0_5] : memref<2x4x362xbf16, #tpu.memory_space<vmem>>, vector<2x4x19xbf16>
    tpu.vector_store %arg14[%c0_3, %c0_4, %c0_5], %2 {strides = array<i32>} : memref<2x4x362xbf16, #tpu.memory_space<vmem>>, vector<2x4x19xbf16>,
    %cst_6 = arith.constant 0.000000e+00 : bf16
    %4 = vector.broadcast %cst_6 : bf16 to vector<2x4x19xbf16>
    %c0_7 = arith.constant 0 : index
    %c0_8 = arith.constant 0 : index
    %c343 = arith.constant 343 : index
    %5 = vector.load %arg14[%c0_7, %c0_8, %c343] : memref<2x4x362xbf16, #tpu.memory_space<vmem>>, vector<2x4x19xbf16>
    tpu.vector_store %arg14[%c0_7, %c0_8, %c343], %4 {strides = array<i32>} : memref<2x4x362xbf16, #tpu.memory_space<vmem>>, vector<2x4x19xbf16>,
    %cst_9 = arith.constant 0.000000e+00 : bf16
    %6 = vector.broadcast %cst_9 : bf16 to vector<2x4x19xbf16>
    %c0_10 = arith.constant 0 : index
    %c0_11 = arith.constant 0 : index
    %c0_12 = arith.constant 0 : index
    %7 = vector.load %arg15[%c0_10, %c0_11, %c0_12] : memref<2x4x362xbf16, #tpu.memory_space<vmem>>, vector<2x4x19xbf16>
    tpu.vector_store %arg15[%c0_10, %c0_11, %c0_12], %6 {strides = array<i32>} : memref<2x4x362xbf16, #tpu.memory_space<vmem>>, vector<2x4x19xbf16>,
    %cst_13 = arith.constant 0.000000e+00 : bf16
    %8 = vector.broadcast %cst_13 : bf16 to vector<2x4x19xbf16>
    %c0_14 = arith.constant 0 : index
    %c0_15 = arith.constant 0 : index
    %c343_16 = arith.constant 343 : index
    %9 = vector.load %arg15[%c0_14, %c0_15, %c343_16] : memref<2x4x362xbf16, #tpu.memory_space<vmem>>, vector<2x4x19xbf16>
    tpu.vector_store %arg15[%c0_14, %c0_15, %c343_16], %8 {strides = array<i32>} : memref<2x4x362xbf16, #tpu.memory_space<vmem>>, vector<2x4x19xbf16>,
    %c0_17 = arith.constant 0 : index
    %c0_18 = arith.constant 0 : index
    %c19 = arith.constant 19 : index
    %10 = vector.load %arg2[%c0_17, %c0_18, %c19] : memref<2x8x362xbf16, #tpu.memory_space<vmem>>, vector<1x8x324xbf16>
    %11 = vector.shape_cast %10 : vector<1x8x324xbf16> to vector<8x324xbf16>
    %cst_19 = arith.constant 0.000000e+00 : f32
    %12 = vector.broadcast %cst_19 : f32 to vector<4x324xf32>
    %c0_20 = arith.constant 0 : index
    %c0_21 = arith.constant 0 : index
    %c0_22 = arith.constant 0 : index
    %13 = vector.load %arg5[%c0_20, %c0_21, %c0_22] : memref<4x4x8xbf16, #tpu.memory_space<vmem>>, vector<1x4x8xbf16>
    %14 = vector.shape_cast %13 : vector<1x4x8xbf16> to vector<4x8xbf16>
    %cst_23 = arith.constant dense<0.000000e+00> : vector<4x324xf32>
    %15 = tpu.matmul %14, %11, %cst_23 {dimension_numbers = #tpu.dot_dimension_numbers<[1], [0], [0], [1], [0, 0, 1, 1], [], []>} : vector<4x8xbf16>, vector<8x324xbf16>, vector<4x324xf32> -> vector<4x324xf32>
    %16 = vector.extract_strided_slice %1 {offsets = [0, 0], sizes = [1, 324], strides = [1, 1]} : vector<4x324xf32> to vector<1x324xf32>
    %17 = vector.broadcast %16 : vector<1x324xf32> to vector<4x324xf32>
    %18 = arith.mulf %17, %15 : vector<4x324xf32>
    %19 = arith.addf %12, %18 : vector<4x324xf32>
    %c1 = arith.constant 1 : index
    %c0_24 = arith.constant 0 : index
    %c0_25 = arith.constant 0 : index
    %20 = vector.load %arg5[%c1, %c0_24, %c0_25] : memref<4x4x8xbf16, #tpu.memory_space<vmem>>, vector<1x4x8xbf16>
    %21 = vector.shape_cast %20 : vector<1x4x8xbf16> to vector<4x8xbf16>
    %cst_26 = arith.constant dense<0.000000e+00> : vector<4x324xf32>
    %22 = tpu.matmul %21, %11, %cst_26 {dimension_numbers = #tpu.dot_dimension_numbers<[1], [0], [0], [1], [0, 0, 1, 1], [], []>} : vector<4x8xbf16>, vector<8x324xbf16>, vector<4x324xf32> -> vector<4x324xf32>
    %23 = vector.extract_strided_slice %1 {offsets = [1, 0], sizes = [1, 324], strides = [1, 1]} : vector<4x324xf32> to vector<1x324xf32>
    %24 = vector.broadcast %23 : vector<1x324xf32> to vector<4x324xf32>
    %25 = arith.mulf %24, %22 : vector<4x324xf32>
    %26 = arith.addf %19, %25 : vector<4x324xf32>
    %c2 = arith.constant 2 : index
    %c0_27 = arith.constant 0 : index
    %c0_28 = arith.constant 0 : index
    %27 = vector.load %arg5[%c2, %c0_27, %c0_28] : memref<4x4x8xbf16, #tpu.memory_space<vmem>>, vector<1x4x8xbf16>
    %28 = vector.shape_cast %27 : vector<1x4x8xbf16> to vector<4x8xbf16>
    %cst_29 = arith.constant dense<0.000000e+00> : vector<4x324xf32>
    %29 = tpu.matmul %28, %11, %cst_29 {dimension_numbers = #tpu.dot_dimension_numbers<[1], [0], [0], [1], [0, 0, 1, 1], [], []>} : vector<4x8xbf16>, vector<8x324xbf16>, vector<4x324xf32> -> vector<4x324xf32>
    %30 = vector.extract_strided_slice %1 {offsets = [2, 0], sizes = [1, 324], strides = [1, 1]} : vector<4x324xf32> to vector<1x324xf32>
    %31 = vector.broadcast %30 : vector<1x324xf32> to vector<4x324xf32>
    %32 = arith.mulf %31, %29 : vector<4x324xf32>
    %33 = arith.addf %26, %32 : vector<4x324xf32>
    %c3 = arith.constant 3 : index
    %c0_30 = arith.constant 0 : index
    %c0_31 = arith.constant 0 : index
    %34 = vector.load %arg5[%c3, %c0_30, %c0_31] : memref<4x4x8xbf16, #tpu.memory_space<vmem>>, vector<1x4x8xbf16>
    %35 = vector.shape_cast %34 : vector<1x4x8xbf16> to vector<4x8xbf16>
    %cst_32 = arith.constant dense<0.000000e+00> : vector<4x324xf32>
    %36 = tpu.matmul %35, %11, %cst_32 {dimension_numbers = #tpu.dot_dimension_numbers<[1], [0], [0], [1], [0, 0, 1, 1], [], []>} : vector<4x8xbf16>, vector<8x324xbf16>, vector<4x324xf32> -> vector<4x324xf32>
    %37 = vector.extract_strided_slice %1 {offsets = [3, 0], sizes = [1, 324], strides = [1, 1]} : vector<4x324xf32> to vector<1x324xf32>
    %38 = vector.broadcast %37 : vector<1x324xf32> to vector<4x324xf32>
    %39 = arith.mulf %38, %36 : vector<4x324xf32>
    %40 = arith.addf %33, %39 : vector<4x324xf32>
    %41 = arith.truncf %40 : vector<4x324xf32> to vector<4x324xbf16>
    %c0_33 = arith.constant 0 : index
    %c0_34 = arith.constant 0 : index
    %c19_35 = arith.constant 19 : index
    %42 = vector.load %arg14[%c0_33, %c0_34, %c19_35] : memref<2x4x362xbf16, #tpu.memory_space<vmem>>, vector<1x4x324xbf16>
    %43 = vector.shape_cast %42 : vector<1x4x324xbf16> to vector<4x324xbf16>
    %44 = vector.shape_cast %41 : vector<4x324xbf16> to vector<1x4x324xbf16>
    tpu.vector_store %arg14[%c0_33, %c0_34, %c19_35], %44 {strides = array<i32>} : memref<2x4x362xbf16, #tpu.memory_space<vmem>>, vector<1x4x324xbf16>,
    %c1_36 = arith.constant 1 : index
    %c0_37 = arith.constant 0 : index
    %c19_38 = arith.constant 19 : index
    %45 = vector.load %arg2[%c1_36, %c0_37, %c19_38] : memref<2x8x362xbf16, #tpu.memory_space<vmem>>, vector<1x8x324xbf16>
    %46 = vector.shape_cast %45 : vector<1x8x324xbf16> to vector<8x324xbf16>
    %cst_39 = arith.constant 0.000000e+00 : f32
    %47 = vector.broadcast %cst_39 : f32 to vector<4x324xf32>
    %c0_40 = arith.constant 0 : index
    %c0_41 = arith.constant 0 : index
    %c0_42 = arith.constant 0 : index
    %48 = vector.load %arg5[%c0_40, %c0_41, %c0_42] : memref<4x4x8xbf16, #tpu.memory_space<vmem>>, vector<1x4x8xbf16>
    %49 = vector.shape_cast %48 : vector<1x4x8xbf16> to vector<4x8xbf16>
    %cst_43 = arith.constant dense<0.000000e+00> : vector<4x324xf32>
    %50 = tpu.matmul %49, %46, %cst_43 {dimension_numbers = #tpu.dot_dimension_numbers<[1], [0], [0], [1], [0, 0, 1, 1], [], []>} : vector<4x8xbf16>, vector<8x324xbf16>, vector<4x324xf32> -> vector<4x324xf32>
    %51 = vector.extract_strided_slice %1 {offsets = [0, 0], sizes = [1, 324], strides = [1, 1]} : vector<4x324xf32> to vector<1x324xf32>
    %52 = vector.broadcast %51 : vector<1x324xf32> to vector<4x324xf32>
    %53 = arith.mulf %52, %50 : vector<4x324xf32>
    %54 = arith.addf %47, %53 : vector<4x324xf32>
    %c1_44 = arith.constant 1 : index
    %c0_45 = arith.constant 0 : index
    %c0_46 = arith.constant 0 : index
    %55 = vector.load %arg5[%c1_44, %c0_45, %c0_46] : memref<4x4x8xbf16, #tpu.memory_space<vmem>>, vector<1x4x8xbf16>
    %56 = vector.shape_cast %55 : vector<1x4x8xbf16> to vector<4x8xbf16>
    %cst_47 = arith.constant dense<0.000000e+00> : vector<4x324xf32>
    %57 = tpu.matmul %56, %46, %cst_47 {dimension_numbers = #tpu.dot_dimension_numbers<[1], [0], [0], [1], [0, 0, 1, 1], [], []>} : vector<4x8xbf16>, vector<8x324xbf16>, vector<4x324xf32> -> vector<4x324xf32>
    %58 = vector.extract_strided_slice %1 {offsets = [1, 0], sizes = [1, 324], strides = [1, 1]} : vector<4x324xf32> to vector<1x324xf32>
    %59 = vector.broadcast %58 : vector<1x324xf32> to vector<4x324xf32>
    %60 = arith.mulf %59, %57 : vector<4x324xf32>
    %61 = arith.addf %54, %60 : vector<4x324xf32>
    %c2_48 = arith.constant 2 : index
    %c0_49 = arith.constant 0 : index
    %c0_50 = arith.constant 0 : index
    %62 = vector.load %arg5[%c2_48, %c0_49, %c0_50] : memref<4x4x8xbf16, #tpu.memory_space<vmem>>, vector<1x4x8xbf16>
    %63 = vector.shape_cast %62 : vector<1x4x8xbf16> to vector<4x8xbf16>
    %cst_51 = arith.constant dense<0.000000e+00> : vector<4x324xf32>
    %64 = tpu.matmul %63, %46, %cst_51 {dimension_numbers = #tpu.dot_dimension_numbers<[1], [0], [0], [1], [0, 0, 1, 1], [], []>} : vector<4x8xbf16>, vector<8x324xbf16>, vector<4x324xf32> -> vector<4x324xf32>
    %65 = vector.extract_strided_slice %1 {offsets = [2, 0], sizes = [1, 324], strides = [1, 1]} : vector<4x324xf32> to vector<1x324xf32>
    %66 = vector.broadcast %65 : vector<1x324xf32> to vector<4x324xf32>
    %67 = arith.mulf %66, %64 : vector<4x324xf32>
    %68 = arith.addf %61, %67 : vector<4x324xf32>
    %c3_52 = arith.constant 3 : index
    %c0_53 = arith.constant 0 : index
    %c0_54 = arith.constant 0 : index
    %69 = vector.load %arg5[%c3_52, %c0_53, %c0_54] : memref<4x4x8xbf16, #tpu.memory_space<vmem>>, vector<1x4x8xbf16>
    %70 = vector.shape_cast %69 : vector<1x4x8xbf16> to vector<4x8xbf16>
    %cst_55 = arith.constant dense<0.000000e+00> : vector<4x324xf32>
    %71 = tpu.matmul %70, %46, %cst_55 {dimension_numbers = #tpu.dot_dimension_numbers<[1], [0], [0], [1], [0, 0, 1, 1], [], []>} : vector<4x8xbf16>, vector<8x324xbf16>, vector<4x324xf32> -> vector<4x324xf32>
    %72 = vector.extract_strided_slice %1 {offsets = [3, 0], sizes = [1, 324], strides = [1, 1]} : vector<4x324xf32> to vector<1x324xf32>
    %73 = vector.broadcast %72 : vector<1x324xf32> to vector<4x324xf32>
    %74 = arith.mulf %73, %71 : vector<4x324xf32>
    %75 = arith.addf %68, %74 : vector<4x324xf32>
    %76 = arith.truncf %75 : vector<4x324xf32> to vector<4x324xbf16>
    %c1_56 = arith.constant 1 : index
    %c0_57 = arith.constant 0 : index
    %c19_58 = arith.constant 19 : index
    %77 = vector.load %arg14[%c1_56, %c0_57, %c19_58] : memref<2x4x362xbf16, #tpu.memory_space<vmem>>, vector<1x4x324xbf16>
    %78 = vector.shape_cast %77 : vector<1x4x324xbf16> to vector<4x324xbf16>
    %79 = vector.shape_cast %76 : vector<4x324xbf16> to vector<1x4x324xbf16>
    tpu.vector_store %arg14[%c1_56, %c0_57, %c19_58], %79 {strides = array<i32>} : memref<2x4x362xbf16, #tpu.memory_space<vmem>>, vector<1x4x324xbf16>,
    %cst_59 = arith.constant 0.000000e+00 : f32
    %80 = vector.broadcast %cst_59 : f32 to vector<4x324xf32>
    %c0_60 = arith.constant 0 : index
    %c0_61 = arith.constant 0 : index
    %c0_62 = arith.constant 0 : index
    %81 = vector.load %arg6[%c0_60, %c0_61, %c0_62] : memref<9x4x4xbf16, #tpu.memory_space<vmem>>, vector<1x4x4xbf16>
    %82 = vector.shape_cast %81 : vector<1x4x4xbf16> to vector<4x4xbf16>
    %c0_63 = arith.constant 0 : index
    %c0_64 = arith.constant 0 : index
    %c0_65 = arith.constant 0 : index
    %83 = vector.load %arg1[%c0_63, %c0_64, %c0_65] : memref<2x4x362xbf16, #tpu.memory_space<vmem>>, vector<1x4x324xbf16>
    %84 = vector.shape_cast %83 : vector<1x4x324xbf16> to vector<4x324xbf16>
    %cst_66 = arith.constant dense<0.000000e+00> : vector<4x324xf32>
    %85 = tpu.matmul %82, %84, %cst_66 {dimension_numbers = #tpu.dot_dimension_numbers<[1], [0], [0], [1], [0, 0, 1, 1], [], []>} : vector<4x4xbf16>, vector<4x324xbf16>, vector<4x324xf32> -> vector<4x324xf32>
    %86 = arith.addf %80, %85 : vector<4x324xf32>
    %c1_67 = arith.constant 1 : index
    %c0_68 = arith.constant 0 : index
    %c0_69 = arith.constant 0 : index
    %87 = vector.load %arg6[%c1_67, %c0_68, %c0_69] : memref<9x4x4xbf16, #tpu.memory_space<vmem>>, vector<1x4x4xbf16>
    %88 = vector.shape_cast %87 : vector<1x4x4xbf16> to vector<4x4xbf16>
    %c0_70 = arith.constant 0 : index
    %c0_71 = arith.constant 0 : index
    %c1_72 = arith.constant 1 : index
    %89 = vector.load %arg1[%c0_70, %c0_71, %c1_72] : memref<2x4x362xbf16, #tpu.memory_space<vmem>>, vector<1x4x324xbf16>
    %90 = vector.shape_cast %89 : vector<1x4x324xbf16> to vector<4x324xbf16>
    %cst_73 = arith.constant dense<0.000000e+00> : vector<4x324xf32>
    %91 = tpu.matmul %88, %90, %cst_73 {dimension_numbers = #tpu.dot_dimension_numbers<[1], [0], [0], [1], [0, 0, 1, 1], [], []>} : vector<4x4xbf16>, vector<4x324xbf16>, vector<4x324xf32> -> vector<4x324xf32>
    %92 = arith.addf %86, %91 : vector<4x324xf32>
    %c2_74 = arith.constant 2 : index
    %c0_75 = arith.constant 0 : index
    %c0_76 = arith.constant 0 : index
    %93 = vector.load %arg6[%c2_74, %c0_75, %c0_76] : memref<9x4x4xbf16, #tpu.memory_space<vmem>>, vector<1x4x4xbf16>
    %94 = vector.shape_cast %93 : vector<1x4x4xbf16> to vector<4x4xbf16>
    %c0_77 = arith.constant 0 : index
    %c0_78 = arith.constant 0 : index
    %c2_79 = arith.constant 2 : index
    %95 = vector.load %arg1[%c0_77, %c0_78, %c2_79] : memref<2x4x362xbf16, #tpu.memory_space<vmem>>, vector<1x4x324xbf16>
    %96 = vector.shape_cast %95 : vector<1x4x324xbf16> to vector<4x324xbf16>
    %cst_80 = arith.constant dense<0.000000e+00> : vector<4x324xf32>
    %97 = tpu.matmul %94, %96, %cst_80 {dimension_numbers = #tpu.dot_dimension_numbers<[1], [0], [0], [1], [0, 0, 1, 1], [], []>} : vector<4x4xbf16>, vector<4x324xbf16>, vector<4x324xf32> -> vector<4x324xf32>
    %98 = arith.addf %92, %97 : vector<4x324xf32>
    %c3_81 = arith.constant 3 : index
    %c0_82 = arith.constant 0 : index
    %c0_83 = arith.constant 0 : index
    %99 = vector.load %arg6[%c3_81, %c0_82, %c0_83] : memref<9x4x4xbf16, #tpu.memory_space<vmem>>, vector<1x4x4xbf16>
    %100 = vector.shape_cast %99 : vector<1x4x4xbf16> to vector<4x4xbf16>
    %c0_84 = arith.constant 0 : index
    %c0_85 = arith.constant 0 : index
    %c18 = arith.constant 18 : index
    %101 = vector.load %arg1[%c0_84, %c0_85, %c18] : memref<2x4x362xbf16, #tpu.memory_space<vmem>>, vector<1x4x324xbf16>
    %102 = vector.shape_cast %101 : vector<1x4x324xbf16> to vector<4x324xbf16>
    %cst_86 = arith.constant dense<0.000000e+00> : vector<4x324xf32>
    %103 = tpu.matmul %100, %102, %cst_86 {dimension_numbers = #tpu.dot_dimension_numbers<[1], [0], [0], [1], [0, 0, 1, 1], [], []>} : vector<4x4xbf16>, vector<4x324xbf16>, vector<4x324xf32> -> vector<4x324xf32>
    %104 = arith.addf %98, %103 : vector<4x324xf32>
    %c4 = arith.constant 4 : index
    %c0_87 = arith.constant 0 : index
    %c0_88 = arith.constant 0 : index
    %105 = vector.load %arg6[%c4, %c0_87, %c0_88] : memref<9x4x4xbf16, #tpu.memory_space<vmem>>, vector<1x4x4xbf16>
    %106 = vector.shape_cast %105 : vector<1x4x4xbf16> to vector<4x4xbf16>
    %c0_89 = arith.constant 0 : index
    %c0_90 = arith.constant 0 : index
    %c19_91 = arith.constant 19 : index
    %107 = vector.load %arg1[%c0_89, %c0_90, %c19_91] : memref<2x4x362xbf16, #tpu.memory_space<vmem>>, vector<1x4x324xbf16>
    %108 = vector.shape_cast %107 : vector<1x4x324xbf16> to vector<4x324xbf16>
    %cst_92 = arith.constant dense<0.000000e+00> : vector<4x324xf32>
    %109 = tpu.matmul %106, %108, %cst_92 {dimension_numbers = #tpu.dot_dimension_numbers<[1], [0], [0], [1], [0, 0, 1, 1], [], []>} : vector<4x4xbf16>, vector<4x324xbf16>, vector<4x324xf32> -> vector<4x324xf32>
    %110 = arith.addf %104, %109 : vector<4x324xf32>
    %c5 = arith.constant 5 : index
    %c0_93 = arith.constant 0 : index
    %c0_94 = arith.constant 0 : index
    %111 = vector.load %arg6[%c5, %c0_93, %c0_94] : memref<9x4x4xbf16, #tpu.memory_space<vmem>>, vector<1x4x4xbf16>
    %112 = vector.shape_cast %111 : vector<1x4x4xbf16> to vector<4x4xbf16>
    %c0_95 = arith.constant 0 : index
    %c0_96 = arith.constant 0 : index
    %c20 = arith.constant 20 : index
    %113 = vector.load %arg1[%c0_95, %c0_96, %c20] : memref<2x4x362xbf16, #tpu.memory_space<vmem>>, vector<1x4x324xbf16>
    %114 = vector.shape_cast %113 : vector<1x4x324xbf16> to vector<4x324xbf16>
    %cst_97 = arith.constant dense<0.000000e+00> : vector<4x324xf32>
    %115 = tpu.matmul %112, %114, %cst_97 {dimension_numbers = #tpu.dot_dimension_numbers<[1], [0], [0], [1], [0, 0, 1, 1], [], []>} : vector<4x4xbf16>, vector<4x324xbf16>, vector<4x324xf32> -> vector<4x324xf32>
    %116 = arith.addf %110, %115 : vector<4x324xf32>
    %c6 = arith.constant 6 : index
    %c0_98 = arith.constant 0 : index
    %c0_99 = arith.constant 0 : index
    %117 = vector.load %arg6[%c6, %c0_98, %c0_99] : memref<9x4x4xbf16, #tpu.memory_space<vmem>>, vector<1x4x4xbf16>
    %118 = vector.shape_cast %117 : vector<1x4x4xbf16> to vector<4x4xbf16>
    %c0_100 = arith.constant 0 : index
    %c0_101 = arith.constant 0 : index
    %c36 = arith.constant 36 : index
    %119 = vector.load %arg1[%c0_100, %c0_101, %c36] : memref<2x4x362xbf16, #tpu.memory_space<vmem>>, vector<1x4x324xbf16>
    %120 = vector.shape_cast %119 : vector<1x4x324xbf16> to vector<4x324xbf16>
    %cst_102 = arith.constant dense<0.000000e+00> : vector<4x324xf32>
    %121 = tpu.matmul %118, %120, %cst_102 {dimension_numbers = #tpu.dot_dimension_numbers<[1], [0], [0], [1], [0, 0, 1, 1], [], []>} : vector<4x4xbf16>, vector<4x324xbf16>, vector<4x324xf32> -> vector<4x324xf32>
    %122 = arith.addf %116, %121 : vector<4x324xf32>
    %c7 = arith.constant 7 : index
    %c0_103 = arith.constant 0 : index
    %c0_104 = arith.constant 0 : index
    %123 = vector.load %arg6[%c7, %c0_103, %c0_104] : memref<9x4x4xbf16, #tpu.memory_space<vmem>>, vector<1x4x4xbf16>
    %124 = vector.shape_cast %123 : vector<1x4x4xbf16> to vector<4x4xbf16>
    %c0_105 = arith.constant 0 : index
    %c0_106 = arith.constant 0 : index
    %c37 = arith.constant 37 : index
    %125 = vector.load %arg1[%c0_105, %c0_106, %c37] : memref<2x4x362xbf16, #tpu.memory_space<vmem>>, vector<1x4x324xbf16>
    %126 = vector.shape_cast %125 : vector<1x4x324xbf16> to vector<4x324xbf16>
    %cst_107 = arith.constant dense<0.000000e+00> : vector<4x324xf32>
    %127 = tpu.matmul %124, %126, %cst_107 {dimension_numbers = #tpu.dot_dimension_numbers<[1], [0], [0], [1], [0, 0, 1, 1], [], []>} : vector<4x4xbf16>, vector<4x324xbf16>, vector<4x324xf32> -> vector<4x324xf32>
    %128 = arith.addf %122, %127 : vector<4x324xf32>
    %c8 = arith.constant 8 : index
    %c0_108 = arith.constant 0 : index
    %c0_109 = arith.constant 0 : index
    %129 = vector.load %arg6[%c8, %c0_108, %c0_109] : memref<9x4x4xbf16, #tpu.memory_space<vmem>>, vector<1x4x4xbf16>
    %130 = vector.shape_cast %129 : vector<1x4x4xbf16> to vector<4x4xbf16>
    %c0_110 = arith.constant 0 : index
    %c0_111 = arith.constant 0 : index
    %c38 = arith.constant 38 : index
    %131 = vector.load %arg1[%c0_110, %c0_111, %c38] : memref<2x4x362xbf16, #tpu.memory_space<vmem>>, vector<1x4x324xbf16>
    %132 = vector.shape_cast %131 : vector<1x4x324xbf16> to vector<4x324xbf16>
    %cst_112 = arith.constant dense<0.000000e+00> : vector<4x324xf32>
    %133 = tpu.matmul %130, %132, %cst_112 {dimension_numbers = #tpu.dot_dimension_numbers<[1], [0], [0], [1], [0, 0, 1, 1], [], []>} : vector<4x4xbf16>, vector<4x324xbf16>, vector<4x324xf32> -> vector<4x324xf32>
    %134 = arith.addf %128, %133 : vector<4x324xf32>
    %cst_113 = arith.constant 0.000000e+00 : f32
    %135 = vector.broadcast %cst_113 : f32 to vector<4x324xf32>
    %c0_114 = arith.constant 0 : index
    %c0_115 = arith.constant 0 : index
    %c0_116 = arith.constant 0 : index
    %136 = vector.load %arg7[%c0_114, %c0_115, %c0_116] : memref<9x4x4xbf16, #tpu.memory_space<vmem>>, vector<1x4x4xbf16>
    %137 = vector.shape_cast %136 : vector<1x4x4xbf16> to vector<4x4xbf16>
    %c0_117 = arith.constant 0 : index
    %c0_118 = arith.constant 0 : index
    %c0_119 = arith.constant 0 : index
    %138 = vector.load %arg14[%c0_117, %c0_118, %c0_119] : memref<2x4x362xbf16, #tpu.memory_space<vmem>>, vector<1x4x324xbf16>
    %139 = vector.shape_cast %138 : vector<1x4x324xbf16> to vector<4x324xbf16>
    %cst_120 = arith.constant dense<0.000000e+00> : vector<4x324xf32>
    %140 = tpu.matmul %137, %139, %cst_120 {dimension_numbers = #tpu.dot_dimension_numbers<[1], [0], [0], [1], [0, 0, 1, 1], [], []>} : vector<4x4xbf16>, vector<4x324xbf16>, vector<4x324xf32> -> vector<4x324xf32>
    %141 = arith.addf %135, %140 : vector<4x324xf32>
    %c1_121 = arith.constant 1 : index
    %c0_122 = arith.constant 0 : index
    %c0_123 = arith.constant 0 : index
    %142 = vector.load %arg7[%c1_121, %c0_122, %c0_123] : memref<9x4x4xbf16, #tpu.memory_space<vmem>>, vector<1x4x4xbf16>
    %143 = vector.shape_cast %142 : vector<1x4x4xbf16> to vector<4x4xbf16>
    %c0_124 = arith.constant 0 : index
    %c0_125 = arith.constant 0 : index
    %c1_126 = arith.constant 1 : index
    %144 = vector.load %arg14[%c0_124, %c0_125, %c1_126] : memref<2x4x362xbf16, #tpu.memory_space<vmem>>, vector<1x4x324xbf16>
    %145 = vector.shape_cast %144 : vector<1x4x324xbf16> to vector<4x324xbf16>
    %cst_127 = arith.constant dense<0.000000e+00> : vector<4x324xf32>
    %146 = tpu.matmul %143, %145, %cst_127 {dimension_numbers = #tpu.dot_dimension_numbers<[1], [0], [0], [1], [0, 0, 1, 1], [], []>} : vector<4x4xbf16>, vector<4x324xbf16>, vector<4x324xf32> -> vector<4x324xf32>
    %147 = arith.addf %141, %146 : vector<4x324xf32>
    %c2_128 = arith.constant 2 : index
    %c0_129 = arith.constant 0 : index
    %c0_130 = arith.constant 0 : index
    %148 = vector.load %arg7[%c2_128, %c0_129, %c0_130] : memref<9x4x4xbf16, #tpu.memory_space<vmem>>, vector<1x4x4xbf16>
    %149 = vector.shape_cast %148 : vector<1x4x4xbf16> to vector<4x4xbf16>
    %c0_131 = arith.constant 0 : index
    %c0_132 = arith.constant 0 : index
    %c2_133 = arith.constant 2 : index
    %150 = vector.load %arg14[%c0_131, %c0_132, %c2_133] : memref<2x4x362xbf16, #tpu.memory_space<vmem>>, vector<1x4x324xbf16>
    %151 = vector.shape_cast %150 : vector<1x4x324xbf16> to vector<4x324xbf16>
    %cst_134 = arith.constant dense<0.000000e+00> : vector<4x324xf32>
    %152 = tpu.matmul %149, %151, %cst_134 {dimension_numbers = #tpu.dot_dimension_numbers<[1], [0], [0], [1], [0, 0, 1, 1], [], []>} : vector<4x4xbf16>, vector<4x324xbf16>, vector<4x324xf32> -> vector<4x324xf32>
    %153 = arith.addf %147, %152 : vector<4x324xf32>
    %c3_135 = arith.constant 3 : index
    %c0_136 = arith.constant 0 : index
    %c0_137 = arith.constant 0 : index
    %154 = vector.load %arg7[%c3_135, %c0_136, %c0_137] : memref<9x4x4xbf16, #tpu.memory_space<vmem>>, vector<1x4x4xbf16>
    %155 = vector.shape_cast %154 : vector<1x4x4xbf16> to vector<4x4xbf16>
    %c0_138 = arith.constant 0 : index
    %c0_139 = arith.constant 0 : index
    %c18_140 = arith.constant 18 : index
    %156 = vector.load %arg14[%c0_138, %c0_139, %c18_140] : memref<2x4x362xbf16, #tpu.memory_space<vmem>>, vector<1x4x324xbf16>
    %157 = vector.shape_cast %156 : vector<1x4x324xbf16> to vector<4x324xbf16>
    %cst_141 = arith.constant dense<0.000000e+00> : vector<4x324xf32>
    %158 = tpu.matmul %155, %157, %cst_141 {dimension_numbers = #tpu.dot_dimension_numbers<[1], [0], [0], [1], [0, 0, 1, 1], [], []>} : vector<4x4xbf16>, vector<4x324xbf16>, vector<4x324xf32> -> vector<4x324xf32>
    %159 = arith.addf %153, %158 : vector<4x324xf32>
    %c4_142 = arith.constant 4 : index
    %c0_143 = arith.constant 0 : index
    %c0_144 = arith.constant 0 : index
    %160 = vector.load %arg7[%c4_142, %c0_143, %c0_144] : memref<9x4x4xbf16, #tpu.memory_space<vmem>>, vector<1x4x4xbf16>
    %161 = vector.shape_cast %160 : vector<1x4x4xbf16> to vector<4x4xbf16>
    %c0_145 = arith.constant 0 : index
    %c0_146 = arith.constant 0 : index
    %c19_147 = arith.constant 19 : index
    %162 = vector.load %arg14[%c0_145, %c0_146, %c19_147] : memref<2x4x362xbf16, #tpu.memory_space<vmem>>, vector<1x4x324xbf16>
    %163 = vector.shape_cast %162 : vector<1x4x324xbf16> to vector<4x324xbf16>
    %cst_148 = arith.constant dense<0.000000e+00> : vector<4x324xf32>
    %164 = tpu.matmul %161, %163, %cst_148 {dimension_numbers = #tpu.dot_dimension_numbers<[1], [0], [0], [1], [0, 0, 1, 1], [], []>} : vector<4x4xbf16>, vector<4x324xbf16>, vector<4x324xf32> -> vector<4x324xf32>
    %165 = arith.addf %159, %164 : vector<4x324xf32>
    %c5_149 = arith.constant 5 : index
    %c0_150 = arith.constant 0 : index
    %c0_151 = arith.constant 0 : index
    %166 = vector.load %arg7[%c5_149, %c0_150, %c0_151] : memref<9x4x4xbf16, #tpu.memory_space<vmem>>, vector<1x4x4xbf16>
    %167 = vector.shape_cast %166 : vector<1x4x4xbf16> to vector<4x4xbf16>
    %c0_152 = arith.constant 0 : index
    %c0_153 = arith.constant 0 : index
    %c20_154 = arith.constant 20 : index
    %168 = vector.load %arg14[%c0_152, %c0_153, %c20_154] : memref<2x4x362xbf16, #tpu.memory_space<vmem>>, vector<1x4x324xbf16>
    %169 = vector.shape_cast %168 : vector<1x4x324xbf16> to vector<4x324xbf16>
    %cst_155 = arith.constant dense<0.000000e+00> : vector<4x324xf32>
    %170 = tpu.matmul %167, %169, %cst_155 {dimension_numbers = #tpu.dot_dimension_numbers<[1], [0], [0], [1], [0, 0, 1, 1], [], []>} : vector<4x4xbf16>, vector<4x324xbf16>, vector<4x324xf32> -> vector<4x324xf32>
    %171 = arith.addf %165, %170 : vector<4x324xf32>
    %c6_156 = arith.constant 6 : index
    %c0_157 = arith.constant 0 : index
    %c0_158 = arith.constant 0 : index
    %172 = vector.load %arg7[%c6_156, %c0_157, %c0_158] : memref<9x4x4xbf16, #tpu.memory_space<vmem>>, vector<1x4x4xbf16>
    %173 = vector.shape_cast %172 : vector<1x4x4xbf16> to vector<4x4xbf16>
    %c0_159 = arith.constant 0 : index
    %c0_160 = arith.constant 0 : index
    %c36_161 = arith.constant 36 : index
    %174 = vector.load %arg14[%c0_159, %c0_160, %c36_161] : memref<2x4x362xbf16, #tpu.memory_space<vmem>>, vector<1x4x324xbf16>
    %175 = vector.shape_cast %174 : vector<1x4x324xbf16> to vector<4x324xbf16>
    %cst_162 = arith.constant dense<0.000000e+00> : vector<4x324xf32>
    %176 = tpu.matmul %173, %175, %cst_162 {dimension_numbers = #tpu.dot_dimension_numbers<[1], [0], [0], [1], [0, 0, 1, 1], [], []>} : vector<4x4xbf16>, vector<4x324xbf16>, vector<4x324xf32> -> vector<4x324xf32>
    %177 = arith.addf %171, %176 : vector<4x324xf32>
    %c7_163 = arith.constant 7 : index
    %c0_164 = arith.constant 0 : index
    %c0_165 = arith.constant 0 : index
    %178 = vector.load %arg7[%c7_163, %c0_164, %c0_165] : memref<9x4x4xbf16, #tpu.memory_space<vmem>>, vector<1x4x4xbf16>
    %179 = vector.shape_cast %178 : vector<1x4x4xbf16> to vector<4x4xbf16>
    %c0_166 = arith.constant 0 : index
    %c0_167 = arith.constant 0 : index
    %c37_168 = arith.constant 37 : index
    %180 = vector.load %arg14[%c0_166, %c0_167, %c37_168] : memref<2x4x362xbf16, #tpu.memory_space<vmem>>, vector<1x4x324xbf16>
    %181 = vector.shape_cast %180 : vector<1x4x324xbf16> to vector<4x324xbf16>
    %cst_169 = arith.constant dense<0.000000e+00> : vector<4x324xf32>
    %182 = tpu.matmul %179, %181, %cst_169 {dimension_numbers = #tpu.dot_dimension_numbers<[1], [0], [0], [1], [0, 0, 1, 1], [], []>} : vector<4x4xbf16>, vector<4x324xbf16>, vector<4x324xf32> -> vector<4x324xf32>
    %183 = arith.addf %177, %182 : vector<4x324xf32>
    %c8_170 = arith.constant 8 : index
    %c0_171 = arith.constant 0 : index
    %c0_172 = arith.constant 0 : index
    %184 = vector.load %arg7[%c8_170, %c0_171, %c0_172] : memref<9x4x4xbf16, #tpu.memory_space<vmem>>, vector<1x4x4xbf16>
    %185 = vector.shape_cast %184 : vector<1x4x4xbf16> to vector<4x4xbf16>
    %c0_173 = arith.constant 0 : index
    %c0_174 = arith.constant 0 : index
    %c38_175 = arith.constant 38 : index
    %186 = vector.load %arg14[%c0_173, %c0_174, %c38_175] : memref<2x4x362xbf16, #tpu.memory_space<vmem>>, vector<1x4x324xbf16>
    %187 = vector.shape_cast %186 : vector<1x4x324xbf16> to vector<4x324xbf16>
    %cst_176 = arith.constant dense<0.000000e+00> : vector<4x324xf32>
    %188 = tpu.matmul %185, %187, %cst_176 {dimension_numbers = #tpu.dot_dimension_numbers<[1], [0], [0], [1], [0, 0, 1, 1], [], []>} : vector<4x4xbf16>, vector<4x324xbf16>, vector<4x324xf32> -> vector<4x324xf32>
    %189 = arith.addf %183, %188 : vector<4x324xf32>
    %190 = arith.addf %134, %189 : vector<4x324xf32>
    %cst_177 = arith.constant 0.000000e+00 : f32
    %191 = vector.broadcast %cst_177 : f32 to vector<4x324xf32>
    %c0_178 = arith.constant 0 : index
    %c0_179 = arith.constant 0 : index
    %c0_180 = arith.constant 0 : index
    %192 = vector.load %arg6[%c0_178, %c0_179, %c0_180] : memref<9x4x4xbf16, #tpu.memory_space<vmem>>, vector<1x4x4xbf16>
    %193 = vector.shape_cast %192 : vector<1x4x4xbf16> to vector<4x4xbf16>
    %c1_181 = arith.constant 1 : index
    %c0_182 = arith.constant 0 : index
    %c0_183 = arith.constant 0 : index
    %194 = vector.load %arg1[%c1_181, %c0_182, %c0_183] : memref<2x4x362xbf16, #tpu.memory_space<vmem>>, vector<1x4x324xbf16>
    %195 = vector.shape_cast %194 : vector<1x4x324xbf16> to vector<4x324xbf16>
    %cst_184 = arith.constant dense<0.000000e+00> : vector<4x324xf32>
    %196 = tpu.matmul %193, %195, %cst_184 {dimension_numbers = #tpu.dot_dimension_numbers<[1], [0], [0], [1], [0, 0, 1, 1], [], []>} : vector<4x4xbf16>, vector<4x324xbf16>, vector<4x324xf32> -> vector<4x324xf32>
    %197 = arith.addf %191, %196 : vector<4x324xf32>
    %c1_185 = arith.constant 1 : index
    %c0_186 = arith.constant 0 : index
    %c0_187 = arith.constant 0 : index
    %198 = vector.load %arg6[%c1_185, %c0_186, %c0_187] : memref<9x4x4xbf16, #tpu.memory_space<vmem>>, vector<1x4x4xbf16>
    %199 = vector.shape_cast %198 : vector<1x4x4xbf16> to vector<4x4xbf16>
    %c1_188 = arith.constant 1 : index
    %c0_189 = arith.constant 0 : index
    %c1_190 = arith.constant 1 : index
    %200 = vector.load %arg1[%c1_188, %c0_189, %c1_190] : memref<2x4x362xbf16, #tpu.memory_space<vmem>>, vector<1x4x324xbf16>
    %201 = vector.shape_cast %200 : vector<1x4x324xbf16> to vector<4x324xbf16>
    %cst_191 = arith.constant dense<0.000000e+00> : vector<4x324xf32>
    %202 = tpu.matmul %199, %201, %cst_191 {dimension_numbers = #tpu.dot_dimension_numbers<[1], [0], [0], [1], [0, 0, 1, 1], [], []>} : vector<4x4xbf16>, vector<4x324xbf16>, vector<4x324xf32> -> vector<4x324xf32>
    %203 = arith.addf %197, %202 : vector<4x324xf32>
    %c2_192 = arith.constant 2 : index
    %c0_193 = arith.constant 0 : index
    %c0_194 = arith.constant 0 : index
    %204 = vector.load %arg6[%c2_192, %c0_193, %c0_194] : memref<9x4x4xbf16, #tpu.memory_space<vmem>>, vector<1x4x4xbf16>
    %205 = vector.shape_cast %204 : vector<1x4x4xbf16> to vector<4x4xbf16>
    %c1_195 = arith.constant 1 : index
    %c0_196 = arith.constant 0 : index
    %c2_197 = arith.constant 2 : index
    %206 = vector.load %arg1[%c1_195, %c0_196, %c2_197] : memref<2x4x362xbf16, #tpu.memory_space<vmem>>, vector<1x4x324xbf16>
    %207 = vector.shape_cast %206 : vector<1x4x324xbf16> to vector<4x324xbf16>
    %cst_198 = arith.constant dense<0.000000e+00> : vector<4x324xf32>
    %208 = tpu.matmul %205, %207, %cst_198 {dimension_numbers = #tpu.dot_dimension_numbers<[1], [0], [0], [1], [0, 0, 1, 1], [], []>} : vector<4x4xbf16>, vector<4x324xbf16>, vector<4x324xf32> -> vector<4x324xf32>
    %209 = arith.addf %203, %208 : vector<4x324xf32>
    %c3_199 = arith.constant 3 : index
    %c0_200 = arith.constant 0 : index
    %c0_201 = arith.constant 0 : index
    %210 = vector.load %arg6[%c3_199, %c0_200, %c0_201] : memref<9x4x4xbf16, #tpu.memory_space<vmem>>, vector<1x4x4xbf16>
    %211 = vector.shape_cast %210 : vector<1x4x4xbf16> to vector<4x4xbf16>
    %c1_202 = arith.constant 1 : index
    %c0_203 = arith.constant 0 : index
    %c18_204 = arith.constant 18 : index
    %212 = vector.load %arg1[%c1_202, %c0_203, %c18_204] : memref<2x4x362xbf16, #tpu.memory_space<vmem>>, vector<1x4x324xbf16>
    %213 = vector.shape_cast %212 : vector<1x4x324xbf16> to vector<4x324xbf16>
    %cst_205 = arith.constant dense<0.000000e+00> : vector<4x324xf32>
    %214 = tpu.matmul %211, %213, %cst_205 {dimension_numbers = #tpu.dot_dimension_numbers<[1], [0], [0], [1], [0, 0, 1, 1], [], []>} : vector<4x4xbf16>, vector<4x324xbf16>, vector<4x324xf32> -> vector<4x324xf32>
    %215 = arith.addf %209, %214 : vector<4x324xf32>
    %c4_206 = arith.constant 4 : index
    %c0_207 = arith.constant 0 : index
    %c0_208 = arith.constant 0 : index
    %216 = vector.load %arg6[%c4_206, %c0_207, %c0_208] : memref<9x4x4xbf16, #tpu.memory_space<vmem>>, vector<1x4x4xbf16>
    %217 = vector.shape_cast %216 : vector<1x4x4xbf16> to vector<4x4xbf16>
    %c1_209 = arith.constant 1 : index
    %c0_210 = arith.constant 0 : index
    %c19_211 = arith.constant 19 : index
    %218 = vector.load %arg1[%c1_209, %c0_210, %c19_211] : memref<2x4x362xbf16, #tpu.memory_space<vmem>>, vector<1x4x324xbf16>
    %219 = vector.shape_cast %218 : vector<1x4x324xbf16> to vector<4x324xbf16>
    %cst_212 = arith.constant dense<0.000000e+00> : vector<4x324xf32>
    %220 = tpu.matmul %217, %219, %cst_212 {dimension_numbers = #tpu.dot_dimension_numbers<[1], [0], [0], [1], [0, 0, 1, 1], [], []>} : vector<4x4xbf16>, vector<4x324xbf16>, vector<4x324xf32> -> vector<4x324xf32>
    %221 = arith.addf %215, %220 : vector<4x324xf32>
    %c5_213 = arith.constant 5 : index
    %c0_214 = arith.constant 0 : index
    %c0_215 = arith.constant 0 : index
    %222 = vector.load %arg6[%c5_213, %c0_214, %c0_215] : memref<9x4x4xbf16, #tpu.memory_space<vmem>>, vector<1x4x4xbf16>
    %223 = vector.shape_cast %222 : vector<1x4x4xbf16> to vector<4x4xbf16>
    %c1_216 = arith.constant 1 : index
    %c0_217 = arith.constant 0 : index
    %c20_218 = arith.constant 20 : index
    %224 = vector.load %arg1[%c1_216, %c0_217, %c20_218] : memref<2x4x362xbf16, #tpu.memory_space<vmem>>, vector<1x4x324xbf16>
    %225 = vector.shape_cast %224 : vector<1x4x324xbf16> to vector<4x324xbf16>
    %cst_219 = arith.constant dense<0.000000e+00> : vector<4x324xf32>
    %226 = tpu.matmul %223, %225, %cst_219 {dimension_numbers = #tpu.dot_dimension_numbers<[1], [0], [0], [1], [0, 0, 1, 1], [], []>} : vector<4x4xbf16>, vector<4x324xbf16>, vector<4x324xf32> -> vector<4x324xf32>
    %227 = arith.addf %221, %226 : vector<4x324xf32>
    %c6_220 = arith.constant 6 : index
    %c0_221 = arith.constant 0 : index
    %c0_222 = arith.constant 0 : index
    %228 = vector.load %arg6[%c6_220, %c0_221, %c0_222] : memref<9x4x4xbf16, #tpu.memory_space<vmem>>, vector<1x4x4xbf16>
    %229 = vector.shape_cast %228 : vector<1x4x4xbf16> to vector<4x4xbf16>
    %c1_223 = arith.constant 1 : index
    %c0_224 = arith.constant 0 : index
    %c36_225 = arith.constant 36 : index
    %230 = vector.load %arg1[%c1_223, %c0_224, %c36_225] : memref<2x4x362xbf16, #tpu.memory_space<vmem>>, vector<1x4x324xbf16>
    %231 = vector.shape_cast %230 : vector<1x4x324xbf16> to vector<4x324xbf16>
    %cst_226 = arith.constant dense<0.000000e+00> : vector<4x324xf32>
    %232 = tpu.matmul %229, %231, %cst_226 {dimension_numbers = #tpu.dot_dimension_numbers<[1], [0], [0], [1], [0, 0, 1, 1], [], []>} : vector<4x4xbf16>, vector<4x324xbf16>, vector<4x324xf32> -> vector<4x324xf32>
    %233 = arith.addf %227, %232 : vector<4x324xf32>
    %c7_227 = arith.constant 7 : index
    %c0_228 = arith.constant 0 : index
    %c0_229 = arith.constant 0 : index
    %234 = vector.load %arg6[%c7_227, %c0_228, %c0_229] : memref<9x4x4xbf16, #tpu.memory_space<vmem>>, vector<1x4x4xbf16>
    %235 = vector.shape_cast %234 : vector<1x4x4xbf16> to vector<4x4xbf16>
    %c1_230 = arith.constant 1 : index
    %c0_231 = arith.constant 0 : index
    %c37_232 = arith.constant 37 : index
    %236 = vector.load %arg1[%c1_230, %c0_231, %c37_232] : memref<2x4x362xbf16, #tpu.memory_space<vmem>>, vector<1x4x324xbf16>
    %237 = vector.shape_cast %236 : vector<1x4x324xbf16> to vector<4x324xbf16>
    %cst_233 = arith.constant dense<0.000000e+00> : vector<4x324xf32>
    %238 = tpu.matmul %235, %237, %cst_233 {dimension_numbers = #tpu.dot_dimension_numbers<[1], [0], [0], [1], [0, 0, 1, 1], [], []>} : vector<4x4xbf16>, vector<4x324xbf16>, vector<4x324xf32> -> vector<4x324xf32>
    %239 = arith.addf %233, %238 : vector<4x324xf32>
    %c8_234 = arith.constant 8 : index
    %c0_235 = arith.constant 0 : index
    %c0_236 = arith.constant 0 : index
    %240 = vector.load %arg6[%c8_234, %c0_235, %c0_236] : memref<9x4x4xbf16, #tpu.memory_space<vmem>>, vector<1x4x4xbf16>
    %241 = vector.shape_cast %240 : vector<1x4x4xbf16> to vector<4x4xbf16>
    %c1_237 = arith.constant 1 : index
    %c0_238 = arith.constant 0 : index
    %c38_239 = arith.constant 38 : index
    %242 = vector.load %arg1[%c1_237, %c0_238, %c38_239] : memref<2x4x362xbf16, #tpu.memory_space<vmem>>, vector<1x4x324xbf16>
    %243 = vector.shape_cast %242 : vector<1x4x324xbf16> to vector<4x324xbf16>
    %cst_240 = arith.constant dense<0.000000e+00> : vector<4x324xf32>
    %244 = tpu.matmul %241, %243, %cst_240 {dimension_numbers = #tpu.dot_dimension_numbers<[1], [0], [0], [1], [0, 0, 1, 1], [], []>} : vector<4x4xbf16>, vector<4x324xbf16>, vector<4x324xf32> -> vector<4x324xf32>
    %245 = arith.addf %239, %244 : vector<4x324xf32>
    %cst_241 = arith.constant 0.000000e+00 : f32
    %246 = vector.broadcast %cst_241 : f32 to vector<4x324xf32>
    %c0_242 = arith.constant 0 : index
    %c0_243 = arith.constant 0 : index
    %c0_244 = arith.constant 0 : index
    %247 = vector.load %arg7[%c0_242, %c0_243, %c0_244] : memref<9x4x4xbf16, #tpu.memory_space<vmem>>, vector<1x4x4xbf16>
    %248 = vector.shape_cast %247 : vector<1x4x4xbf16> to vector<4x4xbf16>
    %c1_245 = arith.constant 1 : index
    %c0_246 = arith.constant 0 : index
    %c0_247 = arith.constant 0 : index
    %249 = vector.load %arg14[%c1_245, %c0_246, %c0_247] : memref<2x4x362xbf16, #tpu.memory_space<vmem>>, vector<1x4x324xbf16>
    %250 = vector.shape_cast %249 : vector<1x4x324xbf16> to vector<4x324xbf16>
    %cst_248 = arith.constant dense<0.000000e+00> : vector<4x324xf32>
    %251 = tpu.matmul %248, %250, %cst_248 {dimension_numbers = #tpu.dot_dimension_numbers<[1], [0], [0], [1], [0, 0, 1, 1], [], []>} : vector<4x4xbf16>, vector<4x324xbf16>, vector<4x324xf32> -> vector<4x324xf32>
    %252 = arith.addf %246, %251 : vector<4x324xf32>
    %c1_249 = arith.constant 1 : index
    %c0_250 = arith.constant 0 : index
    %c0_251 = arith.constant 0 : index
    %253 = vector.load %arg7[%c1_249, %c0_250, %c0_251] : memref<9x4x4xbf16, #tpu.memory_space<vmem>>, vector<1x4x4xbf16>
    %254 = vector.shape_cast %253 : vector<1x4x4xbf16> to vector<4x4xbf16>
    %c1_252 = arith.constant 1 : index
    %c0_253 = arith.constant 0 : index
    %c1_254 = arith.constant 1 : index
    %255 = vector.load %arg14[%c1_252, %c0_253, %c1_254] : memref<2x4x362xbf16, #tpu.memory_space<vmem>>, vector<1x4x324xbf16>
    %256 = vector.shape_cast %255 : vector<1x4x324xbf16> to vector<4x324xbf16>
    %cst_255 = arith.constant dense<0.000000e+00> : vector<4x324xf32>
    %257 = tpu.matmul %254, %256, %cst_255 {dimension_numbers = #tpu.dot_dimension_numbers<[1], [0], [0], [1], [0, 0, 1, 1], [], []>} : vector<4x4xbf16>, vector<4x324xbf16>, vector<4x324xf32> -> vector<4x324xf32>
    %258 = arith.addf %252, %257 : vector<4x324xf32>
    %c2_256 = arith.constant 2 : index
    %c0_257 = arith.constant 0 : index
    %c0_258 = arith.constant 0 : index
    %259 = vector.load %arg7[%c2_256, %c0_257, %c0_258] : memref<9x4x4xbf16, #tpu.memory_space<vmem>>, vector<1x4x4xbf16>
    %260 = vector.shape_cast %259 : vector<1x4x4xbf16> to vector<4x4xbf16>
    %c1_259 = arith.constant 1 : index
    %c0_260 = arith.constant 0 : index
    %c2_261 = arith.constant 2 : index
    %261 = vector.load %arg14[%c1_259, %c0_260, %c2_261] : memref<2x4x362xbf16, #tpu.memory_space<vmem>>, vector<1x4x324xbf16>
    %262 = vector.shape_cast %261 : vector<1x4x324xbf16> to vector<4x324xbf16>
    %cst_262 = arith.constant dense<0.000000e+00> : vector<4x324xf32>
    %263 = tpu.matmul %260, %262, %cst_262 {dimension_numbers = #tpu.dot_dimension_numbers<[1], [0], [0], [1], [0, 0, 1, 1], [], []>} : vector<4x4xbf16>, vector<4x324xbf16>, vector<4x324xf32> -> vector<4x324xf32>
    %264 = arith.addf %258, %263 : vector<4x324xf32>
    %c3_263 = arith.constant 3 : index
    %c0_264 = arith.constant 0 : index
    %c0_265 = arith.constant 0 : index
    %265 = vector.load %arg7[%c3_263, %c0_264, %c0_265] : memref<9x4x4xbf16, #tpu.memory_space<vmem>>, vector<1x4x4xbf16>
    %266 = vector.shape_cast %265 : vector<1x4x4xbf16> to vector<4x4xbf16>
    %c1_266 = arith.constant 1 : index
    %c0_267 = arith.constant 0 : index
    %c18_268 = arith.constant 18 : index
    %267 = vector.load %arg14[%c1_266, %c0_267, %c18_268] : memref<2x4x362xbf16, #tpu.memory_space<vmem>>, vector<1x4x324xbf16>
    %268 = vector.shape_cast %267 : vector<1x4x324xbf16> to vector<4x324xbf16>
    %cst_269 = arith.constant dense<0.000000e+00> : vector<4x324xf32>
    %269 = tpu.matmul %266, %268, %cst_269 {dimension_numbers = #tpu.dot_dimension_numbers<[1], [0], [0], [1], [0, 0, 1, 1], [], []>} : vector<4x4xbf16>, vector<4x324xbf16>, vector<4x324xf32> -> vector<4x324xf32>
    %270 = arith.addf %264, %269 : vector<4x324xf32>
    %c4_270 = arith.constant 4 : index
    %c0_271 = arith.constant 0 : index
    %c0_272 = arith.constant 0 : index
    %271 = vector.load %arg7[%c4_270, %c0_271, %c0_272] : memref<9x4x4xbf16, #tpu.memory_space<vmem>>, vector<1x4x4xbf16>
    %272 = vector.shape_cast %271 : vector<1x4x4xbf16> to vector<4x4xbf16>
    %c1_273 = arith.constant 1 : index
    %c0_274 = arith.constant 0 : index
    %c19_275 = arith.constant 19 : index
    %273 = vector.load %arg14[%c1_273, %c0_274, %c19_275] : memref<2x4x362xbf16, #tpu.memory_space<vmem>>, vector<1x4x324xbf16>
    %274 = vector.shape_cast %273 : vector<1x4x324xbf16> to vector<4x324xbf16>
    %cst_276 = arith.constant dense<0.000000e+00> : vector<4x324xf32>
    %275 = tpu.matmul %272, %274, %cst_276 {dimension_numbers = #tpu.dot_dimension_numbers<[1], [0], [0], [1], [0, 0, 1, 1], [], []>} : vector<4x4xbf16>, vector<4x324xbf16>, vector<4x324xf32> -> vector<4x324xf32>
    %276 = arith.addf %270, %275 : vector<4x324xf32>
    %c5_277 = arith.constant 5 : index
    %c0_278 = arith.constant 0 : index
    %c0_279 = arith.constant 0 : index
    %277 = vector.load %arg7[%c5_277, %c0_278, %c0_279] : memref<9x4x4xbf16, #tpu.memory_space<vmem>>, vector<1x4x4xbf16>
    %278 = vector.shape_cast %277 : vector<1x4x4xbf16> to vector<4x4xbf16>
    %c1_280 = arith.constant 1 : index
    %c0_281 = arith.constant 0 : index
    %c20_282 = arith.constant 20 : index
    %279 = vector.load %arg14[%c1_280, %c0_281, %c20_282] : memref<2x4x362xbf16, #tpu.memory_space<vmem>>, vector<1x4x324xbf16>
    %280 = vector.shape_cast %279 : vector<1x4x324xbf16> to vector<4x324xbf16>
    %cst_283 = arith.constant dense<0.000000e+00> : vector<4x324xf32>
    %281 = tpu.matmul %278, %280, %cst_283 {dimension_numbers = #tpu.dot_dimension_numbers<[1], [0], [0], [1], [0, 0, 1, 1], [], []>} : vector<4x4xbf16>, vector<4x324xbf16>, vector<4x324xf32> -> vector<4x324xf32>
    %282 = arith.addf %276, %281 : vector<4x324xf32>
    %c6_284 = arith.constant 6 : index
    %c0_285 = arith.constant 0 : index
    %c0_286 = arith.constant 0 : index
    %283 = vector.load %arg7[%c6_284, %c0_285, %c0_286] : memref<9x4x4xbf16, #tpu.memory_space<vmem>>, vector<1x4x4xbf16>
    %284 = vector.shape_cast %283 : vector<1x4x4xbf16> to vector<4x4xbf16>
    %c1_287 = arith.constant 1 : index
    %c0_288 = arith.constant 0 : index
    %c36_289 = arith.constant 36 : index
    %285 = vector.load %arg14[%c1_287, %c0_288, %c36_289] : memref<2x4x362xbf16, #tpu.memory_space<vmem>>, vector<1x4x324xbf16>
    %286 = vector.shape_cast %285 : vector<1x4x324xbf16> to vector<4x324xbf16>
    %cst_290 = arith.constant dense<0.000000e+00> : vector<4x324xf32>
    %287 = tpu.matmul %284, %286, %cst_290 {dimension_numbers = #tpu.dot_dimension_numbers<[1], [0], [0], [1], [0, 0, 1, 1], [], []>} : vector<4x4xbf16>, vector<4x324xbf16>, vector<4x324xf32> -> vector<4x324xf32>
    %288 = arith.addf %282, %287 : vector<4x324xf32>
    %c7_291 = arith.constant 7 : index
    %c0_292 = arith.constant 0 : index
    %c0_293 = arith.constant 0 : index
    %289 = vector.load %arg7[%c7_291, %c0_292, %c0_293] : memref<9x4x4xbf16, #tpu.memory_space<vmem>>, vector<1x4x4xbf16>
    %290 = vector.shape_cast %289 : vector<1x4x4xbf16> to vector<4x4xbf16>
    %c1_294 = arith.constant 1 : index
    %c0_295 = arith.constant 0 : index
    %c37_296 = arith.constant 37 : index
    %291 = vector.load %arg14[%c1_294, %c0_295, %c37_296] : memref<2x4x362xbf16, #tpu.memory_space<vmem>>, vector<1x4x324xbf16>
    %292 = vector.shape_cast %291 : vector<1x4x324xbf16> to vector<4x324xbf16>
    %cst_297 = arith.constant dense<0.000000e+00> : vector<4x324xf32>
    %293 = tpu.matmul %290, %292, %cst_297 {dimension_numbers = #tpu.dot_dimension_numbers<[1], [0], [0], [1], [0, 0, 1, 1], [], []>} : vector<4x4xbf16>, vector<4x324xbf16>, vector<4x324xf32> -> vector<4x324xf32>
    %294 = arith.addf %288, %293 : vector<4x324xf32>
    %c8_298 = arith.constant 8 : index
    %c0_299 = arith.constant 0 : index
    %c0_300 = arith.constant 0 : index
    %295 = vector.load %arg7[%c8_298, %c0_299, %c0_300] : memref<9x4x4xbf16, #tpu.memory_space<vmem>>, vector<1x4x4xbf16>
    %296 = vector.shape_cast %295 : vector<1x4x4xbf16> to vector<4x4xbf16>
    %c1_301 = arith.constant 1 : index
    %c0_302 = arith.constant 0 : index
    %c38_303 = arith.constant 38 : index
    %297 = vector.load %arg14[%c1_301, %c0_302, %c38_303] : memref<2x4x362xbf16, #tpu.memory_space<vmem>>, vector<1x4x324xbf16>
    %298 = vector.shape_cast %297 : vector<1x4x324xbf16> to vector<4x324xbf16>
    %cst_304 = arith.constant dense<0.000000e+00> : vector<4x324xf32>
    %299 = tpu.matmul %296, %298, %cst_304 {dimension_numbers = #tpu.dot_dimension_numbers<[1], [0], [0], [1], [0, 0, 1, 1], [], []>} : vector<4x4xbf16>, vector<4x324xbf16>, vector<4x324xf32> -> vector<4x324xf32>
    %300 = arith.addf %294, %299 : vector<4x324xf32>
    %301 = arith.addf %245, %300 : vector<4x324xf32>
    %302 = vector.broadcast %0 : vector<1x324xf32> to vector<4x324xf32>
    %303 = arith.mulf %190, %302 : vector<4x324xf32>
    %cst_305 = arith.constant dense<0.000000e+00> : vector<4xf32>
    %304 = vector.multi_reduction <add>, %303, %cst_305 [1] : vector<4x324xf32> to vector<4xf32>
    %305 = vector.shape_cast %304 : vector<4xf32> to vector<4x1xf32>
    %cst_306 = arith.constant 0.000000e+00 : f32
    %306 = vector.broadcast %cst_306 : f32 to vector<4x1xf32>
    %307 = arith.addf %306, %305 : vector<4x1xf32>
    %308 = vector.broadcast %0 : vector<1x324xf32> to vector<4x324xf32>
    %309 = arith.mulf %301, %308 : vector<4x324xf32>
    %cst_307 = arith.constant dense<0.000000e+00> : vector<4xf32>
    %310 = vector.multi_reduction <add>, %309, %cst_307 [1] : vector<4x324xf32> to vector<4xf32>
    %311 = vector.shape_cast %310 : vector<4xf32> to vector<4x1xf32>
    %312 = arith.addf %307, %311 : vector<4x1xf32>
    %cst_308 = arith.constant 5.120000e+02 : f32
    %313 = vector.broadcast %cst_308 : f32 to vector<4x1xf32>
    %314 = arith.divf %312, %313 : vector<4x1xf32>
    %315 = vector.broadcast %314 : vector<4x1xf32> to vector<4x324xf32>
    %316 = arith.subf %190, %315 : vector<4x324xf32>
    %317 = arith.mulf %316, %316 : vector<4x324xf32>
    %318 = vector.broadcast %0 : vector<1x324xf32> to vector<4x324xf32>
    %319 = arith.mulf %318, %317 : vector<4x324xf32>
    %cst_309 = arith.constant dense<0.000000e+00> : vector<4xf32>
    %320 = vector.multi_reduction <add>, %319, %cst_309 [1] : vector<4x324xf32> to vector<4xf32>
    %321 = vector.shape_cast %320 : vector<4xf32> to vector<4x1xf32>
    %cst_310 = arith.constant 0.000000e+00 : f32
    %322 = vector.broadcast %cst_310 : f32 to vector<4x1xf32>
    %323 = arith.addf %322, %321 : vector<4x1xf32>
    %324 = vector.broadcast %314 : vector<4x1xf32> to vector<4x324xf32>
    %325 = arith.subf %301, %324 : vector<4x324xf32>
    %326 = arith.mulf %325, %325 : vector<4x324xf32>
    %327 = vector.broadcast %0 : vector<1x324xf32> to vector<4x324xf32>
    %328 = arith.mulf %327, %326 : vector<4x324xf32>
    %cst_311 = arith.constant dense<0.000000e+00> : vector<4xf32>
    %329 = vector.multi_reduction <add>, %328, %cst_311 [1] : vector<4x324xf32> to vector<4xf32>
    %330 = vector.shape_cast %329 : vector<4xf32> to vector<4x1xf32>
    %331 = arith.addf %323, %330 : vector<4x1xf32>
    %cst_312 = arith.constant 5.120000e+02 : f32
    %332 = vector.broadcast %cst_312 : f32 to vector<4x1xf32>
    %333 = arith.divf %331, %332 : vector<4x1xf32>
    %c0_313 = arith.constant 0 : index
    %c0_314 = arith.constant 0 : index
    %334 = vector.load %arg8[%c0_313, %c0_314] : memref<4x1xf32, #tpu.memory_space<vmem>>, vector<4x1xf32>
    %cst_315 = arith.constant 9.99999974E-6 : f32
    %335 = vector.broadcast %cst_315 : f32 to vector<4x1xf32>
    %336 = arith.addf %333, %335 : vector<4x1xf32>
    %337 = math.rsqrt %336 : vector<4x1xf32>
    %338 = arith.mulf %334, %337 : vector<4x1xf32>
    %c0_316 = arith.constant 0 : index
    %c0_317 = arith.constant 0 : index
    %339 = vector.load %arg9[%c0_316, %c0_317] : memref<4x1xf32, #tpu.memory_space<vmem>>, vector<4x1xf32>
    %340 = arith.mulf %314, %338 : vector<4x1xf32>
    %341 = arith.subf %339, %340 : vector<4x1xf32>
    %342 = vector.broadcast %338 : vector<4x1xf32> to vector<4x324xf32>
    %343 = arith.mulf %190, %342 : vector<4x324xf32>
    %344 = vector.broadcast %341 : vector<4x1xf32> to vector<4x324xf32>
    %345 = arith.addf %343, %344 : vector<4x324xf32>
    %cst_318 = arith.constant 0.000000e+00 : f32
    %346 = vector.broadcast %cst_318 : f32 to vector<4x324xf32>
    %347 = arith.maximumf %345, %346 : vector<4x324xf32>
    %348 = vector.broadcast %0 : vector<1x324xf32> to vector<4x324xf32>
    %349 = arith.mulf %348, %347 : vector<4x324xf32>
    %350 = vector.broadcast %338 : vector<4x1xf32> to vector<4x324xf32>
    %351 = arith.mulf %301, %350 : vector<4x324xf32>
    %352 = vector.broadcast %341 : vector<4x1xf32> to vector<4x324xf32>
    %353 = arith.addf %351, %352 : vector<4x324xf32>
    %cst_319 = arith.constant 0.000000e+00 : f32
    %354 = vector.broadcast %cst_319 : f32 to vector<4x324xf32>
    %355 = arith.maximumf %353, %354 : vector<4x324xf32>
    %356 = vector.broadcast %0 : vector<1x324xf32> to vector<4x324xf32>
    %357 = arith.mulf %356, %355 : vector<4x324xf32>
    %358 = arith.truncf %349 : vector<4x324xf32> to vector<4x324xbf16>
    %c0_320 = arith.constant 0 : index
    %c0_321 = arith.constant 0 : index
    %c19_322 = arith.constant 19 : index
    %359 = vector.load %arg15[%c0_320, %c0_321, %c19_322] : memref<2x4x362xbf16, #tpu.memory_space<vmem>>, vector<1x4x324xbf16>
    %360 = vector.shape_cast %359 : vector<1x4x324xbf16> to vector<4x324xbf16>
    %361 = vector.shape_cast %358 : vector<4x324xbf16> to vector<1x4x324xbf16>
    tpu.vector_store %arg15[%c0_320, %c0_321, %c19_322], %361 {strides = array<i32>} : memref<2x4x362xbf16, #tpu.memory_space<vmem>>, vector<1x4x324xbf16>,
    %362 = arith.truncf %357 : vector<4x324xf32> to vector<4x324xbf16>
    %c1_323 = arith.constant 1 : index
    %c0_324 = arith.constant 0 : index
    %c19_325 = arith.constant 19 : index
    %363 = vector.load %arg15[%c1_323, %c0_324, %c19_325] : memref<2x4x362xbf16, #tpu.memory_space<vmem>>, vector<1x4x324xbf16>
    %364 = vector.shape_cast %363 : vector<1x4x324xbf16> to vector<4x324xbf16>
    %365 = vector.shape_cast %362 : vector<4x324xbf16> to vector<1x4x324xbf16>
    tpu.vector_store %arg15[%c1_323, %c0_324, %c19_325], %365 {strides = array<i32>} : memref<2x4x362xbf16, #tpu.memory_space<vmem>>, vector<1x4x324xbf16>,
    %cst_326 = arith.constant 0.000000e+00 : f32
    %366 = vector.broadcast %cst_326 : f32 to vector<4x324xf32>
    %c0_327 = arith.constant 0 : index
    %c0_328 = arith.constant 0 : index
    %c0_329 = arith.constant 0 : index
    %367 = vector.load %arg10[%c0_327, %c0_328, %c0_329] : memref<9x4x4xbf16, #tpu.memory_space<vmem>>, vector<1x4x4xbf16>
    %368 = vector.shape_cast %367 : vector<1x4x4xbf16> to vector<4x4xbf16>
    %c0_330 = arith.constant 0 : index
    %c0_331 = arith.constant 0 : index
    %c0_332 = arith.constant 0 : index
    %369 = vector.load %arg15[%c0_330, %c0_331, %c0_332] : memref<2x4x362xbf16, #tpu.memory_space<vmem>>, vector<1x4x324xbf16>
    %370 = vector.shape_cast %369 : vector<1x4x324xbf16> to vector<4x324xbf16>
    %cst_333 = arith.constant dense<0.000000e+00> : vector<4x324xf32>
    %371 = tpu.matmul %368, %370, %cst_333 {dimension_numbers = #tpu.dot_dimension_numbers<[1], [0], [0], [1], [0, 0, 1, 1], [], []>} : vector<4x4xbf16>, vector<4x324xbf16>, vector<4x324xf32> -> vector<4x324xf32>
    %372 = arith.addf %366, %371 : vector<4x324xf32>
    %c1_334 = arith.constant 1 : index
    %c0_335 = arith.constant 0 : index
    %c0_336 = arith.constant 0 : index
    %373 = vector.load %arg10[%c1_334, %c0_335, %c0_336] : memref<9x4x4xbf16, #tpu.memory_space<vmem>>, vector<1x4x4xbf16>
    %374 = vector.shape_cast %373 : vector<1x4x4xbf16> to vector<4x4xbf16>
    %c0_337 = arith.constant 0 : index
    %c0_338 = arith.constant 0 : index
    %c1_339 = arith.constant 1 : index
    %375 = vector.load %arg15[%c0_337, %c0_338, %c1_339] : memref<2x4x362xbf16, #tpu.memory_space<vmem>>, vector<1x4x324xbf16>
    %376 = vector.shape_cast %375 : vector<1x4x324xbf16> to vector<4x324xbf16>
    %cst_340 = arith.constant dense<0.000000e+00> : vector<4x324xf32>
    %377 = tpu.matmul %374, %376, %cst_340 {dimension_numbers = #tpu.dot_dimension_numbers<[1], [0], [0], [1], [0, 0, 1, 1], [], []>} : vector<4x4xbf16>, vector<4x324xbf16>, vector<4x324xf32> -> vector<4x324xf32>
    %378 = arith.addf %372, %377 : vector<4x324xf32>
    %c2_341 = arith.constant 2 : index
    %c0_342 = arith.constant 0 : index
    %c0_343 = arith.constant 0 : index
    %379 = vector.load %arg10[%c2_341, %c0_342, %c0_343] : memref<9x4x4xbf16, #tpu.memory_space<vmem>>, vector<1x4x4xbf16>
    %380 = vector.shape_cast %379 : vector<1x4x4xbf16> to vector<4x4xbf16>
    %c0_344 = arith.constant 0 : index
    %c0_345 = arith.constant 0 : index
    %c2_346 = arith.constant 2 : index
    %381 = vector.load %arg15[%c0_344, %c0_345, %c2_346] : memref<2x4x362xbf16, #tpu.memory_space<vmem>>, vector<1x4x324xbf16>
    %382 = vector.shape_cast %381 : vector<1x4x324xbf16> to vector<4x324xbf16>
    %cst_347 = arith.constant dense<0.000000e+00> : vector<4x324xf32>
    %383 = tpu.matmul %380, %382, %cst_347 {dimension_numbers = #tpu.dot_dimension_numbers<[1], [0], [0], [1], [0, 0, 1, 1], [], []>} : vector<4x4xbf16>, vector<4x324xbf16>, vector<4x324xf32> -> vector<4x324xf32>
    %384 = arith.addf %378, %383 : vector<4x324xf32>
    %c3_348 = arith.constant 3 : index
    %c0_349 = arith.constant 0 : index
    %c0_350 = arith.constant 0 : index
    %385 = vector.load %arg10[%c3_348, %c0_349, %c0_350] : memref<9x4x4xbf16, #tpu.memory_space<vmem>>, vector<1x4x4xbf16>
    %386 = vector.shape_cast %385 : vector<1x4x4xbf16> to vector<4x4xbf16>
    %c0_351 = arith.constant 0 : index
    %c0_352 = arith.constant 0 : index
    %c18_353 = arith.constant 18 : index
    %387 = vector.load %arg15[%c0_351, %c0_352, %c18_353] : memref<2x4x362xbf16, #tpu.memory_space<vmem>>, vector<1x4x324xbf16>
    %388 = vector.shape_cast %387 : vector<1x4x324xbf16> to vector<4x324xbf16>
    %cst_354 = arith.constant dense<0.000000e+00> : vector<4x324xf32>
    %389 = tpu.matmul %386, %388, %cst_354 {dimension_numbers = #tpu.dot_dimension_numbers<[1], [0], [0], [1], [0, 0, 1, 1], [], []>} : vector<4x4xbf16>, vector<4x324xbf16>, vector<4x324xf32> -> vector<4x324xf32>
    %390 = arith.addf %384, %389 : vector<4x324xf32>
    %c4_355 = arith.constant 4 : index
    %c0_356 = arith.constant 0 : index
    %c0_357 = arith.constant 0 : index
    %391 = vector.load %arg10[%c4_355, %c0_356, %c0_357] : memref<9x4x4xbf16, #tpu.memory_space<vmem>>, vector<1x4x4xbf16>
    %392 = vector.shape_cast %391 : vector<1x4x4xbf16> to vector<4x4xbf16>
    %c0_358 = arith.constant 0 : index
    %c0_359 = arith.constant 0 : index
    %c19_360 = arith.constant 19 : index
    %393 = vector.load %arg15[%c0_358, %c0_359, %c19_360] : memref<2x4x362xbf16, #tpu.memory_space<vmem>>, vector<1x4x324xbf16>
    %394 = vector.shape_cast %393 : vector<1x4x324xbf16> to vector<4x324xbf16>
    %cst_361 = arith.constant dense<0.000000e+00> : vector<4x324xf32>
    %395 = tpu.matmul %392, %394, %cst_361 {dimension_numbers = #tpu.dot_dimension_numbers<[1], [0], [0], [1], [0, 0, 1, 1], [], []>} : vector<4x4xbf16>, vector<4x324xbf16>, vector<4x324xf32> -> vector<4x324xf32>
    %396 = arith.addf %390, %395 : vector<4x324xf32>
    %c5_362 = arith.constant 5 : index
    %c0_363 = arith.constant 0 : index
    %c0_364 = arith.constant 0 : index
    %397 = vector.load %arg10[%c5_362, %c0_363, %c0_364] : memref<9x4x4xbf16, #tpu.memory_space<vmem>>, vector<1x4x4xbf16>
    %398 = vector.shape_cast %397 : vector<1x4x4xbf16> to vector<4x4xbf16>
    %c0_365 = arith.constant 0 : index
    %c0_366 = arith.constant 0 : index
    %c20_367 = arith.constant 20 : index
    %399 = vector.load %arg15[%c0_365, %c0_366, %c20_367] : memref<2x4x362xbf16, #tpu.memory_space<vmem>>, vector<1x4x324xbf16>
    %400 = vector.shape_cast %399 : vector<1x4x324xbf16> to vector<4x324xbf16>
    %cst_368 = arith.constant dense<0.000000e+00> : vector<4x324xf32>
    %401 = tpu.matmul %398, %400, %cst_368 {dimension_numbers = #tpu.dot_dimension_numbers<[1], [0], [0], [1], [0, 0, 1, 1], [], []>} : vector<4x4xbf16>, vector<4x324xbf16>, vector<4x324xf32> -> vector<4x324xf32>
    %402 = arith.addf %396, %401 : vector<4x324xf32>
    %c6_369 = arith.constant 6 : index
    %c0_370 = arith.constant 0 : index
    %c0_371 = arith.constant 0 : index
    %403 = vector.load %arg10[%c6_369, %c0_370, %c0_371] : memref<9x4x4xbf16, #tpu.memory_space<vmem>>, vector<1x4x4xbf16>
    %404 = vector.shape_cast %403 : vector<1x4x4xbf16> to vector<4x4xbf16>
    %c0_372 = arith.constant 0 : index
    %c0_373 = arith.constant 0 : index
    %c36_374 = arith.constant 36 : index
    %405 = vector.load %arg15[%c0_372, %c0_373, %c36_374] : memref<2x4x362xbf16, #tpu.memory_space<vmem>>, vector<1x4x324xbf16>
    %406 = vector.shape_cast %405 : vector<1x4x324xbf16> to vector<4x324xbf16>
    %cst_375 = arith.constant dense<0.000000e+00> : vector<4x324xf32>
    %407 = tpu.matmul %404, %406, %cst_375 {dimension_numbers = #tpu.dot_dimension_numbers<[1], [0], [0], [1], [0, 0, 1, 1], [], []>} : vector<4x4xbf16>, vector<4x324xbf16>, vector<4x324xf32> -> vector<4x324xf32>
    %408 = arith.addf %402, %407 : vector<4x324xf32>
    %c7_376 = arith.constant 7 : index
    %c0_377 = arith.constant 0 : index
    %c0_378 = arith.constant 0 : index
    %409 = vector.load %arg10[%c7_376, %c0_377, %c0_378] : memref<9x4x4xbf16, #tpu.memory_space<vmem>>, vector<1x4x4xbf16>
    %410 = vector.shape_cast %409 : vector<1x4x4xbf16> to vector<4x4xbf16>
    %c0_379 = arith.constant 0 : index
    %c0_380 = arith.constant 0 : index
    %c37_381 = arith.constant 37 : index
    %411 = vector.load %arg15[%c0_379, %c0_380, %c37_381] : memref<2x4x362xbf16, #tpu.memory_space<vmem>>, vector<1x4x324xbf16>
    %412 = vector.shape_cast %411 : vector<1x4x324xbf16> to vector<4x324xbf16>
    %cst_382 = arith.constant dense<0.000000e+00> : vector<4x324xf32>
    %413 = tpu.matmul %410, %412, %cst_382 {dimension_numbers = #tpu.dot_dimension_numbers<[1], [0], [0], [1], [0, 0, 1, 1], [], []>} : vector<4x4xbf16>, vector<4x324xbf16>, vector<4x324xf32> -> vector<4x324xf32>
    %414 = arith.addf %408, %413 : vector<4x324xf32>
    %c8_383 = arith.constant 8 : index
    %c0_384 = arith.constant 0 : index
    %c0_385 = arith.constant 0 : index
    %415 = vector.load %arg10[%c8_383, %c0_384, %c0_385] : memref<9x4x4xbf16, #tpu.memory_space<vmem>>, vector<1x4x4xbf16>
    %416 = vector.shape_cast %415 : vector<1x4x4xbf16> to vector<4x4xbf16>
    %c0_386 = arith.constant 0 : index
    %c0_387 = arith.constant 0 : index
    %c38_388 = arith.constant 38 : index
    %417 = vector.load %arg15[%c0_386, %c0_387, %c38_388] : memref<2x4x362xbf16, #tpu.memory_space<vmem>>, vector<1x4x324xbf16>
    %418 = vector.shape_cast %417 : vector<1x4x324xbf16> to vector<4x324xbf16>
    %cst_389 = arith.constant dense<0.000000e+00> : vector<4x324xf32>
    %419 = tpu.matmul %416, %418, %cst_389 {dimension_numbers = #tpu.dot_dimension_numbers<[1], [0], [0], [1], [0, 0, 1, 1], [], []>} : vector<4x4xbf16>, vector<4x324xbf16>, vector<4x324xf32> -> vector<4x324xf32>
    %420 = arith.addf %414, %419 : vector<4x324xf32>
    %cst_390 = arith.constant 0.000000e+00 : f32
    %421 = vector.broadcast %cst_390 : f32 to vector<4x324xf32>
    %c0_391 = arith.constant 0 : index
    %c0_392 = arith.constant 0 : index
    %c0_393 = arith.constant 0 : index
    %422 = vector.load %arg10[%c0_391, %c0_392, %c0_393] : memref<9x4x4xbf16, #tpu.memory_space<vmem>>, vector<1x4x4xbf16>
    %423 = vector.shape_cast %422 : vector<1x4x4xbf16> to vector<4x4xbf16>
    %c1_394 = arith.constant 1 : index
    %c0_395 = arith.constant 0 : index
    %c0_396 = arith.constant 0 : index
    %424 = vector.load %arg15[%c1_394, %c0_395, %c0_396] : memref<2x4x362xbf16, #tpu.memory_space<vmem>>, vector<1x4x324xbf16>
    %425 = vector.shape_cast %424 : vector<1x4x324xbf16> to vector<4x324xbf16>
    %cst_397 = arith.constant dense<0.000000e+00> : vector<4x324xf32>
    %426 = tpu.matmul %423, %425, %cst_397 {dimension_numbers = #tpu.dot_dimension_numbers<[1], [0], [0], [1], [0, 0, 1, 1], [], []>} : vector<4x4xbf16>, vector<4x324xbf16>, vector<4x324xf32> -> vector<4x324xf32>
    %427 = arith.addf %421, %426 : vector<4x324xf32>
    %c1_398 = arith.constant 1 : index
    %c0_399 = arith.constant 0 : index
    %c0_400 = arith.constant 0 : index
    %428 = vector.load %arg10[%c1_398, %c0_399, %c0_400] : memref<9x4x4xbf16, #tpu.memory_space<vmem>>, vector<1x4x4xbf16>
    %429 = vector.shape_cast %428 : vector<1x4x4xbf16> to vector<4x4xbf16>
    %c1_401 = arith.constant 1 : index
    %c0_402 = arith.constant 0 : index
    %c1_403 = arith.constant 1 : index
    %430 = vector.load %arg15[%c1_401, %c0_402, %c1_403] : memref<2x4x362xbf16, #tpu.memory_space<vmem>>, vector<1x4x324xbf16>
    %431 = vector.shape_cast %430 : vector<1x4x324xbf16> to vector<4x324xbf16>
    %cst_404 = arith.constant dense<0.000000e+00> : vector<4x324xf32>
    %432 = tpu.matmul %429, %431, %cst_404 {dimension_numbers = #tpu.dot_dimension_numbers<[1], [0], [0], [1], [0, 0, 1, 1], [], []>} : vector<4x4xbf16>, vector<4x324xbf16>, vector<4x324xf32> -> vector<4x324xf32>
    %433 = arith.addf %427, %432 : vector<4x324xf32>
    %c2_405 = arith.constant 2 : index
    %c0_406 = arith.constant 0 : index
    %c0_407 = arith.constant 0 : index
    %434 = vector.load %arg10[%c2_405, %c0_406, %c0_407] : memref<9x4x4xbf16, #tpu.memory_space<vmem>>, vector<1x4x4xbf16>
    %435 = vector.shape_cast %434 : vector<1x4x4xbf16> to vector<4x4xbf16>
    %c1_408 = arith.constant 1 : index
    %c0_409 = arith.constant 0 : index
    %c2_410 = arith.constant 2 : index
    %436 = vector.load %arg15[%c1_408, %c0_409, %c2_410] : memref<2x4x362xbf16, #tpu.memory_space<vmem>>, vector<1x4x324xbf16>
    %437 = vector.shape_cast %436 : vector<1x4x324xbf16> to vector<4x324xbf16>
    %cst_411 = arith.constant dense<0.000000e+00> : vector<4x324xf32>
    %438 = tpu.matmul %435, %437, %cst_411 {dimension_numbers = #tpu.dot_dimension_numbers<[1], [0], [0], [1], [0, 0, 1, 1], [], []>} : vector<4x4xbf16>, vector<4x324xbf16>, vector<4x324xf32> -> vector<4x324xf32>
    %439 = arith.addf %433, %438 : vector<4x324xf32>
    %c3_412 = arith.constant 3 : index
    %c0_413 = arith.constant 0 : index
    %c0_414 = arith.constant 0 : index
    %440 = vector.load %arg10[%c3_412, %c0_413, %c0_414] : memref<9x4x4xbf16, #tpu.memory_space<vmem>>, vector<1x4x4xbf16>
    %441 = vector.shape_cast %440 : vector<1x4x4xbf16> to vector<4x4xbf16>
    %c1_415 = arith.constant 1 : index
    %c0_416 = arith.constant 0 : index
    %c18_417 = arith.constant 18 : index
    %442 = vector.load %arg15[%c1_415, %c0_416, %c18_417] : memref<2x4x362xbf16, #tpu.memory_space<vmem>>, vector<1x4x324xbf16>
    %443 = vector.shape_cast %442 : vector<1x4x324xbf16> to vector<4x324xbf16>
    %cst_418 = arith.constant dense<0.000000e+00> : vector<4x324xf32>
    %444 = tpu.matmul %441, %443, %cst_418 {dimension_numbers = #tpu.dot_dimension_numbers<[1], [0], [0], [1], [0, 0, 1, 1], [], []>} : vector<4x4xbf16>, vector<4x324xbf16>, vector<4x324xf32> -> vector<4x324xf32>
    %445 = arith.addf %439, %444 : vector<4x324xf32>
    %c4_419 = arith.constant 4 : index
    %c0_420 = arith.constant 0 : index
    %c0_421 = arith.constant 0 : index
    %446 = vector.load %arg10[%c4_419, %c0_420, %c0_421] : memref<9x4x4xbf16, #tpu.memory_space<vmem>>, vector<1x4x4xbf16>
    %447 = vector.shape_cast %446 : vector<1x4x4xbf16> to vector<4x4xbf16>
    %c1_422 = arith.constant 1 : index
    %c0_423 = arith.constant 0 : index
    %c19_424 = arith.constant 19 : index
    %448 = vector.load %arg15[%c1_422, %c0_423, %c19_424] : memref<2x4x362xbf16, #tpu.memory_space<vmem>>, vector<1x4x324xbf16>
    %449 = vector.shape_cast %448 : vector<1x4x324xbf16> to vector<4x324xbf16>
    %cst_425 = arith.constant dense<0.000000e+00> : vector<4x324xf32>
    %450 = tpu.matmul %447, %449, %cst_425 {dimension_numbers = #tpu.dot_dimension_numbers<[1], [0], [0], [1], [0, 0, 1, 1], [], []>} : vector<4x4xbf16>, vector<4x324xbf16>, vector<4x324xf32> -> vector<4x324xf32>
    %451 = arith.addf %445, %450 : vector<4x324xf32>
    %c5_426 = arith.constant 5 : index
    %c0_427 = arith.constant 0 : index
    %c0_428 = arith.constant 0 : index
    %452 = vector.load %arg10[%c5_426, %c0_427, %c0_428] : memref<9x4x4xbf16, #tpu.memory_space<vmem>>, vector<1x4x4xbf16>
    %453 = vector.shape_cast %452 : vector<1x4x4xbf16> to vector<4x4xbf16>
    %c1_429 = arith.constant 1 : index
    %c0_430 = arith.constant 0 : index
    %c20_431 = arith.constant 20 : index
    %454 = vector.load %arg15[%c1_429, %c0_430, %c20_431] : memref<2x4x362xbf16, #tpu.memory_space<vmem>>, vector<1x4x324xbf16>
    %455 = vector.shape_cast %454 : vector<1x4x324xbf16> to vector<4x324xbf16>
    %cst_432 = arith.constant dense<0.000000e+00> : vector<4x324xf32>
    %456 = tpu.matmul %453, %455, %cst_432 {dimension_numbers = #tpu.dot_dimension_numbers<[1], [0], [0], [1], [0, 0, 1, 1], [], []>} : vector<4x4xbf16>, vector<4x324xbf16>, vector<4x324xf32> -> vector<4x324xf32>
    %457 = arith.addf %451, %456 : vector<4x324xf32>
    %c6_433 = arith.constant 6 : index
    %c0_434 = arith.constant 0 : index
    %c0_435 = arith.constant 0 : index
    %458 = vector.load %arg10[%c6_433, %c0_434, %c0_435] : memref<9x4x4xbf16, #tpu.memory_space<vmem>>, vector<1x4x4xbf16>
    %459 = vector.shape_cast %458 : vector<1x4x4xbf16> to vector<4x4xbf16>
    %c1_436 = arith.constant 1 : index
    %c0_437 = arith.constant 0 : index
    %c36_438 = arith.constant 36 : index
    %460 = vector.load %arg15[%c1_436, %c0_437, %c36_438] : memref<2x4x362xbf16, #tpu.memory_space<vmem>>, vector<1x4x324xbf16>
    %461 = vector.shape_cast %460 : vector<1x4x324xbf16> to vector<4x324xbf16>
    %cst_439 = arith.constant dense<0.000000e+00> : vector<4x324xf32>
    %462 = tpu.matmul %459, %461, %cst_439 {dimension_numbers = #tpu.dot_dimension_numbers<[1], [0], [0], [1], [0, 0, 1, 1], [], []>} : vector<4x4xbf16>, vector<4x324xbf16>, vector<4x324xf32> -> vector<4x324xf32>
    %463 = arith.addf %457, %462 : vector<4x324xf32>
    %c7_440 = arith.constant 7 : index
    %c0_441 = arith.constant 0 : index
    %c0_442 = arith.constant 0 : index
    %464 = vector.load %arg10[%c7_440, %c0_441, %c0_442] : memref<9x4x4xbf16, #tpu.memory_space<vmem>>, vector<1x4x4xbf16>
    %465 = vector.shape_cast %464 : vector<1x4x4xbf16> to vector<4x4xbf16>
    %c1_443 = arith.constant 1 : index
    %c0_444 = arith.constant 0 : index
    %c37_445 = arith.constant 37 : index
    %466 = vector.load %arg15[%c1_443, %c0_444, %c37_445] : memref<2x4x362xbf16, #tpu.memory_space<vmem>>, vector<1x4x324xbf16>
    %467 = vector.shape_cast %466 : vector<1x4x324xbf16> to vector<4x324xbf16>
    %cst_446 = arith.constant dense<0.000000e+00> : vector<4x324xf32>
    %468 = tpu.matmul %465, %467, %cst_446 {dimension_numbers = #tpu.dot_dimension_numbers<[1], [0], [0], [1], [0, 0, 1, 1], [], []>} : vector<4x4xbf16>, vector<4x324xbf16>, vector<4x324xf32> -> vector<4x324xf32>
    %469 = arith.addf %463, %468 : vector<4x324xf32>
    %c8_447 = arith.constant 8 : index
    %c0_448 = arith.constant 0 : index
    %c0_449 = arith.constant 0 : index
    %470 = vector.load %arg10[%c8_447, %c0_448, %c0_449] : memref<9x4x4xbf16, #tpu.memory_space<vmem>>, vector<1x4x4xbf16>
    %471 = vector.shape_cast %470 : vector<1x4x4xbf16> to vector<4x4xbf16>
    %c1_450 = arith.constant 1 : index
    %c0_451 = arith.constant 0 : index
    %c38_452 = arith.constant 38 : index
    %472 = vector.load %arg15[%c1_450, %c0_451, %c38_452] : memref<2x4x362xbf16, #tpu.memory_space<vmem>>, vector<1x4x324xbf16>
    %473 = vector.shape_cast %472 : vector<1x4x324xbf16> to vector<4x324xbf16>
    %cst_453 = arith.constant dense<0.000000e+00> : vector<4x324xf32>
    %474 = tpu.matmul %471, %473, %cst_453 {dimension_numbers = #tpu.dot_dimension_numbers<[1], [0], [0], [1], [0, 0, 1, 1], [], []>} : vector<4x4xbf16>, vector<4x324xbf16>, vector<4x324xf32> -> vector<4x324xf32>
    %475 = arith.addf %469, %474 : vector<4x324xf32>
    %476 = vector.broadcast %0 : vector<1x324xf32> to vector<4x324xf32>
    %477 = arith.mulf %420, %476 : vector<4x324xf32>
    %cst_454 = arith.constant dense<0.000000e+00> : vector<4xf32>
    %478 = vector.multi_reduction <add>, %477, %cst_454 [1] : vector<4x324xf32> to vector<4xf32>
    %479 = vector.shape_cast %478 : vector<4xf32> to vector<4x1xf32>
    %cst_455 = arith.constant 0.000000e+00 : f32
    %480 = vector.broadcast %cst_455 : f32 to vector<4x1xf32>
    %481 = arith.addf %480, %479 : vector<4x1xf32>
    %482 = vector.broadcast %0 : vector<1x324xf32> to vector<4x324xf32>
    %483 = arith.mulf %475, %482 : vector<4x324xf32>
    %cst_456 = arith.constant dense<0.000000e+00> : vector<4xf32>
    %484 = vector.multi_reduction <add>, %483, %cst_456 [1] : vector<4x324xf32> to vector<4xf32>
    %485 = vector.shape_cast %484 : vector<4xf32> to vector<4x1xf32>
    %486 = arith.addf %481, %485 : vector<4x1xf32>
    %cst_457 = arith.constant 5.120000e+02 : f32
    %487 = vector.broadcast %cst_457 : f32 to vector<4x1xf32>
    %488 = arith.divf %486, %487 : vector<4x1xf32>
    %489 = vector.broadcast %488 : vector<4x1xf32> to vector<4x324xf32>
    %490 = arith.subf %420, %489 : vector<4x324xf32>
    %491 = arith.mulf %490, %490 : vector<4x324xf32>
    %492 = vector.broadcast %0 : vector<1x324xf32> to vector<4x324xf32>
    %493 = arith.mulf %492, %491 : vector<4x324xf32>
    %cst_458 = arith.constant dense<0.000000e+00> : vector<4xf32>
    %494 = vector.multi_reduction <add>, %493, %cst_458 [1] : vector<4x324xf32> to vector<4xf32>
    %495 = vector.shape_cast %494 : vector<4xf32> to vector<4x1xf32>
    %cst_459 = arith.constant 0.000000e+00 : f32
    %496 = vector.broadcast %cst_459 : f32 to vector<4x1xf32>
    %497 = arith.addf %496, %495 : vector<4x1xf32>
    %498 = vector.broadcast %488 : vector<4x1xf32> to vector<4x324xf32>
    %499 = arith.subf %475, %498 : vector<4x324xf32>
    %500 = arith.mulf %499, %499 : vector<4x324xf32>
    %501 = vector.broadcast %0 : vector<1x324xf32> to vector<4x324xf32>
    %502 = arith.mulf %501, %500 : vector<4x324xf32>
    %cst_460 = arith.constant dense<0.000000e+00> : vector<4xf32>
    %503 = vector.multi_reduction <add>, %502, %cst_460 [1] : vector<4x324xf32> to vector<4xf32>
    %504 = vector.shape_cast %503 : vector<4xf32> to vector<4x1xf32>
    %505 = arith.addf %497, %504 : vector<4x1xf32>
    %cst_461 = arith.constant 5.120000e+02 : f32
    %506 = vector.broadcast %cst_461 : f32 to vector<4x1xf32>
    %507 = arith.divf %505, %506 : vector<4x1xf32>
    %c0_462 = arith.constant 0 : index
    %c0_463 = arith.constant 0 : index
    %508 = vector.load %arg11[%c0_462, %c0_463] : memref<4x1xf32, #tpu.memory_space<vmem>>, vector<4x1xf32>
    %cst_464 = arith.constant 9.99999974E-6 : f32
    %509 = vector.broadcast %cst_464 : f32 to vector<4x1xf32>
    %510 = arith.addf %507, %509 : vector<4x1xf32>
    %511 = math.rsqrt %510 : vector<4x1xf32>
    %512 = arith.mulf %508, %511 : vector<4x1xf32>
    %c0_465 = arith.constant 0 : index
    %c0_466 = arith.constant 0 : index
    %513 = vector.load %arg12[%c0_465, %c0_466] : memref<4x1xf32, #tpu.memory_space<vmem>>, vector<4x1xf32>
    %514 = arith.mulf %488, %512 : vector<4x1xf32>
    %515 = arith.subf %513, %514 : vector<4x1xf32>
    %516 = vector.broadcast %512 : vector<4x1xf32> to vector<4x324xf32>
    %517 = arith.mulf %420, %516 : vector<4x324xf32>
    %518 = vector.broadcast %515 : vector<4x1xf32> to vector<4x324xf32>
    %519 = arith.addf %517, %518 : vector<4x324xf32>
    %cst_467 = arith.constant 0.000000e+00 : f32
    %520 = vector.broadcast %cst_467 : f32 to vector<4x324xf32>
    %521 = arith.maximumf %519, %520 : vector<4x324xf32>
    %522 = vector.broadcast %0 : vector<1x324xf32> to vector<4x324xf32>
    %523 = arith.mulf %522, %521 : vector<4x324xf32>
    %524 = vector.broadcast %512 : vector<4x1xf32> to vector<4x324xf32>
    %525 = arith.mulf %475, %524 : vector<4x324xf32>
    %526 = vector.broadcast %515 : vector<4x1xf32> to vector<4x324xf32>
    %527 = arith.addf %525, %526 : vector<4x324xf32>
    %cst_468 = arith.constant 0.000000e+00 : f32
    %528 = vector.broadcast %cst_468 : f32 to vector<4x324xf32>
    %529 = arith.maximumf %527, %528 : vector<4x324xf32>
    %530 = vector.broadcast %0 : vector<1x324xf32> to vector<4x324xf32>
    %531 = arith.mulf %530, %529 : vector<4x324xf32>
    %c0_469 = arith.constant 0 : index
    %c0_470 = arith.constant 0 : index
    %c0_471 = arith.constant 0 : index
    %532 = vector.load %arg13[%c0_469, %c0_470, %c0_471] : memref<2x4x324xf32, #tpu.memory_space<vmem>>, vector<1x4x324xf32>
    %533 = vector.shape_cast %532 : vector<1x4x324xf32> to vector<4x324xf32>
    %534 = vector.shape_cast %523 : vector<4x324xf32> to vector<1x4x324xf32>
    tpu.vector_store %arg13[%c0_469, %c0_470, %c0_471], %534 {strides = array<i32>} : memref<2x4x324xf32, #tpu.memory_space<vmem>>, vector<1x4x324xf32>,
    %c1_472 = arith.constant 1 : index
    %c0_473 = arith.constant 0 : index
    %c0_474 = arith.constant 0 : index
    %535 = vector.load %arg13[%c1_472, %c0_473, %c0_474] : memref<2x4x324xf32, #tpu.memory_space<vmem>>, vector<1x4x324xf32>
    %536 = vector.shape_cast %535 : vector<1x4x324xf32> to vector<4x324xf32>
    %537 = vector.shape_cast %531 : vector<4x324xf32> to vector<1x4x324xf32>
    tpu.vector_store %arg13[%c1_472, %c0_473, %c0_474], %537 {strides = array<i32>} : memref<2x4x324xf32, #tpu.memory_space<vmem>>, vector<1x4x324xf32>,
    return
  }
  func.func @transform_0(%arg0: i32) -> (i32, i32, i32) {
    %c0_i32 = arith.constant 0 : i32
    %c0_i32_0 = arith.constant 0 : i32
    %c0_i32_1 = arith.constant 0 : i32
    %c0_i32_2 = arith.constant 0 : i32
    return %c0_i32, %c0_i32_0, %c0_i32_1 : i32, i32, i32
  }
  func.func @transform_1(%arg0: i32) -> (i32, i32, i32) {
    %c0_i32 = arith.constant 0 : i32
    %c0_i32_0 = arith.constant 0 : i32
    %c0_i32_1 = arith.constant 0 : i32
    %c0_i32_2 = arith.constant 0 : i32
    return %c0_i32, %c0_i32_0, %c0_i32_1 : i32, i32, i32
  }
  func.func @transform_2(%arg0: i32) -> (i32, i32) {
    %c0_i32 = arith.constant 0 : i32
    %c0_i32_0 = arith.constant 0 : i32
    %c0_i32_1 = arith.constant 0 : i32
    return %c0_i32, %c0_i32_0 : i32, i32
  }
  func.func @transform_3(%arg0: i32) -> (i32, i32) {
    %c0_i32 = arith.constant 0 : i32
    %c0_i32_0 = arith.constant 0 : i32
    %c0_i32_1 = arith.constant 0 : i32
    return %c0_i32, %c0_i32_0 : i32, i32
  }
  func.func @transform_4(%arg0: i32) -> (i32, i32, i32) {
    %c0_i32 = arith.constant 0 : i32
    %c0_i32_0 = arith.constant 0 : i32
    %c0_i32_1 = arith.constant 0 : i32
    %c0_i32_2 = arith.constant 0 : i32
    return %c0_i32, %c0_i32_0, %c0_i32_1 : i32, i32, i32
  }
  func.func @transform_5(%arg0: i32) -> (i32, i32, i32) {
    %c0_i32 = arith.constant 0 : i32
    %c0_i32_0 = arith.constant 0 : i32
    %c0_i32_1 = arith.constant 0 : i32
    %c0_i32_2 = arith.constant 0 : i32
    return %c0_i32, %c0_i32_0, %c0_i32_1 : i32, i32, i32
  }
  func.func @transform_6(%arg0: i32) -> (i32, i32, i32) {
    %c0_i32 = arith.constant 0 : i32
    %c0_i32_0 = arith.constant 0 : i32
    %c0_i32_1 = arith.constant 0 : i32
    %c0_i32_2 = arith.constant 0 : i32
    return %c0_i32, %c0_i32_0, %c0_i32_1 : i32, i32, i32
  }
  func.func @transform_7(%arg0: i32) -> (i32, i32) {
    %c0_i32 = arith.constant 0 : i32
    %c0_i32_0 = arith.constant 0 : i32
    %c0_i32_1 = arith.constant 0 : i32
    return %c0_i32, %c0_i32_0 : i32, i32
  }
  func.func @transform_8(%arg0: i32) -> (i32, i32) {
    %c0_i32 = arith.constant 0 : i32
    %c0_i32_0 = arith.constant 0 : i32
    %c0_i32_1 = arith.constant 0 : i32
    return %c0_i32, %c0_i32_0 : i32, i32
  }
  func.func @transform_9(%arg0: i32) -> (i32, i32, i32) {
    %c0_i32 = arith.constant 0 : i32
    %c0_i32_0 = arith.constant 0 : i32
    %c0_i32_1 = arith.constant 0 : i32
    %c0_i32_2 = arith.constant 0 : i32
    return %c0_i32, %c0_i32_0, %c0_i32_1 : i32, i32, i32
  }
  func.func @transform_10(%arg0: i32) -> (i32, i32) {
    %c0_i32 = arith.constant 0 : i32
    %c0_i32_0 = arith.constant 0 : i32
    %c0_i32_1 = arith.constant 0 : i32
    return %c0_i32, %c0_i32_0 : i32, i32
  }
  func.func @transform_11(%arg0: i32) -> (i32, i32) {
    %c0_i32 = arith.constant 0 : i32
    %c0_i32_0 = arith.constant 0 : i32
    %c0_i32_1 = arith.constant 0 : i32
    return %c0_i32, %c0_i32_0 : i32, i32
  }
  func.func @transform_12(%arg0: i32) -> (i32, i32, i32) {
    %c0_i32 = arith.constant 0 : i32
    %c0_i32_0 = arith.constant 0 : i32
    %c0_i32_1 = arith.constant 0 : i32
    %c0_i32_2 = arith.constant 0 : i32
    return %c0_i32, %c0_i32_0, %c0_i32_1 : i32, i32, i32
  }
}

</mosaic_0001>

<llo_original>
// kernel: decoder_blocks_forward.2
$region0: #{decoder_blocks_forward.2}
  #allocation0 [shape = 'u32[]', space=smem, size = 0x4, offset = 0x4, fixed_abs, tag = 'smem constant byte address 0x4 - core index']
  #allocation1 [shape = 'u32[72,128]{1,0:T(1,128)}', space=vmem, size = 0x9000, scoped, tag = 'internal scratch']
  #allocation2 [shape = 'bf16[2,8,122]{2,1,0:T(8,128)(2,1)}', space=vmem, size = 0x1000, scoped, tag = 'scratch operand']
  #allocation3 [shape = 'bf16[2,8,122]{2,1,0:T(8,128)(2,1)}', space=vmem, size = 0x1000, scoped, tag = 'scratch operand']
  %s0 = inlined_call_operand.vmem [shape: bf16[2,8,122], index: 0, kind: input, shape index: {}]
  %s1 = inlined_call_operand.vmem [shape: bf16[2,16,122], index: 1, kind: input, shape index: {}]
  %s2 = inlined_call_operand.vmem [shape: f32[4,100], index: 2, kind: input, shape index: {}]
  %s3 = inlined_call_operand.vmem [shape: f32[1,100], index: 3, kind: input, shape index: {}]
  %s4 = inlined_call_operand.vmem [shape: bf16[4,8,16], index: 4, kind: input, shape index: {}]
  %s5 = inlined_call_operand.vmem [shape: bf16[9,8,8], index: 5, kind: input, shape index: {}]
  %s6 = inlined_call_operand.vmem [shape: bf16[9,8,8], index: 6, kind: input, shape index: {}]
  %s7 = inlined_call_operand.vmem [shape: f32[8,1], index: 7, kind: input, shape index: {}]
  %s8 = inlined_call_operand.vmem [shape: f32[8,1], index: 8, kind: input, shape index: {}]
  %s9 = inlined_call_operand.vmem [shape: bf16[9,8,8], index: 9, kind: input, shape index: {}]
  %s10 = inlined_call_operand.vmem [shape: f32[8,1], index: 10, kind: input, shape index: {}]
  %s11 = inlined_call_operand.vmem [shape: f32[8,1], index: 11, kind: input, shape index: {}]
  %s12 = inlined_call_operand.vmem [shape: f32[2,8,100], index: 12, kind: output, shape index: {}]
  %s13 = sld [smem:[#allocation0]]
  $region58: #{decoder_blocks_forward.2} parent=0
    _
  %s15 = ssub.s32 1, %s13
  %s16 = scalar_select 0, %s15, %s13
  // Predicated region
  $region2: #{decoder_blocks_forward.2} parent=0 // pred_check
    _
  $region3: #{decoder_blocks_forward.2} parent=0 // pred_check_branch
    %18 = sbr.rel (0) target = $region5
  $region4: #{decoder_blocks_forward.2} parent=0 // pred_region
    _
  $region5: #{decoder_blocks_forward.2} parent=0 // pred_fallthru
    _
  // Predicated region
  $region6: #{decoder_blocks_forward.2} parent=0 // pred_check
    _
  $region7: #{decoder_blocks_forward.2} parent=0 // pred_check_branch
    %20 = sbr.rel (0) target = $region9
  $region8: #{decoder_blocks_forward.2} parent=0 // pred_region
    _
  $region9: #{decoder_blocks_forward.2} parent=0 // pred_fallthru
    _
  // Predicated region
  $region10: #{decoder_blocks_forward.2} parent=0 // pred_check
    _
  $region11: #{decoder_blocks_forward.2} parent=0 // pred_check_branch
    %22 = sbr.rel (0) target = $region13
  $region12: #{decoder_blocks_forward.2} parent=0 // pred_region
    _
  $region13: #{decoder_blocks_forward.2} parent=0 // pred_fallthru
    _
  // Predicated region
  $region14: #{decoder_blocks_forward.2} parent=0 // pred_check
    _
  $region15: #{decoder_blocks_forward.2} parent=0 // pred_check_branch
    %24 = sbr.rel (0) target = $region17
  $region16: #{decoder_blocks_forward.2} parent=0 // pred_region
    _
  $region17: #{decoder_blocks_forward.2} parent=0 // pred_fallthru
    _
  // Predicated region
  $region18: #{decoder_blocks_forward.2} parent=0 // pred_check
    _
  $region19: #{decoder_blocks_forward.2} parent=0 // pred_check_branch
    %26 = sbr.rel (0) target = $region21
  $region20: #{decoder_blocks_forward.2} parent=0 // pred_region
    _
  $region21: #{decoder_blocks_forward.2} parent=0 // pred_fallthru
    _
  // Predicated region
  $region22: #{decoder_blocks_forward.2} parent=0 // pred_check
    _
  $region23: #{decoder_blocks_forward.2} parent=0 // pred_check_branch
    %28 = sbr.rel (0) target = $region25
  $region24: #{decoder_blocks_forward.2} parent=0 // pred_region
    _
  $region25: #{decoder_blocks_forward.2} parent=0 // pred_fallthru
    _
  // Predicated region
  $region26: #{decoder_blocks_forward.2} parent=0 // pred_check
    _
  $region27: #{decoder_blocks_forward.2} parent=0 // pred_check_branch
    %30 = sbr.rel (0) target = $region29
  $region28: #{decoder_blocks_forward.2} parent=0 // pred_region
    _
  $region29: #{decoder_blocks_forward.2} parent=0 // pred_fallthru
    _
  // Predicated region
  $region30: #{decoder_blocks_forward.2} parent=0 // pred_check
    _
  $region31: #{decoder_blocks_forward.2} parent=0 // pred_check_branch
    %32 = sbr.rel (0) target = $region33
  $region32: #{decoder_blocks_forward.2} parent=0 // pred_region
    _
  $region33: #{decoder_blocks_forward.2} parent=0 // pred_fallthru
    _
  // Predicated region
  $region34: #{decoder_blocks_forward.2} parent=0 // pred_check
    _
  $region35: #{decoder_blocks_forward.2} parent=0 // pred_check_branch
    %34 = sbr.rel (0) target = $region37
  $region36: #{decoder_blocks_forward.2} parent=0 // pred_region
    _
  $region37: #{decoder_blocks_forward.2} parent=0 // pred_fallthru
    _
  // Predicated region
  $region38: #{decoder_blocks_forward.2} parent=0 // pred_check
    _
  $region39: #{decoder_blocks_forward.2} parent=0 // pred_check_branch
    %36 = sbr.rel (0) target = $region41
  $region40: #{decoder_blocks_forward.2} parent=0 // pred_region
    _
  $region41: #{decoder_blocks_forward.2} parent=0 // pred_fallthru
    _
  // Predicated region
  $region42: #{decoder_blocks_forward.2} parent=0 // pred_check
    _
  $region43: #{decoder_blocks_forward.2} parent=0 // pred_check_branch
    %38 = sbr.rel (0) target = $region45
  $region44: #{decoder_blocks_forward.2} parent=0 // pred_region
    _
  $region45: #{decoder_blocks_forward.2} parent=0 // pred_fallthru
    _
  // Predicated region
  $region46: #{decoder_blocks_forward.2} parent=0 // pred_check
    _
  $region47: #{decoder_blocks_forward.2} parent=0 // pred_check_branch
    %40 = sbr.rel (0) target = $region49
  $region48: #{decoder_blocks_forward.2} parent=0 // pred_region
    _
  $region49: #{decoder_blocks_forward.2} parent=0 // pred_fallthru
    _
  %v42 = vld [vmem:[%s3] sm:$0x1]
  %v43 = vld [vmem:[%s2] sm:$0xf]
  %vm44 = vcmask 84992
  %45 = vst.msk [vmem:[#allocation2] sm:$0xf] %vm44, 0
  %46 = vst.msk [vmem:[#allocation2 + $0x4] sm:$0xf] %vm44, 0
  %vm47 = vcmask 995192
  %48 = vst.msk [vmem:[#allocation2] sm:$0xf] %vm47, 0
  %49 = vst.msk [vmem:[#allocation2 + $0x4] sm:$0xf] %vm47, 0
  %50 = vst.msk [vmem:[#allocation3] sm:$0xf] %vm44, 0
  %51 = vst.msk [vmem:[#allocation3 + $0x4] sm:$0xf] %vm44, 0
  %52 = vst.msk [vmem:[#allocation3] sm:$0xf] %vm47, 0
  %53 = vst.msk [vmem:[#allocation3 + $0x4] sm:$0xf] %vm47, 0
  %v54 = vld [vmem:[%s1] sm:$0xf]
  %v55 = vld [vmem:[%s1 + $0x4] sm:$0xf]
  %v56 = vld [vmem:[%s4] sm:$0xf]
  %v59 = vunpack.c.l.b16 %v54
  %v60 = vunpack.c.l.b16 %v55
  %v61 = vpack.c.b16 %v60, %v59
  %62 = vrot.lane.b32.xlu0 %v61, 117
  %v63 = vpop.permute.xlu0 %62
  %vm65 = vcmask 130048
  %v67 = vsel %vm65, %v56, 0
  %69 = vmatpush.bf16.msra.mxu0 0
  %70 = vmatpush.bf16.msra.mxu0 0
  %71 = vmatpush.bf16.msra.mxu0 0
  %72 = vmatpush.bf16.msra.mxu0 0
  %73 = vmatpush.bf16.msra.mxu0 0
  %74 = vmatpush.bf16.msra.mxu0 0
  %75 = vmatpush.bf16.msra.mxu0 0
  %76 = vmatpush.bf16.msra.mxu0 %v63
  %77 = vmatmul.bf16.gmra.mxu0 %v67
  %v78 = vpop.f32.mrf.mxu0
  %v79 = vadd.f32 0.0, %v78
  %v80 = vpop.f32.mrf.mxu0
  %81 = vdwg.mxu0
  %v82 = vperm.slane %v43, 0
  %v83 = vmul.f32 %v82, %v79
  %v84 = vadd.f32 %v83, 0.0
  %s85 = scalar_lea.vmem %s4, 4
  %v86 = vld [vmem:[%s85] sm:$0xf]
  %v88 = vsel %vm65, %v86, 0
  %90 = vmatpush.bf16.msra.mxu0 0
  %91 = vmatpush.bf16.msra.mxu0 0
  %92 = vmatpush.bf16.msra.mxu0 0
  %93 = vmatpush.bf16.msra.mxu0 0
  %94 = vmatpush.bf16.msra.mxu0 0
  %95 = vmatpush.bf16.msra.mxu0 0
  %96 = vmatpush.bf16.msra.mxu0 0
  %97 = vmatpush.bf16.msra.mxu0 %v63
  %98 = vmatmul.bf16.gmra.mxu0 %v88
  %v99 = vpop.f32.mrf.mxu0
  %v100 = vadd.f32 0.0, %v99
  %v101 = vpop.f32.mrf.mxu0
  %102 = vdwg.mxu0
  %v103 = vperm.slane %v43, 1
  %v104 = vmul.f32 %v103, %v100
  %v105 = vadd.f32 %v84, %v104
  %s106 = scalar_lea.vmem %s4, 8
  %v107 = vld [vmem:[%s106] sm:$0xf]
  %v109 = vsel %vm65, %v107, 0
  %111 = vmatpush.bf16.msra.mxu0 0
  %112 = vmatpush.bf16.msra.mxu0 0
  %113 = vmatpush.bf16.msra.mxu0 0
  %114 = vmatpush.bf16.msra.mxu0 0
  %115 = vmatpush.bf16.msra.mxu0 0
  %116 = vmatpush.bf16.msra.mxu0 0
  %117 = vmatpush.bf16.msra.mxu0 0
  %118 = vmatpush.bf16.msra.mxu0 %v63
  %119 = vmatmul.bf16.gmra.mxu0 %v109
  %v120 = vpop.f32.mrf.mxu0
  %v121 = vadd.f32 0.0, %v120
  %v122 = vpop.f32.mrf.mxu0
  %123 = vdwg.mxu0
  %v124 = vperm.slane %v43, 2
  %v125 = vmul.f32 %v124, %v121
  %v126 = vadd.f32 %v105, %v125
  %s127 = scalar_lea.vmem %s4, 12
  %v128 = vld [vmem:[%s127] sm:$0xf]
  %v130 = vsel %vm65, %v128, 0
  %132 = vmatpush.bf16.msra.mxu0 0
  %133 = vmatpush.bf16.msra.mxu0 0
  %134 = vmatpush.bf16.msra.mxu0 0
  %135 = vmatpush.bf16.msra.mxu0 0
  %136 = vmatpush.bf16.msra.mxu0 0
  %137 = vmatpush.bf16.msra.mxu0 0
  %138 = vmatpush.bf16.msra.mxu0 0
  %139 = vmatpush.bf16.msra.mxu0 %v63
  %140 = vmatmul.bf16.gmra.mxu0 %v130
  %v141 = vpop.f32.mrf.mxu0
  %v142 = vadd.f32 0.0, %v141
  %v143 = vpop.f32.mrf.mxu0
  %144 = vdwg.mxu0
  %v145 = vperm.slane %v43, 3
  %v146 = vmul.f32 %v145, %v142
  %v147 = vadd.f32 %v126, %v146
  %v148 = vpack.c.bf16 %v147, %v147
  %150 = vrot.lane.b32.xlu0 %v148, 11
  %v151 = vpop.permute.xlu0 %150
  %vm153 = vcmask 904280
  %154 = vst.msk [vmem:[#allocation2] sm:$0xf] %vm153, %v151
  %s155 = scalar_lea.vmem %s1, 8
  %v156 = vld [vmem:[%s155] sm:$0xf]
  %v157 = vld [vmem:[%s155 + $0x4] sm:$0xf]
  %v158 = vld [vmem:[%s4] sm:$0xf]
  %v161 = vunpack.c.l.b16 %v156
  %v162 = vunpack.c.l.b16 %v157
  %v163 = vpack.c.b16 %v162, %v161
  %164 = vrot.lane.b32.xlu0 %v163, 117
  %v165 = vpop.permute.xlu0 %164
  %v168 = vsel %vm65, %v158, 0
  %170 = vmatpush.bf16.msra.mxu0 0
  %171 = vmatpush.bf16.msra.mxu0 0
  %172 = vmatpush.bf16.msra.mxu0 0
  %173 = vmatpush.bf16.msra.mxu0 0
  %174 = vmatpush.bf16.msra.mxu0 0
  %175 = vmatpush.bf16.msra.mxu0 0
  %176 = vmatpush.bf16.msra.mxu0 0
  %177 = vmatpush.bf16.msra.mxu0 %v165
  %178 = vmatmul.bf16.gmra.mxu0 %v168
  %v179 = vpop.f32.mrf.mxu0
  %v180 = vadd.f32 0.0, %v179
  %v181 = vpop.f32.mrf.mxu0
  %182 = vdwg.mxu0
  %v183 = vmul.f32 %v82, %v180
  %v184 = vadd.f32 %v183, 0.0
  %v185 = vld [vmem:[%s85] sm:$0xf]
  %v187 = vsel %vm65, %v185, 0
  %189 = vmatpush.bf16.msra.mxu0 0
  %190 = vmatpush.bf16.msra.mxu0 0
  %191 = vmatpush.bf16.msra.mxu0 0
  %192 = vmatpush.bf16.msra.mxu0 0
  %193 = vmatpush.bf16.msra.mxu0 0
  %194 = vmatpush.bf16.msra.mxu0 0
  %195 = vmatpush.bf16.msra.mxu0 0
  %196 = vmatpush.bf16.msra.mxu0 %v165
  %197 = vmatmul.bf16.gmra.mxu0 %v187
  %v198 = vpop.f32.mrf.mxu0
  %v199 = vadd.f32 0.0, %v198
  %v200 = vpop.f32.mrf.mxu0
  %201 = vdwg.mxu0
  %v202 = vmul.f32 %v103, %v199
  %v203 = vadd.f32 %v184, %v202
  %v204 = vld [vmem:[%s106] sm:$0xf]
  %v206 = vsel %vm65, %v204, 0
  %208 = vmatpush.bf16.msra.mxu0 0
  %209 = vmatpush.bf16.msra.mxu0 0
  %210 = vmatpush.bf16.msra.mxu0 0
  %211 = vmatpush.bf16.msra.mxu0 0
  %212 = vmatpush.bf16.msra.mxu0 0
  %213 = vmatpush.bf16.msra.mxu0 0
  %214 = vmatpush.bf16.msra.mxu0 0
  %215 = vmatpush.bf16.msra.mxu0 %v165
  %216 = vmatmul.bf16.gmra.mxu0 %v206
  %v217 = vpop.f32.mrf.mxu0
  %v218 = vadd.f32 0.0, %v217
  %v219 = vpop.f32.mrf.mxu0
  %220 = vdwg.mxu0
  %v221 = vmul.f32 %v124, %v218
  %v222 = vadd.f32 %v203, %v221
  %v223 = vld [vmem:[%s127] sm:$0xf]
  %v225 = vsel %vm65, %v223, 0
  %227 = vmatpush.bf16.msra.mxu0 0
  %228 = vmatpush.bf16.msra.mxu0 0
  %229 = vmatpush.bf16.msra.mxu0 0
  %230 = vmatpush.bf16.msra.mxu0 0
  %231 = vmatpush.bf16.msra.mxu0 0
  %232 = vmatpush.bf16.msra.mxu0 0
  %233 = vmatpush.bf16.msra.mxu0 0
  %234 = vmatpush.bf16.msra.mxu0 %v165
  %235 = vmatmul.bf16.gmra.mxu0 %v225
  %v236 = vpop.f32.mrf.mxu0
  %v237 = vadd.f32 0.0, %v236
  %v238 = vpop.f32.mrf.mxu0
  %239 = vdwg.mxu0
  %v240 = vmul.f32 %v145, %v237
  %v241 = vadd.f32 %v222, %v240
  %v242 = vpack.c.bf16 %v241, %v241
  %244 = vrot.lane.b32.xlu0 %v242, 11
  %v245 = vpop.permute.xlu0 %244
  %s247 = scalar_lea.vmem [#allocation2], 4
  %248 = vst.msk [vmem:[%s247] sm:$0xf] %vm153, %v245
  %v249 = vld [vmem:[%s5] sm:$0xf]
  %v250 = vld [vmem:[%s0] sm:$0xf]
  %s251 = scalar_lea.vmem %s5, 4
  %v252 = vld [vmem:[%s251] sm:$0xf]
  %v254 = vunpack.c.l.b16 %v250
  %v255 = vpack.c.b16 %v254, %v254
  %256 = vrot.lane.b32.xlu0 %v255, 127
  %v257 = vpop.permute.xlu0 %256
  %vm258 = vcmask 64512
  %v260 = vsel %vm258, %v252, 0
  %vm262 = vcmask 1043456
  %v264 = vsel %vm262, %v257, 0
  %266 = vmatpush.bf16.msra.mxu0 0
  %267 = vmatpush.bf16.msra.mxu0 0
  %268 = vmatpush.bf16.msra.mxu0 0
  %269 = vmatpush.bf16.msra.mxu0 0
  %270 = vmatpush.bf16.msra.mxu0 0
  %271 = vmatpush.bf16.msra.mxu0 0
  %272 = vmatpush.bf16.msra.mxu0 0
  %273 = vmatpush.bf16.msra.mxu0 %v264
  %274 = vmatmul.bf16.gmra.mxu0 %v260
  %v275 = vpop.f32.mrf.mxu0
  %v276 = vadd.f32 0.0, %v275
  %v277 = vpop.f32.mrf.mxu0
  %278 = vdwg.mxu0
  %v280 = vsel %vm258, %v249, 0
  %v283 = vsel %vm262, %v250, 0
  %285 = vmatpush.bf16.msra.mxu0 0
  %286 = vmatpush.bf16.msra.mxu0 0
  %287 = vmatpush.bf16.msra.mxu0 0
  %288 = vmatpush.bf16.msra.mxu0 0
  %289 = vmatpush.bf16.msra.mxu0 0
  %290 = vmatpush.bf16.msra.mxu0 0
  %291 = vmatpush.bf16.msra.mxu0 0
  %292 = vmatpush.bf16.msra.mxu0 %v283
  %293 = vmatmul.bf16.gmra.mxu0 %v280
  %v294 = vpop.f32.mrf.mxu0
  %v295 = vadd.f32 %v276, %v294
  %v296 = vpop.f32.mrf.mxu0
  %297 = vdwg.mxu0
  %s298 = scalar_lea.vmem %s5, 8
  %v299 = vld [vmem:[%s298] sm:$0xf]
  %300 = vrot.lane.b32.xlu0 %v255, 126
  %v301 = vpop.permute.xlu0 %300
  %v303 = vsel %vm258, %v299, 0
  %v306 = vsel %vm262, %v301, 0
  %308 = vmatpush.bf16.msra.mxu0 0
  %309 = vmatpush.bf16.msra.mxu0 0
  %310 = vmatpush.bf16.msra.mxu0 0
  %311 = vmatpush.bf16.msra.mxu0 0
  %312 = vmatpush.bf16.msra.mxu0 0
  %313 = vmatpush.bf16.msra.mxu0 0
  %314 = vmatpush.bf16.msra.mxu0 0
  %315 = vmatpush.bf16.msra.mxu0 %v306
  %316 = vmatmul.bf16.gmra.mxu0 %v303
  %v317 = vpop.f32.mrf.mxu0
  %v318 = vadd.f32 0.0, %v317
  %v319 = vpop.f32.mrf.mxu0
  %320 = vdwg.mxu0
  %v321 = vadd.f32 %v295, %v318
  %s322 = scalar_lea.vmem %s5, 12
  %v323 = vld [vmem:[%s322] sm:$0xf]
  %324 = vrot.lane.b32.xlu0 %v255, 118
  %v325 = vpop.permute.xlu0 %324
  %v327 = vsel %vm258, %v323, 0
  %v330 = vsel %vm262, %v325, 0
  %332 = vmatpush.bf16.msra.mxu0 0
  %333 = vmatpush.bf16.msra.mxu0 0
  %334 = vmatpush.bf16.msra.mxu0 0
  %335 = vmatpush.bf16.msra.mxu0 0
  %336 = vmatpush.bf16.msra.mxu0 0
  %337 = vmatpush.bf16.msra.mxu0 0
  %338 = vmatpush.bf16.msra.mxu0 0
  %339 = vmatpush.bf16.msra.mxu0 %v330
  %340 = vmatmul.bf16.gmra.mxu0 %v327
  %v341 = vpop.f32.mrf.mxu0
  %v342 = vadd.f32 0.0, %v341
  %v343 = vpop.f32.mrf.mxu0
  %344 = vdwg.mxu0
  %v345 = vadd.f32 %v321, %v342
  %s346 = scalar_lea.vmem %s5, 16
  %v347 = vld [vmem:[%s346] sm:$0xf]
  %348 = vrot.lane.b32.xlu0 %v255, 117
  %v349 = vpop.permute.xlu0 %348
  %v351 = vsel %vm258, %v347, 0
  %v354 = vsel %vm262, %v349, 0
  %356 = vmatpush.bf16.msra.mxu0 0
  %357 = vmatpush.bf16.msra.mxu0 0
  %358 = vmatpush.bf16.msra.mxu0 0
  %359 = vmatpush.bf16.msra.mxu0 0
  %360 = vmatpush.bf16.msra.mxu0 0
  %361 = vmatpush.bf16.msra.mxu0 0
  %362 = vmatpush.bf16.msra.mxu0 0
  %363 = vmatpush.bf16.msra.mxu0 %v354
  %364 = vmatmul.bf16.gmra.mxu0 %v351
  %v365 = vpop.f32.mrf.mxu0
  %v366 = vadd.f32 0.0, %v365
  %v367 = vpop.f32.mrf.mxu0
  %368 = vdwg.mxu0
  %v369 = vadd.f32 %v345, %v366
  %s370 = scalar_lea.vmem %s5, 20
  %v371 = vld [vmem:[%s370] sm:$0xf]
  %372 = vrot.lane.b32.xlu0 %v255, 116
  %v373 = vpop.permute.xlu0 %372
  %v375 = vsel %vm258, %v371, 0
  %v378 = vsel %vm262, %v373, 0
  %380 = vmatpush.bf16.msra.mxu0 0
  %381 = vmatpush.bf16.msra.mxu0 0
  %382 = vmatpush.bf16.msra.mxu0 0
  %383 = vmatpush.bf16.msra.mxu0 0
  %384 = vmatpush.bf16.msra.mxu0 0
  %385 = vmatpush.bf16.msra.mxu0 0
  %386 = vmatpush.bf16.msra.mxu0 0
  %387 = vmatpush.bf16.msra.mxu0 %v378
  %388 = vmatmul.bf16.gmra.mxu0 %v375
  %v389 = vpop.f32.mrf.mxu0
  %v390 = vadd.f32 0.0, %v389
  %v391 = vpop.f32.mrf.mxu0
  %392 = vdwg.mxu0
  %v393 = vadd.f32 %v369, %v390
  %s394 = scalar_lea.vmem %s5, 24
  %v395 = vld [vmem:[%s394] sm:$0xf]
  %396 = vrot.lane.b32.xlu0 %v255, 108
  %v397 = vpop.permute.xlu0 %396
  %v399 = vsel %vm258, %v395, 0
  %v402 = vsel %vm262, %v397, 0
  %404 = vmatpush.bf16.msra.mxu0 0
  %405 = vmatpush.bf16.msra.mxu0 0
  %406 = vmatpush.bf16.msra.mxu0 0
  %407 = vmatpush.bf16.msra.mxu0 0
  %408 = vmatpush.bf16.msra.mxu0 0
  %409 = vmatpush.bf16.msra.mxu0 0
  %410 = vmatpush.bf16.msra.mxu0 0
  %411 = vmatpush.bf16.msra.mxu0 %v402
  %412 = vmatmul.bf16.gmra.mxu0 %v399
  %v413 = vpop.f32.mrf.mxu0
  %v414 = vadd.f32 0.0, %v413
  %v415 = vpop.f32.mrf.mxu0
  %416 = vdwg.mxu0
  %v417 = vadd.f32 %v393, %v414
  %s418 = scalar_lea.vmem %s5, 28
  %v419 = vld [vmem:[%s418] sm:$0xf]
  %420 = vrot.lane.b32.xlu0 %v255, 107
  %v421 = vpop.permute.xlu0 %420
  %v423 = vsel %vm258, %v419, 0
  %v426 = vsel %vm262, %v421, 0
  %428 = vmatpush.bf16.msra.mxu0 0
  %429 = vmatpush.bf16.msra.mxu0 0
  %430 = vmatpush.bf16.msra.mxu0 0
  %431 = vmatpush.bf16.msra.mxu0 0
  %432 = vmatpush.bf16.msra.mxu0 0
  %433 = vmatpush.bf16.msra.mxu0 0
  %434 = vmatpush.bf16.msra.mxu0 0
  %435 = vmatpush.bf16.msra.mxu0 %v426
  %436 = vmatmul.bf16.gmra.mxu0 %v423
  %v437 = vpop.f32.mrf.mxu0
  %v438 = vadd.f32 0.0, %v437
  %v439 = vpop.f32.mrf.mxu0
  %440 = vdwg.mxu0
  %v441 = vadd.f32 %v417, %v438
  %s442 = scalar_lea.vmem %s5, 32
  %v443 = vld [vmem:[%s442] sm:$0xf]
  %444 = vrot.lane.b32.xlu0 %v255, 106
  %v445 = vpop.permute.xlu0 %444
  %v447 = vsel %vm258, %v443, 0
  %v450 = vsel %vm262, %v445, 0
  %452 = vmatpush.bf16.msra.mxu0 0
  %453 = vmatpush.bf16.msra.mxu0 0
  %454 = vmatpush.bf16.msra.mxu0 0
  %455 = vmatpush.bf16.msra.mxu0 0
  %456 = vmatpush.bf16.msra.mxu0 0
  %457 = vmatpush.bf16.msra.mxu0 0
  %458 = vmatpush.bf16.msra.mxu0 0
  %459 = vmatpush.bf16.msra.mxu0 %v450
  %460 = vmatmul.bf16.gmra.mxu0 %v447
  %v461 = vpop.f32.mrf.mxu0
  %v462 = vadd.f32 0.0, %v461
  %v463 = vpop.f32.mrf.mxu0
  %464 = vdwg.mxu0
  %v465 = vadd.f32 %v441, %v462
  %v466 = vld [vmem:[%s6] sm:$0xf]
  %v467 = vld [vmem:[#allocation2] sm:$0xf]
  %s468 = scalar_lea.vmem %s6, 4
  %v469 = vld [vmem:[%s468] sm:$0xf]
  %v471 = vunpack.c.l.b16 %v467
  %v472 = vpack.c.b16 %v471, %v471
  %473 = vrot.lane.b32.xlu0 %v472, 127
  %v474 = vpop.permute.xlu0 %473
  %v476 = vsel %vm258, %v469, 0
  %v479 = vsel %vm262, %v474, 0
  %481 = vmatpush.bf16.msra.mxu0 0
  %482 = vmatpush.bf16.msra.mxu0 0
  %483 = vmatpush.bf16.msra.mxu0 0
  %484 = vmatpush.bf16.msra.mxu0 0
  %485 = vmatpush.bf16.msra.mxu0 0
  %486 = vmatpush.bf16.msra.mxu0 0
  %487 = vmatpush.bf16.msra.mxu0 0
  %488 = vmatpush.bf16.msra.mxu0 %v479
  %489 = vmatmul.bf16.gmra.mxu0 %v476
  %v490 = vpop.f32.mrf.mxu0
  %v491 = vadd.f32 0.0, %v490
  %v492 = vpop.f32.mrf.mxu0
  %493 = vdwg.mxu0
  %v495 = vsel %vm258, %v466, 0
  %v498 = vsel %vm262, %v467, 0
  %500 = vmatpush.bf16.msra.mxu0 0
  %501 = vmatpush.bf16.msra.mxu0 0
  %502 = vmatpush.bf16.msra.mxu0 0
  %503 = vmatpush.bf16.msra.mxu0 0
  %504 = vmatpush.bf16.msra.mxu0 0
  %505 = vmatpush.bf16.msra.mxu0 0
  %506 = vmatpush.bf16.msra.mxu0 0
  %507 = vmatpush.bf16.msra.mxu0 %v498
  %508 = vmatmul.bf16.gmra.mxu0 %v495
  %v509 = vpop.f32.mrf.mxu0
  %v510 = vadd.f32 %v491, %v509
  %v511 = vpop.f32.mrf.mxu0
  %512 = vdwg.mxu0
  %s513 = scalar_lea.vmem %s6, 8
  %v514 = vld [vmem:[%s513] sm:$0xf]
  %515 = vrot.lane.b32.xlu0 %v472, 126
  %v516 = vpop.permute.xlu0 %515
  %v518 = vsel %vm258, %v514, 0
  %v521 = vsel %vm262, %v516, 0
  %523 = vmatpush.bf16.msra.mxu0 0
  %524 = vmatpush.bf16.msra.mxu0 0
  %525 = vmatpush.bf16.msra.mxu0 0
  %526 = vmatpush.bf16.msra.mxu0 0
  %527 = vmatpush.bf16.msra.mxu0 0
  %528 = vmatpush.bf16.msra.mxu0 0
  %529 = vmatpush.bf16.msra.mxu0 0
  %530 = vmatpush.bf16.msra.mxu0 %v521
  %531 = vmatmul.bf16.gmra.mxu0 %v518
  %v532 = vpop.f32.mrf.mxu0
  %v533 = vadd.f32 0.0, %v532
  %v534 = vpop.f32.mrf.mxu0
  %535 = vdwg.mxu0
  %v536 = vadd.f32 %v510, %v533
  %s537 = scalar_lea.vmem %s6, 12
  %v538 = vld [vmem:[%s537] sm:$0xf]
  %539 = vrot.lane.b32.xlu0 %v472, 118
  %v540 = vpop.permute.xlu0 %539
  %v542 = vsel %vm258, %v538, 0
  %v545 = vsel %vm262, %v540, 0
  %547 = vmatpush.bf16.msra.mxu0 0
  %548 = vmatpush.bf16.msra.mxu0 0
  %549 = vmatpush.bf16.msra.mxu0 0
  %550 = vmatpush.bf16.msra.mxu0 0
  %551 = vmatpush.bf16.msra.mxu0 0
  %552 = vmatpush.bf16.msra.mxu0 0
  %553 = vmatpush.bf16.msra.mxu0 0
  %554 = vmatpush.bf16.msra.mxu0 %v545
  %555 = vmatmul.bf16.gmra.mxu0 %v542
  %v556 = vpop.f32.mrf.mxu0
  %v557 = vadd.f32 0.0, %v556
  %v558 = vpop.f32.mrf.mxu0
  %559 = vdwg.mxu0
  %v560 = vadd.f32 %v536, %v557
  %s561 = scalar_lea.vmem %s6, 16
  %v562 = vld [vmem:[%s561] sm:$0xf]
  %563 = vrot.lane.b32.xlu0 %v472, 117
  %v564 = vpop.permute.xlu0 %563
  %v566 = vsel %vm258, %v562, 0
  %v569 = vsel %vm262, %v564, 0
  %571 = vmatpush.bf16.msra.mxu0 0
  %572 = vmatpush.bf16.msra.mxu0 0
  %573 = vmatpush.bf16.msra.mxu0 0
  %574 = vmatpush.bf16.msra.mxu0 0
  %575 = vmatpush.bf16.msra.mxu0 0
  %576 = vmatpush.bf16.msra.mxu0 0
  %577 = vmatpush.bf16.msra.mxu0 0
  %578 = vmatpush.bf16.msra.mxu0 %v569
  %579 = vmatmul.bf16.gmra.mxu0 %v566
  %v580 = vpop.f32.mrf.mxu0
  %v581 = vadd.f32 0.0, %v580
  %v582 = vpop.f32.mrf.mxu0
  %583 = vdwg.mxu0
  %v584 = vadd.f32 %v560, %v581
  %s585 = scalar_lea.vmem %s6, 20
  %v586 = vld [vmem:[%s585] sm:$0xf]
  %587 = vrot.lane.b32.xlu0 %v472, 116
  %v588 = vpop.permute.xlu0 %587
  %v590 = vsel %vm258, %v586, 0
  %v593 = vsel %vm262, %v588, 0
  %595 = vmatpush.bf16.msra.mxu0 0
  %596 = vmatpush.bf16.msra.mxu0 0
  %597 = vmatpush.bf16.msra.mxu0 0
  %598 = vmatpush.bf16.msra.mxu0 0
  %599 = vmatpush.bf16.msra.mxu0 0
  %600 = vmatpush.bf16.msra.mxu0 0
  %601 = vmatpush.bf16.msra.mxu0 0
  %602 = vmatpush.bf16.msra.mxu0 %v593
  %603 = vmatmul.bf16.gmra.mxu0 %v590
  %v604 = vpop.f32.mrf.mxu0
  %v605 = vadd.f32 0.0, %v604
  %v606 = vpop.f32.mrf.mxu0
  %607 = vdwg.mxu0
  %v608 = vadd.f32 %v584, %v605
  %s609 = scalar_lea.vmem %s6, 24
  %v610 = vld [vmem:[%s609] sm:$0xf]
  %611 = vrot.lane.b32.xlu0 %v472, 108
  %v612 = vpop.permute.xlu0 %611
  %v614 = vsel %vm258, %v610, 0
  %v617 = vsel %vm262, %v612, 0
  %619 = vmatpush.bf16.msra.mxu0 0
  %620 = vmatpush.bf16.msra.mxu0 0
  %621 = vmatpush.bf16.msra.mxu0 0
  %622 = vmatpush.bf16.msra.mxu0 0
  %623 = vmatpush.bf16.msra.mxu0 0
  %624 = vmatpush.bf16.msra.mxu0 0
  %625 = vmatpush.bf16.msra.mxu0 0
  %626 = vmatpush.bf16.msra.mxu0 %v617
  %627 = vmatmul.bf16.gmra.mxu0 %v614
  %v628 = vpop.f32.mrf.mxu0
  %v629 = vadd.f32 0.0, %v628
  %v630 = vpop.f32.mrf.mxu0
  %631 = vdwg.mxu0
  %v632 = vadd.f32 %v608, %v629
  %s633 = scalar_lea.vmem %s6, 28
  %v634 = vld [vmem:[%s633] sm:$0xf]
  %635 = vrot.lane.b32.xlu0 %v472, 107
  %v636 = vpop.permute.xlu0 %635
  %v638 = vsel %vm258, %v634, 0
  %v641 = vsel %vm262, %v636, 0
  %643 = vmatpush.bf16.msra.mxu0 0
  %644 = vmatpush.bf16.msra.mxu0 0
  %645 = vmatpush.bf16.msra.mxu0 0
  %646 = vmatpush.bf16.msra.mxu0 0
  %647 = vmatpush.bf16.msra.mxu0 0
  %648 = vmatpush.bf16.msra.mxu0 0
  %649 = vmatpush.bf16.msra.mxu0 0
  %650 = vmatpush.bf16.msra.mxu0 %v641
  %651 = vmatmul.bf16.gmra.mxu0 %v638
  %v652 = vpop.f32.mrf.mxu0
  %v653 = vadd.f32 0.0, %v652
  %v654 = vpop.f32.mrf.mxu0
  %655 = vdwg.mxu0
  %v656 = vadd.f32 %v632, %v653
  %s657 = scalar_lea.vmem %s6, 32
  %v658 = vld [vmem:[%s657] sm:$0xf]
  %659 = vrot.lane.b32.xlu0 %v472, 106
  %v660 = vpop.permute.xlu0 %659
  %v662 = vsel %vm258, %v658, 0
  %v665 = vsel %vm262, %v660, 0
  %667 = vmatpush.bf16.msra.mxu0 0
  %668 = vmatpush.bf16.msra.mxu0 0
  %669 = vmatpush.bf16.msra.mxu0 0
  %670 = vmatpush.bf16.msra.mxu0 0
  %671 = vmatpush.bf16.msra.mxu0 0
  %672 = vmatpush.bf16.msra.mxu0 0
  %673 = vmatpush.bf16.msra.mxu0 0
  %674 = vmatpush.bf16.msra.mxu0 %v665
  %675 = vmatmul.bf16.gmra.mxu0 %v662
  %v676 = vpop.f32.mrf.mxu0
  %v677 = vadd.f32 0.0, %v676
  %v678 = vpop.f32.mrf.mxu0
  %679 = vdwg.mxu0
  %v680 = vadd.f32 %v656, %v677
  %v681 = vadd.f32 %v465, %v680
  %s682 = scalar_lea.vmem %s0, 4
  %v683 = vld [vmem:[%s682] sm:$0xf]
  %v685 = vunpack.c.l.b16 %v683
  %v686 = vpack.c.b16 %v685, %v685
  %687 = vrot.lane.b32.xlu0 %v686, 127
  %v688 = vpop.permute.xlu0 %687
  %v690 = vsel %vm262, %v688, 0
  %692 = vmatpush.bf16.msra.mxu0 0
  %693 = vmatpush.bf16.msra.mxu0 0
  %694 = vmatpush.bf16.msra.mxu0 0
  %695 = vmatpush.bf16.msra.mxu0 0
  %696 = vmatpush.bf16.msra.mxu0 0
  %697 = vmatpush.bf16.msra.mxu0 0
  %698 = vmatpush.bf16.msra.mxu0 0
  %699 = vmatpush.bf16.msra.mxu0 %v690
  %700 = vmatmul.bf16.gmra.mxu0 %v260
  %v701 = vpop.f32.mrf.mxu0
  %v702 = vadd.f32 0.0, %v701
  %v703 = vpop.f32.mrf.mxu0
  %704 = vdwg.mxu0
  %v706 = vsel %vm262, %v683, 0
  %708 = vmatpush.bf16.msra.mxu0 0
  %709 = vmatpush.bf16.msra.mxu0 0
  %710 = vmatpush.bf16.msra.mxu0 0
  %711 = vmatpush.bf16.msra.mxu0 0
  %712 = vmatpush.bf16.msra.mxu0 0
  %713 = vmatpush.bf16.msra.mxu0 0
  %714 = vmatpush.bf16.msra.mxu0 0
  %715 = vmatpush.bf16.msra.mxu0 %v706
  %716 = vmatmul.bf16.gmra.mxu0 %v280
  %v717 = vpop.f32.mrf.mxu0
  %v718 = vadd.f32 %v702, %v717
  %v719 = vpop.f32.mrf.mxu0
  %720 = vdwg.mxu0
  %721 = vrot.lane.b32.xlu0 %v686, 126
  %v722 = vpop.permute.xlu0 %721
  %v724 = vsel %vm262, %v722, 0
  %726 = vmatpush.bf16.msra.mxu0 0
  %727 = vmatpush.bf16.msra.mxu0 0
  %728 = vmatpush.bf16.msra.mxu0 0
  %729 = vmatpush.bf16.msra.mxu0 0
  %730 = vmatpush.bf16.msra.mxu0 0
  %731 = vmatpush.bf16.msra.mxu0 0
  %732 = vmatpush.bf16.msra.mxu0 0
  %733 = vmatpush.bf16.msra.mxu0 %v724
  %734 = vmatmul.bf16.gmra.mxu0 %v303
  %v735 = vpop.f32.mrf.mxu0
  %v736 = vadd.f32 0.0, %v735
  %v737 = vpop.f32.mrf.mxu0
  %738 = vdwg.mxu0
  %v739 = vadd.f32 %v718, %v736
  %740 = vrot.lane.b32.xlu0 %v686, 118
  %v741 = vpop.permute.xlu0 %740
  %v743 = vsel %vm262, %v741, 0
  %745 = vmatpush.bf16.msra.mxu0 0
  %746 = vmatpush.bf16.msra.mxu0 0
  %747 = vmatpush.bf16.msra.mxu0 0
  %748 = vmatpush.bf16.msra.mxu0 0
  %749 = vmatpush.bf16.msra.mxu0 0
  %750 = vmatpush.bf16.msra.mxu0 0
  %751 = vmatpush.bf16.msra.mxu0 0
  %752 = vmatpush.bf16.msra.mxu0 %v743
  %753 = vmatmul.bf16.gmra.mxu0 %v327
  %v754 = vpop.f32.mrf.mxu0
  %v755 = vadd.f32 0.0, %v754
  %v756 = vpop.f32.mrf.mxu0
  %757 = vdwg.mxu0
  %v758 = vadd.f32 %v739, %v755
  %759 = vrot.lane.b32.xlu0 %v686, 117
  %v760 = vpop.permute.xlu0 %759
  %v762 = vsel %vm262, %v760, 0
  %764 = vmatpush.bf16.msra.mxu0 0
  %765 = vmatpush.bf16.msra.mxu0 0
  %766 = vmatpush.bf16.msra.mxu0 0
  %767 = vmatpush.bf16.msra.mxu0 0
  %768 = vmatpush.bf16.msra.mxu0 0
  %769 = vmatpush.bf16.msra.mxu0 0
  %770 = vmatpush.bf16.msra.mxu0 0
  %771 = vmatpush.bf16.msra.mxu0 %v762
  %772 = vmatmul.bf16.gmra.mxu0 %v351
  %v773 = vpop.f32.mrf.mxu0
  %v774 = vadd.f32 0.0, %v773
  %v775 = vpop.f32.mrf.mxu0
  %776 = vdwg.mxu0
  %v777 = vadd.f32 %v758, %v774
  %778 = vrot.lane.b32.xlu0 %v686, 116
  %v779 = vpop.permute.xlu0 %778
  %v781 = vsel %vm262, %v779, 0
  %783 = vmatpush.bf16.msra.mxu0 0
  %784 = vmatpush.bf16.msra.mxu0 0
  %785 = vmatpush.bf16.msra.mxu0 0
  %786 = vmatpush.bf16.msra.mxu0 0
  %787 = vmatpush.bf16.msra.mxu0 0
  %788 = vmatpush.bf16.msra.mxu0 0
  %789 = vmatpush.bf16.msra.mxu0 0
  %790 = vmatpush.bf16.msra.mxu0 %v781
  %791 = vmatmul.bf16.gmra.mxu0 %v375
  %v792 = vpop.f32.mrf.mxu0
  %v793 = vadd.f32 0.0, %v792
  %v794 = vpop.f32.mrf.mxu0
  %795 = vdwg.mxu0
  %v796 = vadd.f32 %v777, %v793
  %797 = vrot.lane.b32.xlu0 %v686, 108
  %v798 = vpop.permute.xlu0 %797
  %v800 = vsel %vm262, %v798, 0
  %802 = vmatpush.bf16.msra.mxu0 0
  %803 = vmatpush.bf16.msra.mxu0 0
  %804 = vmatpush.bf16.msra.mxu0 0
  %805 = vmatpush.bf16.msra.mxu0 0
  %806 = vmatpush.bf16.msra.mxu0 0
  %807 = vmatpush.bf16.msra.mxu0 0
  %808 = vmatpush.bf16.msra.mxu0 0
  %809 = vmatpush.bf16.msra.mxu0 %v800
  %810 = vmatmul.bf16.gmra.mxu0 %v399
  %v811 = vpop.f32.mrf.mxu0
  %v812 = vadd.f32 0.0, %v811
  %v813 = vpop.f32.mrf.mxu0
  %814 = vdwg.mxu0
  %v815 = vadd.f32 %v796, %v812
  %816 = vrot.lane.b32.xlu0 %v686, 107
  %v817 = vpop.permute.xlu0 %816
  %v819 = vsel %vm262, %v817, 0
  %821 = vmatpush.bf16.msra.mxu0 0
  %822 = vmatpush.bf16.msra.mxu0 0
  %823 = vmatpush.bf16.msra.mxu0 0
  %824 = vmatpush.bf16.msra.mxu0 0
  %825 = vmatpush.bf16.msra.mxu0 0
  %826 = vmatpush.bf16.msra.mxu0 0
  %827 = vmatpush.bf16.msra.mxu0 0
  %828 = vmatpush.bf16.msra.mxu0 %v819
  %829 = vmatmul.bf16.gmra.mxu0 %v423
  %v830 = vpop.f32.mrf.mxu0
  %v831 = vadd.f32 0.0, %v830
  %v832 = vpop.f32.mrf.mxu0
  %833 = vdwg.mxu0
  %v834 = vadd.f32 %v815, %v831
  %835 = vrot.lane.b32.xlu0 %v686, 106
  %v836 = vpop.permute.xlu0 %835
  %v838 = vsel %vm262, %v836, 0
  %840 = vmatpush.bf16.msra.mxu0 0
  %841 = vmatpush.bf16.msra.mxu0 0
  %842 = vmatpush.bf16.msra.mxu0 0
  %843 = vmatpush.bf16.msra.mxu0 0
  %844 = vmatpush.bf16.msra.mxu0 0
  %845 = vmatpush.bf16.msra.mxu0 0
  %846 = vmatpush.bf16.msra.mxu0 0
  %847 = vmatpush.bf16.msra.mxu0 %v838
  %848 = vmatmul.bf16.gmra.mxu0 %v447
  %v849 = vpop.f32.mrf.mxu0
  %v850 = vadd.f32 0.0, %v849
  %v851 = vpop.f32.mrf.mxu0
  %852 = vdwg.mxu0
  %v853 = vadd.f32 %v834, %v850
  %v854 = vld [vmem:[%s247] sm:$0xf]
  %v856 = vunpack.c.l.b16 %v854
  %v857 = vpack.c.b16 %v856, %v856
  %858 = vrot.lane.b32.xlu0 %v857, 127
  %v859 = vpop.permute.xlu0 %858
  %v861 = vsel %vm262, %v859, 0
  %863 = vmatpush.bf16.msra.mxu0 0
  %864 = vmatpush.bf16.msra.mxu0 0
  %865 = vmatpush.bf16.msra.mxu0 0
  %866 = vmatpush.bf16.msra.mxu0 0
  %867 = vmatpush.bf16.msra.mxu0 0
  %868 = vmatpush.bf16.msra.mxu0 0
  %869 = vmatpush.bf16.msra.mxu0 0
  %870 = vmatpush.bf16.msra.mxu0 %v861
  %871 = vmatmul.bf16.gmra.mxu0 %v476
  %v872 = vpop.f32.mrf.mxu0
  %v873 = vadd.f32 0.0, %v872
  %v874 = vpop.f32.mrf.mxu0
  %875 = vdwg.mxu0
  %v877 = vsel %vm262, %v854, 0
  %879 = vmatpush.bf16.msra.mxu0 0
  %880 = vmatpush.bf16.msra.mxu0 0
  %881 = vmatpush.bf16.msra.mxu0 0
  %882 = vmatpush.bf16.msra.mxu0 0
  %883 = vmatpush.bf16.msra.mxu0 0
  %884 = vmatpush.bf16.msra.mxu0 0
  %885 = vmatpush.bf16.msra.mxu0 0
  %886 = vmatpush.bf16.msra.mxu0 %v877
  %887 = vmatmul.bf16.gmra.mxu0 %v495
  %v888 = vpop.f32.mrf.mxu0
  %v889 = vadd.f32 %v873, %v888
  %v890 = vpop.f32.mrf.mxu0
  %891 = vdwg.mxu0
  %892 = vrot.lane.b32.xlu0 %v857, 126
  %v893 = vpop.permute.xlu0 %892
  %v895 = vsel %vm262, %v893, 0
  %897 = vmatpush.bf16.msra.mxu0 0
  %898 = vmatpush.bf16.msra.mxu0 0
  %899 = vmatpush.bf16.msra.mxu0 0
  %900 = vmatpush.bf16.msra.mxu0 0
  %901 = vmatpush.bf16.msra.mxu0 0
  %902 = vmatpush.bf16.msra.mxu0 0
  %903 = vmatpush.bf16.msra.mxu0 0
  %904 = vmatpush.bf16.msra.mxu0 %v895
  %905 = vmatmul.bf16.gmra.mxu0 %v518
  %v906 = vpop.f32.mrf.mxu0
  %v907 = vadd.f32 0.0, %v906
  %v908 = vpop.f32.mrf.mxu0
  %909 = vdwg.mxu0
  %v910 = vadd.f32 %v889, %v907
  %911 = vrot.lane.b32.xlu0 %v857, 118
  %v912 = vpop.permute.xlu0 %911
  %v914 = vsel %vm262, %v912, 0
  %916 = vmatpush.bf16.msra.mxu0 0
  %917 = vmatpush.bf16.msra.mxu0 0
  %918 = vmatpush.bf16.msra.mxu0 0
  %919 = vmatpush.bf16.msra.mxu0 0
  %920 = vmatpush.bf16.msra.mxu0 0
  %921 = vmatpush.bf16.msra.mxu0 0
  %922 = vmatpush.bf16.msra.mxu0 0
  %923 = vmatpush.bf16.msra.mxu0 %v914
  %924 = vmatmul.bf16.gmra.mxu0 %v542
  %v925 = vpop.f32.mrf.mxu0
  %v926 = vadd.f32 0.0, %v925
  %v927 = vpop.f32.mrf.mxu0
  %928 = vdwg.mxu0
  %v929 = vadd.f32 %v910, %v926
  %930 = vrot.lane.b32.xlu0 %v857, 117
  %v931 = vpop.permute.xlu0 %930
  %v933 = vsel %vm262, %v931, 0
  %935 = vmatpush.bf16.msra.mxu0 0
  %936 = vmatpush.bf16.msra.mxu0 0
  %937 = vmatpush.bf16.msra.mxu0 0
  %938 = vmatpush.bf16.msra.mxu0 0
  %939 = vmatpush.bf16.msra.mxu0 0
  %940 = vmatpush.bf16.msra.mxu0 0
  %941 = vmatpush.bf16.msra.mxu0 0
  %942 = vmatpush.bf16.msra.mxu0 %v933
  %943 = vmatmul.bf16.gmra.mxu0 %v566
  %v944 = vpop.f32.mrf.mxu0
  %v945 = vadd.f32 0.0, %v944
  %v946 = vpop.f32.mrf.mxu0
  %947 = vdwg.mxu0
  %v948 = vadd.f32 %v929, %v945
  %949 = vrot.lane.b32.xlu0 %v857, 116
  %v950 = vpop.permute.xlu0 %949
  %v952 = vsel %vm262, %v950, 0
  %954 = vmatpush.bf16.msra.mxu0 0
  %955 = vmatpush.bf16.msra.mxu0 0
  %956 = vmatpush.bf16.msra.mxu0 0
  %957 = vmatpush.bf16.msra.mxu0 0
  %958 = vmatpush.bf16.msra.mxu0 0
  %959 = vmatpush.bf16.msra.mxu0 0
  %960 = vmatpush.bf16.msra.mxu0 0
  %961 = vmatpush.bf16.msra.mxu0 %v952
  %962 = vmatmul.bf16.gmra.mxu0 %v590
  %v963 = vpop.f32.mrf.mxu0
  %v964 = vadd.f32 0.0, %v963
  %v965 = vpop.f32.mrf.mxu0
  %966 = vdwg.mxu0
  %v967 = vadd.f32 %v948, %v964
  %968 = vrot.lane.b32.xlu0 %v857, 108
  %v969 = vpop.permute.xlu0 %968
  %v971 = vsel %vm262, %v969, 0
  %973 = vmatpush.bf16.msra.mxu0 0
  %974 = vmatpush.bf16.msra.mxu0 0
  %975 = vmatpush.bf16.msra.mxu0 0
  %976 = vmatpush.bf16.msra.mxu0 0
  %977 = vmatpush.bf16.msra.mxu0 0
  %978 = vmatpush.bf16.msra.mxu0 0
  %979 = vmatpush.bf16.msra.mxu0 0
  %980 = vmatpush.bf16.msra.mxu0 %v971
  %981 = vmatmul.bf16.gmra.mxu0 %v614
  %v982 = vpop.f32.mrf.mxu0
  %v983 = vadd.f32 0.0, %v982
  %v984 = vpop.f32.mrf.mxu0
  %985 = vdwg.mxu0
  %v986 = vadd.f32 %v967, %v983
  %987 = vrot.lane.b32.xlu0 %v857, 107
  %v988 = vpop.permute.xlu0 %987
  %v990 = vsel %vm262, %v988, 0
  %992 = vmatpush.bf16.msra.mxu0 0
  %993 = vmatpush.bf16.msra.mxu0 0
  %994 = vmatpush.bf16.msra.mxu0 0
  %995 = vmatpush.bf16.msra.mxu0 0
  %996 = vmatpush.bf16.msra.mxu0 0
  %997 = vmatpush.bf16.msra.mxu0 0
  %998 = vmatpush.bf16.msra.mxu0 0
  %999 = vmatpush.bf16.msra.mxu0 %v990
  %1000 = vmatmul.bf16.gmra.mxu0 %v638
  %v1001 = vpop.f32.mrf.mxu0
  %v1002 = vadd.f32 0.0, %v1001
  %v1003 = vpop.f32.mrf.mxu0
  %1004 = vdwg.mxu0
  %v1005 = vadd.f32 %v986, %v1002
  %1006 = vrot.lane.b32.xlu0 %v857, 106
  %v1007 = vpop.permute.xlu0 %1006
  %v1009 = vsel %vm262, %v1007, 0
  %1011 = vmatpush.bf16.msra.mxu0 0
  %1012 = vmatpush.bf16.msra.mxu0 0
  %1013 = vmatpush.bf16.msra.mxu0 0
  %1014 = vmatpush.bf16.msra.mxu0 0
  %1015 = vmatpush.bf16.msra.mxu0 0
  %1016 = vmatpush.bf16.msra.mxu0 0
  %1017 = vmatpush.bf16.msra.mxu0 0
  %1018 = vmatpush.bf16.msra.mxu0 %v1009
  %1019 = vmatmul.bf16.gmra.mxu0 %v662
  %v1020 = vpop.f32.mrf.mxu0
  %v1021 = vadd.f32 0.0, %v1020
  %v1022 = vpop.f32.mrf.mxu0
  %1023 = vdwg.mxu0
  %v1024 = vadd.f32 %v1005, %v1021
  %v1025 = vadd.f32 %v853, %v1024
  %v1027 = vperm.slane %v42, 0
  %v1029 = vmul.f32 %v681, %v1027
  %vm1030 = vcmask 818176
  %v1031 = vsel %vm1030, %v1029, 0.0
  %1032 = vadd.xlane.f32.xlu0 %v1031
  %v1033 = vpop.xlane.xlu0 %1032
  %v1034 = vadd.f32 %v1033, 0.0
  %v1035 = vmul.f32 %v1025, %v1027
  %v1036 = vsel %vm1030, %v1035, 0.0
  %1037 = vadd.xlane.f32.xlu0 %v1036
  %v1038 = vpop.xlane.xlu0 %1037
  %v1039 = vadd.f32 %v1034, %v1038
  %v1040 = vrcp.pop 128.0
  %v1041 = vmul.f32 128.0, %v1040
  %v1042 = vsub.f32 1.0, %v1041
  %v1043 = vmul.f32 %v1040, %v1042
  %v1044 = vadd.f32 %v1040, %v1043
  %vm1045 = vweird.f32 %v1040
  %v1046 = vsel %vm1045, %v1040, %v1044
  %v1047 = vmul.f32 %v1039, %v1046
  %v1048 = vsub.f32 %v681, %v1047
  %v1049 = vmul.f32 %v1048, %v1048
  %v1050 = vmul.f32 %v1027, %v1049
  %v1051 = vsel %vm1030, %v1050, 0.0
  %1052 = vadd.xlane.f32.xlu0 %v1051
  %v1053 = vpop.xlane.xlu0 %1052
  %v1054 = vadd.f32 %v1053, 0.0
  %v1055 = vsub.f32 %v1025, %v1047
  %v1056 = vmul.f32 %v1055, %v1055
  %v1057 = vmul.f32 %v1027, %v1056
  %v1058 = vsel %vm1030, %v1057, 0.0
  %1059 = vadd.xlane.f32.xlu0 %v1058
  %v1060 = vpop.xlane.xlu0 %1059
  %v1061 = vadd.f32 %v1054, %v1060
  %v1062 = vmul.f32 %v1061, %v1046
  %v1063 = vld [vmem:[%s7] sm:$0xff]
  %v1064 = vadd.f32 %v1062, 1e-05
  %v1065 = vrsqrt.pop %v1064
  %v1066 = vmul.f32 %v1065, %v1064
  %v1067 = vmul.f32 %v1066, %v1065
  %v1068 = vmul.f32 0.5, %v1067
  %v1069 = vsub.f32 1.5, %v1068
  %v1070 = vmul.f32 %v1065, %v1069
  %vm1071 = vweird.f32 %v1064
  %vm1072 = vweird.f32 %v1065
  %vm1073 = vmor %vm1071, %vm1072
  %v1074 = vsel %vm1073, %v1065, %v1070
  %v1075 = vmul.f32 %v1063, %v1074
  %v1076 = vld [vmem:[%s8] sm:$0xff]
  %v1077 = vmul.f32 %v1047, %v1075
  %v1078 = vsub.f32 %v1076, %v1077
  %1080 = vset.pattern.permute.xlu0 0
  %1081 = vperm.xlu0 %1080, %v1075
  %v1082 = vpop.permute.xlu0 %1081
  %v1084 = vmul.f32 %v681, %v1082
  %1086 = vset.pattern.permute.xlu0 0
  %1087 = vperm.xlu0 %1086, %v1078
  %v1088 = vpop.permute.xlu0 %1087
  %v1090 = vadd.f32 %v1084, %v1088
  %v1091 = vmax.f32 %v1090, 0.0
  %v1092 = vmul.f32 %v1027, %v1091
  %v1093 = vmul.f32 %v1025, %v1082
  %v1094 = vadd.f32 %v1093, %v1088
  %v1095 = vmax.f32 %v1094, 0.0
  %v1096 = vmul.f32 %v1027, %v1095
  %v1097 = vpack.c.bf16 %v1092, %v1092
  %1099 = vrot.lane.b32.xlu0 %v1097, 11
  %v1100 = vpop.permute.xlu0 %1099
  %1102 = vst.msk [vmem:[#allocation3] sm:$0xf] %vm153, %v1100
  %v1103 = vpack.c.bf16 %v1096, %v1096
  %1105 = vrot.lane.b32.xlu0 %v1103, 11
  %v1106 = vpop.permute.xlu0 %1105
  %s1108 = scalar_lea.vmem [#allocation3], 4
  %1109 = vst.msk [vmem:[%s1108] sm:$0xf] %vm153, %v1106
  %v1110 = vld [vmem:[%s9] sm:$0xf]
  %v1111 = vld [vmem:[#allocation3] sm:$0xf]
  %s1112 = scalar_lea.vmem %s9, 4
  %v1113 = vld [vmem:[%s1112] sm:$0xf]
  %v1115 = vunpack.c.l.b16 %v1111
  %v1116 = vpack.c.b16 %v1115, %v1115
  %1117 = vrot.lane.b32.xlu0 %v1116, 127
  %v1118 = vpop.permute.xlu0 %1117
  %v1120 = vsel %vm258, %v1113, 0
  %v1123 = vsel %vm262, %v1118, 0
  %1125 = vmatpush.bf16.msra.mxu0 0
  %1126 = vmatpush.bf16.msra.mxu0 0
  %1127 = vmatpush.bf16.msra.mxu0 0
  %1128 = vmatpush.bf16.msra.mxu0 0
  %1129 = vmatpush.bf16.msra.mxu0 0
  %1130 = vmatpush.bf16.msra.mxu0 0
  %1131 = vmatpush.bf16.msra.mxu0 0
  %1132 = vmatpush.bf16.msra.mxu0 %v1123
  %1133 = vmatmul.bf16.gmra.mxu0 %v1120
  %v1134 = vpop.f32.mrf.mxu0
  %v1135 = vadd.f32 0.0, %v1134
  %v1136 = vpop.f32.mrf.mxu0
  %1137 = vdwg.mxu0
  %v1139 = vsel %vm258, %v1110, 0
  %v1142 = vsel %vm262, %v1111, 0
  %1144 = vmatpush.bf16.msra.mxu0 0
  %1145 = vmatpush.bf16.msra.mxu0 0
  %1146 = vmatpush.bf16.msra.mxu0 0
  %1147 = vmatpush.bf16.msra.mxu0 0
  %1148 = vmatpush.bf16.msra.mxu0 0
  %1149 = vmatpush.bf16.msra.mxu0 0
  %1150 = vmatpush.bf16.msra.mxu0 0
  %1151 = vmatpush.bf16.msra.mxu0 %v1142
  %1152 = vmatmul.bf16.gmra.mxu0 %v1139
  %v1153 = vpop.f32.mrf.mxu0
  %v1154 = vadd.f32 %v1135, %v1153
  %v1155 = vpop.f32.mrf.mxu0
  %1156 = vdwg.mxu0
  %s1157 = scalar_lea.vmem %s9, 8
  %v1158 = vld [vmem:[%s1157] sm:$0xf]
  %1159 = vrot.lane.b32.xlu0 %v1116, 126
  %v1160 = vpop.permute.xlu0 %1159
  %v1162 = vsel %vm258, %v1158, 0
  %v1165 = vsel %vm262, %v1160, 0
  %1167 = vmatpush.bf16.msra.mxu0 0
  %1168 = vmatpush.bf16.msra.mxu0 0
  %1169 = vmatpush.bf16.msra.mxu0 0
  %1170 = vmatpush.bf16.msra.mxu0 0
  %1171 = vmatpush.bf16.msra.mxu0 0
  %1172 = vmatpush.bf16.msra.mxu0 0
  %1173 = vmatpush.bf16.msra.mxu0 0
  %1174 = vmatpush.bf16.msra.mxu0 %v1165
  %1175 = vmatmul.bf16.gmra.mxu0 %v1162
  %v1176 = vpop.f32.mrf.mxu0
  %v1177 = vadd.f32 0.0, %v1176
  %v1178 = vpop.f32.mrf.mxu0
  %1179 = vdwg.mxu0
  %v1180 = vadd.f32 %v1154, %v1177
  %s1181 = scalar_lea.vmem %s9, 12
  %v1182 = vld [vmem:[%s1181] sm:$0xf]
  %1183 = vrot.lane.b32.xlu0 %v1116, 118
  %v1184 = vpop.permute.xlu0 %1183
  %v1186 = vsel %vm258, %v1182, 0
  %v1189 = vsel %vm262, %v1184, 0
  %1191 = vmatpush.bf16.msra.mxu0 0
  %1192 = vmatpush.bf16.msra.mxu0 0
  %1193 = vmatpush.bf16.msra.mxu0 0
  %1194 = vmatpush.bf16.msra.mxu0 0
  %1195 = vmatpush.bf16.msra.mxu0 0
  %1196 = vmatpush.bf16.msra.mxu0 0
  %1197 = vmatpush.bf16.msra.mxu0 0
  %1198 = vmatpush.bf16.msra.mxu0 %v1189
  %1199 = vmatmul.bf16.gmra.mxu0 %v1186
  %v1200 = vpop.f32.mrf.mxu0
  %v1201 = vadd.f32 0.0, %v1200
  %v1202 = vpop.f32.mrf.mxu0
  %1203 = vdwg.mxu0
  %v1204 = vadd.f32 %v1180, %v1201
  %s1205 = scalar_lea.vmem %s9, 16
  %v1206 = vld [vmem:[%s1205] sm:$0xf]
  %1207 = vrot.lane.b32.xlu0 %v1116, 117
  %v1208 = vpop.permute.xlu0 %1207
  %v1210 = vsel %vm258, %v1206, 0
  %v1213 = vsel %vm262, %v1208, 0
  %1215 = vmatpush.bf16.msra.mxu0 0
  %1216 = vmatpush.bf16.msra.mxu0 0
  %1217 = vmatpush.bf16.msra.mxu0 0
  %1218 = vmatpush.bf16.msra.mxu0 0
  %1219 = vmatpush.bf16.msra.mxu0 0
  %1220 = vmatpush.bf16.msra.mxu0 0
  %1221 = vmatpush.bf16.msra.mxu0 0
  %1222 = vmatpush.bf16.msra.mxu0 %v1213
  %1223 = vmatmul.bf16.gmra.mxu0 %v1210
  %v1224 = vpop.f32.mrf.mxu0
  %v1225 = vadd.f32 0.0, %v1224
  %v1226 = vpop.f32.mrf.mxu0
  %1227 = vdwg.mxu0
  %v1228 = vadd.f32 %v1204, %v1225
  %s1229 = scalar_lea.vmem %s9, 20
  %v1230 = vld [vmem:[%s1229] sm:$0xf]
  %1231 = vrot.lane.b32.xlu0 %v1116, 116
  %v1232 = vpop.permute.xlu0 %1231
  %v1234 = vsel %vm258, %v1230, 0
  %v1237 = vsel %vm262, %v1232, 0
  %1239 = vmatpush.bf16.msra.mxu0 0
  %1240 = vmatpush.bf16.msra.mxu0 0
  %1241 = vmatpush.bf16.msra.mxu0 0
  %1242 = vmatpush.bf16.msra.mxu0 0
  %1243 = vmatpush.bf16.msra.mxu0 0
  %1244 = vmatpush.bf16.msra.mxu0 0
  %1245 = vmatpush.bf16.msra.mxu0 0
  %1246 = vmatpush.bf16.msra.mxu0 %v1237
  %1247 = vmatmul.bf16.gmra.mxu0 %v1234
  %v1248 = vpop.f32.mrf.mxu0
  %v1249 = vadd.f32 0.0, %v1248
  %v1250 = vpop.f32.mrf.mxu0
  %1251 = vdwg.mxu0
  %v1252 = vadd.f32 %v1228, %v1249
  %s1253 = scalar_lea.vmem %s9, 24
  %v1254 = vld [vmem:[%s1253] sm:$0xf]
  %1255 = vrot.lane.b32.xlu0 %v1116, 108
  %v1256 = vpop.permute.xlu0 %1255
  %v1258 = vsel %vm258, %v1254, 0
  %v1261 = vsel %vm262, %v1256, 0
  %1263 = vmatpush.bf16.msra.mxu0 0
  %1264 = vmatpush.bf16.msra.mxu0 0
  %1265 = vmatpush.bf16.msra.mxu0 0
  %1266 = vmatpush.bf16.msra.mxu0 0
  %1267 = vmatpush.bf16.msra.mxu0 0
  %1268 = vmatpush.bf16.msra.mxu0 0
  %1269 = vmatpush.bf16.msra.mxu0 0
  %1270 = vmatpush.bf16.msra.mxu0 %v1261
  %1271 = vmatmul.bf16.gmra.mxu0 %v1258
  %v1272 = vpop.f32.mrf.mxu0
  %v1273 = vadd.f32 0.0, %v1272
  %v1274 = vpop.f32.mrf.mxu0
  %1275 = vdwg.mxu0
  %v1276 = vadd.f32 %v1252, %v1273
  %s1277 = scalar_lea.vmem %s9, 28
  %v1278 = vld [vmem:[%s1277] sm:$0xf]
  %1279 = vrot.lane.b32.xlu0 %v1116, 107
  %v1280 = vpop.permute.xlu0 %1279
  %v1282 = vsel %vm258, %v1278, 0
  %v1285 = vsel %vm262, %v1280, 0
  %1287 = vmatpush.bf16.msra.mxu0 0
  %1288 = vmatpush.bf16.msra.mxu0 0
  %1289 = vmatpush.bf16.msra.mxu0 0
  %1290 = vmatpush.bf16.msra.mxu0 0
  %1291 = vmatpush.bf16.msra.mxu0 0
  %1292 = vmatpush.bf16.msra.mxu0 0
  %1293 = vmatpush.bf16.msra.mxu0 0
  %1294 = vmatpush.bf16.msra.mxu0 %v1285
  %1295 = vmatmul.bf16.gmra.mxu0 %v1282
  %v1296 = vpop.f32.mrf.mxu0
  %v1297 = vadd.f32 0.0, %v1296
  %v1298 = vpop.f32.mrf.mxu0
  %1299 = vdwg.mxu0
  %v1300 = vadd.f32 %v1276, %v1297
  %s1301 = scalar_lea.vmem %s9, 32
  %v1302 = vld [vmem:[%s1301] sm:$0xf]
  %1303 = vrot.lane.b32.xlu0 %v1116, 106
  %v1304 = vpop.permute.xlu0 %1303
  %v1306 = vsel %vm258, %v1302, 0
  %v1309 = vsel %vm262, %v1304, 0
  %1311 = vmatpush.bf16.msra.mxu0 0
  %1312 = vmatpush.bf16.msra.mxu0 0
  %1313 = vmatpush.bf16.msra.mxu0 0
  %1314 = vmatpush.bf16.msra.mxu0 0
  %1315 = vmatpush.bf16.msra.mxu0 0
  %1316 = vmatpush.bf16.msra.mxu0 0
  %1317 = vmatpush.bf16.msra.mxu0 0
  %1318 = vmatpush.bf16.msra.mxu0 %v1309
  %1319 = vmatmul.bf16.gmra.mxu0 %v1306
  %v1320 = vpop.f32.mrf.mxu0
  %v1321 = vadd.f32 0.0, %v1320
  %v1322 = vpop.f32.mrf.mxu0
  %1323 = vdwg.mxu0
  %v1324 = vadd.f32 %v1300, %v1321
  %v1325 = vld [vmem:[%s1108] sm:$0xf]
  %v1327 = vunpack.c.l.b16 %v1325
  %v1328 = vpack.c.b16 %v1327, %v1327
  %1329 = vrot.lane.b32.xlu0 %v1328, 127
  %v1330 = vpop.permute.xlu0 %1329
  %v1332 = vsel %vm262, %v1330, 0
  %1334 = vmatpush.bf16.msra.mxu0 0
  %1335 = vmatpush.bf16.msra.mxu0 0
  %1336 = vmatpush.bf16.msra.mxu0 0
  %1337 = vmatpush.bf16.msra.mxu0 0
  %1338 = vmatpush.bf16.msra.mxu0 0
  %1339 = vmatpush.bf16.msra.mxu0 0
  %1340 = vmatpush.bf16.msra.mxu0 0
  %1341 = vmatpush.bf16.msra.mxu0 %v1332
  %1342 = vmatmul.bf16.gmra.mxu0 %v1120
  %v1343 = vpop.f32.mrf.mxu0
  %v1344 = vadd.f32 0.0, %v1343
  %v1345 = vpop.f32.mrf.mxu0
  %1346 = vdwg.mxu0
  %v1348 = vsel %vm262, %v1325, 0
  %1350 = vmatpush.bf16.msra.mxu0 0
  %1351 = vmatpush.bf16.msra.mxu0 0
  %1352 = vmatpush.bf16.msra.mxu0 0
  %1353 = vmatpush.bf16.msra.mxu0 0
  %1354 = vmatpush.bf16.msra.mxu0 0
  %1355 = vmatpush.bf16.msra.mxu0 0
  %1356 = vmatpush.bf16.msra.mxu0 0
  %1357 = vmatpush.bf16.msra.mxu0 %v1348
  %1358 = vmatmul.bf16.gmra.mxu0 %v1139
  %v1359 = vpop.f32.mrf.mxu0
  %v1360 = vadd.f32 %v1344, %v1359
  %v1361 = vpop.f32.mrf.mxu0
  %1362 = vdwg.mxu0
  %1363 = vrot.lane.b32.xlu0 %v1328, 126
  %v1364 = vpop.permute.xlu0 %1363
  %v1366 = vsel %vm262, %v1364, 0
  %1368 = vmatpush.bf16.msra.mxu0 0
  %1369 = vmatpush.bf16.msra.mxu0 0
  %1370 = vmatpush.bf16.msra.mxu0 0
  %1371 = vmatpush.bf16.msra.mxu0 0
  %1372 = vmatpush.bf16.msra.mxu0 0
  %1373 = vmatpush.bf16.msra.mxu0 0
  %1374 = vmatpush.bf16.msra.mxu0 0
  %1375 = vmatpush.bf16.msra.mxu0 %v1366
  %1376 = vmatmul.bf16.gmra.mxu0 %v1162
  %v1377 = vpop.f32.mrf.mxu0
  %v1378 = vadd.f32 0.0, %v1377
  %v1379 = vpop.f32.mrf.mxu0
  %1380 = vdwg.mxu0
  %v1381 = vadd.f32 %v1360, %v1378
  %1382 = vrot.lane.b32.xlu0 %v1328, 118
  %v1383 = vpop.permute.xlu0 %1382
  %v1385 = vsel %vm262, %v1383, 0
  %1387 = vmatpush.bf16.msra.mxu0 0
  %1388 = vmatpush.bf16.msra.mxu0 0
  %1389 = vmatpush.bf16.msra.mxu0 0
  %1390 = vmatpush.bf16.msra.mxu0 0
  %1391 = vmatpush.bf16.msra.mxu0 0
  %1392 = vmatpush.bf16.msra.mxu0 0
  %1393 = vmatpush.bf16.msra.mxu0 0
  %1394 = vmatpush.bf16.msra.mxu0 %v1385
  %1395 = vmatmul.bf16.gmra.mxu0 %v1186
  %v1396 = vpop.f32.mrf.mxu0
  %v1397 = vadd.f32 0.0, %v1396
  %v1398 = vpop.f32.mrf.mxu0
  %1399 = vdwg.mxu0
  %v1400 = vadd.f32 %v1381, %v1397
  %1401 = vrot.lane.b32.xlu0 %v1328, 117
  %v1402 = vpop.permute.xlu0 %1401
  %v1404 = vsel %vm262, %v1402, 0
  %1406 = vmatpush.bf16.msra.mxu0 0
  %1407 = vmatpush.bf16.msra.mxu0 0
  %1408 = vmatpush.bf16.msra.mxu0 0
  %1409 = vmatpush.bf16.msra.mxu0 0
  %1410 = vmatpush.bf16.msra.mxu0 0
  %1411 = vmatpush.bf16.msra.mxu0 0
  %1412 = vmatpush.bf16.msra.mxu0 0
  %1413 = vmatpush.bf16.msra.mxu0 %v1404
  %1414 = vmatmul.bf16.gmra.mxu0 %v1210
  %v1415 = vpop.f32.mrf.mxu0
  %v1416 = vadd.f32 0.0, %v1415
  %v1417 = vpop.f32.mrf.mxu0
  %1418 = vdwg.mxu0
  %v1419 = vadd.f32 %v1400, %v1416
  %1420 = vrot.lane.b32.xlu0 %v1328, 116
  %v1421 = vpop.permute.xlu0 %1420
  %v1423 = vsel %vm262, %v1421, 0
  %1425 = vmatpush.bf16.msra.mxu0 0
  %1426 = vmatpush.bf16.msra.mxu0 0
  %1427 = vmatpush.bf16.msra.mxu0 0
  %1428 = vmatpush.bf16.msra.mxu0 0
  %1429 = vmatpush.bf16.msra.mxu0 0
  %1430 = vmatpush.bf16.msra.mxu0 0
  %1431 = vmatpush.bf16.msra.mxu0 0
  %1432 = vmatpush.bf16.msra.mxu0 %v1423
  %1433 = vmatmul.bf16.gmra.mxu0 %v1234
  %v1434 = vpop.f32.mrf.mxu0
  %v1435 = vadd.f32 0.0, %v1434
  %v1436 = vpop.f32.mrf.mxu0
  %1437 = vdwg.mxu0
  %v1438 = vadd.f32 %v1419, %v1435
  %1439 = vrot.lane.b32.xlu0 %v1328, 108
  %v1440 = vpop.permute.xlu0 %1439
  %v1442 = vsel %vm262, %v1440, 0
  %1444 = vmatpush.bf16.msra.mxu0 0
  %1445 = vmatpush.bf16.msra.mxu0 0
  %1446 = vmatpush.bf16.msra.mxu0 0
  %1447 = vmatpush.bf16.msra.mxu0 0
  %1448 = vmatpush.bf16.msra.mxu0 0
  %1449 = vmatpush.bf16.msra.mxu0 0
  %1450 = vmatpush.bf16.msra.mxu0 0
  %1451 = vmatpush.bf16.msra.mxu0 %v1442
  %1452 = vmatmul.bf16.gmra.mxu0 %v1258
  %v1453 = vpop.f32.mrf.mxu0
  %v1454 = vadd.f32 0.0, %v1453
  %v1455 = vpop.f32.mrf.mxu0
  %1456 = vdwg.mxu0
  %v1457 = vadd.f32 %v1438, %v1454
  %1458 = vrot.lane.b32.xlu0 %v1328, 107
  %v1459 = vpop.permute.xlu0 %1458
  %v1461 = vsel %vm262, %v1459, 0
  %1463 = vmatpush.bf16.msra.mxu0 0
  %1464 = vmatpush.bf16.msra.mxu0 0
  %1465 = vmatpush.bf16.msra.mxu0 0
  %1466 = vmatpush.bf16.msra.mxu0 0
  %1467 = vmatpush.bf16.msra.mxu0 0
  %1468 = vmatpush.bf16.msra.mxu0 0
  %1469 = vmatpush.bf16.msra.mxu0 0
  %1470 = vmatpush.bf16.msra.mxu0 %v1461
  %1471 = vmatmul.bf16.gmra.mxu0 %v1282
  %v1472 = vpop.f32.mrf.mxu0
  %v1473 = vadd.f32 0.0, %v1472
  %v1474 = vpop.f32.mrf.mxu0
  %1475 = vdwg.mxu0
  %v1476 = vadd.f32 %v1457, %v1473
  %1477 = vrot.lane.b32.xlu0 %v1328, 106
  %v1478 = vpop.permute.xlu0 %1477
  %v1480 = vsel %vm262, %v1478, 0
  %1482 = vmatpush.bf16.msra.mxu0 0
  %1483 = vmatpush.bf16.msra.mxu0 0
  %1484 = vmatpush.bf16.msra.mxu0 0
  %1485 = vmatpush.bf16.msra.mxu0 0
  %1486 = vmatpush.bf16.msra.mxu0 0
  %1487 = vmatpush.bf16.msra.mxu0 0
  %1488 = vmatpush.bf16.msra.mxu0 0
  %1489 = vmatpush.bf16.msra.mxu0 %v1480
  %1490 = vmatmul.bf16.gmra.mxu0 %v1306
  %v1491 = vpop.f32.mrf.mxu0
  %v1492 = vadd.f32 0.0, %v1491
  %v1493 = vpop.f32.mrf.mxu0
  %1494 = vdwg.mxu0
  %v1495 = vadd.f32 %v1476, %v1492
  %v1496 = vmul.f32 %v1324, %v1027
  %v1497 = vsel %vm1030, %v1496, 0.0
  %1498 = vadd.xlane.f32.xlu0 %v1497
  %v1499 = vpop.xlane.xlu0 %1498
  %v1500 = vadd.f32 %v1499, 0.0
  %v1501 = vmul.f32 %v1495, %v1027
  %v1502 = vsel %vm1030, %v1501, 0.0
  %1503 = vadd.xlane.f32.xlu0 %v1502
  %v1504 = vpop.xlane.xlu0 %1503
  %v1505 = vadd.f32 %v1500, %v1504
  %v1506 = vmul.f32 %v1505, %v1046
  %v1507 = vsub.f32 %v1324, %v1506
  %v1508 = vmul.f32 %v1507, %v1507
  %v1509 = vmul.f32 %v1027, %v1508
  %v1510 = vsel %vm1030, %v1509, 0.0
  %1511 = vadd.xlane.f32.xlu0 %v1510
  %v1512 = vpop.xlane.xlu0 %1511
  %v1513 = vadd.f32 %v1512, 0.0
  %v1514 = vsub.f32 %v1495, %v1506
  %v1515 = vmul.f32 %v1514, %v1514
  %v1516 = vmul.f32 %v1027, %v1515
  %v1517 = vsel %vm1030, %v1516, 0.0
  %1518 = vadd.xlane.f32.xlu0 %v1517
  %v1519 = vpop.xlane.xlu0 %1518
  %v1520 = vadd.f32 %v1513, %v1519
  %v1521 = vmul.f32 %v1520, %v1046
  %v1522 = vld [vmem:[%s10] sm:$0xff]
  %v1523 = vadd.f32 %v1521, 1e-05
  %v1524 = vrsqrt.pop %v1523
  %v1525 = vmul.f32 %v1524, %v1523
  %v1526 = vmul.f32 %v1525, %v1524
  %v1527 = vmul.f32 0.5, %v1526
  %v1528 = vsub.f32 1.5, %v1527
  %v1529 = vmul.f32 %v1524, %v1528
  %vm1530 = vweird.f32 %v1523
  %vm1531 = vweird.f32 %v1524
  %vm1532 = vmor %vm1530, %vm1531
  %v1533 = vsel %vm1532, %v1524, %v1529
  %v1534 = vmul.f32 %v1522, %v1533
  %v1535 = vld [vmem:[%s11] sm:$0xff]
  %v1536 = vmul.f32 %v1506, %v1534
  %v1537 = vsub.f32 %v1535, %v1536
  %1539 = vset.pattern.permute.xlu0 0
  %1540 = vperm.xlu0 %1539, %v1534
  %v1541 = vpop.permute.xlu0 %1540
  %v1543 = vmul.f32 %v1324, %v1541
  %1545 = vset.pattern.permute.xlu0 0
  %1546 = vperm.xlu0 %1545, %v1537
  %v1547 = vpop.permute.xlu0 %1546
  %v1549 = vadd.f32 %v1543, %v1547
  %v1550 = vmax.f32 %v1549, 0.0
  %v1551 = vmul.f32 %v1027, %v1550
  %v1552 = vmul.f32 %v1495, %v1541
  %v1553 = vadd.f32 %v1552, %v1547
  %v1554 = vmax.f32 %v1553, 0.0
  %v1555 = vmul.f32 %v1027, %v1554
  %1556 = vst.msk [vmem:[%s12] sm:$0xff] %vm1030, %v1551
  %s1557 = scalar_lea.vmem %s12, 8
  %1558 = vst.msk [vmem:[%s1557] sm:$0xff] %vm1030, %v1555
  // Predicated region
  $region50: #{decoder_blocks_forward.2} parent=0 // pred_check
    _
  $region51: #{decoder_blocks_forward.2} parent=0 // pred_check_branch
    %1560 = sbr.rel (0) target = $region53
  $region52: #{decoder_blocks_forward.2} parent=0 // pred_region
    _
  $region53: #{decoder_blocks_forward.2} parent=0 // pred_fallthru
    _
  // Predicated region
  $region54: #{decoder_blocks_forward.2} parent=0 // pred_check
    _
  $region55: #{decoder_blocks_forward.2} parent=0 // pred_check_branch
    %1562 = sbr.rel (0) target = $region57
  $region56: #{decoder_blocks_forward.2} parent=0 // pred_region
    _
  $region57: #{decoder_blocks_forward.2} parent=0 // pred_fallthru
    _

// kernel: decoder_blocks_forward.3
$region0: #{decoder_blocks_forward.3}
  #allocation0 [shape = 'u32[]', space=smem, size = 0x4, offset = 0x4, fixed_abs, tag = 'smem constant byte address 0x4 - core index']
  #allocation1 [shape = 'u32[72,128]{1,0:T(1,128)}', space=vmem, size = 0x9000, scoped, tag = 'internal scratch']
  #allocation2 [shape = 'bf16[2,4,362]{2,1,0:T(4,128)(2,1)}', space=vmem, size = 0x1800, scoped, tag = 'scratch operand']
  #allocation3 [shape = 'bf16[2,4,362]{2,1,0:T(4,128)(2,1)}', space=vmem, size = 0x1800, scoped, tag = 'scratch operand']
  %s0 = inlined_call_operand.vmem [shape: bf16[2,4,362], index: 0, kind: input, shape index: {}]
  %s1 = inlined_call_operand.vmem [shape: bf16[2,8,362], index: 1, kind: input, shape index: {}]
  %s2 = inlined_call_operand.vmem [shape: f32[4,324], index: 2, kind: input, shape index: {}]
  %s3 = inlined_call_operand.vmem [shape: f32[1,324], index: 3, kind: input, shape index: {}]
  %s4 = inlined_call_operand.vmem [shape: bf16[4,4,8], index: 4, kind: input, shape index: {}]
  %s5 = inlined_call_operand.vmem [shape: bf16[9,4,4], index: 5, kind: input, shape index: {}]
  %s6 = inlined_call_operand.vmem [shape: bf16[9,4,4], index: 6, kind: input, shape index: {}]
  %s7 = inlined_call_operand.vmem [shape: f32[4,1], index: 7, kind: input, shape index: {}]
  %s8 = inlined_call_operand.vmem [shape: f32[4,1], index: 8, kind: input, shape index: {}]
  %s9 = inlined_call_operand.vmem [shape: bf16[9,4,4], index: 9, kind: input, shape index: {}]
  %s10 = inlined_call_operand.vmem [shape: f32[4,1], index: 10, kind: input, shape index: {}]
  %s11 = inlined_call_operand.vmem [shape: f32[4,1], index: 11, kind: input, shape index: {}]
  %s12 = inlined_call_operand.vmem [shape: f32[2,4,324], index: 12, kind: output, shape index: {}]
  %s13 = sld [smem:[#allocation0]]
  $region58: #{decoder_blocks_forward.3} parent=0
    _
  %s15 = ssub.s32 1, %s13
  %s16 = scalar_select 0, %s15, %s13
  // Predicated region
  $region2: #{decoder_blocks_forward.3} parent=0 // pred_check
    _
  $region3: #{decoder_blocks_forward.3} parent=0 // pred_check_branch
    %18 = sbr.rel (0) target = $region5
  $region4: #{decoder_blocks_forward.3} parent=0 // pred_region
    _
  $region5: #{decoder_blocks_forward.3} parent=0 // pred_fallthru
    _
  // Predicated region
  $region6: #{decoder_blocks_forward.3} parent=0 // pred_check
    _
  $region7: #{decoder_blocks_forward.3} parent=0 // pred_check_branch
    %20 = sbr.rel (0) target = $region9
  $region8: #{decoder_blocks_forward.3} parent=0 // pred_region
    _
  $region9: #{decoder_blocks_forward.3} parent=0 // pred_fallthru
    _
  // Predicated region
  $region10: #{decoder_blocks_forward.3} parent=0 // pred_check
    _
  $region11: #{decoder_blocks_forward.3} parent=0 // pred_check_branch
    %22 = sbr.rel (0) target = $region13
  $region12: #{decoder_blocks_forward.3} parent=0 // pred_region
    _
  $region13: #{decoder_blocks_forward.3} parent=0 // pred_fallthru
    _
  // Predicated region
  $region14: #{decoder_blocks_forward.3} parent=0 // pred_check
    _
  $region15: #{decoder_blocks_forward.3} parent=0 // pred_check_branch
    %24 = sbr.rel (0) target = $region17
  $region16: #{decoder_blocks_forward.3} parent=0 // pred_region
    _
  $region17: #{decoder_blocks_forward.3} parent=0 // pred_fallthru
    _
  // Predicated region
  $region18: #{decoder_blocks_forward.3} parent=0 // pred_check
    _
  $region19: #{decoder_blocks_forward.3} parent=0 // pred_check_branch
    %26 = sbr.rel (0) target = $region21
  $region20: #{decoder_blocks_forward.3} parent=0 // pred_region
    _
  $region21: #{decoder_blocks_forward.3} parent=0 // pred_fallthru
    _
  // Predicated region
  $region22: #{decoder_blocks_forward.3} parent=0 // pred_check
    _
  $region23: #{decoder_blocks_forward.3} parent=0 // pred_check_branch
    %28 = sbr.rel (0) target = $region25
  $region24: #{decoder_blocks_forward.3} parent=0 // pred_region
    _
  $region25: #{decoder_blocks_forward.3} parent=0 // pred_fallthru
    _
  // Predicated region
  $region26: #{decoder_blocks_forward.3} parent=0 // pred_check
    _
  $region27: #{decoder_blocks_forward.3} parent=0 // pred_check_branch
    %30 = sbr.rel (0) target = $region29
  $region28: #{decoder_blocks_forward.3} parent=0 // pred_region
    _
  $region29: #{decoder_blocks_forward.3} parent=0 // pred_fallthru
    _
  // Predicated region
  $region30: #{decoder_blocks_forward.3} parent=0 // pred_check
    _
  $region31: #{decoder_blocks_forward.3} parent=0 // pred_check_branch
    %32 = sbr.rel (0) target = $region33
  $region32: #{decoder_blocks_forward.3} parent=0 // pred_region
    _
  $region33: #{decoder_blocks_forward.3} parent=0 // pred_fallthru
    _
  // Predicated region
  $region34: #{decoder_blocks_forward.3} parent=0 // pred_check
    _
  $region35: #{decoder_blocks_forward.3} parent=0 // pred_check_branch
    %34 = sbr.rel (0) target = $region37
  $region36: #{decoder_blocks_forward.3} parent=0 // pred_region
    _
  $region37: #{decoder_blocks_forward.3} parent=0 // pred_fallthru
    _
  // Predicated region
  $region38: #{decoder_blocks_forward.3} parent=0 // pred_check
    _
  $region39: #{decoder_blocks_forward.3} parent=0 // pred_check_branch
    %36 = sbr.rel (0) target = $region41
  $region40: #{decoder_blocks_forward.3} parent=0 // pred_region
    _
  $region41: #{decoder_blocks_forward.3} parent=0 // pred_fallthru
    _
  // Predicated region
  $region42: #{decoder_blocks_forward.3} parent=0 // pred_check
    _
  $region43: #{decoder_blocks_forward.3} parent=0 // pred_check_branch
    %38 = sbr.rel (0) target = $region45
  $region44: #{decoder_blocks_forward.3} parent=0 // pred_region
    _
  $region45: #{decoder_blocks_forward.3} parent=0 // pred_fallthru
    _
  // Predicated region
  $region46: #{decoder_blocks_forward.3} parent=0 // pred_check
    _
  $region47: #{decoder_blocks_forward.3} parent=0 // pred_check_branch
    %40 = sbr.rel (0) target = $region49
  $region48: #{decoder_blocks_forward.3} parent=0 // pred_region
    _
  $region49: #{decoder_blocks_forward.3} parent=0 // pred_fallthru
    _
  %v42 = vld [vmem:[%s3] sm:$0x7]
  %v43 = vld [vmem:[%s2] sm:$0xff]
  %v44 = vld [vmem:[%s2 + $0x8] sm:$0xf]
  %vm45 = vcmask 148480
  %46 = vst.msk [vmem:[#allocation2] sm:$0x3] %vm45, 0
  %47 = vst.msk [vmem:[#allocation2 + $0x6] sm:$0x3] %vm45, 0
  %vm48 = vcmask 861880
  %49 = vst.msk [vmem:[#allocation2 + $0x4] sm:$0x3] %vm48, 0
  %50 = vst.msk [vmem:[#allocation2 + $0xa] sm:$0x3] %vm48, 0
  %51 = vst.msk [vmem:[#allocation3] sm:$0x3] %vm45, 0
  %52 = vst.msk [vmem:[#allocation3 + $0x6] sm:$0x3] %vm45, 0
  %53 = vst.msk [vmem:[#allocation3 + $0x4] sm:$0x3] %vm48, 0
  %54 = vst.msk [vmem:[#allocation3 + $0xa] sm:$0x3] %vm48, 0
  %v55 = vld [vmem:[%s1] sm:$0xff]
  %v56 = vld [vmem:[%s1 + $0x8] sm:$0xf]
  %v57 = vld [vmem:[%s4] sm:$0x3]
  %v60 = vunpack.c.l.b16 %v55
  %v61 = vunpack.c.h.b16 %v55
  %v62 = vunpack.c.l.b16 %v56
  %v63 = vpack.c.b16 %v60, %v60
  %v64 = vpack.c.b16 %v61, %v61
  %v65 = vpack.c.b16 %v62, %v62
  %66 = vrot.lane.b32.xlu0 %v63, 109
  %v67 = vpop.permute.xlu0 %66
  %68 = vrot.lane.b32.xlu0 %v64, 109
  %v69 = vpop.permute.xlu0 %68
  %70 = vrot.lane.b32.xlu0 %v65, 109
  %v71 = vpop.permute.xlu0 %70
  %vm72 = vcmask 891904
  %v73 = vsel %vm72, %v67, %v69
  %v74 = vsel %vm72, %v69, %v71
  %vm75 = vcmask 64512
  %v77 = vsel %vm75, %v57, 0
  %vm79 = vcmask 1043456
  %v81 = vsel %vm79, %v73, 0
  %v84 = vsel %vm79, %v74, 0
  %v87 = vsel %vm79, %v71, 0
  %89 = vmatpush.bf16.msra.mxu0 0
  %90 = vmatpush.bf16.msra.mxu0 0
  %91 = vmatpush.bf16.msra.mxu0 0
  %92 = vmatpush.bf16.msra.mxu0 0
  %93 = vmatpush.bf16.msra.mxu0 0
  %94 = vmatpush.bf16.msra.mxu0 0
  %95 = vmatpush.bf16.msra.mxu0 0
  %96 = vmatpush.bf16.msra.mxu0 %v81
  %97 = vmatmul.bf16.gmra.mxu0 %v77
  %v98 = vpop.f32.mrf.mxu0
  %v99 = vadd.f32 0.0, %v98
  %v100 = vpop.f32.mrf.mxu0
  %101 = vdwg.mxu0
  %102 = vmatpush.bf16.msra.mxu0 0
  %103 = vmatpush.bf16.msra.mxu0 0
  %104 = vmatpush.bf16.msra.mxu0 0
  %105 = vmatpush.bf16.msra.mxu0 0
  %106 = vmatpush.bf16.msra.mxu0 0
  %107 = vmatpush.bf16.msra.mxu0 0
  %108 = vmatpush.bf16.msra.mxu0 0
  %109 = vmatpush.bf16.msra.mxu0 %v84
  %110 = vmatmul.bf16.gmra.mxu0 %v77
  %v111 = vpop.f32.mrf.mxu0
  %v112 = vadd.f32 0.0, %v111
  %v113 = vpop.f32.mrf.mxu0
  %114 = vdwg.mxu0
  %115 = vmatpush.bf16.msra.mxu0 0
  %116 = vmatpush.bf16.msra.mxu0 0
  %117 = vmatpush.bf16.msra.mxu0 0
  %118 = vmatpush.bf16.msra.mxu0 0
  %119 = vmatpush.bf16.msra.mxu0 0
  %120 = vmatpush.bf16.msra.mxu0 0
  %121 = vmatpush.bf16.msra.mxu0 0
  %122 = vmatpush.bf16.msra.mxu0 %v87
  %123 = vmatmul.bf16.gmra.mxu0 %v77
  %v124 = vpop.f32.mrf.mxu0
  %v125 = vadd.f32 0.0, %v124
  %v126 = vpop.f32.mrf.mxu0
  %127 = vdwg.mxu0
  %v130 = vperm.slane %v43, 0
  %v131 = vperm.slane %v43, 4
  %v132 = vperm.slane %v44, 0
  %v136 = vperm.slane %v130, 0
  %v137 = vperm.slane %v131, 0
  %v138 = vperm.slane %v132, 0
  %v139 = vmul.f32 %v136, %v99
  %v140 = vmul.f32 %v137, %v112
  %v141 = vmul.f32 %v138, %v125
  %v142 = vadd.f32 %v139, 0.0
  %v143 = vadd.f32 %v140, 0.0
  %v144 = vadd.f32 %v141, 0.0
  %s145 = scalar_lea.vmem %s4, 2
  %v146 = vld [vmem:[%s145] sm:$0x3]
  %v148 = vsel %vm75, %v146, 0
  %150 = vmatpush.bf16.msra.mxu0 0
  %151 = vmatpush.bf16.msra.mxu0 0
  %152 = vmatpush.bf16.msra.mxu0 0
  %153 = vmatpush.bf16.msra.mxu0 0
  %154 = vmatpush.bf16.msra.mxu0 0
  %155 = vmatpush.bf16.msra.mxu0 0
  %156 = vmatpush.bf16.msra.mxu0 0
  %157 = vmatpush.bf16.msra.mxu0 %v81
  %158 = vmatmul.bf16.gmra.mxu0 %v148
  %v159 = vpop.f32.mrf.mxu0
  %v160 = vadd.f32 0.0, %v159
  %v161 = vpop.f32.mrf.mxu0
  %162 = vdwg.mxu0
  %163 = vmatpush.bf16.msra.mxu0 0
  %164 = vmatpush.bf16.msra.mxu0 0
  %165 = vmatpush.bf16.msra.mxu0 0
  %166 = vmatpush.bf16.msra.mxu0 0
  %167 = vmatpush.bf16.msra.mxu0 0
  %168 = vmatpush.bf16.msra.mxu0 0
  %169 = vmatpush.bf16.msra.mxu0 0
  %170 = vmatpush.bf16.msra.mxu0 %v84
  %171 = vmatmul.bf16.gmra.mxu0 %v148
  %v172 = vpop.f32.mrf.mxu0
  %v173 = vadd.f32 0.0, %v172
  %v174 = vpop.f32.mrf.mxu0
  %175 = vdwg.mxu0
  %176 = vmatpush.bf16.msra.mxu0 0
  %177 = vmatpush.bf16.msra.mxu0 0
  %178 = vmatpush.bf16.msra.mxu0 0
  %179 = vmatpush.bf16.msra.mxu0 0
  %180 = vmatpush.bf16.msra.mxu0 0
  %181 = vmatpush.bf16.msra.mxu0 0
  %182 = vmatpush.bf16.msra.mxu0 0
  %183 = vmatpush.bf16.msra.mxu0 %v87
  %184 = vmatmul.bf16.gmra.mxu0 %v148
  %v185 = vpop.f32.mrf.mxu0
  %v186 = vadd.f32 0.0, %v185
  %v187 = vpop.f32.mrf.mxu0
  %188 = vdwg.mxu0
  %v189 = vperm.slane %v43, 1
  %v190 = vperm.slane %v43, 5
  %v191 = vperm.slane %v44, 1
  %v195 = vperm.slane %v189, 1
  %v196 = vperm.slane %v190, 1
  %v197 = vperm.slane %v191, 1
  %v198 = vmul.f32 %v195, %v160
  %v199 = vmul.f32 %v196, %v173
  %v200 = vmul.f32 %v197, %v186
  %v201 = vadd.f32 %v142, %v198
  %v202 = vadd.f32 %v143, %v199
  %v203 = vadd.f32 %v144, %v200
  %s204 = scalar_lea.vmem %s4, 4
  %v205 = vld [vmem:[%s204] sm:$0x3]
  %v207 = vsel %vm75, %v205, 0
  %209 = vmatpush.bf16.msra.mxu0 0
  %210 = vmatpush.bf16.msra.mxu0 0
  %211 = vmatpush.bf16.msra.mxu0 0
  %212 = vmatpush.bf16.msra.mxu0 0
  %213 = vmatpush.bf16.msra.mxu0 0
  %214 = vmatpush.bf16.msra.mxu0 0
  %215 = vmatpush.bf16.msra.mxu0 0
  %216 = vmatpush.bf16.msra.mxu0 %v81
  %217 = vmatmul.bf16.gmra.mxu0 %v207
  %v218 = vpop.f32.mrf.mxu0
  %v219 = vadd.f32 0.0, %v218
  %v220 = vpop.f32.mrf.mxu0
  %221 = vdwg.mxu0
  %222 = vmatpush.bf16.msra.mxu0 0
  %223 = vmatpush.bf16.msra.mxu0 0
  %224 = vmatpush.bf16.msra.mxu0 0
  %225 = vmatpush.bf16.msra.mxu0 0
  %226 = vmatpush.bf16.msra.mxu0 0
  %227 = vmatpush.bf16.msra.mxu0 0
  %228 = vmatpush.bf16.msra.mxu0 0
  %229 = vmatpush.bf16.msra.mxu0 %v84
  %230 = vmatmul.bf16.gmra.mxu0 %v207
  %v231 = vpop.f32.mrf.mxu0
  %v232 = vadd.f32 0.0, %v231
  %v233 = vpop.f32.mrf.mxu0
  %234 = vdwg.mxu0
  %235 = vmatpush.bf16.msra.mxu0 0
  %236 = vmatpush.bf16.msra.mxu0 0
  %237 = vmatpush.bf16.msra.mxu0 0
  %238 = vmatpush.bf16.msra.mxu0 0
  %239 = vmatpush.bf16.msra.mxu0 0
  %240 = vmatpush.bf16.msra.mxu0 0
  %241 = vmatpush.bf16.msra.mxu0 0
  %242 = vmatpush.bf16.msra.mxu0 %v87
  %243 = vmatmul.bf16.gmra.mxu0 %v207
  %v244 = vpop.f32.mrf.mxu0
  %v245 = vadd.f32 0.0, %v244
  %v246 = vpop.f32.mrf.mxu0
  %247 = vdwg.mxu0
  %v248 = vperm.slane %v43, 2
  %v249 = vperm.slane %v43, 6
  %v250 = vperm.slane %v44, 2
  %v254 = vperm.slane %v248, 2
  %v255 = vperm.slane %v249, 2
  %v256 = vperm.slane %v250, 2
  %v257 = vmul.f32 %v254, %v219
  %v258 = vmul.f32 %v255, %v232
  %v259 = vmul.f32 %v256, %v245
  %v260 = vadd.f32 %v201, %v257
  %v261 = vadd.f32 %v202, %v258
  %v262 = vadd.f32 %v203, %v259
  %s263 = scalar_lea.vmem %s4, 6
  %v264 = vld [vmem:[%s263] sm:$0x3]
  %v266 = vsel %vm75, %v264, 0
  %268 = vmatpush.bf16.msra.mxu0 0
  %269 = vmatpush.bf16.msra.mxu0 0
  %270 = vmatpush.bf16.msra.mxu0 0
  %271 = vmatpush.bf16.msra.mxu0 0
  %272 = vmatpush.bf16.msra.mxu0 0
  %273 = vmatpush.bf16.msra.mxu0 0
  %274 = vmatpush.bf16.msra.mxu0 0
  %275 = vmatpush.bf16.msra.mxu0 %v81
  %276 = vmatmul.bf16.gmra.mxu0 %v266
  %v277 = vpop.f32.mrf.mxu0
  %v278 = vadd.f32 0.0, %v277
  %v279 = vpop.f32.mrf.mxu0
  %280 = vdwg.mxu0
  %281 = vmatpush.bf16.msra.mxu0 0
  %282 = vmatpush.bf16.msra.mxu0 0
  %283 = vmatpush.bf16.msra.mxu0 0
  %284 = vmatpush.bf16.msra.mxu0 0
  %285 = vmatpush.bf16.msra.mxu0 0
  %286 = vmatpush.bf16.msra.mxu0 0
  %287 = vmatpush.bf16.msra.mxu0 0
  %288 = vmatpush.bf16.msra.mxu0 %v84
  %289 = vmatmul.bf16.gmra.mxu0 %v266
  %v290 = vpop.f32.mrf.mxu0
  %v291 = vadd.f32 0.0, %v290
  %v292 = vpop.f32.mrf.mxu0
  %293 = vdwg.mxu0
  %294 = vmatpush.bf16.msra.mxu0 0
  %295 = vmatpush.bf16.msra.mxu0 0
  %296 = vmatpush.bf16.msra.mxu0 0
  %297 = vmatpush.bf16.msra.mxu0 0
  %298 = vmatpush.bf16.msra.mxu0 0
  %299 = vmatpush.bf16.msra.mxu0 0
  %300 = vmatpush.bf16.msra.mxu0 0
  %301 = vmatpush.bf16.msra.mxu0 %v87
  %302 = vmatmul.bf16.gmra.mxu0 %v266
  %v303 = vpop.f32.mrf.mxu0
  %v304 = vadd.f32 0.0, %v303
  %v305 = vpop.f32.mrf.mxu0
  %306 = vdwg.mxu0
  %v307 = vperm.slane %v43, 3
  %v308 = vperm.slane %v43, 7
  %v309 = vperm.slane %v44, 3
  %v313 = vperm.slane %v307, 3
  %v314 = vperm.slane %v308, 3
  %v315 = vperm.slane %v309, 3
  %v316 = vmul.f32 %v313, %v278
  %v317 = vmul.f32 %v314, %v291
  %v318 = vmul.f32 %v315, %v304
  %v319 = vadd.f32 %v260, %v316
  %v320 = vadd.f32 %v261, %v317
  %v321 = vadd.f32 %v262, %v318
  %v322 = vpack.c.bf16 %v320, %v319
  %v323 = vpack.c.bf16 %v321, %v321
  %v326 = vrot.slane %v322, 2
  %v327 = vrot.slane %v323, 4
  %v328 = vrot.slane %v323, 6
  %vm329 = vcmask 1041408
  %v332 = vsel %vm329, %v322, %v326
  %vm333 = vcmask 1045508
  %v336 = vsel %vm333, %v327, %v328
  %v337 = vsel %vm79, %v332, %v336
  %339 = vrot.lane.b32.xlu0 %v337, 19
  %v340 = vpop.permute.xlu0 %339
  %v341 = vrot.slane %v340, 6
  %vm342 = vcmask 154624
  %v343 = vsel %vm342, %v341, %v340
  %vm345 = vcmask 1041560
  %vm346 = vcmask 1043458
  %vm347 = vmor %vm346, %vm345
  %vm348 = vcmask 709636
  %vm349 = vmor %vm348, %vm347
  %350 = vst.msk [vmem:[#allocation2] sm:$0x3f] %vm349, %v343
  %s351 = scalar_lea.vmem %s1, 12
  %v352 = vld [vmem:[%s351] sm:$0xff]
  %v353 = vld [vmem:[%s351 + $0x8] sm:$0xf]
  %v354 = vld [vmem:[%s4] sm:$0x3]
  %v357 = vunpack.c.l.b16 %v352
  %v358 = vunpack.c.h.b16 %v352
  %v359 = vunpack.c.l.b16 %v353
  %v360 = vpack.c.b16 %v357, %v357
  %v361 = vpack.c.b16 %v358, %v358
  %v362 = vpack.c.b16 %v359, %v359
  %363 = vrot.lane.b32.xlu0 %v360, 109
  %v364 = vpop.permute.xlu0 %363
  %365 = vrot.lane.b32.xlu0 %v361, 109
  %v366 = vpop.permute.xlu0 %365
  %367 = vrot.lane.b32.xlu0 %v362, 109
  %v368 = vpop.permute.xlu0 %367
  %v369 = vsel %vm72, %v364, %v366
  %v370 = vsel %vm72, %v366, %v368
  %v372 = vsel %vm75, %v354, 0
  %v375 = vsel %vm79, %v369, 0
  %v378 = vsel %vm79, %v370, 0
  %v381 = vsel %vm79, %v368, 0
  %383 = vmatpush.bf16.msra.mxu0 0
  %384 = vmatpush.bf16.msra.mxu0 0
  %385 = vmatpush.bf16.msra.mxu0 0
  %386 = vmatpush.bf16.msra.mxu0 0
  %387 = vmatpush.bf16.msra.mxu0 0
  %388 = vmatpush.bf16.msra.mxu0 0
  %389 = vmatpush.bf16.msra.mxu0 0
  %390 = vmatpush.bf16.msra.mxu0 %v375
  %391 = vmatmul.bf16.gmra.mxu0 %v372
  %v392 = vpop.f32.mrf.mxu0
  %v393 = vadd.f32 0.0, %v392
  %v394 = vpop.f32.mrf.mxu0
  %395 = vdwg.mxu0
  %396 = vmatpush.bf16.msra.mxu0 0
  %397 = vmatpush.bf16.msra.mxu0 0
  %398 = vmatpush.bf16.msra.mxu0 0
  %399 = vmatpush.bf16.msra.mxu0 0
  %400 = vmatpush.bf16.msra.mxu0 0
  %401 = vmatpush.bf16.msra.mxu0 0
  %402 = vmatpush.bf16.msra.mxu0 0
  %403 = vmatpush.bf16.msra.mxu0 %v378
  %404 = vmatmul.bf16.gmra.mxu0 %v372
  %v405 = vpop.f32.mrf.mxu0
  %v406 = vadd.f32 0.0, %v405
  %v407 = vpop.f32.mrf.mxu0
  %408 = vdwg.mxu0
  %409 = vmatpush.bf16.msra.mxu0 0
  %410 = vmatpush.bf16.msra.mxu0 0
  %411 = vmatpush.bf16.msra.mxu0 0
  %412 = vmatpush.bf16.msra.mxu0 0
  %413 = vmatpush.bf16.msra.mxu0 0
  %414 = vmatpush.bf16.msra.mxu0 0
  %415 = vmatpush.bf16.msra.mxu0 0
  %416 = vmatpush.bf16.msra.mxu0 %v381
  %417 = vmatmul.bf16.gmra.mxu0 %v372
  %v418 = vpop.f32.mrf.mxu0
  %v419 = vadd.f32 0.0, %v418
  %v420 = vpop.f32.mrf.mxu0
  %421 = vdwg.mxu0
  %v422 = vmul.f32 %v136, %v393
  %v423 = vmul.f32 %v137, %v406
  %v424 = vmul.f32 %v138, %v419
  %v425 = vadd.f32 %v422, 0.0
  %v426 = vadd.f32 %v423, 0.0
  %v427 = vadd.f32 %v424, 0.0
  %v428 = vld [vmem:[%s145] sm:$0x3]
  %v430 = vsel %vm75, %v428, 0
  %432 = vmatpush.bf16.msra.mxu0 0
  %433 = vmatpush.bf16.msra.mxu0 0
  %434 = vmatpush.bf16.msra.mxu0 0
  %435 = vmatpush.bf16.msra.mxu0 0
  %436 = vmatpush.bf16.msra.mxu0 0
  %437 = vmatpush.bf16.msra.mxu0 0
  %438 = vmatpush.bf16.msra.mxu0 0
  %439 = vmatpush.bf16.msra.mxu0 %v375
  %440 = vmatmul.bf16.gmra.mxu0 %v430
  %v441 = vpop.f32.mrf.mxu0
  %v442 = vadd.f32 0.0, %v441
  %v443 = vpop.f32.mrf.mxu0
  %444 = vdwg.mxu0
  %445 = vmatpush.bf16.msra.mxu0 0
  %446 = vmatpush.bf16.msra.mxu0 0
  %447 = vmatpush.bf16.msra.mxu0 0
  %448 = vmatpush.bf16.msra.mxu0 0
  %449 = vmatpush.bf16.msra.mxu0 0
  %450 = vmatpush.bf16.msra.mxu0 0
  %451 = vmatpush.bf16.msra.mxu0 0
  %452 = vmatpush.bf16.msra.mxu0 %v378
  %453 = vmatmul.bf16.gmra.mxu0 %v430
  %v454 = vpop.f32.mrf.mxu0
  %v455 = vadd.f32 0.0, %v454
  %v456 = vpop.f32.mrf.mxu0
  %457 = vdwg.mxu0
  %458 = vmatpush.bf16.msra.mxu0 0
  %459 = vmatpush.bf16.msra.mxu0 0
  %460 = vmatpush.bf16.msra.mxu0 0
  %461 = vmatpush.bf16.msra.mxu0 0
  %462 = vmatpush.bf16.msra.mxu0 0
  %463 = vmatpush.bf16.msra.mxu0 0
  %464 = vmatpush.bf16.msra.mxu0 0
  %465 = vmatpush.bf16.msra.mxu0 %v381
  %466 = vmatmul.bf16.gmra.mxu0 %v430
  %v467 = vpop.f32.mrf.mxu0
  %v468 = vadd.f32 0.0, %v467
  %v469 = vpop.f32.mrf.mxu0
  %470 = vdwg.mxu0
  %v471 = vmul.f32 %v195, %v442
  %v472 = vmul.f32 %v196, %v455
  %v473 = vmul.f32 %v197, %v468
  %v474 = vadd.f32 %v425, %v471
  %v475 = vadd.f32 %v426, %v472
  %v476 = vadd.f32 %v427, %v473
  %v477 = vld [vmem:[%s204] sm:$0x3]
  %v479 = vsel %vm75, %v477, 0
  %481 = vmatpush.bf16.msra.mxu0 0
  %482 = vmatpush.bf16.msra.mxu0 0
  %483 = vmatpush.bf16.msra.mxu0 0
  %484 = vmatpush.bf16.msra.mxu0 0
  %485 = vmatpush.bf16.msra.mxu0 0
  %486 = vmatpush.bf16.msra.mxu0 0
  %487 = vmatpush.bf16.msra.mxu0 0
  %488 = vmatpush.bf16.msra.mxu0 %v375
  %489 = vmatmul.bf16.gmra.mxu0 %v479
  %v490 = vpop.f32.mrf.mxu0
  %v491 = vadd.f32 0.0, %v490
  %v492 = vpop.f32.mrf.mxu0
  %493 = vdwg.mxu0
  %494 = vmatpush.bf16.msra.mxu0 0
  %495 = vmatpush.bf16.msra.mxu0 0
  %496 = vmatpush.bf16.msra.mxu0 0
  %497 = vmatpush.bf16.msra.mxu0 0
  %498 = vmatpush.bf16.msra.mxu0 0
  %499 = vmatpush.bf16.msra.mxu0 0
  %500 = vmatpush.bf16.msra.mxu0 0
  %501 = vmatpush.bf16.msra.mxu0 %v378
  %502 = vmatmul.bf16.gmra.mxu0 %v479
  %v503 = vpop.f32.mrf.mxu0
  %v504 = vadd.f32 0.0, %v503
  %v505 = vpop.f32.mrf.mxu0
  %506 = vdwg.mxu0
  %507 = vmatpush.bf16.msra.mxu0 0
  %508 = vmatpush.bf16.msra.mxu0 0
  %509 = vmatpush.bf16.msra.mxu0 0
  %510 = vmatpush.bf16.msra.mxu0 0
  %511 = vmatpush.bf16.msra.mxu0 0
  %512 = vmatpush.bf16.msra.mxu0 0
  %513 = vmatpush.bf16.msra.mxu0 0
  %514 = vmatpush.bf16.msra.mxu0 %v381
  %515 = vmatmul.bf16.gmra.mxu0 %v479
  %v516 = vpop.f32.mrf.mxu0
  %v517 = vadd.f32 0.0, %v516
  %v518 = vpop.f32.mrf.mxu0
  %519 = vdwg.mxu0
  %v520 = vmul.f32 %v254, %v491
  %v521 = vmul.f32 %v255, %v504
  %v522 = vmul.f32 %v256, %v517
  %v523 = vadd.f32 %v474, %v520
  %v524 = vadd.f32 %v475, %v521
  %v525 = vadd.f32 %v476, %v522
  %v526 = vld [vmem:[%s263] sm:$0x3]
  %v528 = vsel %vm75, %v526, 0
  %530 = vmatpush.bf16.msra.mxu0 0
  %531 = vmatpush.bf16.msra.mxu0 0
  %532 = vmatpush.bf16.msra.mxu0 0
  %533 = vmatpush.bf16.msra.mxu0 0
  %534 = vmatpush.bf16.msra.mxu0 0
  %535 = vmatpush.bf16.msra.mxu0 0
  %536 = vmatpush.bf16.msra.mxu0 0
  %537 = vmatpush.bf16.msra.mxu0 %v375
  %538 = vmatmul.bf16.gmra.mxu0 %v528
  %v539 = vpop.f32.mrf.mxu0
  %v540 = vadd.f32 0.0, %v539
  %v541 = vpop.f32.mrf.mxu0
  %542 = vdwg.mxu0
  %543 = vmatpush.bf16.msra.mxu0 0
  %544 = vmatpush.bf16.msra.mxu0 0
  %545 = vmatpush.bf16.msra.mxu0 0
  %546 = vmatpush.bf16.msra.mxu0 0
  %547 = vmatpush.bf16.msra.mxu0 0
  %548 = vmatpush.bf16.msra.mxu0 0
  %549 = vmatpush.bf16.msra.mxu0 0
  %550 = vmatpush.bf16.msra.mxu0 %v378
  %551 = vmatmul.bf16.gmra.mxu0 %v528
  %v552 = vpop.f32.mrf.mxu0
  %v553 = vadd.f32 0.0, %v552
  %v554 = vpop.f32.mrf.mxu0
  %555 = vdwg.mxu0
  %556 = vmatpush.bf16.msra.mxu0 0
  %557 = vmatpush.bf16.msra.mxu0 0
  %558 = vmatpush.bf16.msra.mxu0 0
  %559 = vmatpush.bf16.msra.mxu0 0
  %560 = vmatpush.bf16.msra.mxu0 0
  %561 = vmatpush.bf16.msra.mxu0 0
  %562 = vmatpush.bf16.msra.mxu0 0
  %563 = vmatpush.bf16.msra.mxu0 %v381
  %564 = vmatmul.bf16.gmra.mxu0 %v528
  %v565 = vpop.f32.mrf.mxu0
  %v566 = vadd.f32 0.0, %v565
  %v567 = vpop.f32.mrf.mxu0
  %568 = vdwg.mxu0
  %v569 = vmul.f32 %v313, %v540
  %v570 = vmul.f32 %v314, %v553
  %v571 = vmul.f32 %v315, %v566
  %v572 = vadd.f32 %v523, %v569
  %v573 = vadd.f32 %v524, %v570
  %v574 = vadd.f32 %v525, %v571
  %v575 = vpack.c.bf16 %v573, %v572
  %v576 = vpack.c.bf16 %v574, %v574
  %v579 = vrot.slane %v575, 2
  %v580 = vrot.slane %v576, 4
  %v581 = vrot.slane %v576, 6
  %v584 = vsel %vm329, %v575, %v579
  %v587 = vsel %vm333, %v580, %v581
  %v588 = vsel %vm79, %v584, %v587
  %590 = vrot.lane.b32.xlu0 %v588, 19
  %v591 = vpop.permute.xlu0 %590
  %v592 = vrot.slane %v591, 6
  %v593 = vsel %vm342, %v592, %v591
  %s595 = scalar_lea.vmem [#allocation2], 6
  %596 = vst.msk [vmem:[%s595] sm:$0x3f] %vm349, %v593
  %v597 = vld [vmem:[%s5] sm:$0x3]
  %v598 = vld [vmem:[%s0] sm:$0x3f]
  %s599 = scalar_lea.vmem %s5, 2
  %v600 = vld [vmem:[%s599] sm:$0x3]
  %602 = vst [vmem:[#allocation1] ss:$4 sm:$0xff] %v598
  %v603 = vld.sshfl [vmem:[#allocation1] sm:$0xff pattern:$0x73625140]
  %v605 = vld.sshfl [vmem:[#allocation1 + $0x8] sm:$0xff pattern:$0x73625140]
  %v607 = vld.sshfl [vmem:[#allocation1 + $0x10] sm:$0xff pattern:$0x73625140]
  %609 = vrot.lane.b32.xlu0 %v603, 127
  %v610 = vpop.permute.xlu0 %609
  %611 = vrot.lane.b32.xlu0 %v605, 127
  %v612 = vpop.permute.xlu0 %611
  %613 = vrot.lane.b32.xlu0 %v607, 127
  %v614 = vpop.permute.xlu0 %613
  %vm615 = vcmask 1039360
  %v616 = vsel %vm615, %v610, %v612
  %v617 = vsel %vm615, %v612, %v614
  %vm618 = vcmask 31744
  %v620 = vsel %vm618, %v600, 0
  %v623 = vsel %vm329, %v616, 0
  %v626 = vsel %vm329, %v617, 0
  %v629 = vsel %vm329, %v614, 0
  %631 = vmatpush.bf16.msra.mxu0 0
  %632 = vmatpush.bf16.msra.mxu0 0
  %633 = vmatpush.bf16.msra.mxu0 0
  %634 = vmatpush.bf16.msra.mxu0 0
  %635 = vmatpush.bf16.msra.mxu0 0
  %636 = vmatpush.bf16.msra.mxu0 0
  %637 = vmatpush.bf16.msra.mxu0 0
  %638 = vmatpush.bf16.msra.mxu0 %v623
  %639 = vmatmul.bf16.gmra.mxu0 %v620
  %v640 = vpop.f32.mrf.mxu0
  %v641 = vadd.f32 0.0, %v640
  %v642 = vpop.f32.mrf.mxu0
  %643 = vdwg.mxu0
  %644 = vmatpush.bf16.msra.mxu0 0
  %645 = vmatpush.bf16.msra.mxu0 0
  %646 = vmatpush.bf16.msra.mxu0 0
  %647 = vmatpush.bf16.msra.mxu0 0
  %648 = vmatpush.bf16.msra.mxu0 0
  %649 = vmatpush.bf16.msra.mxu0 0
  %650 = vmatpush.bf16.msra.mxu0 0
  %651 = vmatpush.bf16.msra.mxu0 %v626
  %652 = vmatmul.bf16.gmra.mxu0 %v620
  %v653 = vpop.f32.mrf.mxu0
  %v654 = vadd.f32 0.0, %v653
  %v655 = vpop.f32.mrf.mxu0
  %656 = vdwg.mxu0
  %657 = vmatpush.bf16.msra.mxu0 0
  %658 = vmatpush.bf16.msra.mxu0 0
  %659 = vmatpush.bf16.msra.mxu0 0
  %660 = vmatpush.bf16.msra.mxu0 0
  %661 = vmatpush.bf16.msra.mxu0 0
  %662 = vmatpush.bf16.msra.mxu0 0
  %663 = vmatpush.bf16.msra.mxu0 0
  %664 = vmatpush.bf16.msra.mxu0 %v629
  %665 = vmatmul.bf16.gmra.mxu0 %v620
  %v666 = vpop.f32.mrf.mxu0
  %v667 = vadd.f32 0.0, %v666
  %v668 = vpop.f32.mrf.mxu0
  %669 = vdwg.mxu0
  %670 = vst [vmem:[#allocation1] ss:$4 sm:$0xff] %v598
  %v671 = vld.sshfl [vmem:[#allocation1] sm:$0xff pattern:$0x73625140]
  %v672 = vld.sshfl [vmem:[#allocation1 + $0x8] sm:$0xff pattern:$0x73625140]
  %v673 = vld.sshfl [vmem:[#allocation1 + $0x10] sm:$0xff pattern:$0x73625140]
  %v675 = vsel %vm618, %v597, 0
  %v677 = vsel %vm329, %v671, 0
  %v679 = vsel %vm329, %v672, 0
  %v681 = vsel %vm329, %v673, 0
  %683 = vmatpush.bf16.msra.mxu0 0
  %684 = vmatpush.bf16.msra.mxu0 0
  %685 = vmatpush.bf16.msra.mxu0 0
  %686 = vmatpush.bf16.msra.mxu0 0
  %687 = vmatpush.bf16.msra.mxu0 0
  %688 = vmatpush.bf16.msra.mxu0 0
  %689 = vmatpush.bf16.msra.mxu0 0
  %690 = vmatpush.bf16.msra.mxu0 %v677
  %691 = vmatmul.bf16.gmra.mxu0 %v675
  %v692 = vpop.f32.mrf.mxu0
  %v693 = vadd.f32 %v641, %v692
  %v694 = vpop.f32.mrf.mxu0
  %695 = vdwg.mxu0
  %696 = vmatpush.bf16.msra.mxu0 0
  %697 = vmatpush.bf16.msra.mxu0 0
  %698 = vmatpush.bf16.msra.mxu0 0
  %699 = vmatpush.bf16.msra.mxu0 0
  %700 = vmatpush.bf16.msra.mxu0 0
  %701 = vmatpush.bf16.msra.mxu0 0
  %702 = vmatpush.bf16.msra.mxu0 0
  %703 = vmatpush.bf16.msra.mxu0 %v679
  %704 = vmatmul.bf16.gmra.mxu0 %v675
  %v705 = vpop.f32.mrf.mxu0
  %v706 = vadd.f32 %v654, %v705
  %v707 = vpop.f32.mrf.mxu0
  %708 = vdwg.mxu0
  %709 = vmatpush.bf16.msra.mxu0 0
  %710 = vmatpush.bf16.msra.mxu0 0
  %711 = vmatpush.bf16.msra.mxu0 0
  %712 = vmatpush.bf16.msra.mxu0 0
  %713 = vmatpush.bf16.msra.mxu0 0
  %714 = vmatpush.bf16.msra.mxu0 0
  %715 = vmatpush.bf16.msra.mxu0 0
  %716 = vmatpush.bf16.msra.mxu0 %v681
  %717 = vmatmul.bf16.gmra.mxu0 %v675
  %v718 = vpop.f32.mrf.mxu0
  %v719 = vadd.f32 %v667, %v718
  %v720 = vpop.f32.mrf.mxu0
  %721 = vdwg.mxu0
  %s722 = scalar_lea.vmem %s5, 4
  %v723 = vld [vmem:[%s722] sm:$0x3]
  %v724 = vld [vmem:[%s0] sm:$0x3f]
  %726 = vst [vmem:[#allocation1] ss:$4 sm:$0xff] %v724
  %v727 = vld.sshfl [vmem:[#allocation1] sm:$0xff pattern:$0x73625140]
  %v729 = vld.sshfl [vmem:[#allocation1 + $0x8] sm:$0xff pattern:$0x73625140]
  %v731 = vld.sshfl [vmem:[#allocation1 + $0x10] sm:$0xff pattern:$0x73625140]
  %733 = vrot.lane.b32.xlu0 %v727, 126
  %v734 = vpop.permute.xlu0 %733
  %735 = vrot.lane.b32.xlu0 %v729, 126
  %v736 = vpop.permute.xlu0 %735
  %737 = vrot.lane.b32.xlu0 %v731, 126
  %v738 = vpop.permute.xlu0 %737
  %vm739 = vcmask 1031168
  %v740 = vsel %vm739, %v734, %v736
  %v741 = vsel %vm739, %v736, %v738
  %v743 = vsel %vm618, %v723, 0
  %v746 = vsel %vm329, %v740, 0
  %v749 = vsel %vm329, %v741, 0
  %v752 = vsel %vm329, %v738, 0
  %754 = vmatpush.bf16.msra.mxu0 0
  %755 = vmatpush.bf16.msra.mxu0 0
  %756 = vmatpush.bf16.msra.mxu0 0
  %757 = vmatpush.bf16.msra.mxu0 0
  %758 = vmatpush.bf16.msra.mxu0 0
  %759 = vmatpush.bf16.msra.mxu0 0
  %760 = vmatpush.bf16.msra.mxu0 0
  %761 = vmatpush.bf16.msra.mxu0 %v746
  %762 = vmatmul.bf16.gmra.mxu0 %v743
  %v763 = vpop.f32.mrf.mxu0
  %v764 = vadd.f32 0.0, %v763
  %v765 = vpop.f32.mrf.mxu0
  %766 = vdwg.mxu0
  %767 = vmatpush.bf16.msra.mxu0 0
  %768 = vmatpush.bf16.msra.mxu0 0
  %769 = vmatpush.bf16.msra.mxu0 0
  %770 = vmatpush.bf16.msra.mxu0 0
  %771 = vmatpush.bf16.msra.mxu0 0
  %772 = vmatpush.bf16.msra.mxu0 0
  %773 = vmatpush.bf16.msra.mxu0 0
  %774 = vmatpush.bf16.msra.mxu0 %v749
  %775 = vmatmul.bf16.gmra.mxu0 %v743
  %v776 = vpop.f32.mrf.mxu0
  %v777 = vadd.f32 0.0, %v776
  %v778 = vpop.f32.mrf.mxu0
  %779 = vdwg.mxu0
  %780 = vmatpush.bf16.msra.mxu0 0
  %781 = vmatpush.bf16.msra.mxu0 0
  %782 = vmatpush.bf16.msra.mxu0 0
  %783 = vmatpush.bf16.msra.mxu0 0
  %784 = vmatpush.bf16.msra.mxu0 0
  %785 = vmatpush.bf16.msra.mxu0 0
  %786 = vmatpush.bf16.msra.mxu0 0
  %787 = vmatpush.bf16.msra.mxu0 %v752
  %788 = vmatmul.bf16.gmra.mxu0 %v743
  %v789 = vpop.f32.mrf.mxu0
  %v790 = vadd.f32 0.0, %v789
  %v791 = vpop.f32.mrf.mxu0
  %792 = vdwg.mxu0
  %v793 = vadd.f32 %v693, %v764
  %v794 = vadd.f32 %v706, %v777
  %v795 = vadd.f32 %v719, %v790
  %s796 = scalar_lea.vmem %s5, 6
  %v797 = vld [vmem:[%s796] sm:$0x3]
  %v798 = vld [vmem:[%s0] sm:$0x3f]
  %800 = vst [vmem:[#allocation1] ss:$4 sm:$0xff] %v798
  %v801 = vld.sshfl [vmem:[#allocation1] sm:$0xff pattern:$0x73625140]
  %v803 = vld.sshfl [vmem:[#allocation1 + $0x8] sm:$0xff pattern:$0x73625140]
  %v805 = vld.sshfl [vmem:[#allocation1 + $0x10] sm:$0xff pattern:$0x73625140]
  %807 = vrot.lane.b32.xlu0 %v801, 110
  %v808 = vpop.permute.xlu0 %807
  %809 = vrot.lane.b32.xlu0 %v803, 110
  %v810 = vpop.permute.xlu0 %809
  %811 = vrot.lane.b32.xlu0 %v805, 110
  %v812 = vpop.permute.xlu0 %811
  %vm813 = vcmask 900096
  %v814 = vsel %vm813, %v808, %v810
  %v815 = vsel %vm813, %v810, %v812
  %v817 = vsel %vm618, %v797, 0
  %v820 = vsel %vm329, %v814, 0
  %v823 = vsel %vm329, %v815, 0
  %v826 = vsel %vm329, %v812, 0
  %828 = vmatpush.bf16.msra.mxu0 0
  %829 = vmatpush.bf16.msra.mxu0 0
  %830 = vmatpush.bf16.msra.mxu0 0
  %831 = vmatpush.bf16.msra.mxu0 0
  %832 = vmatpush.bf16.msra.mxu0 0
  %833 = vmatpush.bf16.msra.mxu0 0
  %834 = vmatpush.bf16.msra.mxu0 0
  %835 = vmatpush.bf16.msra.mxu0 %v820
  %836 = vmatmul.bf16.gmra.mxu0 %v817
  %v837 = vpop.f32.mrf.mxu0
  %v838 = vadd.f32 0.0, %v837
  %v839 = vpop.f32.mrf.mxu0
  %840 = vdwg.mxu0
  %841 = vmatpush.bf16.msra.mxu0 0
  %842 = vmatpush.bf16.msra.mxu0 0
  %843 = vmatpush.bf16.msra.mxu0 0
  %844 = vmatpush.bf16.msra.mxu0 0
  %845 = vmatpush.bf16.msra.mxu0 0
  %846 = vmatpush.bf16.msra.mxu0 0
  %847 = vmatpush.bf16.msra.mxu0 0
  %848 = vmatpush.bf16.msra.mxu0 %v823
  %849 = vmatmul.bf16.gmra.mxu0 %v817
  %v850 = vpop.f32.mrf.mxu0
  %v851 = vadd.f32 0.0, %v850
  %v852 = vpop.f32.mrf.mxu0
  %853 = vdwg.mxu0
  %854 = vmatpush.bf16.msra.mxu0 0
  %855 = vmatpush.bf16.msra.mxu0 0
  %856 = vmatpush.bf16.msra.mxu0 0
  %857 = vmatpush.bf16.msra.mxu0 0
  %858 = vmatpush.bf16.msra.mxu0 0
  %859 = vmatpush.bf16.msra.mxu0 0
  %860 = vmatpush.bf16.msra.mxu0 0
  %861 = vmatpush.bf16.msra.mxu0 %v826
  %862 = vmatmul.bf16.gmra.mxu0 %v817
  %v863 = vpop.f32.mrf.mxu0
  %v864 = vadd.f32 0.0, %v863
  %v865 = vpop.f32.mrf.mxu0
  %866 = vdwg.mxu0
  %v867 = vadd.f32 %v793, %v838
  %v868 = vadd.f32 %v794, %v851
  %v869 = vadd.f32 %v795, %v864
  %s870 = scalar_lea.vmem %s5, 8
  %v871 = vld [vmem:[%s870] sm:$0x3]
  %v872 = vld [vmem:[%s0] sm:$0x3f]
  %874 = vst [vmem:[#allocation1] ss:$4 sm:$0xff] %v872
  %v875 = vld.sshfl [vmem:[#allocation1] sm:$0xff pattern:$0x73625140]
  %v877 = vld.sshfl [vmem:[#allocation1 + $0x8] sm:$0xff pattern:$0x73625140]
  %v879 = vld.sshfl [vmem:[#allocation1 + $0x10] sm:$0xff pattern:$0x73625140]
  %881 = vrot.lane.b32.xlu0 %v875, 109
  %v882 = vpop.permute.xlu0 %881
  %883 = vrot.lane.b32.xlu0 %v877, 109
  %v884 = vpop.permute.xlu0 %883
  %885 = vrot.lane.b32.xlu0 %v879, 109
  %v886 = vpop.permute.xlu0 %885
  %v887 = vsel %vm72, %v882, %v884
  %v888 = vsel %vm72, %v884, %v886
  %v890 = vsel %vm618, %v871, 0
  %v893 = vsel %vm329, %v887, 0
  %v896 = vsel %vm329, %v888, 0
  %v899 = vsel %vm329, %v886, 0
  %901 = vmatpush.bf16.msra.mxu0 0
  %902 = vmatpush.bf16.msra.mxu0 0
  %903 = vmatpush.bf16.msra.mxu0 0
  %904 = vmatpush.bf16.msra.mxu0 0
  %905 = vmatpush.bf16.msra.mxu0 0
  %906 = vmatpush.bf16.msra.mxu0 0
  %907 = vmatpush.bf16.msra.mxu0 0
  %908 = vmatpush.bf16.msra.mxu0 %v893
  %909 = vmatmul.bf16.gmra.mxu0 %v890
  %v910 = vpop.f32.mrf.mxu0
  %v911 = vadd.f32 0.0, %v910
  %v912 = vpop.f32.mrf.mxu0
  %913 = vdwg.mxu0
  %914 = vmatpush.bf16.msra.mxu0 0
  %915 = vmatpush.bf16.msra.mxu0 0
  %916 = vmatpush.bf16.msra.mxu0 0
  %917 = vmatpush.bf16.msra.mxu0 0
  %918 = vmatpush.bf16.msra.mxu0 0
  %919 = vmatpush.bf16.msra.mxu0 0
  %920 = vmatpush.bf16.msra.mxu0 0
  %921 = vmatpush.bf16.msra.mxu0 %v896
  %922 = vmatmul.bf16.gmra.mxu0 %v890
  %v923 = vpop.f32.mrf.mxu0
  %v924 = vadd.f32 0.0, %v923
  %v925 = vpop.f32.mrf.mxu0
  %926 = vdwg.mxu0
  %927 = vmatpush.bf16.msra.mxu0 0
  %928 = vmatpush.bf16.msra.mxu0 0
  %929 = vmatpush.bf16.msra.mxu0 0
  %930 = vmatpush.bf16.msra.mxu0 0
  %931 = vmatpush.bf16.msra.mxu0 0
  %932 = vmatpush.bf16.msra.mxu0 0
  %933 = vmatpush.bf16.msra.mxu0 0
  %934 = vmatpush.bf16.msra.mxu0 %v899
  %935 = vmatmul.bf16.gmra.mxu0 %v890
  %v936 = vpop.f32.mrf.mxu0
  %v937 = vadd.f32 0.0, %v936
  %v938 = vpop.f32.mrf.mxu0
  %939 = vdwg.mxu0
  %v940 = vadd.f32 %v867, %v911
  %v941 = vadd.f32 %v868, %v924
  %v942 = vadd.f32 %v869, %v937
  %s943 = scalar_lea.vmem %s5, 10
  %v944 = vld [vmem:[%s943] sm:$0x3]
  %v945 = vld [vmem:[%s0] sm:$0x3f]
  %947 = vst [vmem:[#allocation1] ss:$4 sm:$0xff] %v945
  %v948 = vld.sshfl [vmem:[#allocation1] sm:$0xff pattern:$0x73625140]
  %v950 = vld.sshfl [vmem:[#allocation1 + $0x8] sm:$0xff pattern:$0x73625140]
  %v952 = vld.sshfl [vmem:[#allocation1 + $0x10] sm:$0xff pattern:$0x73625140]
  %954 = vrot.lane.b32.xlu0 %v948, 108
  %v955 = vpop.permute.xlu0 %954
  %956 = vrot.lane.b32.xlu0 %v950, 108
  %v957 = vpop.permute.xlu0 %956
  %958 = vrot.lane.b32.xlu0 %v952, 108
  %v959 = vpop.permute.xlu0 %958
  %vm960 = vcmask 883712
  %v961 = vsel %vm960, %v955, %v957
  %v962 = vsel %vm960, %v957, %v959
  %v964 = vsel %vm618, %v944, 0
  %v967 = vsel %vm329, %v961, 0
  %v970 = vsel %vm329, %v962, 0
  %v973 = vsel %vm329, %v959, 0
  %975 = vmatpush.bf16.msra.mxu0 0
  %976 = vmatpush.bf16.msra.mxu0 0
  %977 = vmatpush.bf16.msra.mxu0 0
  %978 = vmatpush.bf16.msra.mxu0 0
  %979 = vmatpush.bf16.msra.mxu0 0
  %980 = vmatpush.bf16.msra.mxu0 0
  %981 = vmatpush.bf16.msra.mxu0 0
  %982 = vmatpush.bf16.msra.mxu0 %v967
  %983 = vmatmul.bf16.gmra.mxu0 %v964
  %v984 = vpop.f32.mrf.mxu0
  %v985 = vadd.f32 0.0, %v984
  %v986 = vpop.f32.mrf.mxu0
  %987 = vdwg.mxu0
  %988 = vmatpush.bf16.msra.mxu0 0
  %989 = vmatpush.bf16.msra.mxu0 0
  %990 = vmatpush.bf16.msra.mxu0 0
  %991 = vmatpush.bf16.msra.mxu0 0
  %992 = vmatpush.bf16.msra.mxu0 0
  %993 = vmatpush.bf16.msra.mxu0 0
  %994 = vmatpush.bf16.msra.mxu0 0
  %995 = vmatpush.bf16.msra.mxu0 %v970
  %996 = vmatmul.bf16.gmra.mxu0 %v964
  %v997 = vpop.f32.mrf.mxu0
  %v998 = vadd.f32 0.0, %v997
  %v999 = vpop.f32.mrf.mxu0
  %1000 = vdwg.mxu0
  %1001 = vmatpush.bf16.msra.mxu0 0
  %1002 = vmatpush.bf16.msra.mxu0 0
  %1003 = vmatpush.bf16.msra.mxu0 0
  %1004 = vmatpush.bf16.msra.mxu0 0
  %1005 = vmatpush.bf16.msra.mxu0 0
  %1006 = vmatpush.bf16.msra.mxu0 0
  %1007 = vmatpush.bf16.msra.mxu0 0
  %1008 = vmatpush.bf16.msra.mxu0 %v973
  %1009 = vmatmul.bf16.gmra.mxu0 %v964
  %v1010 = vpop.f32.mrf.mxu0
  %v1011 = vadd.f32 0.0, %v1010
  %v1012 = vpop.f32.mrf.mxu0
  %1013 = vdwg.mxu0
  %v1014 = vadd.f32 %v940, %v985
  %v1015 = vadd.f32 %v941, %v998
  %v1016 = vadd.f32 %v942, %v1011
  %s1017 = scalar_lea.vmem %s5, 12
  %v1018 = vld [vmem:[%s1017] sm:$0x3]
  %v1019 = vld [vmem:[%s0] sm:$0x3f]
  %1021 = vst [vmem:[#allocation1] ss:$4 sm:$0xff] %v1019
  %v1022 = vld.sshfl [vmem:[#allocation1] sm:$0xff pattern:$0x73625140]
  %v1024 = vld.sshfl [vmem:[#allocation1 + $0x8] sm:$0xff pattern:$0x73625140]
  %v1026 = vld.sshfl [vmem:[#allocation1 + $0x10] sm:$0xff pattern:$0x73625140]
  %1028 = vrot.lane.b32.xlu0 %v1022, 92
  %v1029 = vpop.permute.xlu0 %1028
  %1030 = vrot.lane.b32.xlu0 %v1024, 92
  %v1031 = vpop.permute.xlu0 %1030
  %1032 = vrot.lane.b32.xlu0 %v1026, 92
  %v1033 = vpop.permute.xlu0 %1032
  %vm1034 = vcmask 752640
  %v1035 = vsel %vm1034, %v1029, %v1031
  %v1036 = vsel %vm1034, %v1031, %v1033
  %v1038 = vsel %vm618, %v1018, 0
  %v1041 = vsel %vm329, %v1035, 0
  %v1044 = vsel %vm329, %v1036, 0
  %v1047 = vsel %vm329, %v1033, 0
  %1049 = vmatpush.bf16.msra.mxu0 0
  %1050 = vmatpush.bf16.msra.mxu0 0
  %1051 = vmatpush.bf16.msra.mxu0 0
  %1052 = vmatpush.bf16.msra.mxu0 0
  %1053 = vmatpush.bf16.msra.mxu0 0
  %1054 = vmatpush.bf16.msra.mxu0 0
  %1055 = vmatpush.bf16.msra.mxu0 0
  %1056 = vmatpush.bf16.msra.mxu0 %v1041
  %1057 = vmatmul.bf16.gmra.mxu0 %v1038
  %v1058 = vpop.f32.mrf.mxu0
  %v1059 = vadd.f32 0.0, %v1058
  %v1060 = vpop.f32.mrf.mxu0
  %1061 = vdwg.mxu0
  %1062 = vmatpush.bf16.msra.mxu0 0
  %1063 = vmatpush.bf16.msra.mxu0 0
  %1064 = vmatpush.bf16.msra.mxu0 0
  %1065 = vmatpush.bf16.msra.mxu0 0
  %1066 = vmatpush.bf16.msra.mxu0 0
  %1067 = vmatpush.bf16.msra.mxu0 0
  %1068 = vmatpush.bf16.msra.mxu0 0
  %1069 = vmatpush.bf16.msra.mxu0 %v1044
  %1070 = vmatmul.bf16.gmra.mxu0 %v1038
  %v1071 = vpop.f32.mrf.mxu0
  %v1072 = vadd.f32 0.0, %v1071
  %v1073 = vpop.f32.mrf.mxu0
  %1074 = vdwg.mxu0
  %1075 = vmatpush.bf16.msra.mxu0 0
  %1076 = vmatpush.bf16.msra.mxu0 0
  %1077 = vmatpush.bf16.msra.mxu0 0
  %1078 = vmatpush.bf16.msra.mxu0 0
  %1079 = vmatpush.bf16.msra.mxu0 0
  %1080 = vmatpush.bf16.msra.mxu0 0
  %1081 = vmatpush.bf16.msra.mxu0 0
  %1082 = vmatpush.bf16.msra.mxu0 %v1047
  %1083 = vmatmul.bf16.gmra.mxu0 %v1038
  %v1084 = vpop.f32.mrf.mxu0
  %v1085 = vadd.f32 0.0, %v1084
  %v1086 = vpop.f32.mrf.mxu0
  %1087 = vdwg.mxu0
  %v1088 = vadd.f32 %v1014, %v1059
  %v1089 = vadd.f32 %v1015, %v1072
  %v1090 = vadd.f32 %v1016, %v1085
  %s1091 = scalar_lea.vmem %s5, 14
  %v1092 = vld [vmem:[%s1091] sm:$0x3]
  %v1093 = vld [vmem:[%s0] sm:$0x3f]
  %1095 = vst [vmem:[#allocation1] ss:$4 sm:$0xff] %v1093
  %v1096 = vld.sshfl [vmem:[#allocation1] sm:$0xff pattern:$0x73625140]
  %v1098 = vld.sshfl [vmem:[#allocation1 + $0x8] sm:$0xff pattern:$0x73625140]
  %v1100 = vld.sshfl [vmem:[#allocation1 + $0x10] sm:$0xff pattern:$0x73625140]
  %1102 = vrot.lane.b32.xlu0 %v1096, 91
  %v1103 = vpop.permute.xlu0 %1102
  %1104 = vrot.lane.b32.xlu0 %v1098, 91
  %v1105 = vpop.permute.xlu0 %1104
  %1106 = vrot.lane.b32.xlu0 %v1100, 91
  %v1107 = vpop.permute.xlu0 %1106
  %vm1108 = vcmask 744448
  %v1109 = vsel %vm1108, %v1103, %v1105
  %v1110 = vsel %vm1108, %v1105, %v1107
  %v1112 = vsel %vm618, %v1092, 0
  %v1115 = vsel %vm329, %v1109, 0
  %v1118 = vsel %vm329, %v1110, 0
  %v1121 = vsel %vm329, %v1107, 0
  %1123 = vmatpush.bf16.msra.mxu0 0
  %1124 = vmatpush.bf16.msra.mxu0 0
  %1125 = vmatpush.bf16.msra.mxu0 0
  %1126 = vmatpush.bf16.msra.mxu0 0
  %1127 = vmatpush.bf16.msra.mxu0 0
  %1128 = vmatpush.bf16.msra.mxu0 0
  %1129 = vmatpush.bf16.msra.mxu0 0
  %1130 = vmatpush.bf16.msra.mxu0 %v1115
  %1131 = vmatmul.bf16.gmra.mxu0 %v1112
  %v1132 = vpop.f32.mrf.mxu0
  %v1133 = vadd.f32 0.0, %v1132
  %v1134 = vpop.f32.mrf.mxu0
  %1135 = vdwg.mxu0
  %1136 = vmatpush.bf16.msra.mxu0 0
  %1137 = vmatpush.bf16.msra.mxu0 0
  %1138 = vmatpush.bf16.msra.mxu0 0
  %1139 = vmatpush.bf16.msra.mxu0 0
  %1140 = vmatpush.bf16.msra.mxu0 0
  %1141 = vmatpush.bf16.msra.mxu0 0
  %1142 = vmatpush.bf16.msra.mxu0 0
  %1143 = vmatpush.bf16.msra.mxu0 %v1118
  %1144 = vmatmul.bf16.gmra.mxu0 %v1112
  %v1145 = vpop.f32.mrf.mxu0
  %v1146 = vadd.f32 0.0, %v1145
  %v1147 = vpop.f32.mrf.mxu0
  %1148 = vdwg.mxu0
  %1149 = vmatpush.bf16.msra.mxu0 0
  %1150 = vmatpush.bf16.msra.mxu0 0
  %1151 = vmatpush.bf16.msra.mxu0 0
  %1152 = vmatpush.bf16.msra.mxu0 0
  %1153 = vmatpush.bf16.msra.mxu0 0
  %1154 = vmatpush.bf16.msra.mxu0 0
  %1155 = vmatpush.bf16.msra.mxu0 0
  %1156 = vmatpush.bf16.msra.mxu0 %v1121
  %1157 = vmatmul.bf16.gmra.mxu0 %v1112
  %v1158 = vpop.f32.mrf.mxu0
  %v1159 = vadd.f32 0.0, %v1158
  %v1160 = vpop.f32.mrf.mxu0
  %1161 = vdwg.mxu0
  %v1162 = vadd.f32 %v1088, %v1133
  %v1163 = vadd.f32 %v1089, %v1146
  %v1164 = vadd.f32 %v1090, %v1159
  %s1165 = scalar_lea.vmem %s5, 16
  %v1166 = vld [vmem:[%s1165] sm:$0x3]
  %v1167 = vld [vmem:[%s0] sm:$0x3f]
  %1169 = vst [vmem:[#allocation1] ss:$4 sm:$0xff] %v1167
  %v1170 = vld.sshfl [vmem:[#allocation1] sm:$0xff pattern:$0x73625140]
  %v1172 = vld.sshfl [vmem:[#allocation1 + $0x8] sm:$0xff pattern:$0x73625140]
  %v1174 = vld.sshfl [vmem:[#allocation1 + $0x10] sm:$0xff pattern:$0x73625140]
  %1176 = vrot.lane.b32.xlu0 %v1170, 90
  %v1177 = vpop.permute.xlu0 %1176
  %1178 = vrot.lane.b32.xlu0 %v1172, 90
  %v1179 = vpop.permute.xlu0 %1178
  %1180 = vrot.lane.b32.xlu0 %v1174, 90
  %v1181 = vpop.permute.xlu0 %1180
  %vm1182 = vcmask 736256
  %v1183 = vsel %vm1182, %v1177, %v1179
  %v1184 = vsel %vm1182, %v1179, %v1181
  %v1186 = vsel %vm618, %v1166, 0
  %v1189 = vsel %vm329, %v1183, 0
  %v1192 = vsel %vm329, %v1184, 0
  %v1195 = vsel %vm329, %v1181, 0
  %1197 = vmatpush.bf16.msra.mxu0 0
  %1198 = vmatpush.bf16.msra.mxu0 0
  %1199 = vmatpush.bf16.msra.mxu0 0
  %1200 = vmatpush.bf16.msra.mxu0 0
  %1201 = vmatpush.bf16.msra.mxu0 0
  %1202 = vmatpush.bf16.msra.mxu0 0
  %1203 = vmatpush.bf16.msra.mxu0 0
  %1204 = vmatpush.bf16.msra.mxu0 %v1189
  %1205 = vmatmul.bf16.gmra.mxu0 %v1186
  %v1206 = vpop.f32.mrf.mxu0
  %v1207 = vadd.f32 0.0, %v1206
  %v1208 = vpop.f32.mrf.mxu0
  %1209 = vdwg.mxu0
  %1210 = vmatpush.bf16.msra.mxu0 0
  %1211 = vmatpush.bf16.msra.mxu0 0
  %1212 = vmatpush.bf16.msra.mxu0 0
  %1213 = vmatpush.bf16.msra.mxu0 0
  %1214 = vmatpush.bf16.msra.mxu0 0
  %1215 = vmatpush.bf16.msra.mxu0 0
  %1216 = vmatpush.bf16.msra.mxu0 0
  %1217 = vmatpush.bf16.msra.mxu0 %v1192
  %1218 = vmatmul.bf16.gmra.mxu0 %v1186
  %v1219 = vpop.f32.mrf.mxu0
  %v1220 = vadd.f32 0.0, %v1219
  %v1221 = vpop.f32.mrf.mxu0
  %1222 = vdwg.mxu0
  %1223 = vmatpush.bf16.msra.mxu0 0
  %1224 = vmatpush.bf16.msra.mxu0 0
  %1225 = vmatpush.bf16.msra.mxu0 0
  %1226 = vmatpush.bf16.msra.mxu0 0
  %1227 = vmatpush.bf16.msra.mxu0 0
  %1228 = vmatpush.bf16.msra.mxu0 0
  %1229 = vmatpush.bf16.msra.mxu0 0
  %1230 = vmatpush.bf16.msra.mxu0 %v1195
  %1231 = vmatmul.bf16.gmra.mxu0 %v1186
  %v1232 = vpop.f32.mrf.mxu0
  %v1233 = vadd.f32 0.0, %v1232
  %v1234 = vpop.f32.mrf.mxu0
  %1235 = vdwg.mxu0
  %v1236 = vadd.f32 %v1162, %v1207
  %v1237 = vadd.f32 %v1163, %v1220
  %v1238 = vadd.f32 %v1164, %v1233
  %v1239 = vld [vmem:[%s6] sm:$0x3]
  %v1240 = vld [vmem:[#allocation2] sm:$0x3f]
  %s1241 = scalar_lea.vmem %s6, 2
  %v1242 = vld [vmem:[%s1241] sm:$0x3]
  %1244 = vst [vmem:[#allocation1] ss:$4 sm:$0xff] %v1240
  %v1245 = vld.sshfl [vmem:[#allocation1] sm:$0xff pattern:$0x73625140]
  %v1247 = vld.sshfl [vmem:[#allocation1 + $0x8] sm:$0xff pattern:$0x73625140]
  %v1249 = vld.sshfl [vmem:[#allocation1 + $0x10] sm:$0xff pattern:$0x73625140]
  %1251 = vrot.lane.b32.xlu0 %v1245, 127
  %v1252 = vpop.permute.xlu0 %1251
  %1253 = vrot.lane.b32.xlu0 %v1247, 127
  %v1254 = vpop.permute.xlu0 %1253
  %1255 = vrot.lane.b32.xlu0 %v1249, 127
  %v1256 = vpop.permute.xlu0 %1255
  %v1257 = vsel %vm615, %v1252, %v1254
  %v1258 = vsel %vm615, %v1254, %v1256
  %v1260 = vsel %vm618, %v1242, 0
  %v1263 = vsel %vm329, %v1257, 0
  %v1266 = vsel %vm329, %v1258, 0
  %v1269 = vsel %vm329, %v1256, 0
  %1271 = vmatpush.bf16.msra.mxu0 0
  %1272 = vmatpush.bf16.msra.mxu0 0
  %1273 = vmatpush.bf16.msra.mxu0 0
  %1274 = vmatpush.bf16.msra.mxu0 0
  %1275 = vmatpush.bf16.msra.mxu0 0
  %1276 = vmatpush.bf16.msra.mxu0 0
  %1277 = vmatpush.bf16.msra.mxu0 0
  %1278 = vmatpush.bf16.msra.mxu0 %v1263
  %1279 = vmatmul.bf16.gmra.mxu0 %v1260
  %v1280 = vpop.f32.mrf.mxu0
  %v1281 = vadd.f32 0.0, %v1280
  %v1282 = vpop.f32.mrf.mxu0
  %1283 = vdwg.mxu0
  %1284 = vmatpush.bf16.msra.mxu0 0
  %1285 = vmatpush.bf16.msra.mxu0 0
  %1286 = vmatpush.bf16.msra.mxu0 0
  %1287 = vmatpush.bf16.msra.mxu0 0
  %1288 = vmatpush.bf16.msra.mxu0 0
  %1289 = vmatpush.bf16.msra.mxu0 0
  %1290 = vmatpush.bf16.msra.mxu0 0
  %1291 = vmatpush.bf16.msra.mxu0 %v1266
  %1292 = vmatmul.bf16.gmra.mxu0 %v1260
  %v1293 = vpop.f32.mrf.mxu0
  %v1294 = vadd.f32 0.0, %v1293
  %v1295 = vpop.f32.mrf.mxu0
  %1296 = vdwg.mxu0
  %1297 = vmatpush.bf16.msra.mxu0 0
  %1298 = vmatpush.bf16.msra.mxu0 0
  %1299 = vmatpush.bf16.msra.mxu0 0
  %1300 = vmatpush.bf16.msra.mxu0 0
  %1301 = vmatpush.bf16.msra.mxu0 0
  %1302 = vmatpush.bf16.msra.mxu0 0
  %1303 = vmatpush.bf16.msra.mxu0 0
  %1304 = vmatpush.bf16.msra.mxu0 %v1269
  %1305 = vmatmul.bf16.gmra.mxu0 %v1260
  %v1306 = vpop.f32.mrf.mxu0
  %v1307 = vadd.f32 0.0, %v1306
  %v1308 = vpop.f32.mrf.mxu0
  %1309 = vdwg.mxu0
  %1310 = vst [vmem:[#allocation1] ss:$4 sm:$0xff] %v1240
  %v1311 = vld.sshfl [vmem:[#allocation1] sm:$0xff pattern:$0x73625140]
  %v1312 = vld.sshfl [vmem:[#allocation1 + $0x8] sm:$0xff pattern:$0x73625140]
  %v1313 = vld.sshfl [vmem:[#allocation1 + $0x10] sm:$0xff pattern:$0x73625140]
  %v1315 = vsel %vm618, %v1239, 0
  %v1317 = vsel %vm329, %v1311, 0
  %v1319 = vsel %vm329, %v1312, 0
  %v1321 = vsel %vm329, %v1313, 0
  %1323 = vmatpush.bf16.msra.mxu0 0
  %1324 = vmatpush.bf16.msra.mxu0 0
  %1325 = vmatpush.bf16.msra.mxu0 0
  %1326 = vmatpush.bf16.msra.mxu0 0
  %1327 = vmatpush.bf16.msra.mxu0 0
  %1328 = vmatpush.bf16.msra.mxu0 0
  %1329 = vmatpush.bf16.msra.mxu0 0
  %1330 = vmatpush.bf16.msra.mxu0 %v1317
  %1331 = vmatmul.bf16.gmra.mxu0 %v1315
  %v1332 = vpop.f32.mrf.mxu0
  %v1333 = vadd.f32 %v1281, %v1332
  %v1334 = vpop.f32.mrf.mxu0
  %1335 = vdwg.mxu0
  %1336 = vmatpush.bf16.msra.mxu0 0
  %1337 = vmatpush.bf16.msra.mxu0 0
  %1338 = vmatpush.bf16.msra.mxu0 0
  %1339 = vmatpush.bf16.msra.mxu0 0
  %1340 = vmatpush.bf16.msra.mxu0 0
  %1341 = vmatpush.bf16.msra.mxu0 0
  %1342 = vmatpush.bf16.msra.mxu0 0
  %1343 = vmatpush.bf16.msra.mxu0 %v1319
  %1344 = vmatmul.bf16.gmra.mxu0 %v1315
  %v1345 = vpop.f32.mrf.mxu0
  %v1346 = vadd.f32 %v1294, %v1345
  %v1347 = vpop.f32.mrf.mxu0
  %1348 = vdwg.mxu0
  %1349 = vmatpush.bf16.msra.mxu0 0
  %1350 = vmatpush.bf16.msra.mxu0 0
  %1351 = vmatpush.bf16.msra.mxu0 0
  %1352 = vmatpush.bf16.msra.mxu0 0
  %1353 = vmatpush.bf16.msra.mxu0 0
  %1354 = vmatpush.bf16.msra.mxu0 0
  %1355 = vmatpush.bf16.msra.mxu0 0
  %1356 = vmatpush.bf16.msra.mxu0 %v1321
  %1357 = vmatmul.bf16.gmra.mxu0 %v1315
  %v1358 = vpop.f32.mrf.mxu0
  %v1359 = vadd.f32 %v1307, %v1358
  %v1360 = vpop.f32.mrf.mxu0
  %1361 = vdwg.mxu0
  %s1362 = scalar_lea.vmem %s6, 4
  %v1363 = vld [vmem:[%s1362] sm:$0x3]
  %v1364 = vld [vmem:[#allocation2] sm:$0x3f]
  %1366 = vst [vmem:[#allocation1] ss:$4 sm:$0xff] %v1364
  %v1367 = vld.sshfl [vmem:[#allocation1] sm:$0xff pattern:$0x73625140]
  %v1369 = vld.sshfl [vmem:[#allocation1 + $0x8] sm:$0xff pattern:$0x73625140]
  %v1371 = vld.sshfl [vmem:[#allocation1 + $0x10] sm:$0xff pattern:$0x73625140]
  %1373 = vrot.lane.b32.xlu0 %v1367, 126
  %v1374 = vpop.permute.xlu0 %1373
  %1375 = vrot.lane.b32.xlu0 %v1369, 126
  %v1376 = vpop.permute.xlu0 %1375
  %1377 = vrot.lane.b32.xlu0 %v1371, 126
  %v1378 = vpop.permute.xlu0 %1377
  %v1379 = vsel %vm739, %v1374, %v1376
  %v1380 = vsel %vm739, %v1376, %v1378
  %v1382 = vsel %vm618, %v1363, 0
  %v1385 = vsel %vm329, %v1379, 0
  %v1388 = vsel %vm329, %v1380, 0
  %v1391 = vsel %vm329, %v1378, 0
  %1393 = vmatpush.bf16.msra.mxu0 0
  %1394 = vmatpush.bf16.msra.mxu0 0
  %1395 = vmatpush.bf16.msra.mxu0 0
  %1396 = vmatpush.bf16.msra.mxu0 0
  %1397 = vmatpush.bf16.msra.mxu0 0
  %1398 = vmatpush.bf16.msra.mxu0 0
  %1399 = vmatpush.bf16.msra.mxu0 0
  %1400 = vmatpush.bf16.msra.mxu0 %v1385
  %1401 = vmatmul.bf16.gmra.mxu0 %v1382
  %v1402 = vpop.f32.mrf.mxu0
  %v1403 = vadd.f32 0.0, %v1402
  %v1404 = vpop.f32.mrf.mxu0
  %1405 = vdwg.mxu0
  %1406 = vmatpush.bf16.msra.mxu0 0
  %1407 = vmatpush.bf16.msra.mxu0 0
  %1408 = vmatpush.bf16.msra.mxu0 0
  %1409 = vmatpush.bf16.msra.mxu0 0
  %1410 = vmatpush.bf16.msra.mxu0 0
  %1411 = vmatpush.bf16.msra.mxu0 0
  %1412 = vmatpush.bf16.msra.mxu0 0
  %1413 = vmatpush.bf16.msra.mxu0 %v1388
  %1414 = vmatmul.bf16.gmra.mxu0 %v1382
  %v1415 = vpop.f32.mrf.mxu0
  %v1416 = vadd.f32 0.0, %v1415
  %v1417 = vpop.f32.mrf.mxu0
  %1418 = vdwg.mxu0
  %1419 = vmatpush.bf16.msra.mxu0 0
  %1420 = vmatpush.bf16.msra.mxu0 0
  %1421 = vmatpush.bf16.msra.mxu0 0
  %1422 = vmatpush.bf16.msra.mxu0 0
  %1423 = vmatpush.bf16.msra.mxu0 0
  %1424 = vmatpush.bf16.msra.mxu0 0
  %1425 = vmatpush.bf16.msra.mxu0 0
  %1426 = vmatpush.bf16.msra.mxu0 %v1391
  %1427 = vmatmul.bf16.gmra.mxu0 %v1382
  %v1428 = vpop.f32.mrf.mxu0
  %v1429 = vadd.f32 0.0, %v1428
  %v1430 = vpop.f32.mrf.mxu0
  %1431 = vdwg.mxu0
  %v1432 = vadd.f32 %v1333, %v1403
  %v1433 = vadd.f32 %v1346, %v1416
  %v1434 = vadd.f32 %v1359, %v1429
  %s1435 = scalar_lea.vmem %s6, 6
  %v1436 = vld [vmem:[%s1435] sm:$0x3]
  %v1437 = vld [vmem:[#allocation2] sm:$0x3f]
  %1439 = vst [vmem:[#allocation1] ss:$4 sm:$0xff] %v1437
  %v1440 = vld.sshfl [vmem:[#allocation1] sm:$0xff pattern:$0x73625140]
  %v1442 = vld.sshfl [vmem:[#allocation1 + $0x8] sm:$0xff pattern:$0x73625140]
  %v1444 = vld.sshfl [vmem:[#allocation1 + $0x10] sm:$0xff pattern:$0x73625140]
  %1446 = vrot.lane.b32.xlu0 %v1440, 110
  %v1447 = vpop.permute.xlu0 %1446
  %1448 = vrot.lane.b32.xlu0 %v1442, 110
  %v1449 = vpop.permute.xlu0 %1448
  %1450 = vrot.lane.b32.xlu0 %v1444, 110
  %v1451 = vpop.permute.xlu0 %1450
  %v1452 = vsel %vm813, %v1447, %v1449
  %v1453 = vsel %vm813, %v1449, %v1451
  %v1455 = vsel %vm618, %v1436, 0
  %v1458 = vsel %vm329, %v1452, 0
  %v1461 = vsel %vm329, %v1453, 0
  %v1464 = vsel %vm329, %v1451, 0
  %1466 = vmatpush.bf16.msra.mxu0 0
  %1467 = vmatpush.bf16.msra.mxu0 0
  %1468 = vmatpush.bf16.msra.mxu0 0
  %1469 = vmatpush.bf16.msra.mxu0 0
  %1470 = vmatpush.bf16.msra.mxu0 0
  %1471 = vmatpush.bf16.msra.mxu0 0
  %1472 = vmatpush.bf16.msra.mxu0 0
  %1473 = vmatpush.bf16.msra.mxu0 %v1458
  %1474 = vmatmul.bf16.gmra.mxu0 %v1455
  %v1475 = vpop.f32.mrf.mxu0
  %v1476 = vadd.f32 0.0, %v1475
  %v1477 = vpop.f32.mrf.mxu0
  %1478 = vdwg.mxu0
  %1479 = vmatpush.bf16.msra.mxu0 0
  %1480 = vmatpush.bf16.msra.mxu0 0
  %1481 = vmatpush.bf16.msra.mxu0 0
  %1482 = vmatpush.bf16.msra.mxu0 0
  %1483 = vmatpush.bf16.msra.mxu0 0
  %1484 = vmatpush.bf16.msra.mxu0 0
  %1485 = vmatpush.bf16.msra.mxu0 0
  %1486 = vmatpush.bf16.msra.mxu0 %v1461
  %1487 = vmatmul.bf16.gmra.mxu0 %v1455
  %v1488 = vpop.f32.mrf.mxu0
  %v1489 = vadd.f32 0.0, %v1488
  %v1490 = vpop.f32.mrf.mxu0
  %1491 = vdwg.mxu0
  %1492 = vmatpush.bf16.msra.mxu0 0
  %1493 = vmatpush.bf16.msra.mxu0 0
  %1494 = vmatpush.bf16.msra.mxu0 0
  %1495 = vmatpush.bf16.msra.mxu0 0
  %1496 = vmatpush.bf16.msra.mxu0 0
  %1497 = vmatpush.bf16.msra.mxu0 0
  %1498 = vmatpush.bf16.msra.mxu0 0
  %1499 = vmatpush.bf16.msra.mxu0 %v1464
  %1500 = vmatmul.bf16.gmra.mxu0 %v1455
  %v1501 = vpop.f32.mrf.mxu0
  %v1502 = vadd.f32 0.0, %v1501
  %v1503 = vpop.f32.mrf.mxu0
  %1504 = vdwg.mxu0
  %v1505 = vadd.f32 %v1432, %v1476
  %v1506 = vadd.f32 %v1433, %v1489
  %v1507 = vadd.f32 %v1434, %v1502
  %s1508 = scalar_lea.vmem %s6, 8
  %v1509 = vld [vmem:[%s1508] sm:$0x3]
  %v1510 = vld [vmem:[#allocation2] sm:$0x3f]
  %1512 = vst [vmem:[#allocation1] ss:$4 sm:$0xff] %v1510
  %v1513 = vld.sshfl [vmem:[#allocation1] sm:$0xff pattern:$0x73625140]
  %v1515 = vld.sshfl [vmem:[#allocation1 + $0x8] sm:$0xff pattern:$0x73625140]
  %v1517 = vld.sshfl [vmem:[#allocation1 + $0x10] sm:$0xff pattern:$0x73625140]
  %1519 = vrot.lane.b32.xlu0 %v1513, 109
  %v1520 = vpop.permute.xlu0 %1519
  %1521 = vrot.lane.b32.xlu0 %v1515, 109
  %v1522 = vpop.permute.xlu0 %1521
  %1523 = vrot.lane.b32.xlu0 %v1517, 109
  %v1524 = vpop.permute.xlu0 %1523
  %v1525 = vsel %vm72, %v1520, %v1522
  %v1526 = vsel %vm72, %v1522, %v1524
  %v1528 = vsel %vm618, %v1509, 0
  %v1531 = vsel %vm329, %v1525, 0
  %v1534 = vsel %vm329, %v1526, 0
  %v1537 = vsel %vm329, %v1524, 0
  %1539 = vmatpush.bf16.msra.mxu0 0
  %1540 = vmatpush.bf16.msra.mxu0 0
  %1541 = vmatpush.bf16.msra.mxu0 0
  %1542 = vmatpush.bf16.msra.mxu0 0
  %1543 = vmatpush.bf16.msra.mxu0 0
  %1544 = vmatpush.bf16.msra.mxu0 0
  %1545 = vmatpush.bf16.msra.mxu0 0
  %1546 = vmatpush.bf16.msra.mxu0 %v1531
  %1547 = vmatmul.bf16.gmra.mxu0 %v1528
  %v1548 = vpop.f32.mrf.mxu0
  %v1549 = vadd.f32 0.0, %v1548
  %v1550 = vpop.f32.mrf.mxu0
  %1551 = vdwg.mxu0
  %1552 = vmatpush.bf16.msra.mxu0 0
  %1553 = vmatpush.bf16.msra.mxu0 0
  %1554 = vmatpush.bf16.msra.mxu0 0
  %1555 = vmatpush.bf16.msra.mxu0 0
  %1556 = vmatpush.bf16.msra.mxu0 0
  %1557 = vmatpush.bf16.msra.mxu0 0
  %1558 = vmatpush.bf16.msra.mxu0 0
  %1559 = vmatpush.bf16.msra.mxu0 %v1534
  %1560 = vmatmul.bf16.gmra.mxu0 %v1528
  %v1561 = vpop.f32.mrf.mxu0
  %v1562 = vadd.f32 0.0, %v1561
  %v1563 = vpop.f32.mrf.mxu0
  %1564 = vdwg.mxu0
  %1565 = vmatpush.bf16.msra.mxu0 0
  %1566 = vmatpush.bf16.msra.mxu0 0
  %1567 = vmatpush.bf16.msra.mxu0 0
  %1568 = vmatpush.bf16.msra.mxu0 0
  %1569 = vmatpush.bf16.msra.mxu0 0
  %1570 = vmatpush.bf16.msra.mxu0 0
  %1571 = vmatpush.bf16.msra.mxu0 0
  %1572 = vmatpush.bf16.msra.mxu0 %v1537
  %1573 = vmatmul.bf16.gmra.mxu0 %v1528
  %v1574 = vpop.f32.mrf.mxu0
  %v1575 = vadd.f32 0.0, %v1574
  %v1576 = vpop.f32.mrf.mxu0
  %1577 = vdwg.mxu0
  %v1578 = vadd.f32 %v1505, %v1549
  %v1579 = vadd.f32 %v1506, %v1562
  %v1580 = vadd.f32 %v1507, %v1575
  %s1581 = scalar_lea.vmem %s6, 10
  %v1582 = vld [vmem:[%s1581] sm:$0x3]
  %v1583 = vld [vmem:[#allocation2] sm:$0x3f]
  %1585 = vst [vmem:[#allocation1] ss:$4 sm:$0xff] %v1583
  %v1586 = vld.sshfl [vmem:[#allocation1] sm:$0xff pattern:$0x73625140]
  %v1588 = vld.sshfl [vmem:[#allocation1 + $0x8] sm:$0xff pattern:$0x73625140]
  %v1590 = vld.sshfl [vmem:[#allocation1 + $0x10] sm:$0xff pattern:$0x73625140]
  %1592 = vrot.lane.b32.xlu0 %v1586, 108
  %v1593 = vpop.permute.xlu0 %1592
  %1594 = vrot.lane.b32.xlu0 %v1588, 108
  %v1595 = vpop.permute.xlu0 %1594
  %1596 = vrot.lane.b32.xlu0 %v1590, 108
  %v1597 = vpop.permute.xlu0 %1596
  %v1598 = vsel %vm960, %v1593, %v1595
  %v1599 = vsel %vm960, %v1595, %v1597
  %v1601 = vsel %vm618, %v1582, 0
  %v1604 = vsel %vm329, %v1598, 0
  %v1607 = vsel %vm329, %v1599, 0
  %v1610 = vsel %vm329, %v1597, 0
  %1612 = vmatpush.bf16.msra.mxu0 0
  %1613 = vmatpush.bf16.msra.mxu0 0
  %1614 = vmatpush.bf16.msra.mxu0 0
  %1615 = vmatpush.bf16.msra.mxu0 0
  %1616 = vmatpush.bf16.msra.mxu0 0
  %1617 = vmatpush.bf16.msra.mxu0 0
  %1618 = vmatpush.bf16.msra.mxu0 0
  %1619 = vmatpush.bf16.msra.mxu0 %v1604
  %1620 = vmatmul.bf16.gmra.mxu0 %v1601
  %v1621 = vpop.f32.mrf.mxu0
  %v1622 = vadd.f32 0.0, %v1621
  %v1623 = vpop.f32.mrf.mxu0
  %1624 = vdwg.mxu0
  %1625 = vmatpush.bf16.msra.mxu0 0
  %1626 = vmatpush.bf16.msra.mxu0 0
  %1627 = vmatpush.bf16.msra.mxu0 0
  %1628 = vmatpush.bf16.msra.mxu0 0
  %1629 = vmatpush.bf16.msra.mxu0 0
  %1630 = vmatpush.bf16.msra.mxu0 0
  %1631 = vmatpush.bf16.msra.mxu0 0
  %1632 = vmatpush.bf16.msra.mxu0 %v1607
  %1633 = vmatmul.bf16.gmra.mxu0 %v1601
  %v1634 = vpop.f32.mrf.mxu0
  %v1635 = vadd.f32 0.0, %v1634
  %v1636 = vpop.f32.mrf.mxu0
  %1637 = vdwg.mxu0
  %1638 = vmatpush.bf16.msra.mxu0 0
  %1639 = vmatpush.bf16.msra.mxu0 0
  %1640 = vmatpush.bf16.msra.mxu0 0
  %1641 = vmatpush.bf16.msra.mxu0 0
  %1642 = vmatpush.bf16.msra.mxu0 0
  %1643 = vmatpush.bf16.msra.mxu0 0
  %1644 = vmatpush.bf16.msra.mxu0 0
  %1645 = vmatpush.bf16.msra.mxu0 %v1610
  %1646 = vmatmul.bf16.gmra.mxu0 %v1601
  %v1647 = vpop.f32.mrf.mxu0
  %v1648 = vadd.f32 0.0, %v1647
  %v1649 = vpop.f32.mrf.mxu0
  %1650 = vdwg.mxu0
  %v1651 = vadd.f32 %v1578, %v1622
  %v1652 = vadd.f32 %v1579, %v1635
  %v1653 = vadd.f32 %v1580, %v1648
  %s1654 = scalar_lea.vmem %s6, 12
  %v1655 = vld [vmem:[%s1654] sm:$0x3]
  %v1656 = vld [vmem:[#allocation2] sm:$0x3f]
  %1658 = vst [vmem:[#allocation1] ss:$4 sm:$0xff] %v1656
  %v1659 = vld.sshfl [vmem:[#allocation1] sm:$0xff pattern:$0x73625140]
  %v1661 = vld.sshfl [vmem:[#allocation1 + $0x8] sm:$0xff pattern:$0x73625140]
  %v1663 = vld.sshfl [vmem:[#allocation1 + $0x10] sm:$0xff pattern:$0x73625140]
  %1665 = vrot.lane.b32.xlu0 %v1659, 92
  %v1666 = vpop.permute.xlu0 %1665
  %1667 = vrot.lane.b32.xlu0 %v1661, 92
  %v1668 = vpop.permute.xlu0 %1667
  %1669 = vrot.lane.b32.xlu0 %v1663, 92
  %v1670 = vpop.permute.xlu0 %1669
  %v1671 = vsel %vm1034, %v1666, %v1668
  %v1672 = vsel %vm1034, %v1668, %v1670
  %v1674 = vsel %vm618, %v1655, 0
  %v1677 = vsel %vm329, %v1671, 0
  %v1680 = vsel %vm329, %v1672, 0
  %v1683 = vsel %vm329, %v1670, 0
  %1685 = vmatpush.bf16.msra.mxu0 0
  %1686 = vmatpush.bf16.msra.mxu0 0
  %1687 = vmatpush.bf16.msra.mxu0 0
  %1688 = vmatpush.bf16.msra.mxu0 0
  %1689 = vmatpush.bf16.msra.mxu0 0
  %1690 = vmatpush.bf16.msra.mxu0 0
  %1691 = vmatpush.bf16.msra.mxu0 0
  %1692 = vmatpush.bf16.msra.mxu0 %v1677
  %1693 = vmatmul.bf16.gmra.mxu0 %v1674
  %v1694 = vpop.f32.mrf.mxu0
  %v1695 = vadd.f32 0.0, %v1694
  %v1696 = vpop.f32.mrf.mxu0
  %1697 = vdwg.mxu0
  %1698 = vmatpush.bf16.msra.mxu0 0
  %1699 = vmatpush.bf16.msra.mxu0 0
  %1700 = vmatpush.bf16.msra.mxu0 0
  %1701 = vmatpush.bf16.msra.mxu0 0
  %1702 = vmatpush.bf16.msra.mxu0 0
  %1703 = vmatpush.bf16.msra.mxu0 0
  %1704 = vmatpush.bf16.msra.mxu0 0
  %1705 = vmatpush.bf16.msra.mxu0 %v1680
  %1706 = vmatmul.bf16.gmra.mxu0 %v1674
  %v1707 = vpop.f32.mrf.mxu0
  %v1708 = vadd.f32 0.0, %v1707
  %v1709 = vpop.f32.mrf.mxu0
  %1710 = vdwg.mxu0
  %1711 = vmatpush.bf16.msra.mxu0 0
  %1712 = vmatpush.bf16.msra.mxu0 0
  %1713 = vmatpush.bf16.msra.mxu0 0
  %1714 = vmatpush.bf16.msra.mxu0 0
  %1715 = vmatpush.bf16.msra.mxu0 0
  %1716 = vmatpush.bf16.msra.mxu0 0
  %1717 = vmatpush.bf16.msra.mxu0 0
  %1718 = vmatpush.bf16.msra.mxu0 %v1683
  %1719 = vmatmul.bf16.gmra.mxu0 %v1674
  %v1720 = vpop.f32.mrf.mxu0
  %v1721 = vadd.f32 0.0, %v1720
  %v1722 = vpop.f32.mrf.mxu0
  %1723 = vdwg.mxu0
  %v1724 = vadd.f32 %v1651, %v1695
  %v1725 = vadd.f32 %v1652, %v1708
  %v1726 = vadd.f32 %v1653, %v1721
  %s1727 = scalar_lea.vmem %s6, 14
  %v1728 = vld [vmem:[%s1727] sm:$0x3]
  %v1729 = vld [vmem:[#allocation2] sm:$0x3f]
  %1731 = vst [vmem:[#allocation1] ss:$4 sm:$0xff] %v1729
  %v1732 = vld.sshfl [vmem:[#allocation1] sm:$0xff pattern:$0x73625140]
  %v1734 = vld.sshfl [vmem:[#allocation1 + $0x8] sm:$0xff pattern:$0x73625140]
  %v1736 = vld.sshfl [vmem:[#allocation1 + $0x10] sm:$0xff pattern:$0x73625140]
  %1738 = vrot.lane.b32.xlu0 %v1732, 91
  %v1739 = vpop.permute.xlu0 %1738
  %1740 = vrot.lane.b32.xlu0 %v1734, 91
  %v1741 = vpop.permute.xlu0 %1740
  %1742 = vrot.lane.b32.xlu0 %v1736, 91
  %v1743 = vpop.permute.xlu0 %1742
  %v1744 = vsel %vm1108, %v1739, %v1741
  %v1745 = vsel %vm1108, %v1741, %v1743
  %v1747 = vsel %vm618, %v1728, 0
  %v1750 = vsel %vm329, %v1744, 0
  %v1753 = vsel %vm329, %v1745, 0
  %v1756 = vsel %vm329, %v1743, 0
  %1758 = vmatpush.bf16.msra.mxu0 0
  %1759 = vmatpush.bf16.msra.mxu0 0
  %1760 = vmatpush.bf16.msra.mxu0 0
  %1761 = vmatpush.bf16.msra.mxu0 0
  %1762 = vmatpush.bf16.msra.mxu0 0
  %1763 = vmatpush.bf16.msra.mxu0 0
  %1764 = vmatpush.bf16.msra.mxu0 0
  %1765 = vmatpush.bf16.msra.mxu0 %v1750
  %1766 = vmatmul.bf16.gmra.mxu0 %v1747
  %v1767 = vpop.f32.mrf.mxu0
  %v1768 = vadd.f32 0.0, %v1767
  %v1769 = vpop.f32.mrf.mxu0
  %1770 = vdwg.mxu0
  %1771 = vmatpush.bf16.msra.mxu0 0
  %1772 = vmatpush.bf16.msra.mxu0 0
  %1773 = vmatpush.bf16.msra.mxu0 0
  %1774 = vmatpush.bf16.msra.mxu0 0
  %1775 = vmatpush.bf16.msra.mxu0 0
  %1776 = vmatpush.bf16.msra.mxu0 0
  %1777 = vmatpush.bf16.msra.mxu0 0
  %1778 = vmatpush.bf16.msra.mxu0 %v1753
  %1779 = vmatmul.bf16.gmra.mxu0 %v1747
  %v1780 = vpop.f32.mrf.mxu0
  %v1781 = vadd.f32 0.0, %v1780
  %v1782 = vpop.f32.mrf.mxu0
  %1783 = vdwg.mxu0
  %1784 = vmatpush.bf16.msra.mxu0 0
  %1785 = vmatpush.bf16.msra.mxu0 0
  %1786 = vmatpush.bf16.msra.mxu0 0
  %1787 = vmatpush.bf16.msra.mxu0 0
  %1788 = vmatpush.bf16.msra.mxu0 0
  %1789 = vmatpush.bf16.msra.mxu0 0
  %1790 = vmatpush.bf16.msra.mxu0 0
  %1791 = vmatpush.bf16.msra.mxu0 %v1756
  %1792 = vmatmul.bf16.gmra.mxu0 %v1747
  %v1793 = vpop.f32.mrf.mxu0
  %v1794 = vadd.f32 0.0, %v1793
  %v1795 = vpop.f32.mrf.mxu0
  %1796 = vdwg.mxu0
  %v1797 = vadd.f32 %v1724, %v1768
  %v1798 = vadd.f32 %v1725, %v1781
  %v1799 = vadd.f32 %v1726, %v1794
  %s1800 = scalar_lea.vmem %s6, 16
  %v1801 = vld [vmem:[%s1800] sm:$0x3]
  %v1802 = vld [vmem:[#allocation2] sm:$0x3f]
  %1804 = vst [vmem:[#allocation1] ss:$4 sm:$0xff] %v1802
  %v1805 = vld.sshfl [vmem:[#allocation1] sm:$0xff pattern:$0x73625140]
  %v1807 = vld.sshfl [vmem:[#allocation1 + $0x8] sm:$0xff pattern:$0x73625140]
  %v1809 = vld.sshfl [vmem:[#allocation1 + $0x10] sm:$0xff pattern:$0x73625140]
  %1811 = vrot.lane.b32.xlu0 %v1805, 90
  %v1812 = vpop.permute.xlu0 %1811
  %1813 = vrot.lane.b32.xlu0 %v1807, 90
  %v1814 = vpop.permute.xlu0 %1813
  %1815 = vrot.lane.b32.xlu0 %v1809, 90
  %v1816 = vpop.permute.xlu0 %1815
  %v1817 = vsel %vm1182, %v1812, %v1814
  %v1818 = vsel %vm1182, %v1814, %v1816
  %v1820 = vsel %vm618, %v1801, 0
  %v1823 = vsel %vm329, %v1817, 0
  %v1826 = vsel %vm329, %v1818, 0
  %v1829 = vsel %vm329, %v1816, 0
  %1831 = vmatpush.bf16.msra.mxu0 0
  %1832 = vmatpush.bf16.msra.mxu0 0
  %1833 = vmatpush.bf16.msra.mxu0 0
  %1834 = vmatpush.bf16.msra.mxu0 0
  %1835 = vmatpush.bf16.msra.mxu0 0
  %1836 = vmatpush.bf16.msra.mxu0 0
  %1837 = vmatpush.bf16.msra.mxu0 0
  %1838 = vmatpush.bf16.msra.mxu0 %v1823
  %1839 = vmatmul.bf16.gmra.mxu0 %v1820
  %v1840 = vpop.f32.mrf.mxu0
  %v1841 = vadd.f32 0.0, %v1840
  %v1842 = vpop.f32.mrf.mxu0
  %1843 = vdwg.mxu0
  %1844 = vmatpush.bf16.msra.mxu0 0
  %1845 = vmatpush.bf16.msra.mxu0 0
  %1846 = vmatpush.bf16.msra.mxu0 0
  %1847 = vmatpush.bf16.msra.mxu0 0
  %1848 = vmatpush.bf16.msra.mxu0 0
  %1849 = vmatpush.bf16.msra.mxu0 0
  %1850 = vmatpush.bf16.msra.mxu0 0
  %1851 = vmatpush.bf16.msra.mxu0 %v1826
  %1852 = vmatmul.bf16.gmra.mxu0 %v1820
  %v1853 = vpop.f32.mrf.mxu0
  %v1854 = vadd.f32 0.0, %v1853
  %v1855 = vpop.f32.mrf.mxu0
  %1856 = vdwg.mxu0
  %1857 = vmatpush.bf16.msra.mxu0 0
  %1858 = vmatpush.bf16.msra.mxu0 0
  %1859 = vmatpush.bf16.msra.mxu0 0
  %1860 = vmatpush.bf16.msra.mxu0 0
  %1861 = vmatpush.bf16.msra.mxu0 0
  %1862 = vmatpush.bf16.msra.mxu0 0
  %1863 = vmatpush.bf16.msra.mxu0 0
  %1864 = vmatpush.bf16.msra.mxu0 %v1829
  %1865 = vmatmul.bf16.gmra.mxu0 %v1820
  %v1866 = vpop.f32.mrf.mxu0
  %v1867 = vadd.f32 0.0, %v1866
  %v1868 = vpop.f32.mrf.mxu0
  %1869 = vdwg.mxu0
  %v1870 = vadd.f32 %v1797, %v1841
  %v1871 = vadd.f32 %v1798, %v1854
  %v1872 = vadd.f32 %v1799, %v1867
  %v1873 = vadd.f32 %v1236, %v1870
  %v1874 = vadd.f32 %v1237, %v1871
  %v1875 = vadd.f32 %v1238, %v1872
  %s1876 = scalar_lea.vmem %s0, 6
  %v1877 = vld [vmem:[%s1876] sm:$0x3f]
  %1879 = vst [vmem:[#allocation1] ss:$4 sm:$0xff] %v1877
  %v1880 = vld.sshfl [vmem:[#allocation1] sm:$0xff pattern:$0x73625140]
  %v1882 = vld.sshfl [vmem:[#allocation1 + $0x8] sm:$0xff pattern:$0x73625140]
  %v1884 = vld.sshfl [vmem:[#allocation1 + $0x10] sm:$0xff pattern:$0x73625140]
  %1886 = vrot.lane.b32.xlu0 %v1880, 127
  %v1887 = vpop.permute.xlu0 %1886
  %1888 = vrot.lane.b32.xlu0 %v1882, 127
  %v1889 = vpop.permute.xlu0 %1888
  %1890 = vrot.lane.b32.xlu0 %v1884, 127
  %v1891 = vpop.permute.xlu0 %1890
  %v1892 = vsel %vm615, %v1887, %v1889
  %v1893 = vsel %vm615, %v1889, %v1891
  %v1895 = vsel %vm329, %v1892, 0
  %v1898 = vsel %vm329, %v1893, 0
  %v1901 = vsel %vm329, %v1891, 0
  %1903 = vmatpush.bf16.msra.mxu0 0
  %1904 = vmatpush.bf16.msra.mxu0 0
  %1905 = vmatpush.bf16.msra.mxu0 0
  %1906 = vmatpush.bf16.msra.mxu0 0
  %1907 = vmatpush.bf16.msra.mxu0 0
  %1908 = vmatpush.bf16.msra.mxu0 0
  %1909 = vmatpush.bf16.msra.mxu0 0
  %1910 = vmatpush.bf16.msra.mxu0 %v1895
  %1911 = vmatmul.bf16.gmra.mxu0 %v620
  %v1912 = vpop.f32.mrf.mxu0
  %v1913 = vadd.f32 0.0, %v1912
  %v1914 = vpop.f32.mrf.mxu0
  %1915 = vdwg.mxu0
  %1916 = vmatpush.bf16.msra.mxu0 0
  %1917 = vmatpush.bf16.msra.mxu0 0
  %1918 = vmatpush.bf16.msra.mxu0 0
  %1919 = vmatpush.bf16.msra.mxu0 0
  %1920 = vmatpush.bf16.msra.mxu0 0
  %1921 = vmatpush.bf16.msra.mxu0 0
  %1922 = vmatpush.bf16.msra.mxu0 0
  %1923 = vmatpush.bf16.msra.mxu0 %v1898
  %1924 = vmatmul.bf16.gmra.mxu0 %v620
  %v1925 = vpop.f32.mrf.mxu0
  %v1926 = vadd.f32 0.0, %v1925
  %v1927 = vpop.f32.mrf.mxu0
  %1928 = vdwg.mxu0
  %1929 = vmatpush.bf16.msra.mxu0 0
  %1930 = vmatpush.bf16.msra.mxu0 0
  %1931 = vmatpush.bf16.msra.mxu0 0
  %1932 = vmatpush.bf16.msra.mxu0 0
  %1933 = vmatpush.bf16.msra.mxu0 0
  %1934 = vmatpush.bf16.msra.mxu0 0
  %1935 = vmatpush.bf16.msra.mxu0 0
  %1936 = vmatpush.bf16.msra.mxu0 %v1901
  %1937 = vmatmul.bf16.gmra.mxu0 %v620
  %v1938 = vpop.f32.mrf.mxu0
  %v1939 = vadd.f32 0.0, %v1938
  %v1940 = vpop.f32.mrf.mxu0
  %1941 = vdwg.mxu0
  %1942 = vst [vmem:[#allocation1] ss:$4 sm:$0xff] %v1877
  %v1943 = vld.sshfl [vmem:[#allocation1] sm:$0xff pattern:$0x73625140]
  %v1944 = vld.sshfl [vmem:[#allocation1 + $0x8] sm:$0xff pattern:$0x73625140]
  %v1945 = vld.sshfl [vmem:[#allocation1 + $0x10] sm:$0xff pattern:$0x73625140]
  %v1946 = vsel %vm329, %v1943, 0
  %v1948 = vsel %vm329, %v1944, 0
  %v1950 = vsel %vm329, %v1945, 0
  %1952 = vmatpush.bf16.msra.mxu0 0
  %1953 = vmatpush.bf16.msra.mxu0 0
  %1954 = vmatpush.bf16.msra.mxu0 0
  %1955 = vmatpush.bf16.msra.mxu0 0
  %1956 = vmatpush.bf16.msra.mxu0 0
  %1957 = vmatpush.bf16.msra.mxu0 0
  %1958 = vmatpush.bf16.msra.mxu0 0
  %1959 = vmatpush.bf16.msra.mxu0 %v1946
  %1960 = vmatmul.bf16.gmra.mxu0 %v675
  %v1961 = vpop.f32.mrf.mxu0
  %v1962 = vadd.f32 %v1913, %v1961
  %v1963 = vpop.f32.mrf.mxu0
  %1964 = vdwg.mxu0
  %1965 = vmatpush.bf16.msra.mxu0 0
  %1966 = vmatpush.bf16.msra.mxu0 0
  %1967 = vmatpush.bf16.msra.mxu0 0
  %1968 = vmatpush.bf16.msra.mxu0 0
  %1969 = vmatpush.bf16.msra.mxu0 0
  %1970 = vmatpush.bf16.msra.mxu0 0
  %1971 = vmatpush.bf16.msra.mxu0 0
  %1972 = vmatpush.bf16.msra.mxu0 %v1948
  %1973 = vmatmul.bf16.gmra.mxu0 %v675
  %v1974 = vpop.f32.mrf.mxu0
  %v1975 = vadd.f32 %v1926, %v1974
  %v1976 = vpop.f32.mrf.mxu0
  %1977 = vdwg.mxu0
  %1978 = vmatpush.bf16.msra.mxu0 0
  %1979 = vmatpush.bf16.msra.mxu0 0
  %1980 = vmatpush.bf16.msra.mxu0 0
  %1981 = vmatpush.bf16.msra.mxu0 0
  %1982 = vmatpush.bf16.msra.mxu0 0
  %1983 = vmatpush.bf16.msra.mxu0 0
  %1984 = vmatpush.bf16.msra.mxu0 0
  %1985 = vmatpush.bf16.msra.mxu0 %v1950
  %1986 = vmatmul.bf16.gmra.mxu0 %v675
  %v1987 = vpop.f32.mrf.mxu0
  %v1988 = vadd.f32 %v1939, %v1987
  %v1989 = vpop.f32.mrf.mxu0
  %1990 = vdwg.mxu0
  %v1991 = vld [vmem:[%s1876] sm:$0x3f]
  %1993 = vst [vmem:[#allocation1] ss:$4 sm:$0xff] %v1991
  %v1994 = vld.sshfl [vmem:[#allocation1] sm:$0xff pattern:$0x73625140]
  %v1996 = vld.sshfl [vmem:[#allocation1 + $0x8] sm:$0xff pattern:$0x73625140]
  %v1998 = vld.sshfl [vmem:[#allocation1 + $0x10] sm:$0xff pattern:$0x73625140]
  %2000 = vrot.lane.b32.xlu0 %v1994, 126
  %v2001 = vpop.permute.xlu0 %2000
  %2002 = vrot.lane.b32.xlu0 %v1996, 126
  %v2003 = vpop.permute.xlu0 %2002
  %2004 = vrot.lane.b32.xlu0 %v1998, 126
  %v2005 = vpop.permute.xlu0 %2004
  %v2006 = vsel %vm739, %v2001, %v2003
  %v2007 = vsel %vm739, %v2003, %v2005
  %v2009 = vsel %vm329, %v2006, 0
  %v2012 = vsel %vm329, %v2007, 0
  %v2015 = vsel %vm329, %v2005, 0
  %2017 = vmatpush.bf16.msra.mxu0 0
  %2018 = vmatpush.bf16.msra.mxu0 0
  %2019 = vmatpush.bf16.msra.mxu0 0
  %2020 = vmatpush.bf16.msra.mxu0 0
  %2021 = vmatpush.bf16.msra.mxu0 0
  %2022 = vmatpush.bf16.msra.mxu0 0
  %2023 = vmatpush.bf16.msra.mxu0 0
  %2024 = vmatpush.bf16.msra.mxu0 %v2009
  %2025 = vmatmul.bf16.gmra.mxu0 %v743
  %v2026 = vpop.f32.mrf.mxu0
  %v2027 = vadd.f32 0.0, %v2026
  %v2028 = vpop.f32.mrf.mxu0
  %2029 = vdwg.mxu0
  %2030 = vmatpush.bf16.msra.mxu0 0
  %2031 = vmatpush.bf16.msra.mxu0 0
  %2032 = vmatpush.bf16.msra.mxu0 0
  %2033 = vmatpush.bf16.msra.mxu0 0
  %2034 = vmatpush.bf16.msra.mxu0 0
  %2035 = vmatpush.bf16.msra.mxu0 0
  %2036 = vmatpush.bf16.msra.mxu0 0
  %2037 = vmatpush.bf16.msra.mxu0 %v2012
  %2038 = vmatmul.bf16.gmra.mxu0 %v743
  %v2039 = vpop.f32.mrf.mxu0
  %v2040 = vadd.f32 0.0, %v2039
  %v2041 = vpop.f32.mrf.mxu0
  %2042 = vdwg.mxu0
  %2043 = vmatpush.bf16.msra.mxu0 0
  %2044 = vmatpush.bf16.msra.mxu0 0
  %2045 = vmatpush.bf16.msra.mxu0 0
  %2046 = vmatpush.bf16.msra.mxu0 0
  %2047 = vmatpush.bf16.msra.mxu0 0
  %2048 = vmatpush.bf16.msra.mxu0 0
  %2049 = vmatpush.bf16.msra.mxu0 0
  %2050 = vmatpush.bf16.msra.mxu0 %v2015
  %2051 = vmatmul.bf16.gmra.mxu0 %v743
  %v2052 = vpop.f32.mrf.mxu0
  %v2053 = vadd.f32 0.0, %v2052
  %v2054 = vpop.f32.mrf.mxu0
  %2055 = vdwg.mxu0
  %v2056 = vadd.f32 %v1962, %v2027
  %v2057 = vadd.f32 %v1975, %v2040
  %v2058 = vadd.f32 %v1988, %v2053
  %v2059 = vld [vmem:[%s1876] sm:$0x3f]
  %2061 = vst [vmem:[#allocation1] ss:$4 sm:$0xff] %v2059
  %v2062 = vld.sshfl [vmem:[#allocation1] sm:$0xff pattern:$0x73625140]
  %v2064 = vld.sshfl [vmem:[#allocation1 + $0x8] sm:$0xff pattern:$0x73625140]
  %v2066 = vld.sshfl [vmem:[#allocation1 + $0x10] sm:$0xff pattern:$0x73625140]
  %2068 = vrot.lane.b32.xlu0 %v2062, 110
  %v2069 = vpop.permute.xlu0 %2068
  %2070 = vrot.lane.b32.xlu0 %v2064, 110
  %v2071 = vpop.permute.xlu0 %2070
  %2072 = vrot.lane.b32.xlu0 %v2066, 110
  %v2073 = vpop.permute.xlu0 %2072
  %v2074 = vsel %vm813, %v2069, %v2071
  %v2075 = vsel %vm813, %v2071, %v2073
  %v2077 = vsel %vm329, %v2074, 0
  %v2080 = vsel %vm329, %v2075, 0
  %v2083 = vsel %vm329, %v2073, 0
  %2085 = vmatpush.bf16.msra.mxu0 0
  %2086 = vmatpush.bf16.msra.mxu0 0
  %2087 = vmatpush.bf16.msra.mxu0 0
  %2088 = vmatpush.bf16.msra.mxu0 0
  %2089 = vmatpush.bf16.msra.mxu0 0
  %2090 = vmatpush.bf16.msra.mxu0 0
  %2091 = vmatpush.bf16.msra.mxu0 0
  %2092 = vmatpush.bf16.msra.mxu0 %v2077
  %2093 = vmatmul.bf16.gmra.mxu0 %v817
  %v2094 = vpop.f32.mrf.mxu0
  %v2095 = vadd.f32 0.0, %v2094
  %v2096 = vpop.f32.mrf.mxu0
  %2097 = vdwg.mxu0
  %2098 = vmatpush.bf16.msra.mxu0 0
  %2099 = vmatpush.bf16.msra.mxu0 0
  %2100 = vmatpush.bf16.msra.mxu0 0
  %2101 = vmatpush.bf16.msra.mxu0 0
  %2102 = vmatpush.bf16.msra.mxu0 0
  %2103 = vmatpush.bf16.msra.mxu0 0
  %2104 = vmatpush.bf16.msra.mxu0 0
  %2105 = vmatpush.bf16.msra.mxu0 %v2080
  %2106 = vmatmul.bf16.gmra.mxu0 %v817
  %v2107 = vpop.f32.mrf.mxu0
  %v2108 = vadd.f32 0.0, %v2107
  %v2109 = vpop.f32.mrf.mxu0
  %2110 = vdwg.mxu0
  %2111 = vmatpush.bf16.msra.mxu0 0
  %2112 = vmatpush.bf16.msra.mxu0 0
  %2113 = vmatpush.bf16.msra.mxu0 0
  %2114 = vmatpush.bf16.msra.mxu0 0
  %2115 = vmatpush.bf16.msra.mxu0 0
  %2116 = vmatpush.bf16.msra.mxu0 0
  %2117 = vmatpush.bf16.msra.mxu0 0
  %2118 = vmatpush.bf16.msra.mxu0 %v2083
  %2119 = vmatmul.bf16.gmra.mxu0 %v817
  %v2120 = vpop.f32.mrf.mxu0
  %v2121 = vadd.f32 0.0, %v2120
  %v2122 = vpop.f32.mrf.mxu0
  %2123 = vdwg.mxu0
  %v2124 = vadd.f32 %v2056, %v2095
  %v2125 = vadd.f32 %v2057, %v2108
  %v2126 = vadd.f32 %v2058, %v2121
  %v2127 = vld [vmem:[%s1876] sm:$0x3f]
  %2129 = vst [vmem:[#allocation1] ss:$4 sm:$0xff] %v2127
  %v2130 = vld.sshfl [vmem:[#allocation1] sm:$0xff pattern:$0x73625140]
  %v2132 = vld.sshfl [vmem:[#allocation1 + $0x8] sm:$0xff pattern:$0x73625140]
  %v2134 = vld.sshfl [vmem:[#allocation1 + $0x10] sm:$0xff pattern:$0x73625140]
  %2136 = vrot.lane.b32.xlu0 %v2130, 109
  %v2137 = vpop.permute.xlu0 %2136
  %2138 = vrot.lane.b32.xlu0 %v2132, 109
  %v2139 = vpop.permute.xlu0 %2138
  %2140 = vrot.lane.b32.xlu0 %v2134, 109
  %v2141 = vpop.permute.xlu0 %2140
  %v2142 = vsel %vm72, %v2137, %v2139
  %v2143 = vsel %vm72, %v2139, %v2141
  %v2145 = vsel %vm329, %v2142, 0
  %v2148 = vsel %vm329, %v2143, 0
  %v2151 = vsel %vm329, %v2141, 0
  %2153 = vmatpush.bf16.msra.mxu0 0
  %2154 = vmatpush.bf16.msra.mxu0 0
  %2155 = vmatpush.bf16.msra.mxu0 0
  %2156 = vmatpush.bf16.msra.mxu0 0
  %2157 = vmatpush.bf16.msra.mxu0 0
  %2158 = vmatpush.bf16.msra.mxu0 0
  %2159 = vmatpush.bf16.msra.mxu0 0
  %2160 = vmatpush.bf16.msra.mxu0 %v2145
  %2161 = vmatmul.bf16.gmra.mxu0 %v890
  %v2162 = vpop.f32.mrf.mxu0
  %v2163 = vadd.f32 0.0, %v2162
  %v2164 = vpop.f32.mrf.mxu0
  %2165 = vdwg.mxu0
  %2166 = vmatpush.bf16.msra.mxu0 0
  %2167 = vmatpush.bf16.msra.mxu0 0
  %2168 = vmatpush.bf16.msra.mxu0 0
  %2169 = vmatpush.bf16.msra.mxu0 0
  %2170 = vmatpush.bf16.msra.mxu0 0
  %2171 = vmatpush.bf16.msra.mxu0 0
  %2172 = vmatpush.bf16.msra.mxu0 0
  %2173 = vmatpush.bf16.msra.mxu0 %v2148
  %2174 = vmatmul.bf16.gmra.mxu0 %v890
  %v2175 = vpop.f32.mrf.mxu0
  %v2176 = vadd.f32 0.0, %v2175
  %v2177 = vpop.f32.mrf.mxu0
  %2178 = vdwg.mxu0
  %2179 = vmatpush.bf16.msra.mxu0 0
  %2180 = vmatpush.bf16.msra.mxu0 0
  %2181 = vmatpush.bf16.msra.mxu0 0
  %2182 = vmatpush.bf16.msra.mxu0 0
  %2183 = vmatpush.bf16.msra.mxu0 0
  %2184 = vmatpush.bf16.msra.mxu0 0
  %2185 = vmatpush.bf16.msra.mxu0 0
  %2186 = vmatpush.bf16.msra.mxu0 %v2151
  %2187 = vmatmul.bf16.gmra.mxu0 %v890
  %v2188 = vpop.f32.mrf.mxu0
  %v2189 = vadd.f32 0.0, %v2188
  %v2190 = vpop.f32.mrf.mxu0
  %2191 = vdwg.mxu0
  %v2192 = vadd.f32 %v2124, %v2163
  %v2193 = vadd.f32 %v2125, %v2176
  %v2194 = vadd.f32 %v2126, %v2189
  %v2195 = vld [vmem:[%s1876] sm:$0x3f]
  %2197 = vst [vmem:[#allocation1] ss:$4 sm:$0xff] %v2195
  %v2198 = vld.sshfl [vmem:[#allocation1] sm:$0xff pattern:$0x73625140]
  %v2200 = vld.sshfl [vmem:[#allocation1 + $0x8] sm:$0xff pattern:$0x73625140]
  %v2202 = vld.sshfl [vmem:[#allocation1 + $0x10] sm:$0xff pattern:$0x73625140]
  %2204 = vrot.lane.b32.xlu0 %v2198, 108
  %v2205 = vpop.permute.xlu0 %2204
  %2206 = vrot.lane.b32.xlu0 %v2200, 108
  %v2207 = vpop.permute.xlu0 %2206
  %2208 = vrot.lane.b32.xlu0 %v2202, 108
  %v2209 = vpop.permute.xlu0 %2208
  %v2210 = vsel %vm960, %v2205, %v2207
  %v2211 = vsel %vm960, %v2207, %v2209
  %v2213 = vsel %vm329, %v2210, 0
  %v2216 = vsel %vm329, %v2211, 0
  %v2219 = vsel %vm329, %v2209, 0
  %2221 = vmatpush.bf16.msra.mxu0 0
  %2222 = vmatpush.bf16.msra.mxu0 0
  %2223 = vmatpush.bf16.msra.mxu0 0
  %2224 = vmatpush.bf16.msra.mxu0 0
  %2225 = vmatpush.bf16.msra.mxu0 0
  %2226 = vmatpush.bf16.msra.mxu0 0
  %2227 = vmatpush.bf16.msra.mxu0 0
  %2228 = vmatpush.bf16.msra.mxu0 %v2213
  %2229 = vmatmul.bf16.gmra.mxu0 %v964
  %v2230 = vpop.f32.mrf.mxu0
  %v2231 = vadd.f32 0.0, %v2230
  %v2232 = vpop.f32.mrf.mxu0
  %2233 = vdwg.mxu0
  %2234 = vmatpush.bf16.msra.mxu0 0
  %2235 = vmatpush.bf16.msra.mxu0 0
  %2236 = vmatpush.bf16.msra.mxu0 0
  %2237 = vmatpush.bf16.msra.mxu0 0
  %2238 = vmatpush.bf16.msra.mxu0 0
  %2239 = vmatpush.bf16.msra.mxu0 0
  %2240 = vmatpush.bf16.msra.mxu0 0
  %2241 = vmatpush.bf16.msra.mxu0 %v2216
  %2242 = vmatmul.bf16.gmra.mxu0 %v964
  %v2243 = vpop.f32.mrf.mxu0
  %v2244 = vadd.f32 0.0, %v2243
  %v2245 = vpop.f32.mrf.mxu0
  %2246 = vdwg.mxu0
  %2247 = vmatpush.bf16.msra.mxu0 0
  %2248 = vmatpush.bf16.msra.mxu0 0
  %2249 = vmatpush.bf16.msra.mxu0 0
  %2250 = vmatpush.bf16.msra.mxu0 0
  %2251 = vmatpush.bf16.msra.mxu0 0
  %2252 = vmatpush.bf16.msra.mxu0 0
  %2253 = vmatpush.bf16.msra.mxu0 0
  %2254 = vmatpush.bf16.msra.mxu0 %v2219
  %2255 = vmatmul.bf16.gmra.mxu0 %v964
  %v2256 = vpop.f32.mrf.mxu0
  %v2257 = vadd.f32 0.0, %v2256
  %v2258 = vpop.f32.mrf.mxu0
  %2259 = vdwg.mxu0
  %v2260 = vadd.f32 %v2192, %v2231
  %v2261 = vadd.f32 %v2193, %v2244
  %v2262 = vadd.f32 %v2194, %v2257
  %v2263 = vld [vmem:[%s1876] sm:$0x3f]
  %2265 = vst [vmem:[#allocation1] ss:$4 sm:$0xff] %v2263
  %v2266 = vld.sshfl [vmem:[#allocation1] sm:$0xff pattern:$0x73625140]
  %v2268 = vld.sshfl [vmem:[#allocation1 + $0x8] sm:$0xff pattern:$0x73625140]
  %v2270 = vld.sshfl [vmem:[#allocation1 + $0x10] sm:$0xff pattern:$0x73625140]
  %2272 = vrot.lane.b32.xlu0 %v2266, 92
  %v2273 = vpop.permute.xlu0 %2272
  %2274 = vrot.lane.b32.xlu0 %v2268, 92
  %v2275 = vpop.permute.xlu0 %2274
  %2276 = vrot.lane.b32.xlu0 %v2270, 92
  %v2277 = vpop.permute.xlu0 %2276
  %v2278 = vsel %vm1034, %v2273, %v2275
  %v2279 = vsel %vm1034, %v2275, %v2277
  %v2281 = vsel %vm329, %v2278, 0
  %v2284 = vsel %vm329, %v2279, 0
  %v2287 = vsel %vm329, %v2277, 0
  %2289 = vmatpush.bf16.msra.mxu0 0
  %2290 = vmatpush.bf16.msra.mxu0 0
  %2291 = vmatpush.bf16.msra.mxu0 0
  %2292 = vmatpush.bf16.msra.mxu0 0
  %2293 = vmatpush.bf16.msra.mxu0 0
  %2294 = vmatpush.bf16.msra.mxu0 0
  %2295 = vmatpush.bf16.msra.mxu0 0
  %2296 = vmatpush.bf16.msra.mxu0 %v2281
  %2297 = vmatmul.bf16.gmra.mxu0 %v1038
  %v2298 = vpop.f32.mrf.mxu0
  %v2299 = vadd.f32 0.0, %v2298
  %v2300 = vpop.f32.mrf.mxu0
  %2301 = vdwg.mxu0
  %2302 = vmatpush.bf16.msra.mxu0 0
  %2303 = vmatpush.bf16.msra.mxu0 0
  %2304 = vmatpush.bf16.msra.mxu0 0
  %2305 = vmatpush.bf16.msra.mxu0 0
  %2306 = vmatpush.bf16.msra.mxu0 0
  %2307 = vmatpush.bf16.msra.mxu0 0
  %2308 = vmatpush.bf16.msra.mxu0 0
  %2309 = vmatpush.bf16.msra.mxu0 %v2284
  %2310 = vmatmul.bf16.gmra.mxu0 %v1038
  %v2311 = vpop.f32.mrf.mxu0
  %v2312 = vadd.f32 0.0, %v2311
  %v2313 = vpop.f32.mrf.mxu0
  %2314 = vdwg.mxu0
  %2315 = vmatpush.bf16.msra.mxu0 0
  %2316 = vmatpush.bf16.msra.mxu0 0
  %2317 = vmatpush.bf16.msra.mxu0 0
  %2318 = vmatpush.bf16.msra.mxu0 0
  %2319 = vmatpush.bf16.msra.mxu0 0
  %2320 = vmatpush.bf16.msra.mxu0 0
  %2321 = vmatpush.bf16.msra.mxu0 0
  %2322 = vmatpush.bf16.msra.mxu0 %v2287
  %2323 = vmatmul.bf16.gmra.mxu0 %v1038
  %v2324 = vpop.f32.mrf.mxu0
  %v2325 = vadd.f32 0.0, %v2324
  %v2326 = vpop.f32.mrf.mxu0
  %2327 = vdwg.mxu0
  %v2328 = vadd.f32 %v2260, %v2299
  %v2329 = vadd.f32 %v2261, %v2312
  %v2330 = vadd.f32 %v2262, %v2325
  %v2331 = vld [vmem:[%s1876] sm:$0x3f]
  %2333 = vst [vmem:[#allocation1] ss:$4 sm:$0xff] %v2331
  %v2334 = vld.sshfl [vmem:[#allocation1] sm:$0xff pattern:$0x73625140]
  %v2336 = vld.sshfl [vmem:[#allocation1 + $0x8] sm:$0xff pattern:$0x73625140]
  %v2338 = vld.sshfl [vmem:[#allocation1 + $0x10] sm:$0xff pattern:$0x73625140]
  %2340 = vrot.lane.b32.xlu0 %v2334, 91
  %v2341 = vpop.permute.xlu0 %2340
  %2342 = vrot.lane.b32.xlu0 %v2336, 91
  %v2343 = vpop.permute.xlu0 %2342
  %2344 = vrot.lane.b32.xlu0 %v2338, 91
  %v2345 = vpop.permute.xlu0 %2344
  %v2346 = vsel %vm1108, %v2341, %v2343
  %v2347 = vsel %vm1108, %v2343, %v2345
  %v2349 = vsel %vm329, %v2346, 0
  %v2352 = vsel %vm329, %v2347, 0
  %v2355 = vsel %vm329, %v2345, 0
  %2357 = vmatpush.bf16.msra.mxu0 0
  %2358 = vmatpush.bf16.msra.mxu0 0
  %2359 = vmatpush.bf16.msra.mxu0 0
  %2360 = vmatpush.bf16.msra.mxu0 0
  %2361 = vmatpush.bf16.msra.mxu0 0
  %2362 = vmatpush.bf16.msra.mxu0 0
  %2363 = vmatpush.bf16.msra.mxu0 0
  %2364 = vmatpush.bf16.msra.mxu0 %v2349
  %2365 = vmatmul.bf16.gmra.mxu0 %v1112
  %v2366 = vpop.f32.mrf.mxu0
  %v2367 = vadd.f32 0.0, %v2366
  %v2368 = vpop.f32.mrf.mxu0
  %2369 = vdwg.mxu0
  %2370 = vmatpush.bf16.msra.mxu0 0
  %2371 = vmatpush.bf16.msra.mxu0 0
  %2372 = vmatpush.bf16.msra.mxu0 0
  %2373 = vmatpush.bf16.msra.mxu0 0
  %2374 = vmatpush.bf16.msra.mxu0 0
  %2375 = vmatpush.bf16.msra.mxu0 0
  %2376 = vmatpush.bf16.msra.mxu0 0
  %2377 = vmatpush.bf16.msra.mxu0 %v2352
  %2378 = vmatmul.bf16.gmra.mxu0 %v1112
  %v2379 = vpop.f32.mrf.mxu0
  %v2380 = vadd.f32 0.0, %v2379
  %v2381 = vpop.f32.mrf.mxu0
  %2382 = vdwg.mxu0
  %2383 = vmatpush.bf16.msra.mxu0 0
  %2384 = vmatpush.bf16.msra.mxu0 0
  %2385 = vmatpush.bf16.msra.mxu0 0
  %2386 = vmatpush.bf16.msra.mxu0 0
  %2387 = vmatpush.bf16.msra.mxu0 0
  %2388 = vmatpush.bf16.msra.mxu0 0
  %2389 = vmatpush.bf16.msra.mxu0 0
  %2390 = vmatpush.bf16.msra.mxu0 %v2355
  %2391 = vmatmul.bf16.gmra.mxu0 %v1112
  %v2392 = vpop.f32.mrf.mxu0
  %v2393 = vadd.f32 0.0, %v2392
  %v2394 = vpop.f32.mrf.mxu0
  %2395 = vdwg.mxu0
  %v2396 = vadd.f32 %v2328, %v2367
  %v2397 = vadd.f32 %v2329, %v2380
  %v2398 = vadd.f32 %v2330, %v2393
  %v2399 = vld [vmem:[%s1876] sm:$0x3f]
  %2401 = vst [vmem:[#allocation1] ss:$4 sm:$0xff] %v2399
  %v2402 = vld.sshfl [vmem:[#allocation1] sm:$0xff pattern:$0x73625140]
  %v2404 = vld.sshfl [vmem:[#allocation1 + $0x8] sm:$0xff pattern:$0x73625140]
  %v2406 = vld.sshfl [vmem:[#allocation1 + $0x10] sm:$0xff pattern:$0x73625140]
  %2408 = vrot.lane.b32.xlu0 %v2402, 90
  %v2409 = vpop.permute.xlu0 %2408
  %2410 = vrot.lane.b32.xlu0 %v2404, 90
  %v2411 = vpop.permute.xlu0 %2410
  %2412 = vrot.lane.b32.xlu0 %v2406, 90
  %v2413 = vpop.permute.xlu0 %2412
  %v2414 = vsel %vm1182, %v2409, %v2411
  %v2415 = vsel %vm1182, %v2411, %v2413
  %v2417 = vsel %vm329, %v2414, 0
  %v2420 = vsel %vm329, %v2415, 0
  %v2423 = vsel %vm329, %v2413, 0
  %2425 = vmatpush.bf16.msra.mxu0 0
  %2426 = vmatpush.bf16.msra.mxu0 0
  %2427 = vmatpush.bf16.msra.mxu0 0
  %2428 = vmatpush.bf16.msra.mxu0 0
  %2429 = vmatpush.bf16.msra.mxu0 0
  %2430 = vmatpush.bf16.msra.mxu0 0
  %2431 = vmatpush.bf16.msra.mxu0 0
  %2432 = vmatpush.bf16.msra.mxu0 %v2417
  %2433 = vmatmul.bf16.gmra.mxu0 %v1186
  %v2434 = vpop.f32.mrf.mxu0
  %v2435 = vadd.f32 0.0, %v2434
  %v2436 = vpop.f32.mrf.mxu0
  %2437 = vdwg.mxu0
  %2438 = vmatpush.bf16.msra.mxu0 0
  %2439 = vmatpush.bf16.msra.mxu0 0
  %2440 = vmatpush.bf16.msra.mxu0 0
  %2441 = vmatpush.bf16.msra.mxu0 0
  %2442 = vmatpush.bf16.msra.mxu0 0
  %2443 = vmatpush.bf16.msra.mxu0 0
  %2444 = vmatpush.bf16.msra.mxu0 0
  %2445 = vmatpush.bf16.msra.mxu0 %v2420
  %2446 = vmatmul.bf16.gmra.mxu0 %v1186
  %v2447 = vpop.f32.mrf.mxu0
  %v2448 = vadd.f32 0.0, %v2447
  %v2449 = vpop.f32.mrf.mxu0
  %2450 = vdwg.mxu0
  %2451 = vmatpush.bf16.msra.mxu0 0
  %2452 = vmatpush.bf16.msra.mxu0 0
  %2453 = vmatpush.bf16.msra.mxu0 0
  %2454 = vmatpush.bf16.msra.mxu0 0
  %2455 = vmatpush.bf16.msra.mxu0 0
  %2456 = vmatpush.bf16.msra.mxu0 0
  %2457 = vmatpush.bf16.msra.mxu0 0
  %2458 = vmatpush.bf16.msra.mxu0 %v2423
  %2459 = vmatmul.bf16.gmra.mxu0 %v1186
  %v2460 = vpop.f32.mrf.mxu0
  %v2461 = vadd.f32 0.0, %v2460
  %v2462 = vpop.f32.mrf.mxu0
  %2463 = vdwg.mxu0
  %v2464 = vadd.f32 %v2396, %v2435
  %v2465 = vadd.f32 %v2397, %v2448
  %v2466 = vadd.f32 %v2398, %v2461
  %v2467 = vld [vmem:[%s595] sm:$0x3f]
  %2469 = vst [vmem:[#allocation1] ss:$4 sm:$0xff] %v2467
  %v2470 = vld.sshfl [vmem:[#allocation1] sm:$0xff pattern:$0x73625140]
  %v2472 = vld.sshfl [vmem:[#allocation1 + $0x8] sm:$0xff pattern:$0x73625140]
  %v2474 = vld.sshfl [vmem:[#allocation1 + $0x10] sm:$0xff pattern:$0x73625140]
  %2476 = vrot.lane.b32.xlu0 %v2470, 127
  %v2477 = vpop.permute.xlu0 %2476
  %2478 = vrot.lane.b32.xlu0 %v2472, 127
  %v2479 = vpop.permute.xlu0 %2478
  %2480 = vrot.lane.b32.xlu0 %v2474, 127
  %v2481 = vpop.permute.xlu0 %2480
  %v2482 = vsel %vm615, %v2477, %v2479
  %v2483 = vsel %vm615, %v2479, %v2481
  %v2485 = vsel %vm329, %v2482, 0
  %v2488 = vsel %vm329, %v2483, 0
  %v2491 = vsel %vm329, %v2481, 0
  %2493 = vmatpush.bf16.msra.mxu0 0
  %2494 = vmatpush.bf16.msra.mxu0 0
  %2495 = vmatpush.bf16.msra.mxu0 0
  %2496 = vmatpush.bf16.msra.mxu0 0
  %2497 = vmatpush.bf16.msra.mxu0 0
  %2498 = vmatpush.bf16.msra.mxu0 0
  %2499 = vmatpush.bf16.msra.mxu0 0
  %2500 = vmatpush.bf16.msra.mxu0 %v2485
  %2501 = vmatmul.bf16.gmra.mxu0 %v1260
  %v2502 = vpop.f32.mrf.mxu0
  %v2503 = vadd.f32 0.0, %v2502
  %v2504 = vpop.f32.mrf.mxu0
  %2505 = vdwg.mxu0
  %2506 = vmatpush.bf16.msra.mxu0 0
  %2507 = vmatpush.bf16.msra.mxu0 0
  %2508 = vmatpush.bf16.msra.mxu0 0
  %2509 = vmatpush.bf16.msra.mxu0 0
  %2510 = vmatpush.bf16.msra.mxu0 0
  %2511 = vmatpush.bf16.msra.mxu0 0
  %2512 = vmatpush.bf16.msra.mxu0 0
  %2513 = vmatpush.bf16.msra.mxu0 %v2488
  %2514 = vmatmul.bf16.gmra.mxu0 %v1260
  %v2515 = vpop.f32.mrf.mxu0
  %v2516 = vadd.f32 0.0, %v2515
  %v2517 = vpop.f32.mrf.mxu0
  %2518 = vdwg.mxu0
  %2519 = vmatpush.bf16.msra.mxu0 0
  %2520 = vmatpush.bf16.msra.mxu0 0
  %2521 = vmatpush.bf16.msra.mxu0 0
  %2522 = vmatpush.bf16.msra.mxu0 0
  %2523 = vmatpush.bf16.msra.mxu0 0
  %2524 = vmatpush.bf16.msra.mxu0 0
  %2525 = vmatpush.bf16.msra.mxu0 0
  %2526 = vmatpush.bf16.msra.mxu0 %v2491
  %2527 = vmatmul.bf16.gmra.mxu0 %v1260
  %v2528 = vpop.f32.mrf.mxu0
  %v2529 = vadd.f32 0.0, %v2528
  %v2530 = vpop.f32.mrf.mxu0
  %2531 = vdwg.mxu0
  %2532 = vst [vmem:[#allocation1] ss:$4 sm:$0xff] %v2467
  %v2533 = vld.sshfl [vmem:[#allocation1] sm:$0xff pattern:$0x73625140]
  %v2534 = vld.sshfl [vmem:[#allocation1 + $0x8] sm:$0xff pattern:$0x73625140]
  %v2535 = vld.sshfl [vmem:[#allocation1 + $0x10] sm:$0xff pattern:$0x73625140]
  %v2536 = vsel %vm329, %v2533, 0
  %v2538 = vsel %vm329, %v2534, 0
  %v2540 = vsel %vm329, %v2535, 0
  %2542 = vmatpush.bf16.msra.mxu0 0
  %2543 = vmatpush.bf16.msra.mxu0 0
  %2544 = vmatpush.bf16.msra.mxu0 0
  %2545 = vmatpush.bf16.msra.mxu0 0
  %2546 = vmatpush.bf16.msra.mxu0 0
  %2547 = vmatpush.bf16.msra.mxu0 0
  %2548 = vmatpush.bf16.msra.mxu0 0
  %2549 = vmatpush.bf16.msra.mxu0 %v2536
  %2550 = vmatmul.bf16.gmra.mxu0 %v1315
  %v2551 = vpop.f32.mrf.mxu0
  %v2552 = vadd.f32 %v2503, %v2551
  %v2553 = vpop.f32.mrf.mxu0
  %2554 = vdwg.mxu0
  %2555 = vmatpush.bf16.msra.mxu0 0
  %2556 = vmatpush.bf16.msra.mxu0 0
  %2557 = vmatpush.bf16.msra.mxu0 0
  %2558 = vmatpush.bf16.msra.mxu0 0
  %2559 = vmatpush.bf16.msra.mxu0 0
  %2560 = vmatpush.bf16.msra.mxu0 0
  %2561 = vmatpush.bf16.msra.mxu0 0
  %2562 = vmatpush.bf16.msra.mxu0 %v2538
  %2563 = vmatmul.bf16.gmra.mxu0 %v1315
  %v2564 = vpop.f32.mrf.mxu0
  %v2565 = vadd.f32 %v2516, %v2564
  %v2566 = vpop.f32.mrf.mxu0
  %2567 = vdwg.mxu0
  %2568 = vmatpush.bf16.msra.mxu0 0
  %2569 = vmatpush.bf16.msra.mxu0 0
  %2570 = vmatpush.bf16.msra.mxu0 0
  %2571 = vmatpush.bf16.msra.mxu0 0
  %2572 = vmatpush.bf16.msra.mxu0 0
  %2573 = vmatpush.bf16.msra.mxu0 0
  %2574 = vmatpush.bf16.msra.mxu0 0
  %2575 = vmatpush.bf16.msra.mxu0 %v2540
  %2576 = vmatmul.bf16.gmra.mxu0 %v1315
  %v2577 = vpop.f32.mrf.mxu0
  %v2578 = vadd.f32 %v2529, %v2577
  %v2579 = vpop.f32.mrf.mxu0
  %2580 = vdwg.mxu0
  %v2581 = vld [vmem:[%s595] sm:$0x3f]
  %2583 = vst [vmem:[#allocation1] ss:$4 sm:$0xff] %v2581
  %v2584 = vld.sshfl [vmem:[#allocation1] sm:$0xff pattern:$0x73625140]
  %v2586 = vld.sshfl [vmem:[#allocation1 + $0x8] sm:$0xff pattern:$0x73625140]
  %v2588 = vld.sshfl [vmem:[#allocation1 + $0x10] sm:$0xff pattern:$0x73625140]
  %2590 = vrot.lane.b32.xlu0 %v2584, 126
  %v2591 = vpop.permute.xlu0 %2590
  %2592 = vrot.lane.b32.xlu0 %v2586, 126
  %v2593 = vpop.permute.xlu0 %2592
  %2594 = vrot.lane.b32.xlu0 %v2588, 126
  %v2595 = vpop.permute.xlu0 %2594
  %v2596 = vsel %vm739, %v2591, %v2593
  %v2597 = vsel %vm739, %v2593, %v2595
  %v2599 = vsel %vm329, %v2596, 0
  %v2602 = vsel %vm329, %v2597, 0
  %v2605 = vsel %vm329, %v2595, 0
  %2607 = vmatpush.bf16.msra.mxu0 0
  %2608 = vmatpush.bf16.msra.mxu0 0
  %2609 = vmatpush.bf16.msra.mxu0 0
  %2610 = vmatpush.bf16.msra.mxu0 0
  %2611 = vmatpush.bf16.msra.mxu0 0
  %2612 = vmatpush.bf16.msra.mxu0 0
  %2613 = vmatpush.bf16.msra.mxu0 0
  %2614 = vmatpush.bf16.msra.mxu0 %v2599
  %2615 = vmatmul.bf16.gmra.mxu0 %v1382
  %v2616 = vpop.f32.mrf.mxu0
  %v2617 = vadd.f32 0.0, %v2616
  %v2618 = vpop.f32.mrf.mxu0
  %2619 = vdwg.mxu0
  %2620 = vmatpush.bf16.msra.mxu0 0
  %2621 = vmatpush.bf16.msra.mxu0 0
  %2622 = vmatpush.bf16.msra.mxu0 0
  %2623 = vmatpush.bf16.msra.mxu0 0
  %2624 = vmatpush.bf16.msra.mxu0 0
  %2625 = vmatpush.bf16.msra.mxu0 0
  %2626 = vmatpush.bf16.msra.mxu0 0
  %2627 = vmatpush.bf16.msra.mxu0 %v2602
  %2628 = vmatmul.bf16.gmra.mxu0 %v1382
  %v2629 = vpop.f32.mrf.mxu0
  %v2630 = vadd.f32 0.0, %v2629
  %v2631 = vpop.f32.mrf.mxu0
  %2632 = vdwg.mxu0
  %2633 = vmatpush.bf16.msra.mxu0 0
  %2634 = vmatpush.bf16.msra.mxu0 0
  %2635 = vmatpush.bf16.msra.mxu0 0
  %2636 = vmatpush.bf16.msra.mxu0 0
  %2637 = vmatpush.bf16.msra.mxu0 0
  %2638 = vmatpush.bf16.msra.mxu0 0
  %2639 = vmatpush.bf16.msra.mxu0 0
  %2640 = vmatpush.bf16.msra.mxu0 %v2605
  %2641 = vmatmul.bf16.gmra.mxu0 %v1382
  %v2642 = vpop.f32.mrf.mxu0
  %v2643 = vadd.f32 0.0, %v2642
  %v2644 = vpop.f32.mrf.mxu0
  %2645 = vdwg.mxu0
  %v2646 = vadd.f32 %v2552, %v2617
  %v2647 = vadd.f32 %v2565, %v2630
  %v2648 = vadd.f32 %v2578, %v2643
  %v2649 = vld [vmem:[%s595] sm:$0x3f]
  %2651 = vst [vmem:[#allocation1] ss:$4 sm:$0xff] %v2649
  %v2652 = vld.sshfl [vmem:[#allocation1] sm:$0xff pattern:$0x73625140]
  %v2654 = vld.sshfl [vmem:[#allocation1 + $0x8] sm:$0xff pattern:$0x73625140]
  %v2656 = vld.sshfl [vmem:[#allocation1 + $0x10] sm:$0xff pattern:$0x73625140]
  %2658 = vrot.lane.b32.xlu0 %v2652, 110
  %v2659 = vpop.permute.xlu0 %2658
  %2660 = vrot.lane.b32.xlu0 %v2654, 110
  %v2661 = vpop.permute.xlu0 %2660
  %2662 = vrot.lane.b32.xlu0 %v2656, 110
  %v2663 = vpop.permute.xlu0 %2662
  %v2664 = vsel %vm813, %v2659, %v2661
  %v2665 = vsel %vm813, %v2661, %v2663
  %v2667 = vsel %vm329, %v2664, 0
  %v2670 = vsel %vm329, %v2665, 0
  %v2673 = vsel %vm329, %v2663, 0
  %2675 = vmatpush.bf16.msra.mxu0 0
  %2676 = vmatpush.bf16.msra.mxu0 0
  %2677 = vmatpush.bf16.msra.mxu0 0
  %2678 = vmatpush.bf16.msra.mxu0 0
  %2679 = vmatpush.bf16.msra.mxu0 0
  %2680 = vmatpush.bf16.msra.mxu0 0
  %2681 = vmatpush.bf16.msra.mxu0 0
  %2682 = vmatpush.bf16.msra.mxu0 %v2667
  %2683 = vmatmul.bf16.gmra.mxu0 %v1455
  %v2684 = vpop.f32.mrf.mxu0
  %v2685 = vadd.f32 0.0, %v2684
  %v2686 = vpop.f32.mrf.mxu0
  %2687 = vdwg.mxu0
  %2688 = vmatpush.bf16.msra.mxu0 0
  %2689 = vmatpush.bf16.msra.mxu0 0
  %2690 = vmatpush.bf16.msra.mxu0 0
  %2691 = vmatpush.bf16.msra.mxu0 0
  %2692 = vmatpush.bf16.msra.mxu0 0
  %2693 = vmatpush.bf16.msra.mxu0 0
  %2694 = vmatpush.bf16.msra.mxu0 0
  %2695 = vmatpush.bf16.msra.mxu0 %v2670
  %2696 = vmatmul.bf16.gmra.mxu0 %v1455
  %v2697 = vpop.f32.mrf.mxu0
  %v2698 = vadd.f32 0.0, %v2697
  %v2699 = vpop.f32.mrf.mxu0
  %2700 = vdwg.mxu0
  %2701 = vmatpush.bf16.msra.mxu0 0
  %2702 = vmatpush.bf16.msra.mxu0 0
  %2703 = vmatpush.bf16.msra.mxu0 0
  %2704 = vmatpush.bf16.msra.mxu0 0
  %2705 = vmatpush.bf16.msra.mxu0 0
  %2706 = vmatpush.bf16.msra.mxu0 0
  %2707 = vmatpush.bf16.msra.mxu0 0
  %2708 = vmatpush.bf16.msra.mxu0 %v2673
  %2709 = vmatmul.bf16.gmra.mxu0 %v1455
  %v2710 = vpop.f32.mrf.mxu0
  %v2711 = vadd.f32 0.0, %v2710
  %v2712 = vpop.f32.mrf.mxu0
  %2713 = vdwg.mxu0
  %v2714 = vadd.f32 %v2646, %v2685
  %v2715 = vadd.f32 %v2647, %v2698
  %v2716 = vadd.f32 %v2648, %v2711
  %v2717 = vld [vmem:[%s595] sm:$0x3f]
  %2719 = vst [vmem:[#allocation1] ss:$4 sm:$0xff] %v2717
  %v2720 = vld.sshfl [vmem:[#allocation1] sm:$0xff pattern:$0x73625140]
  %v2722 = vld.sshfl [vmem:[#allocation1 + $0x8] sm:$0xff pattern:$0x73625140]
  %v2724 = vld.sshfl [vmem:[#allocation1 + $0x10] sm:$0xff pattern:$0x73625140]
  %2726 = vrot.lane.b32.xlu0 %v2720, 109
  %v2727 = vpop.permute.xlu0 %2726
  %2728 = vrot.lane.b32.xlu0 %v2722, 109
  %v2729 = vpop.permute.xlu0 %2728
  %2730 = vrot.lane.b32.xlu0 %v2724, 109
  %v2731 = vpop.permute.xlu0 %2730
  %v2732 = vsel %vm72, %v2727, %v2729
  %v2733 = vsel %vm72, %v2729, %v2731
  %v2735 = vsel %vm329, %v2732, 0
  %v2738 = vsel %vm329, %v2733, 0
  %v2741 = vsel %vm329, %v2731, 0
  %2743 = vmatpush.bf16.msra.mxu0 0
  %2744 = vmatpush.bf16.msra.mxu0 0
  %2745 = vmatpush.bf16.msra.mxu0 0
  %2746 = vmatpush.bf16.msra.mxu0 0
  %2747 = vmatpush.bf16.msra.mxu0 0
  %2748 = vmatpush.bf16.msra.mxu0 0
  %2749 = vmatpush.bf16.msra.mxu0 0
  %2750 = vmatpush.bf16.msra.mxu0 %v2735
  %2751 = vmatmul.bf16.gmra.mxu0 %v1528
  %v2752 = vpop.f32.mrf.mxu0
  %v2753 = vadd.f32 0.0, %v2752
  %v2754 = vpop.f32.mrf.mxu0
  %2755 = vdwg.mxu0
  %2756 = vmatpush.bf16.msra.mxu0 0
  %2757 = vmatpush.bf16.msra.mxu0 0
  %2758 = vmatpush.bf16.msra.mxu0 0
  %2759 = vmatpush.bf16.msra.mxu0 0
  %2760 = vmatpush.bf16.msra.mxu0 0
  %2761 = vmatpush.bf16.msra.mxu0 0
  %2762 = vmatpush.bf16.msra.mxu0 0
  %2763 = vmatpush.bf16.msra.mxu0 %v2738
  %2764 = vmatmul.bf16.gmra.mxu0 %v1528
  %v2765 = vpop.f32.mrf.mxu0
  %v2766 = vadd.f32 0.0, %v2765
  %v2767 = vpop.f32.mrf.mxu0
  %2768 = vdwg.mxu0
  %2769 = vmatpush.bf16.msra.mxu0 0
  %2770 = vmatpush.bf16.msra.mxu0 0
  %2771 = vmatpush.bf16.msra.mxu0 0
  %2772 = vmatpush.bf16.msra.mxu0 0
  %2773 = vmatpush.bf16.msra.mxu0 0
  %2774 = vmatpush.bf16.msra.mxu0 0
  %2775 = vmatpush.bf16.msra.mxu0 0
  %2776 = vmatpush.bf16.msra.mxu0 %v2741
  %2777 = vmatmul.bf16.gmra.mxu0 %v1528
  %v2778 = vpop.f32.mrf.mxu0
  %v2779 = vadd.f32 0.0, %v2778
  %v2780 = vpop.f32.mrf.mxu0
  %2781 = vdwg.mxu0
  %v2782 = vadd.f32 %v2714, %v2753
  %v2783 = vadd.f32 %v2715, %v2766
  %v2784 = vadd.f32 %v2716, %v2779
  %v2785 = vld [vmem:[%s595] sm:$0x3f]
  %2787 = vst [vmem:[#allocation1] ss:$4 sm:$0xff] %v2785
  %v2788 = vld.sshfl [vmem:[#allocation1] sm:$0xff pattern:$0x73625140]
  %v2790 = vld.sshfl [vmem:[#allocation1 + $0x8] sm:$0xff pattern:$0x73625140]
  %v2792 = vld.sshfl [vmem:[#allocation1 + $0x10] sm:$0xff pattern:$0x73625140]
  %2794 = vrot.lane.b32.xlu0 %v2788, 108
  %v2795 = vpop.permute.xlu0 %2794
  %2796 = vrot.lane.b32.xlu0 %v2790, 108
  %v2797 = vpop.permute.xlu0 %2796
  %2798 = vrot.lane.b32.xlu0 %v2792, 108
  %v2799 = vpop.permute.xlu0 %2798
  %v2800 = vsel %vm960, %v2795, %v2797
  %v2801 = vsel %vm960, %v2797, %v2799
  %v2803 = vsel %vm329, %v2800, 0
  %v2806 = vsel %vm329, %v2801, 0
  %v2809 = vsel %vm329, %v2799, 0
  %2811 = vmatpush.bf16.msra.mxu0 0
  %2812 = vmatpush.bf16.msra.mxu0 0
  %2813 = vmatpush.bf16.msra.mxu0 0
  %2814 = vmatpush.bf16.msra.mxu0 0
  %2815 = vmatpush.bf16.msra.mxu0 0
  %2816 = vmatpush.bf16.msra.mxu0 0
  %2817 = vmatpush.bf16.msra.mxu0 0
  %2818 = vmatpush.bf16.msra.mxu0 %v2803
  %2819 = vmatmul.bf16.gmra.mxu0 %v1601
  %v2820 = vpop.f32.mrf.mxu0
  %v2821 = vadd.f32 0.0, %v2820
  %v2822 = vpop.f32.mrf.mxu0
  %2823 = vdwg.mxu0
  %2824 = vmatpush.bf16.msra.mxu0 0
  %2825 = vmatpush.bf16.msra.mxu0 0
  %2826 = vmatpush.bf16.msra.mxu0 0
  %2827 = vmatpush.bf16.msra.mxu0 0
  %2828 = vmatpush.bf16.msra.mxu0 0
  %2829 = vmatpush.bf16.msra.mxu0 0
  %2830 = vmatpush.bf16.msra.mxu0 0
  %2831 = vmatpush.bf16.msra.mxu0 %v2806
  %2832 = vmatmul.bf16.gmra.mxu0 %v1601
  %v2833 = vpop.f32.mrf.mxu0
  %v2834 = vadd.f32 0.0, %v2833
  %v2835 = vpop.f32.mrf.mxu0
  %2836 = vdwg.mxu0
  %2837 = vmatpush.bf16.msra.mxu0 0
  %2838 = vmatpush.bf16.msra.mxu0 0
  %2839 = vmatpush.bf16.msra.mxu0 0
  %2840 = vmatpush.bf16.msra.mxu0 0
  %2841 = vmatpush.bf16.msra.mxu0 0
  %2842 = vmatpush.bf16.msra.mxu0 0
  %2843 = vmatpush.bf16.msra.mxu0 0
  %2844 = vmatpush.bf16.msra.mxu0 %v2809
  %2845 = vmatmul.bf16.gmra.mxu0 %v1601
  %v2846 = vpop.f32.mrf.mxu0
  %v2847 = vadd.f32 0.0, %v2846
  %v2848 = vpop.f32.mrf.mxu0
  %2849 = vdwg.mxu0
  %v2850 = vadd.f32 %v2782, %v2821
  %v2851 = vadd.f32 %v2783, %v2834
  %v2852 = vadd.f32 %v2784, %v2847
  %v2853 = vld [vmem:[%s595] sm:$0x3f]
  %2855 = vst [vmem:[#allocation1] ss:$4 sm:$0xff] %v2853
  %v2856 = vld.sshfl [vmem:[#allocation1] sm:$0xff pattern:$0x73625140]
  %v2858 = vld.sshfl [vmem:[#allocation1 + $0x8] sm:$0xff pattern:$0x73625140]
  %v2860 = vld.sshfl [vmem:[#allocation1 + $0x10] sm:$0xff pattern:$0x73625140]
  %2862 = vrot.lane.b32.xlu0 %v2856, 92
  %v2863 = vpop.permute.xlu0 %2862
  %2864 = vrot.lane.b32.xlu0 %v2858, 92
  %v2865 = vpop.permute.xlu0 %2864
  %2866 = vrot.lane.b32.xlu0 %v2860, 92
  %v2867 = vpop.permute.xlu0 %2866
  %v2868 = vsel %vm1034, %v2863, %v2865
  %v2869 = vsel %vm1034, %v2865, %v2867
  %v2871 = vsel %vm329, %v2868, 0
  %v2874 = vsel %vm329, %v2869, 0
  %v2877 = vsel %vm329, %v2867, 0
  %2879 = vmatpush.bf16.msra.mxu0 0
  %2880 = vmatpush.bf16.msra.mxu0 0
  %2881 = vmatpush.bf16.msra.mxu0 0
  %2882 = vmatpush.bf16.msra.mxu0 0
  %2883 = vmatpush.bf16.msra.mxu0 0
  %2884 = vmatpush.bf16.msra.mxu0 0
  %2885 = vmatpush.bf16.msra.mxu0 0
  %2886 = vmatpush.bf16.msra.mxu0 %v2871
  %2887 = vmatmul.bf16.gmra.mxu0 %v1674
  %v2888 = vpop.f32.mrf.mxu0
  %v2889 = vadd.f32 0.0, %v2888
  %v2890 = vpop.f32.mrf.mxu0
  %2891 = vdwg.mxu0
  %2892 = vmatpush.bf16.msra.mxu0 0
  %2893 = vmatpush.bf16.msra.mxu0 0
  %2894 = vmatpush.bf16.msra.mxu0 0
  %2895 = vmatpush.bf16.msra.mxu0 0
  %2896 = vmatpush.bf16.msra.mxu0 0
  %2897 = vmatpush.bf16.msra.mxu0 0
  %2898 = vmatpush.bf16.msra.mxu0 0
  %2899 = vmatpush.bf16.msra.mxu0 %v2874
  %2900 = vmatmul.bf16.gmra.mxu0 %v1674
  %v2901 = vpop.f32.mrf.mxu0
  %v2902 = vadd.f32 0.0, %v2901
  %v2903 = vpop.f32.mrf.mxu0
  %2904 = vdwg.mxu0
  %2905 = vmatpush.bf16.msra.mxu0 0
  %2906 = vmatpush.bf16.msra.mxu0 0
  %2907 = vmatpush.bf16.msra.mxu0 0
  %2908 = vmatpush.bf16.msra.mxu0 0
  %2909 = vmatpush.bf16.msra.mxu0 0
  %2910 = vmatpush.bf16.msra.mxu0 0
  %2911 = vmatpush.bf16.msra.mxu0 0
  %2912 = vmatpush.bf16.msra.mxu0 %v2877
  %2913 = vmatmul.bf16.gmra.mxu0 %v1674
  %v2914 = vpop.f32.mrf.mxu0
  %v2915 = vadd.f32 0.0, %v2914
  %v2916 = vpop.f32.mrf.mxu0
  %2917 = vdwg.mxu0
  %v2918 = vadd.f32 %v2850, %v2889
  %v2919 = vadd.f32 %v2851, %v2902
  %v2920 = vadd.f32 %v2852, %v2915
  %v2921 = vld [vmem:[%s595] sm:$0x3f]
  %2923 = vst [vmem:[#allocation1] ss:$4 sm:$0xff] %v2921
  %v2924 = vld.sshfl [vmem:[#allocation1] sm:$0xff pattern:$0x73625140]
  %v2926 = vld.sshfl [vmem:[#allocation1 + $0x8] sm:$0xff pattern:$0x73625140]
  %v2928 = vld.sshfl [vmem:[#allocation1 + $0x10] sm:$0xff pattern:$0x73625140]
  %2930 = vrot.lane.b32.xlu0 %v2924, 91
  %v2931 = vpop.permute.xlu0 %2930
  %2932 = vrot.lane.b32.xlu0 %v2926, 91
  %v2933 = vpop.permute.xlu0 %2932
  %2934 = vrot.lane.b32.xlu0 %v2928, 91
  %v2935 = vpop.permute.xlu0 %2934
  %v2936 = vsel %vm1108, %v2931, %v2933
  %v2937 = vsel %vm1108, %v2933, %v2935
  %v2939 = vsel %vm329, %v2936, 0
  %v2942 = vsel %vm329, %v2937, 0
  %v2945 = vsel %vm329, %v2935, 0
  %2947 = vmatpush.bf16.msra.mxu0 0
  %2948 = vmatpush.bf16.msra.mxu0 0
  %2949 = vmatpush.bf16.msra.mxu0 0
  %2950 = vmatpush.bf16.msra.mxu0 0
  %2951 = vmatpush.bf16.msra.mxu0 0
  %2952 = vmatpush.bf16.msra.mxu0 0
  %2953 = vmatpush.bf16.msra.mxu0 0
  %2954 = vmatpush.bf16.msra.mxu0 %v2939
  %2955 = vmatmul.bf16.gmra.mxu0 %v1747
  %v2956 = vpop.f32.mrf.mxu0
  %v2957 = vadd.f32 0.0, %v2956
  %v2958 = vpop.f32.mrf.mxu0
  %2959 = vdwg.mxu0
  %2960 = vmatpush.bf16.msra.mxu0 0
  %2961 = vmatpush.bf16.msra.mxu0 0
  %2962 = vmatpush.bf16.msra.mxu0 0
  %2963 = vmatpush.bf16.msra.mxu0 0
  %2964 = vmatpush.bf16.msra.mxu0 0
  %2965 = vmatpush.bf16.msra.mxu0 0
  %2966 = vmatpush.bf16.msra.mxu0 0
  %2967 = vmatpush.bf16.msra.mxu0 %v2942
  %2968 = vmatmul.bf16.gmra.mxu0 %v1747
  %v2969 = vpop.f32.mrf.mxu0
  %v2970 = vadd.f32 0.0, %v2969
  %v2971 = vpop.f32.mrf.mxu0
  %2972 = vdwg.mxu0
  %2973 = vmatpush.bf16.msra.mxu0 0
  %2974 = vmatpush.bf16.msra.mxu0 0
  %2975 = vmatpush.bf16.msra.mxu0 0
  %2976 = vmatpush.bf16.msra.mxu0 0
  %2977 = vmatpush.bf16.msra.mxu0 0
  %2978 = vmatpush.bf16.msra.mxu0 0
  %2979 = vmatpush.bf16.msra.mxu0 0
  %2980 = vmatpush.bf16.msra.mxu0 %v2945
  %2981 = vmatmul.bf16.gmra.mxu0 %v1747
  %v2982 = vpop.f32.mrf.mxu0
  %v2983 = vadd.f32 0.0, %v2982
  %v2984 = vpop.f32.mrf.mxu0
  %2985 = vdwg.mxu0
  %v2986 = vadd.f32 %v2918, %v2957
  %v2987 = vadd.f32 %v2919, %v2970
  %v2988 = vadd.f32 %v2920, %v2983
  %v2989 = vld [vmem:[%s595] sm:$0x3f]
  %2991 = vst [vmem:[#allocation1] ss:$4 sm:$0xff] %v2989
  %v2992 = vld.sshfl [vmem:[#allocation1] sm:$0xff pattern:$0x73625140]
  %v2994 = vld.sshfl [vmem:[#allocation1 + $0x8] sm:$0xff pattern:$0x73625140]
  %v2996 = vld.sshfl [vmem:[#allocation1 + $0x10] sm:$0xff pattern:$0x73625140]
  %2998 = vrot.lane.b32.xlu0 %v2992, 90
  %v2999 = vpop.permute.xlu0 %2998
  %3000 = vrot.lane.b32.xlu0 %v2994, 90
  %v3001 = vpop.permute.xlu0 %3000
  %3002 = vrot.lane.b32.xlu0 %v2996, 90
  %v3003 = vpop.permute.xlu0 %3002
  %v3004 = vsel %vm1182, %v2999, %v3001
  %v3005 = vsel %vm1182, %v3001, %v3003
  %v3007 = vsel %vm329, %v3004, 0
  %v3010 = vsel %vm329, %v3005, 0
  %v3013 = vsel %vm329, %v3003, 0
  %3015 = vmatpush.bf16.msra.mxu0 0
  %3016 = vmatpush.bf16.msra.mxu0 0
  %3017 = vmatpush.bf16.msra.mxu0 0
  %3018 = vmatpush.bf16.msra.mxu0 0
  %3019 = vmatpush.bf16.msra.mxu0 0
  %3020 = vmatpush.bf16.msra.mxu0 0
  %3021 = vmatpush.bf16.msra.mxu0 0
  %3022 = vmatpush.bf16.msra.mxu0 %v3007
  %3023 = vmatmul.bf16.gmra.mxu0 %v1820
  %v3024 = vpop.f32.mrf.mxu0
  %v3025 = vadd.f32 0.0, %v3024
  %v3026 = vpop.f32.mrf.mxu0
  %3027 = vdwg.mxu0
  %3028 = vmatpush.bf16.msra.mxu0 0
  %3029 = vmatpush.bf16.msra.mxu0 0
  %3030 = vmatpush.bf16.msra.mxu0 0
  %3031 = vmatpush.bf16.msra.mxu0 0
  %3032 = vmatpush.bf16.msra.mxu0 0
  %3033 = vmatpush.bf16.msra.mxu0 0
  %3034 = vmatpush.bf16.msra.mxu0 0
  %3035 = vmatpush.bf16.msra.mxu0 %v3010
  %3036 = vmatmul.bf16.gmra.mxu0 %v1820
  %v3037 = vpop.f32.mrf.mxu0
  %v3038 = vadd.f32 0.0, %v3037
  %v3039 = vpop.f32.mrf.mxu0
  %3040 = vdwg.mxu0
  %3041 = vmatpush.bf16.msra.mxu0 0
  %3042 = vmatpush.bf16.msra.mxu0 0
  %3043 = vmatpush.bf16.msra.mxu0 0
  %3044 = vmatpush.bf16.msra.mxu0 0
  %3045 = vmatpush.bf16.msra.mxu0 0
  %3046 = vmatpush.bf16.msra.mxu0 0
  %3047 = vmatpush.bf16.msra.mxu0 0
  %3048 = vmatpush.bf16.msra.mxu0 %v3013
  %3049 = vmatmul.bf16.gmra.mxu0 %v1820
  %v3050 = vpop.f32.mrf.mxu0
  %v3051 = vadd.f32 0.0, %v3050
  %v3052 = vpop.f32.mrf.mxu0
  %3053 = vdwg.mxu0
  %v3054 = vadd.f32 %v2986, %v3025
  %v3055 = vadd.f32 %v2987, %v3038
  %v3056 = vadd.f32 %v2988, %v3051
  %v3057 = vadd.f32 %v2464, %v3054
  %v3058 = vadd.f32 %v2465, %v3055
  %v3059 = vadd.f32 %v2466, %v3056
  %v3061 = vperm.slane %v42, 0
  %v3062 = vperm.slane %v42, 1
  %v3063 = vperm.slane %v42, 2
  %v3067 = vmul.f32 %v1873, %v3061
  %v3068 = vmul.f32 %v1874, %v3062
  %v3069 = vmul.f32 %v1875, %v3063
  %v3070 = vsel %vm79, %v3067, 0.0
  %v3071 = vsel %vm79, %v3068, 0.0
  %v3072 = vadd.f32 %v3070, %v3071
  %vm3073 = vcmask 551936
  %v3074 = vsel %vm3073, %v3069, 0.0
  %v3075 = vadd.f32 %v3072, %v3074
  %3076 = vadd.xlane.f32.xlu0 %v3075
  %v3077 = vpop.xlane.xlu0 %3076
  %v3078 = vadd.f32 %v3077, 0.0
  %v3079 = vmul.f32 %v3057, %v3061
  %v3080 = vmul.f32 %v3058, %v3062
  %v3081 = vmul.f32 %v3059, %v3063
  %v3082 = vsel %vm79, %v3079, 0.0
  %v3083 = vsel %vm79, %v3080, 0.0
  %v3084 = vadd.f32 %v3082, %v3083
  %v3085 = vsel %vm3073, %v3081, 0.0
  %v3086 = vadd.f32 %v3084, %v3085
  %3087 = vadd.xlane.f32.xlu0 %v3086
  %v3088 = vpop.xlane.xlu0 %3087
  %v3089 = vadd.f32 %v3078, %v3088
  %v3090 = vrcp.pop 512.0
  %v3091 = vmul.f32 512.0, %v3090
  %v3092 = vsub.f32 1.0, %v3091
  %v3093 = vmul.f32 %v3090, %v3092
  %v3094 = vadd.f32 %v3090, %v3093
  %vm3095 = vweird.f32 %v3090
  %v3096 = vsel %vm3095, %v3090, %v3094
  %v3097 = vmul.f32 %v3089, %v3096
  %v3098 = vsub.f32 %v1873, %v3097
  %v3099 = vsub.f32 %v1874, %v3097
  %v3100 = vsub.f32 %v1875, %v3097
  %v3101 = vmul.f32 %v3098, %v3098
  %v3102 = vmul.f32 %v3099, %v3099
  %v3103 = vmul.f32 %v3100, %v3100
  %v3104 = vmul.f32 %v3061, %v3101
  %v3105 = vmul.f32 %v3062, %v3102
  %v3106 = vmul.f32 %v3063, %v3103
  %v3107 = vsel %vm79, %v3104, 0.0
  %v3108 = vsel %vm79, %v3105, 0.0
  %v3109 = vadd.f32 %v3107, %v3108
  %v3110 = vsel %vm3073, %v3106, 0.0
  %v3111 = vadd.f32 %v3109, %v3110
  %3112 = vadd.xlane.f32.xlu0 %v3111
  %v3113 = vpop.xlane.xlu0 %3112
  %v3114 = vadd.f32 %v3113, 0.0
  %v3115 = vsub.f32 %v3057, %v3097
  %v3116 = vsub.f32 %v3058, %v3097
  %v3117 = vsub.f32 %v3059, %v3097
  %v3118 = vmul.f32 %v3115, %v3115
  %v3119 = vmul.f32 %v3116, %v3116
  %v3120 = vmul.f32 %v3117, %v3117
  %v3121 = vmul.f32 %v3061, %v3118
  %v3122 = vmul.f32 %v3062, %v3119
  %v3123 = vmul.f32 %v3063, %v3120
  %v3124 = vsel %vm79, %v3121, 0.0
  %v3125 = vsel %vm79, %v3122, 0.0
  %v3126 = vadd.f32 %v3124, %v3125
  %v3127 = vsel %vm3073, %v3123, 0.0
  %v3128 = vadd.f32 %v3126, %v3127
  %3129 = vadd.xlane.f32.xlu0 %v3128
  %v3130 = vpop.xlane.xlu0 %3129
  %v3131 = vadd.f32 %v3114, %v3130
  %v3132 = vmul.f32 %v3131, %v3096
  %v3133 = vld [vmem:[%s7] sm:$0xf]
  %v3134 = vadd.f32 %v3132, 1e-05
  %v3135 = vrsqrt.pop %v3134
  %v3136 = vmul.f32 %v3135, %v3134
  %v3137 = vmul.f32 %v3136, %v3135
  %v3138 = vmul.f32 0.5, %v3137
  %v3139 = vsub.f32 1.5, %v3138
  %v3140 = vmul.f32 %v3135, %v3139
  %vm3141 = vweird.f32 %v3134
  %vm3142 = vweird.f32 %v3135
  %vm3143 = vmor %vm3141, %vm3142
  %v3144 = vsel %vm3143, %v3135, %v3140
  %v3145 = vmul.f32 %v3133, %v3144
  %v3146 = vld [vmem:[%s8] sm:$0xf]
  %v3147 = vmul.f32 %v3097, %v3145
  %v3148 = vsub.f32 %v3146, %v3147
  %3150 = vset.pattern.permute.xlu0 0
  %3151 = vperm.xlu0 %3150, %v3145
  %v3152 = vpop.permute.xlu0 %3151
  %v3154 = vmul.f32 %v1873, %v3152
  %v3155 = vmul.f32 %v1874, %v3152
  %v3156 = vmul.f32 %v1875, %v3152
  %3158 = vset.pattern.permute.xlu0 0
  %3159 = vperm.xlu0 %3158, %v3148
  %v3160 = vpop.permute.xlu0 %3159
  %v3162 = vadd.f32 %v3154, %v3160
  %v3163 = vadd.f32 %v3155, %v3160
  %v3164 = vadd.f32 %v3156, %v3160
  %v3165 = vmax.f32 %v3162, 0.0
  %v3166 = vmax.f32 %v3163, 0.0
  %v3167 = vmax.f32 %v3164, 0.0
  %v3168 = vmul.f32 %v3061, %v3165
  %v3169 = vmul.f32 %v3062, %v3166
  %v3170 = vmul.f32 %v3063, %v3167
  %v3171 = vmul.f32 %v3057, %v3152
  %v3172 = vmul.f32 %v3058, %v3152
  %v3173 = vmul.f32 %v3059, %v3152
  %v3174 = vadd.f32 %v3171, %v3160
  %v3175 = vadd.f32 %v3172, %v3160
  %v3176 = vadd.f32 %v3173, %v3160
  %v3177 = vmax.f32 %v3174, 0.0
  %v3178 = vmax.f32 %v3175, 0.0
  %v3179 = vmax.f32 %v3176, 0.0
  %v3180 = vmul.f32 %v3061, %v3177
  %v3181 = vmul.f32 %v3062, %v3178
  %v3182 = vmul.f32 %v3063, %v3179
  %v3183 = vpack.c.bf16 %v3169, %v3168
  %v3184 = vpack.c.bf16 %v3170, %v3170
  %v3187 = vrot.slane %v3183, 2
  %v3188 = vrot.slane %v3184, 4
  %v3189 = vrot.slane %v3184, 6
  %v3192 = vsel %vm329, %v3183, %v3187
  %v3195 = vsel %vm333, %v3188, %v3189
  %v3196 = vsel %vm79, %v3192, %v3195
  %3198 = vrot.lane.b32.xlu0 %v3196, 19
  %v3199 = vpop.permute.xlu0 %3198
  %v3200 = vrot.slane %v3199, 6
  %v3201 = vsel %vm342, %v3200, %v3199
  %3203 = vst.msk [vmem:[#allocation3] sm:$0x3f] %vm349, %v3201
  %v3204 = vpack.c.bf16 %v3181, %v3180
  %v3205 = vpack.c.bf16 %v3182, %v3182
  %v3208 = vrot.slane %v3204, 2
  %v3209 = vrot.slane %v3205, 4
  %v3210 = vrot.slane %v3205, 6
  %v3213 = vsel %vm329, %v3204, %v3208
  %v3216 = vsel %vm333, %v3209, %v3210
  %v3217 = vsel %vm79, %v3213, %v3216
  %3219 = vrot.lane.b32.xlu0 %v3217, 19
  %v3220 = vpop.permute.xlu0 %3219
  %v3221 = vrot.slane %v3220, 6
  %v3222 = vsel %vm342, %v3221, %v3220
  %s3224 = scalar_lea.vmem [#allocation3], 6
  %3225 = vst.msk [vmem:[%s3224] sm:$0x3f] %vm349, %v3222
  %v3226 = vld [vmem:[%s9] sm:$0x3]
  %v3227 = vld [vmem:[#allocation3] sm:$0x3f]
  %s3228 = scalar_lea.vmem %s9, 2
  %v3229 = vld [vmem:[%s3228] sm:$0x3]
  %3231 = vst [vmem:[#allocation1] ss:$4 sm:$0xff] %v3227
  %v3232 = vld.sshfl [vmem:[#allocation1] sm:$0xff pattern:$0x73625140]
  %v3234 = vld.sshfl [vmem:[#allocation1 + $0x8] sm:$0xff pattern:$0x73625140]
  %v3236 = vld.sshfl [vmem:[#allocation1 + $0x10] sm:$0xff pattern:$0x73625140]
  %3238 = vrot.lane.b32.xlu0 %v3232, 127
  %v3239 = vpop.permute.xlu0 %3238
  %3240 = vrot.lane.b32.xlu0 %v3234, 127
  %v3241 = vpop.permute.xlu0 %3240
  %3242 = vrot.lane.b32.xlu0 %v3236, 127
  %v3243 = vpop.permute.xlu0 %3242
  %v3244 = vsel %vm615, %v3239, %v3241
  %v3245 = vsel %vm615, %v3241, %v3243
  %v3247 = vsel %vm618, %v3229, 0
  %v3250 = vsel %vm329, %v3244, 0
  %v3253 = vsel %vm329, %v3245, 0
  %v3256 = vsel %vm329, %v3243, 0
  %3258 = vmatpush.bf16.msra.mxu0 0
  %3259 = vmatpush.bf16.msra.mxu0 0
  %3260 = vmatpush.bf16.msra.mxu0 0
  %3261 = vmatpush.bf16.msra.mxu0 0
  %3262 = vmatpush.bf16.msra.mxu0 0
  %3263 = vmatpush.bf16.msra.mxu0 0
  %3264 = vmatpush.bf16.msra.mxu0 0
  %3265 = vmatpush.bf16.msra.mxu0 %v3250
  %3266 = vmatmul.bf16.gmra.mxu0 %v3247
  %v3267 = vpop.f32.mrf.mxu0
  %v3268 = vadd.f32 0.0, %v3267
  %v3269 = vpop.f32.mrf.mxu0
  %3270 = vdwg.mxu0
  %3271 = vmatpush.bf16.msra.mxu0 0
  %3272 = vmatpush.bf16.msra.mxu0 0
  %3273 = vmatpush.bf16.msra.mxu0 0
  %3274 = vmatpush.bf16.msra.mxu0 0
  %3275 = vmatpush.bf16.msra.mxu0 0
  %3276 = vmatpush.bf16.msra.mxu0 0
  %3277 = vmatpush.bf16.msra.mxu0 0
  %3278 = vmatpush.bf16.msra.mxu0 %v3253
  %3279 = vmatmul.bf16.gmra.mxu0 %v3247
  %v3280 = vpop.f32.mrf.mxu0
  %v3281 = vadd.f32 0.0, %v3280
  %v3282 = vpop.f32.mrf.mxu0
  %3283 = vdwg.mxu0
  %3284 = vmatpush.bf16.msra.mxu0 0
  %3285 = vmatpush.bf16.msra.mxu0 0
  %3286 = vmatpush.bf16.msra.mxu0 0
  %3287 = vmatpush.bf16.msra.mxu0 0
  %3288 = vmatpush.bf16.msra.mxu0 0
  %3289 = vmatpush.bf16.msra.mxu0 0
  %3290 = vmatpush.bf16.msra.mxu0 0
  %3291 = vmatpush.bf16.msra.mxu0 %v3256
  %3292 = vmatmul.bf16.gmra.mxu0 %v3247
  %v3293 = vpop.f32.mrf.mxu0
  %v3294 = vadd.f32 0.0, %v3293
  %v3295 = vpop.f32.mrf.mxu0
  %3296 = vdwg.mxu0
  %3297 = vst [vmem:[#allocation1] ss:$4 sm:$0xff] %v3227
  %v3298 = vld.sshfl [vmem:[#allocation1] sm:$0xff pattern:$0x73625140]
  %v3299 = vld.sshfl [vmem:[#allocation1 + $0x8] sm:$0xff pattern:$0x73625140]
  %v3300 = vld.sshfl [vmem:[#allocation1 + $0x10] sm:$0xff pattern:$0x73625140]
  %v3302 = vsel %vm618, %v3226, 0
  %v3304 = vsel %vm329, %v3298, 0
  %v3306 = vsel %vm329, %v3299, 0
  %v3308 = vsel %vm329, %v3300, 0
  %3310 = vmatpush.bf16.msra.mxu0 0
  %3311 = vmatpush.bf16.msra.mxu0 0
  %3312 = vmatpush.bf16.msra.mxu0 0
  %3313 = vmatpush.bf16.msra.mxu0 0
  %3314 = vmatpush.bf16.msra.mxu0 0
  %3315 = vmatpush.bf16.msra.mxu0 0
  %3316 = vmatpush.bf16.msra.mxu0 0
  %3317 = vmatpush.bf16.msra.mxu0 %v3304
  %3318 = vmatmul.bf16.gmra.mxu0 %v3302
  %v3319 = vpop.f32.mrf.mxu0
  %v3320 = vadd.f32 %v3268, %v3319
  %v3321 = vpop.f32.mrf.mxu0
  %3322 = vdwg.mxu0
  %3323 = vmatpush.bf16.msra.mxu0 0
  %3324 = vmatpush.bf16.msra.mxu0 0
  %3325 = vmatpush.bf16.msra.mxu0 0
  %3326 = vmatpush.bf16.msra.mxu0 0
  %3327 = vmatpush.bf16.msra.mxu0 0
  %3328 = vmatpush.bf16.msra.mxu0 0
  %3329 = vmatpush.bf16.msra.mxu0 0
  %3330 = vmatpush.bf16.msra.mxu0 %v3306
  %3331 = vmatmul.bf16.gmra.mxu0 %v3302
  %v3332 = vpop.f32.mrf.mxu0
  %v3333 = vadd.f32 %v3281, %v3332
  %v3334 = vpop.f32.mrf.mxu0
  %3335 = vdwg.mxu0
  %3336 = vmatpush.bf16.msra.mxu0 0
  %3337 = vmatpush.bf16.msra.mxu0 0
  %3338 = vmatpush.bf16.msra.mxu0 0
  %3339 = vmatpush.bf16.msra.mxu0 0
  %3340 = vmatpush.bf16.msra.mxu0 0
  %3341 = vmatpush.bf16.msra.mxu0 0
  %3342 = vmatpush.bf16.msra.mxu0 0
  %3343 = vmatpush.bf16.msra.mxu0 %v3308
  %3344 = vmatmul.bf16.gmra.mxu0 %v3302
  %v3345 = vpop.f32.mrf.mxu0
  %v3346 = vadd.f32 %v3294, %v3345
  %v3347 = vpop.f32.mrf.mxu0
  %3348 = vdwg.mxu0
  %s3349 = scalar_lea.vmem %s9, 4
  %v3350 = vld [vmem:[%s3349] sm:$0x3]
  %v3351 = vld [vmem:[#allocation3] sm:$0x3f]
  %3353 = vst [vmem:[#allocation1] ss:$4 sm:$0xff] %v3351
  %v3354 = vld.sshfl [vmem:[#allocation1] sm:$0xff pattern:$0x73625140]
  %v3356 = vld.sshfl [vmem:[#allocation1 + $0x8] sm:$0xff pattern:$0x73625140]
  %v3358 = vld.sshfl [vmem:[#allocation1 + $0x10] sm:$0xff pattern:$0x73625140]
  %3360 = vrot.lane.b32.xlu0 %v3354, 126
  %v3361 = vpop.permute.xlu0 %3360
  %3362 = vrot.lane.b32.xlu0 %v3356, 126
  %v3363 = vpop.permute.xlu0 %3362
  %3364 = vrot.lane.b32.xlu0 %v3358, 126
  %v3365 = vpop.permute.xlu0 %3364
  %v3366 = vsel %vm739, %v3361, %v3363
  %v3367 = vsel %vm739, %v3363, %v3365
  %v3369 = vsel %vm618, %v3350, 0
  %v3372 = vsel %vm329, %v3366, 0
  %v3375 = vsel %vm329, %v3367, 0
  %v3378 = vsel %vm329, %v3365, 0
  %3380 = vmatpush.bf16.msra.mxu0 0
  %3381 = vmatpush.bf16.msra.mxu0 0
  %3382 = vmatpush.bf16.msra.mxu0 0
  %3383 = vmatpush.bf16.msra.mxu0 0
  %3384 = vmatpush.bf16.msra.mxu0 0
  %3385 = vmatpush.bf16.msra.mxu0 0
  %3386 = vmatpush.bf16.msra.mxu0 0
  %3387 = vmatpush.bf16.msra.mxu0 %v3372
  %3388 = vmatmul.bf16.gmra.mxu0 %v3369
  %v3389 = vpop.f32.mrf.mxu0
  %v3390 = vadd.f32 0.0, %v3389
  %v3391 = vpop.f32.mrf.mxu0
  %3392 = vdwg.mxu0
  %3393 = vmatpush.bf16.msra.mxu0 0
  %3394 = vmatpush.bf16.msra.mxu0 0
  %3395 = vmatpush.bf16.msra.mxu0 0
  %3396 = vmatpush.bf16.msra.mxu0 0
  %3397 = vmatpush.bf16.msra.mxu0 0
  %3398 = vmatpush.bf16.msra.mxu0 0
  %3399 = vmatpush.bf16.msra.mxu0 0
  %3400 = vmatpush.bf16.msra.mxu0 %v3375
  %3401 = vmatmul.bf16.gmra.mxu0 %v3369
  %v3402 = vpop.f32.mrf.mxu0
  %v3403 = vadd.f32 0.0, %v3402
  %v3404 = vpop.f32.mrf.mxu0
  %3405 = vdwg.mxu0
  %3406 = vmatpush.bf16.msra.mxu0 0
  %3407 = vmatpush.bf16.msra.mxu0 0
  %3408 = vmatpush.bf16.msra.mxu0 0
  %3409 = vmatpush.bf16.msra.mxu0 0
  %3410 = vmatpush.bf16.msra.mxu0 0
  %3411 = vmatpush.bf16.msra.mxu0 0
  %3412 = vmatpush.bf16.msra.mxu0 0
  %3413 = vmatpush.bf16.msra.mxu0 %v3378
  %3414 = vmatmul.bf16.gmra.mxu0 %v3369
  %v3415 = vpop.f32.mrf.mxu0
  %v3416 = vadd.f32 0.0, %v3415
  %v3417 = vpop.f32.mrf.mxu0
  %3418 = vdwg.mxu0
  %v3419 = vadd.f32 %v3320, %v3390
  %v3420 = vadd.f32 %v3333, %v3403
  %v3421 = vadd.f32 %v3346, %v3416
  %s3422 = scalar_lea.vmem %s9, 6
  %v3423 = vld [vmem:[%s3422] sm:$0x3]
  %v3424 = vld [vmem:[#allocation3] sm:$0x3f]
  %3426 = vst [vmem:[#allocation1] ss:$4 sm:$0xff] %v3424
  %v3427 = vld.sshfl [vmem:[#allocation1] sm:$0xff pattern:$0x73625140]
  %v3429 = vld.sshfl [vmem:[#allocation1 + $0x8] sm:$0xff pattern:$0x73625140]
  %v3431 = vld.sshfl [vmem:[#allocation1 + $0x10] sm:$0xff pattern:$0x73625140]
  %3433 = vrot.lane.b32.xlu0 %v3427, 110
  %v3434 = vpop.permute.xlu0 %3433
  %3435 = vrot.lane.b32.xlu0 %v3429, 110
  %v3436 = vpop.permute.xlu0 %3435
  %3437 = vrot.lane.b32.xlu0 %v3431, 110
  %v3438 = vpop.permute.xlu0 %3437
  %v3439 = vsel %vm813, %v3434, %v3436
  %v3440 = vsel %vm813, %v3436, %v3438
  %v3442 = vsel %vm618, %v3423, 0
  %v3445 = vsel %vm329, %v3439, 0
  %v3448 = vsel %vm329, %v3440, 0
  %v3451 = vsel %vm329, %v3438, 0
  %3453 = vmatpush.bf16.msra.mxu0 0
  %3454 = vmatpush.bf16.msra.mxu0 0
  %3455 = vmatpush.bf16.msra.mxu0 0
  %3456 = vmatpush.bf16.msra.mxu0 0
  %3457 = vmatpush.bf16.msra.mxu0 0
  %3458 = vmatpush.bf16.msra.mxu0 0
  %3459 = vmatpush.bf16.msra.mxu0 0
  %3460 = vmatpush.bf16.msra.mxu0 %v3445
  %3461 = vmatmul.bf16.gmra.mxu0 %v3442
  %v3462 = vpop.f32.mrf.mxu0
  %v3463 = vadd.f32 0.0, %v3462
  %v3464 = vpop.f32.mrf.mxu0
  %3465 = vdwg.mxu0
  %3466 = vmatpush.bf16.msra.mxu0 0
  %3467 = vmatpush.bf16.msra.mxu0 0
  %3468 = vmatpush.bf16.msra.mxu0 0
  %3469 = vmatpush.bf16.msra.mxu0 0
  %3470 = vmatpush.bf16.msra.mxu0 0
  %3471 = vmatpush.bf16.msra.mxu0 0
  %3472 = vmatpush.bf16.msra.mxu0 0
  %3473 = vmatpush.bf16.msra.mxu0 %v3448
  %3474 = vmatmul.bf16.gmra.mxu0 %v3442
  %v3475 = vpop.f32.mrf.mxu0
  %v3476 = vadd.f32 0.0, %v3475
  %v3477 = vpop.f32.mrf.mxu0
  %3478 = vdwg.mxu0
  %3479 = vmatpush.bf16.msra.mxu0 0
  %3480 = vmatpush.bf16.msra.mxu0 0
  %3481 = vmatpush.bf16.msra.mxu0 0
  %3482 = vmatpush.bf16.msra.mxu0 0
  %3483 = vmatpush.bf16.msra.mxu0 0
  %3484 = vmatpush.bf16.msra.mxu0 0
  %3485 = vmatpush.bf16.msra.mxu0 0
  %3486 = vmatpush.bf16.msra.mxu0 %v3451
  %3487 = vmatmul.bf16.gmra.mxu0 %v3442
  %v3488 = vpop.f32.mrf.mxu0
  %v3489 = vadd.f32 0.0, %v3488
  %v3490 = vpop.f32.mrf.mxu0
  %3491 = vdwg.mxu0
  %v3492 = vadd.f32 %v3419, %v3463
  %v3493 = vadd.f32 %v3420, %v3476
  %v3494 = vadd.f32 %v3421, %v3489
  %s3495 = scalar_lea.vmem %s9, 8
  %v3496 = vld [vmem:[%s3495] sm:$0x3]
  %v3497 = vld [vmem:[#allocation3] sm:$0x3f]
  %3499 = vst [vmem:[#allocation1] ss:$4 sm:$0xff] %v3497
  %v3500 = vld.sshfl [vmem:[#allocation1] sm:$0xff pattern:$0x73625140]
  %v3502 = vld.sshfl [vmem:[#allocation1 + $0x8] sm:$0xff pattern:$0x73625140]
  %v3504 = vld.sshfl [vmem:[#allocation1 + $0x10] sm:$0xff pattern:$0x73625140]
  %3506 = vrot.lane.b32.xlu0 %v3500, 109
  %v3507 = vpop.permute.xlu0 %3506
  %3508 = vrot.lane.b32.xlu0 %v3502, 109
  %v3509 = vpop.permute.xlu0 %3508
  %3510 = vrot.lane.b32.xlu0 %v3504, 109
  %v3511 = vpop.permute.xlu0 %3510
  %v3512 = vsel %vm72, %v3507, %v3509
  %v3513 = vsel %vm72, %v3509, %v3511
  %v3515 = vsel %vm618, %v3496, 0
  %v3518 = vsel %vm329, %v3512, 0
  %v3521 = vsel %vm329, %v3513, 0
  %v3524 = vsel %vm329, %v3511, 0
  %3526 = vmatpush.bf16.msra.mxu0 0
  %3527 = vmatpush.bf16.msra.mxu0 0
  %3528 = vmatpush.bf16.msra.mxu0 0
  %3529 = vmatpush.bf16.msra.mxu0 0
  %3530 = vmatpush.bf16.msra.mxu0 0
  %3531 = vmatpush.bf16.msra.mxu0 0
  %3532 = vmatpush.bf16.msra.mxu0 0
  %3533 = vmatpush.bf16.msra.mxu0 %v3518
  %3534 = vmatmul.bf16.gmra.mxu0 %v3515
  %v3535 = vpop.f32.mrf.mxu0
  %v3536 = vadd.f32 0.0, %v3535
  %v3537 = vpop.f32.mrf.mxu0
  %3538 = vdwg.mxu0
  %3539 = vmatpush.bf16.msra.mxu0 0
  %3540 = vmatpush.bf16.msra.mxu0 0
  %3541 = vmatpush.bf16.msra.mxu0 0
  %3542 = vmatpush.bf16.msra.mxu0 0
  %3543 = vmatpush.bf16.msra.mxu0 0
  %3544 = vmatpush.bf16.msra.mxu0 0
  %3545 = vmatpush.bf16.msra.mxu0 0
  %3546 = vmatpush.bf16.msra.mxu0 %v3521
  %3547 = vmatmul.bf16.gmra.mxu0 %v3515
  %v3548 = vpop.f32.mrf.mxu0
  %v3549 = vadd.f32 0.0, %v3548
  %v3550 = vpop.f32.mrf.mxu0
  %3551 = vdwg.mxu0
  %3552 = vmatpush.bf16.msra.mxu0 0
  %3553 = vmatpush.bf16.msra.mxu0 0
  %3554 = vmatpush.bf16.msra.mxu0 0
  %3555 = vmatpush.bf16.msra.mxu0 0
  %3556 = vmatpush.bf16.msra.mxu0 0
  %3557 = vmatpush.bf16.msra.mxu0 0
  %3558 = vmatpush.bf16.msra.mxu0 0
  %3559 = vmatpush.bf16.msra.mxu0 %v3524
  %3560 = vmatmul.bf16.gmra.mxu0 %v3515
  %v3561 = vpop.f32.mrf.mxu0
  %v3562 = vadd.f32 0.0, %v3561
  %v3563 = vpop.f32.mrf.mxu0
  %3564 = vdwg.mxu0
  %v3565 = vadd.f32 %v3492, %v3536
  %v3566 = vadd.f32 %v3493, %v3549
  %v3567 = vadd.f32 %v3494, %v3562
  %s3568 = scalar_lea.vmem %s9, 10
  %v3569 = vld [vmem:[%s3568] sm:$0x3]
  %v3570 = vld [vmem:[#allocation3] sm:$0x3f]
  %3572 = vst [vmem:[#allocation1] ss:$4 sm:$0xff] %v3570
  %v3573 = vld.sshfl [vmem:[#allocation1] sm:$0xff pattern:$0x73625140]
  %v3575 = vld.sshfl [vmem:[#allocation1 + $0x8] sm:$0xff pattern:$0x73625140]
  %v3577 = vld.sshfl [vmem:[#allocation1 + $0x10] sm:$0xff pattern:$0x73625140]
  %3579 = vrot.lane.b32.xlu0 %v3573, 108
  %v3580 = vpop.permute.xlu0 %3579
  %3581 = vrot.lane.b32.xlu0 %v3575, 108
  %v3582 = vpop.permute.xlu0 %3581
  %3583 = vrot.lane.b32.xlu0 %v3577, 108
  %v3584 = vpop.permute.xlu0 %3583
  %v3585 = vsel %vm960, %v3580, %v3582
  %v3586 = vsel %vm960, %v3582, %v3584
  %v3588 = vsel %vm618, %v3569, 0
  %v3591 = vsel %vm329, %v3585, 0
  %v3594 = vsel %vm329, %v3586, 0
  %v3597 = vsel %vm329, %v3584, 0
  %3599 = vmatpush.bf16.msra.mxu0 0
  %3600 = vmatpush.bf16.msra.mxu0 0
  %3601 = vmatpush.bf16.msra.mxu0 0
  %3602 = vmatpush.bf16.msra.mxu0 0
  %3603 = vmatpush.bf16.msra.mxu0 0
  %3604 = vmatpush.bf16.msra.mxu0 0
  %3605 = vmatpush.bf16.msra.mxu0 0
  %3606 = vmatpush.bf16.msra.mxu0 %v3591
  %3607 = vmatmul.bf16.gmra.mxu0 %v3588
  %v3608 = vpop.f32.mrf.mxu0
  %v3609 = vadd.f32 0.0, %v3608
  %v3610 = vpop.f32.mrf.mxu0
  %3611 = vdwg.mxu0
  %3612 = vmatpush.bf16.msra.mxu0 0
  %3613 = vmatpush.bf16.msra.mxu0 0
  %3614 = vmatpush.bf16.msra.mxu0 0
  %3615 = vmatpush.bf16.msra.mxu0 0
  %3616 = vmatpush.bf16.msra.mxu0 0
  %3617 = vmatpush.bf16.msra.mxu0 0
  %3618 = vmatpush.bf16.msra.mxu0 0
  %3619 = vmatpush.bf16.msra.mxu0 %v3594
  %3620 = vmatmul.bf16.gmra.mxu0 %v3588
  %v3621 = vpop.f32.mrf.mxu0
  %v3622 = vadd.f32 0.0, %v3621
  %v3623 = vpop.f32.mrf.mxu0
  %3624 = vdwg.mxu0
  %3625 = vmatpush.bf16.msra.mxu0 0
  %3626 = vmatpush.bf16.msra.mxu0 0
  %3627 = vmatpush.bf16.msra.mxu0 0
  %3628 = vmatpush.bf16.msra.mxu0 0
  %3629 = vmatpush.bf16.msra.mxu0 0
  %3630 = vmatpush.bf16.msra.mxu0 0
  %3631 = vmatpush.bf16.msra.mxu0 0
  %3632 = vmatpush.bf16.msra.mxu0 %v3597
  %3633 = vmatmul.bf16.gmra.mxu0 %v3588
  %v3634 = vpop.f32.mrf.mxu0
  %v3635 = vadd.f32 0.0, %v3634
  %v3636 = vpop.f32.mrf.mxu0
  %3637 = vdwg.mxu0
  %v3638 = vadd.f32 %v3565, %v3609
  %v3639 = vadd.f32 %v3566, %v3622
  %v3640 = vadd.f32 %v3567, %v3635
  %s3641 = scalar_lea.vmem %s9, 12
  %v3642 = vld [vmem:[%s3641] sm:$0x3]
  %v3643 = vld [vmem:[#allocation3] sm:$0x3f]
  %3645 = vst [vmem:[#allocation1] ss:$4 sm:$0xff] %v3643
  %v3646 = vld.sshfl [vmem:[#allocation1] sm:$0xff pattern:$0x73625140]
  %v3648 = vld.sshfl [vmem:[#allocation1 + $0x8] sm:$0xff pattern:$0x73625140]
  %v3650 = vld.sshfl [vmem:[#allocation1 + $0x10] sm:$0xff pattern:$0x73625140]
  %3652 = vrot.lane.b32.xlu0 %v3646, 92
  %v3653 = vpop.permute.xlu0 %3652
  %3654 = vrot.lane.b32.xlu0 %v3648, 92
  %v3655 = vpop.permute.xlu0 %3654
  %3656 = vrot.lane.b32.xlu0 %v3650, 92
  %v3657 = vpop.permute.xlu0 %3656
  %v3658 = vsel %vm1034, %v3653, %v3655
  %v3659 = vsel %vm1034, %v3655, %v3657
  %v3661 = vsel %vm618, %v3642, 0
  %v3664 = vsel %vm329, %v3658, 0
  %v3667 = vsel %vm329, %v3659, 0
  %v3670 = vsel %vm329, %v3657, 0
  %3672 = vmatpush.bf16.msra.mxu0 0
  %3673 = vmatpush.bf16.msra.mxu0 0
  %3674 = vmatpush.bf16.msra.mxu0 0
  %3675 = vmatpush.bf16.msra.mxu0 0
  %3676 = vmatpush.bf16.msra.mxu0 0
  %3677 = vmatpush.bf16.msra.mxu0 0
  %3678 = vmatpush.bf16.msra.mxu0 0
  %3679 = vmatpush.bf16.msra.mxu0 %v3664
  %3680 = vmatmul.bf16.gmra.mxu0 %v3661
  %v3681 = vpop.f32.mrf.mxu0
  %v3682 = vadd.f32 0.0, %v3681
  %v3683 = vpop.f32.mrf.mxu0
  %3684 = vdwg.mxu0
  %3685 = vmatpush.bf16.msra.mxu0 0
  %3686 = vmatpush.bf16.msra.mxu0 0
  %3687 = vmatpush.bf16.msra.mxu0 0
  %3688 = vmatpush.bf16.msra.mxu0 0
  %3689 = vmatpush.bf16.msra.mxu0 0
  %3690 = vmatpush.bf16.msra.mxu0 0
  %3691 = vmatpush.bf16.msra.mxu0 0
  %3692 = vmatpush.bf16.msra.mxu0 %v3667
  %3693 = vmatmul.bf16.gmra.mxu0 %v3661
  %v3694 = vpop.f32.mrf.mxu0
  %v3695 = vadd.f32 0.0, %v3694
  %v3696 = vpop.f32.mrf.mxu0
  %3697 = vdwg.mxu0
  %3698 = vmatpush.bf16.msra.mxu0 0
  %3699 = vmatpush.bf16.msra.mxu0 0
  %3700 = vmatpush.bf16.msra.mxu0 0
  %3701 = vmatpush.bf16.msra.mxu0 0
  %3702 = vmatpush.bf16.msra.mxu0 0
  %3703 = vmatpush.bf16.msra.mxu0 0
  %3704 = vmatpush.bf16.msra.mxu0 0
  %3705 = vmatpush.bf16.msra.mxu0 %v3670
  %3706 = vmatmul.bf16.gmra.mxu0 %v3661
  %v3707 = vpop.f32.mrf.mxu0
  %v3708 = vadd.f32 0.0, %v3707
  %v3709 = vpop.f32.mrf.mxu0
  %3710 = vdwg.mxu0
  %v3711 = vadd.f32 %v3638, %v3682
  %v3712 = vadd.f32 %v3639, %v3695
  %v3713 = vadd.f32 %v3640, %v3708
  %s3714 = scalar_lea.vmem %s9, 14
  %v3715 = vld [vmem:[%s3714] sm:$0x3]
  %v3716 = vld [vmem:[#allocation3] sm:$0x3f]
  %3718 = vst [vmem:[#allocation1] ss:$4 sm:$0xff] %v3716
  %v3719 = vld.sshfl [vmem:[#allocation1] sm:$0xff pattern:$0x73625140]
  %v3721 = vld.sshfl [vmem:[#allocation1 + $0x8] sm:$0xff pattern:$0x73625140]
  %v3723 = vld.sshfl [vmem:[#allocation1 + $0x10] sm:$0xff pattern:$0x73625140]
  %3725 = vrot.lane.b32.xlu0 %v3719, 91
  %v3726 = vpop.permute.xlu0 %3725
  %3727 = vrot.lane.b32.xlu0 %v3721, 91
  %v3728 = vpop.permute.xlu0 %3727
  %3729 = vrot.lane.b32.xlu0 %v3723, 91
  %v3730 = vpop.permute.xlu0 %3729
  %v3731 = vsel %vm1108, %v3726, %v3728
  %v3732 = vsel %vm1108, %v3728, %v3730
  %v3734 = vsel %vm618, %v3715, 0
  %v3737 = vsel %vm329, %v3731, 0
  %v3740 = vsel %vm329, %v3732, 0
  %v3743 = vsel %vm329, %v3730, 0
  %3745 = vmatpush.bf16.msra.mxu0 0
  %3746 = vmatpush.bf16.msra.mxu0 0
  %3747 = vmatpush.bf16.msra.mxu0 0
  %3748 = vmatpush.bf16.msra.mxu0 0
  %3749 = vmatpush.bf16.msra.mxu0 0
  %3750 = vmatpush.bf16.msra.mxu0 0
  %3751 = vmatpush.bf16.msra.mxu0 0
  %3752 = vmatpush.bf16.msra.mxu0 %v3737
  %3753 = vmatmul.bf16.gmra.mxu0 %v3734
  %v3754 = vpop.f32.mrf.mxu0
  %v3755 = vadd.f32 0.0, %v3754
  %v3756 = vpop.f32.mrf.mxu0
  %3757 = vdwg.mxu0
  %3758 = vmatpush.bf16.msra.mxu0 0
  %3759 = vmatpush.bf16.msra.mxu0 0
  %3760 = vmatpush.bf16.msra.mxu0 0
  %3761 = vmatpush.bf16.msra.mxu0 0
  %3762 = vmatpush.bf16.msra.mxu0 0
  %3763 = vmatpush.bf16.msra.mxu0 0
  %3764 = vmatpush.bf16.msra.mxu0 0
  %3765 = vmatpush.bf16.msra.mxu0 %v3740
  %3766 = vmatmul.bf16.gmra.mxu0 %v3734
  %v3767 = vpop.f32.mrf.mxu0
  %v3768 = vadd.f32 0.0, %v3767
  %v3769 = vpop.f32.mrf.mxu0
  %3770 = vdwg.mxu0
  %3771 = vmatpush.bf16.msra.mxu0 0
  %3772 = vmatpush.bf16.msra.mxu0 0
  %3773 = vmatpush.bf16.msra.mxu0 0
  %3774 = vmatpush.bf16.msra.mxu0 0
  %3775 = vmatpush.bf16.msra.mxu0 0
  %3776 = vmatpush.bf16.msra.mxu0 0
  %3777 = vmatpush.bf16.msra.mxu0 0
  %3778 = vmatpush.bf16.msra.mxu0 %v3743
  %3779 = vmatmul.bf16.gmra.mxu0 %v3734
  %v3780 = vpop.f32.mrf.mxu0
  %v3781 = vadd.f32 0.0, %v3780
  %v3782 = vpop.f32.mrf.mxu0
  %3783 = vdwg.mxu0
  %v3784 = vadd.f32 %v3711, %v3755
  %v3785 = vadd.f32 %v3712, %v3768
  %v3786 = vadd.f32 %v3713, %v3781
  %s3787 = scalar_lea.vmem %s9, 16
  %v3788 = vld [vmem:[%s3787] sm:$0x3]
  %v3789 = vld [vmem:[#allocation3] sm:$0x3f]
  %3791 = vst [vmem:[#allocation1] ss:$4 sm:$0xff] %v3789
  %v3792 = vld.sshfl [vmem:[#allocation1] sm:$0xff pattern:$0x73625140]
  %v3794 = vld.sshfl [vmem:[#allocation1 + $0x8] sm:$0xff pattern:$0x73625140]
  %v3796 = vld.sshfl [vmem:[#allocation1 + $0x10] sm:$0xff pattern:$0x73625140]
  %3798 = vrot.lane.b32.xlu0 %v3792, 90
  %v3799 = vpop.permute.xlu0 %3798
  %3800 = vrot.lane.b32.xlu0 %v3794, 90
  %v3801 = vpop.permute.xlu0 %3800
  %3802 = vrot.lane.b32.xlu0 %v3796, 90
  %v3803 = vpop.permute.xlu0 %3802
  %v3804 = vsel %vm1182, %v3799, %v3801
  %v3805 = vsel %vm1182, %v3801, %v3803
  %v3807 = vsel %vm618, %v3788, 0
  %v3810 = vsel %vm329, %v3804, 0
  %v3813 = vsel %vm329, %v3805, 0
  %v3816 = vsel %vm329, %v3803, 0
  %3818 = vmatpush.bf16.msra.mxu0 0
  %3819 = vmatpush.bf16.msra.mxu0 0
  %3820 = vmatpush.bf16.msra.mxu0 0
  %3821 = vmatpush.bf16.msra.mxu0 0
  %3822 = vmatpush.bf16.msra.mxu0 0
  %3823 = vmatpush.bf16.msra.mxu0 0
  %3824 = vmatpush.bf16.msra.mxu0 0
  %3825 = vmatpush.bf16.msra.mxu0 %v3810
  %3826 = vmatmul.bf16.gmra.mxu0 %v3807
  %v3827 = vpop.f32.mrf.mxu0
  %v3828 = vadd.f32 0.0, %v3827
  %v3829 = vpop.f32.mrf.mxu0
  %3830 = vdwg.mxu0
  %3831 = vmatpush.bf16.msra.mxu0 0
  %3832 = vmatpush.bf16.msra.mxu0 0
  %3833 = vmatpush.bf16.msra.mxu0 0
  %3834 = vmatpush.bf16.msra.mxu0 0
  %3835 = vmatpush.bf16.msra.mxu0 0
  %3836 = vmatpush.bf16.msra.mxu0 0
  %3837 = vmatpush.bf16.msra.mxu0 0
  %3838 = vmatpush.bf16.msra.mxu0 %v3813
  %3839 = vmatmul.bf16.gmra.mxu0 %v3807
  %v3840 = vpop.f32.mrf.mxu0
  %v3841 = vadd.f32 0.0, %v3840
  %v3842 = vpop.f32.mrf.mxu0
  %3843 = vdwg.mxu0
  %3844 = vmatpush.bf16.msra.mxu0 0
  %3845 = vmatpush.bf16.msra.mxu0 0
  %3846 = vmatpush.bf16.msra.mxu0 0
  %3847 = vmatpush.bf16.msra.mxu0 0
  %3848 = vmatpush.bf16.msra.mxu0 0
  %3849 = vmatpush.bf16.msra.mxu0 0
  %3850 = vmatpush.bf16.msra.mxu0 0
  %3851 = vmatpush.bf16.msra.mxu0 %v3816
  %3852 = vmatmul.bf16.gmra.mxu0 %v3807
  %v3853 = vpop.f32.mrf.mxu0
  %v3854 = vadd.f32 0.0, %v3853
  %v3855 = vpop.f32.mrf.mxu0
  %3856 = vdwg.mxu0
  %v3857 = vadd.f32 %v3784, %v3828
  %v3858 = vadd.f32 %v3785, %v3841
  %v3859 = vadd.f32 %v3786, %v3854
  %v3860 = vld [vmem:[%s3224] sm:$0x3f]
  %3862 = vst [vmem:[#allocation1] ss:$4 sm:$0xff] %v3860
  %v3863 = vld.sshfl [vmem:[#allocation1] sm:$0xff pattern:$0x73625140]
  %v3865 = vld.sshfl [vmem:[#allocation1 + $0x8] sm:$0xff pattern:$0x73625140]
  %v3867 = vld.sshfl [vmem:[#allocation1 + $0x10] sm:$0xff pattern:$0x73625140]
  %3869 = vrot.lane.b32.xlu0 %v3863, 127
  %v3870 = vpop.permute.xlu0 %3869
  %3871 = vrot.lane.b32.xlu0 %v3865, 127
  %v3872 = vpop.permute.xlu0 %3871
  %3873 = vrot.lane.b32.xlu0 %v3867, 127
  %v3874 = vpop.permute.xlu0 %3873
  %v3875 = vsel %vm615, %v3870, %v3872
  %v3876 = vsel %vm615, %v3872, %v3874
  %v3878 = vsel %vm329, %v3875, 0
  %v3881 = vsel %vm329, %v3876, 0
  %v3884 = vsel %vm329, %v3874, 0
  %3886 = vmatpush.bf16.msra.mxu0 0
  %3887 = vmatpush.bf16.msra.mxu0 0
  %3888 = vmatpush.bf16.msra.mxu0 0
  %3889 = vmatpush.bf16.msra.mxu0 0
  %3890 = vmatpush.bf16.msra.mxu0 0
  %3891 = vmatpush.bf16.msra.mxu0 0
  %3892 = vmatpush.bf16.msra.mxu0 0
  %3893 = vmatpush.bf16.msra.mxu0 %v3878
  %3894 = vmatmul.bf16.gmra.mxu0 %v3247
  %v3895 = vpop.f32.mrf.mxu0
  %v3896 = vadd.f32 0.0, %v3895
  %v3897 = vpop.f32.mrf.mxu0
  %3898 = vdwg.mxu0
  %3899 = vmatpush.bf16.msra.mxu0 0
  %3900 = vmatpush.bf16.msra.mxu0 0
  %3901 = vmatpush.bf16.msra.mxu0 0
  %3902 = vmatpush.bf16.msra.mxu0 0
  %3903 = vmatpush.bf16.msra.mxu0 0
  %3904 = vmatpush.bf16.msra.mxu0 0
  %3905 = vmatpush.bf16.msra.mxu0 0
  %3906 = vmatpush.bf16.msra.mxu0 %v3881
  %3907 = vmatmul.bf16.gmra.mxu0 %v3247
  %v3908 = vpop.f32.mrf.mxu0
  %v3909 = vadd.f32 0.0, %v3908
  %v3910 = vpop.f32.mrf.mxu0
  %3911 = vdwg.mxu0
  %3912 = vmatpush.bf16.msra.mxu0 0
  %3913 = vmatpush.bf16.msra.mxu0 0
  %3914 = vmatpush.bf16.msra.mxu0 0
  %3915 = vmatpush.bf16.msra.mxu0 0
  %3916 = vmatpush.bf16.msra.mxu0 0
  %3917 = vmatpush.bf16.msra.mxu0 0
  %3918 = vmatpush.bf16.msra.mxu0 0
  %3919 = vmatpush.bf16.msra.mxu0 %v3884
  %3920 = vmatmul.bf16.gmra.mxu0 %v3247
  %v3921 = vpop.f32.mrf.mxu0
  %v3922 = vadd.f32 0.0, %v3921
  %v3923 = vpop.f32.mrf.mxu0
  %3924 = vdwg.mxu0
  %3925 = vst [vmem:[#allocation1] ss:$4 sm:$0xff] %v3860
  %v3926 = vld.sshfl [vmem:[#allocation1] sm:$0xff pattern:$0x73625140]
  %v3927 = vld.sshfl [vmem:[#allocation1 + $0x8] sm:$0xff pattern:$0x73625140]
  %v3928 = vld.sshfl [vmem:[#allocation1 + $0x10] sm:$0xff pattern:$0x73625140]
  %v3929 = vsel %vm329, %v3926, 0
  %v3931 = vsel %vm329, %v3927, 0
  %v3933 = vsel %vm329, %v3928, 0
  %3935 = vmatpush.bf16.msra.mxu0 0
  %3936 = vmatpush.bf16.msra.mxu0 0
  %3937 = vmatpush.bf16.msra.mxu0 0
  %3938 = vmatpush.bf16.msra.mxu0 0
  %3939 = vmatpush.bf16.msra.mxu0 0
  %3940 = vmatpush.bf16.msra.mxu0 0
  %3941 = vmatpush.bf16.msra.mxu0 0
  %3942 = vmatpush.bf16.msra.mxu0 %v3929
  %3943 = vmatmul.bf16.gmra.mxu0 %v3302
  %v3944 = vpop.f32.mrf.mxu0
  %v3945 = vadd.f32 %v3896, %v3944
  %v3946 = vpop.f32.mrf.mxu0
  %3947 = vdwg.mxu0
  %3948 = vmatpush.bf16.msra.mxu0 0
  %3949 = vmatpush.bf16.msra.mxu0 0
  %3950 = vmatpush.bf16.msra.mxu0 0
  %3951 = vmatpush.bf16.msra.mxu0 0
  %3952 = vmatpush.bf16.msra.mxu0 0
  %3953 = vmatpush.bf16.msra.mxu0 0
  %3954 = vmatpush.bf16.msra.mxu0 0
  %3955 = vmatpush.bf16.msra.mxu0 %v3931
  %3956 = vmatmul.bf16.gmra.mxu0 %v3302
  %v3957 = vpop.f32.mrf.mxu0
  %v3958 = vadd.f32 %v3909, %v3957
  %v3959 = vpop.f32.mrf.mxu0
  %3960 = vdwg.mxu0
  %3961 = vmatpush.bf16.msra.mxu0 0
  %3962 = vmatpush.bf16.msra.mxu0 0
  %3963 = vmatpush.bf16.msra.mxu0 0
  %3964 = vmatpush.bf16.msra.mxu0 0
  %3965 = vmatpush.bf16.msra.mxu0 0
  %3966 = vmatpush.bf16.msra.mxu0 0
  %3967 = vmatpush.bf16.msra.mxu0 0
  %3968 = vmatpush.bf16.msra.mxu0 %v3933
  %3969 = vmatmul.bf16.gmra.mxu0 %v3302
  %v3970 = vpop.f32.mrf.mxu0
  %v3971 = vadd.f32 %v3922, %v3970
  %v3972 = vpop.f32.mrf.mxu0
  %3973 = vdwg.mxu0
  %v3974 = vld [vmem:[%s3224] sm:$0x3f]
  %3976 = vst [vmem:[#allocation1] ss:$4 sm:$0xff] %v3974
  %v3977 = vld.sshfl [vmem:[#allocation1] sm:$0xff pattern:$0x73625140]
  %v3979 = vld.sshfl [vmem:[#allocation1 + $0x8] sm:$0xff pattern:$0x73625140]
  %v3981 = vld.sshfl [vmem:[#allocation1 + $0x10] sm:$0xff pattern:$0x73625140]
  %3983 = vrot.lane.b32.xlu0 %v3977, 126
  %v3984 = vpop.permute.xlu0 %3983
  %3985 = vrot.lane.b32.xlu0 %v3979, 126
  %v3986 = vpop.permute.xlu0 %3985
  %3987 = vrot.lane.b32.xlu0 %v3981, 126
  %v3988 = vpop.permute.xlu0 %3987
  %v3989 = vsel %vm739, %v3984, %v3986
  %v3990 = vsel %vm739, %v3986, %v3988
  %v3992 = vsel %vm329, %v3989, 0
  %v3995 = vsel %vm329, %v3990, 0
  %v3998 = vsel %vm329, %v3988, 0
  %4000 = vmatpush.bf16.msra.mxu0 0
  %4001 = vmatpush.bf16.msra.mxu0 0
  %4002 = vmatpush.bf16.msra.mxu0 0
  %4003 = vmatpush.bf16.msra.mxu0 0
  %4004 = vmatpush.bf16.msra.mxu0 0
  %4005 = vmatpush.bf16.msra.mxu0 0
  %4006 = vmatpush.bf16.msra.mxu0 0
  %4007 = vmatpush.bf16.msra.mxu0 %v3992
  %4008 = vmatmul.bf16.gmra.mxu0 %v3369
  %v4009 = vpop.f32.mrf.mxu0
  %v4010 = vadd.f32 0.0, %v4009
  %v4011 = vpop.f32.mrf.mxu0
  %4012 = vdwg.mxu0
  %4013 = vmatpush.bf16.msra.mxu0 0
  %4014 = vmatpush.bf16.msra.mxu0 0
  %4015 = vmatpush.bf16.msra.mxu0 0
  %4016 = vmatpush.bf16.msra.mxu0 0
  %4017 = vmatpush.bf16.msra.mxu0 0
  %4018 = vmatpush.bf16.msra.mxu0 0
  %4019 = vmatpush.bf16.msra.mxu0 0
  %4020 = vmatpush.bf16.msra.mxu0 %v3995
  %4021 = vmatmul.bf16.gmra.mxu0 %v3369
  %v4022 = vpop.f32.mrf.mxu0
  %v4023 = vadd.f32 0.0, %v4022
  %v4024 = vpop.f32.mrf.mxu0
  %4025 = vdwg.mxu0
  %4026 = vmatpush.bf16.msra.mxu0 0
  %4027 = vmatpush.bf16.msra.mxu0 0
  %4028 = vmatpush.bf16.msra.mxu0 0
  %4029 = vmatpush.bf16.msra.mxu0 0
  %4030 = vmatpush.bf16.msra.mxu0 0
  %4031 = vmatpush.bf16.msra.mxu0 0
  %4032 = vmatpush.bf16.msra.mxu0 0
  %4033 = vmatpush.bf16.msra.mxu0 %v3998
  %4034 = vmatmul.bf16.gmra.mxu0 %v3369
  %v4035 = vpop.f32.mrf.mxu0
  %v4036 = vadd.f32 0.0, %v4035
  %v4037 = vpop.f32.mrf.mxu0
  %4038 = vdwg.mxu0
  %v4039 = vadd.f32 %v3945, %v4010
  %v4040 = vadd.f32 %v3958, %v4023
  %v4041 = vadd.f32 %v3971, %v4036
  %v4042 = vld [vmem:[%s3224] sm:$0x3f]
  %4044 = vst [vmem:[#allocation1] ss:$4 sm:$0xff] %v4042
  %v4045 = vld.sshfl [vmem:[#allocation1] sm:$0xff pattern:$0x73625140]
  %v4047 = vld.sshfl [vmem:[#allocation1 + $0x8] sm:$0xff pattern:$0x73625140]
  %v4049 = vld.sshfl [vmem:[#allocation1 + $0x10] sm:$0xff pattern:$0x73625140]
  %4051 = vrot.lane.b32.xlu0 %v4045, 110
  %v4052 = vpop.permute.xlu0 %4051
  %4053 = vrot.lane.b32.xlu0 %v4047, 110
  %v4054 = vpop.permute.xlu0 %4053
  %4055 = vrot.lane.b32.xlu0 %v4049, 110
  %v4056 = vpop.permute.xlu0 %4055
  %v4057 = vsel %vm813, %v4052, %v4054
  %v4058 = vsel %vm813, %v4054, %v4056
  %v4060 = vsel %vm329, %v4057, 0
  %v4063 = vsel %vm329, %v4058, 0
  %v4066 = vsel %vm329, %v4056, 0
  %4068 = vmatpush.bf16.msra.mxu0 0
  %4069 = vmatpush.bf16.msra.mxu0 0
  %4070 = vmatpush.bf16.msra.mxu0 0
  %4071 = vmatpush.bf16.msra.mxu0 0
  %4072 = vmatpush.bf16.msra.mxu0 0
  %4073 = vmatpush.bf16.msra.mxu0 0
  %4074 = vmatpush.bf16.msra.mxu0 0
  %4075 = vmatpush.bf16.msra.mxu0 %v4060
  %4076 = vmatmul.bf16.gmra.mxu0 %v3442
  %v4077 = vpop.f32.mrf.mxu0
  %v4078 = vadd.f32 0.0, %v4077
  %v4079 = vpop.f32.mrf.mxu0
  %4080 = vdwg.mxu0
  %4081 = vmatpush.bf16.msra.mxu0 0
  %4082 = vmatpush.bf16.msra.mxu0 0
  %4083 = vmatpush.bf16.msra.mxu0 0
  %4084 = vmatpush.bf16.msra.mxu0 0
  %4085 = vmatpush.bf16.msra.mxu0 0
  %4086 = vmatpush.bf16.msra.mxu0 0
  %4087 = vmatpush.bf16.msra.mxu0 0
  %4088 = vmatpush.bf16.msra.mxu0 %v4063
  %4089 = vmatmul.bf16.gmra.mxu0 %v3442
  %v4090 = vpop.f32.mrf.mxu0
  %v4091 = vadd.f32 0.0, %v4090
  %v4092 = vpop.f32.mrf.mxu0
  %4093 = vdwg.mxu0
  %4094 = vmatpush.bf16.msra.mxu0 0
  %4095 = vmatpush.bf16.msra.mxu0 0
  %4096 = vmatpush.bf16.msra.mxu0 0
  %4097 = vmatpush.bf16.msra.mxu0 0
  %4098 = vmatpush.bf16.msra.mxu0 0
  %4099 = vmatpush.bf16.msra.mxu0 0
  %4100 = vmatpush.bf16.msra.mxu0 0
  %4101 = vmatpush.bf16.msra.mxu0 %v4066
  %4102 = vmatmul.bf16.gmra.mxu0 %v3442
  %v4103 = vpop.f32.mrf.mxu0
  %v4104 = vadd.f32 0.0, %v4103
  %v4105 = vpop.f32.mrf.mxu0
  %4106 = vdwg.mxu0
  %v4107 = vadd.f32 %v4039, %v4078
  %v4108 = vadd.f32 %v4040, %v4091
  %v4109 = vadd.f32 %v4041, %v4104
  %v4110 = vld [vmem:[%s3224] sm:$0x3f]
  %4112 = vst [vmem:[#allocation1] ss:$4 sm:$0xff] %v4110
  %v4113 = vld.sshfl [vmem:[#allocation1] sm:$0xff pattern:$0x73625140]
  %v4115 = vld.sshfl [vmem:[#allocation1 + $0x8] sm:$0xff pattern:$0x73625140]
  %v4117 = vld.sshfl [vmem:[#allocation1 + $0x10] sm:$0xff pattern:$0x73625140]
  %4119 = vrot.lane.b32.xlu0 %v4113, 109
  %v4120 = vpop.permute.xlu0 %4119
  %4121 = vrot.lane.b32.xlu0 %v4115, 109
  %v4122 = vpop.permute.xlu0 %4121
  %4123 = vrot.lane.b32.xlu0 %v4117, 109
  %v4124 = vpop.permute.xlu0 %4123
  %v4125 = vsel %vm72, %v4120, %v4122
  %v4126 = vsel %vm72, %v4122, %v4124
  %v4128 = vsel %vm329, %v4125, 0
  %v4131 = vsel %vm329, %v4126, 0
  %v4134 = vsel %vm329, %v4124, 0
  %4136 = vmatpush.bf16.msra.mxu0 0
  %4137 = vmatpush.bf16.msra.mxu0 0
  %4138 = vmatpush.bf16.msra.mxu0 0
  %4139 = vmatpush.bf16.msra.mxu0 0
  %4140 = vmatpush.bf16.msra.mxu0 0
  %4141 = vmatpush.bf16.msra.mxu0 0
  %4142 = vmatpush.bf16.msra.mxu0 0
  %4143 = vmatpush.bf16.msra.mxu0 %v4128
  %4144 = vmatmul.bf16.gmra.mxu0 %v3515
  %v4145 = vpop.f32.mrf.mxu0
  %v4146 = vadd.f32 0.0, %v4145
  %v4147 = vpop.f32.mrf.mxu0
  %4148 = vdwg.mxu0
  %4149 = vmatpush.bf16.msra.mxu0 0
  %4150 = vmatpush.bf16.msra.mxu0 0
  %4151 = vmatpush.bf16.msra.mxu0 0
  %4152 = vmatpush.bf16.msra.mxu0 0
  %4153 = vmatpush.bf16.msra.mxu0 0
  %4154 = vmatpush.bf16.msra.mxu0 0
  %4155 = vmatpush.bf16.msra.mxu0 0
  %4156 = vmatpush.bf16.msra.mxu0 %v4131
  %4157 = vmatmul.bf16.gmra.mxu0 %v3515
  %v4158 = vpop.f32.mrf.mxu0
  %v4159 = vadd.f32 0.0, %v4158
  %v4160 = vpop.f32.mrf.mxu0
  %4161 = vdwg.mxu0
  %4162 = vmatpush.bf16.msra.mxu0 0
  %4163 = vmatpush.bf16.msra.mxu0 0
  %4164 = vmatpush.bf16.msra.mxu0 0
  %4165 = vmatpush.bf16.msra.mxu0 0
  %4166 = vmatpush.bf16.msra.mxu0 0
  %4167 = vmatpush.bf16.msra.mxu0 0
  %4168 = vmatpush.bf16.msra.mxu0 0
  %4169 = vmatpush.bf16.msra.mxu0 %v4134
  %4170 = vmatmul.bf16.gmra.mxu0 %v3515
  %v4171 = vpop.f32.mrf.mxu0
  %v4172 = vadd.f32 0.0, %v4171
  %v4173 = vpop.f32.mrf.mxu0
  %4174 = vdwg.mxu0
  %v4175 = vadd.f32 %v4107, %v4146
  %v4176 = vadd.f32 %v4108, %v4159
  %v4177 = vadd.f32 %v4109, %v4172
  %v4178 = vld [vmem:[%s3224] sm:$0x3f]
  %4180 = vst [vmem:[#allocation1] ss:$4 sm:$0xff] %v4178
  %v4181 = vld.sshfl [vmem:[#allocation1] sm:$0xff pattern:$0x73625140]
  %v4183 = vld.sshfl [vmem:[#allocation1 + $0x8] sm:$0xff pattern:$0x73625140]
  %v4185 = vld.sshfl [vmem:[#allocation1 + $0x10] sm:$0xff pattern:$0x73625140]
  %4187 = vrot.lane.b32.xlu0 %v4181, 108
  %v4188 = vpop.permute.xlu0 %4187
  %4189 = vrot.lane.b32.xlu0 %v4183, 108
  %v4190 = vpop.permute.xlu0 %4189
  %4191 = vrot.lane.b32.xlu0 %v4185, 108
  %v4192 = vpop.permute.xlu0 %4191
  %v4193 = vsel %vm960, %v4188, %v4190
  %v4194 = vsel %vm960, %v4190, %v4192
  %v4196 = vsel %vm329, %v4193, 0
  %v4199 = vsel %vm329, %v4194, 0
  %v4202 = vsel %vm329, %v4192, 0
  %4204 = vmatpush.bf16.msra.mxu0 0
  %4205 = vmatpush.bf16.msra.mxu0 0
  %4206 = vmatpush.bf16.msra.mxu0 0
  %4207 = vmatpush.bf16.msra.mxu0 0
  %4208 = vmatpush.bf16.msra.mxu0 0
  %4209 = vmatpush.bf16.msra.mxu0 0
  %4210 = vmatpush.bf16.msra.mxu0 0
  %4211 = vmatpush.bf16.msra.mxu0 %v4196
  %4212 = vmatmul.bf16.gmra.mxu0 %v3588
  %v4213 = vpop.f32.mrf.mxu0
  %v4214 = vadd.f32 0.0, %v4213
  %v4215 = vpop.f32.mrf.mxu0
  %4216 = vdwg.mxu0
  %4217 = vmatpush.bf16.msra.mxu0 0
  %4218 = vmatpush.bf16.msra.mxu0 0
  %4219 = vmatpush.bf16.msra.mxu0 0
  %4220 = vmatpush.bf16.msra.mxu0 0
  %4221 = vmatpush.bf16.msra.mxu0 0
  %4222 = vmatpush.bf16.msra.mxu0 0
  %4223 = vmatpush.bf16.msra.mxu0 0
  %4224 = vmatpush.bf16.msra.mxu0 %v4199
  %4225 = vmatmul.bf16.gmra.mxu0 %v3588
  %v4226 = vpop.f32.mrf.mxu0
  %v4227 = vadd.f32 0.0, %v4226
  %v4228 = vpop.f32.mrf.mxu0
  %4229 = vdwg.mxu0
  %4230 = vmatpush.bf16.msra.mxu0 0
  %4231 = vmatpush.bf16.msra.mxu0 0
  %4232 = vmatpush.bf16.msra.mxu0 0
  %4233 = vmatpush.bf16.msra.mxu0 0
  %4234 = vmatpush.bf16.msra.mxu0 0
  %4235 = vmatpush.bf16.msra.mxu0 0
  %4236 = vmatpush.bf16.msra.mxu0 0
  %4237 = vmatpush.bf16.msra.mxu0 %v4202
  %4238 = vmatmul.bf16.gmra.mxu0 %v3588
  %v4239 = vpop.f32.mrf.mxu0
  %v4240 = vadd.f32 0.0, %v4239
  %v4241 = vpop.f32.mrf.mxu0
  %4242 = vdwg.mxu0
  %v4243 = vadd.f32 %v4175, %v4214
  %v4244 = vadd.f32 %v4176, %v4227
  %v4245 = vadd.f32 %v4177, %v4240
  %v4246 = vld [vmem:[%s3224] sm:$0x3f]
  %4248 = vst [vmem:[#allocation1] ss:$4 sm:$0xff] %v4246
  %v4249 = vld.sshfl [vmem:[#allocation1] sm:$0xff pattern:$0x73625140]
  %v4251 = vld.sshfl [vmem:[#allocation1 + $0x8] sm:$0xff pattern:$0x73625140]
  %v4253 = vld.sshfl [vmem:[#allocation1 + $0x10] sm:$0xff pattern:$0x73625140]
  %4255 = vrot.lane.b32.xlu0 %v4249, 92
  %v4256 = vpop.permute.xlu0 %4255
  %4257 = vrot.lane.b32.xlu0 %v4251, 92
  %v4258 = vpop.permute.xlu0 %4257
  %4259 = vrot.lane.b32.xlu0 %v4253, 92
  %v4260 = vpop.permute.xlu0 %4259
  %v4261 = vsel %vm1034, %v4256, %v4258
  %v4262 = vsel %vm1034, %v4258, %v4260
  %v4264 = vsel %vm329, %v4261, 0
  %v4267 = vsel %vm329, %v4262, 0
  %v4270 = vsel %vm329, %v4260, 0
  %4272 = vmatpush.bf16.msra.mxu0 0
  %4273 = vmatpush.bf16.msra.mxu0 0
  %4274 = vmatpush.bf16.msra.mxu0 0
  %4275 = vmatpush.bf16.msra.mxu0 0
  %4276 = vmatpush.bf16.msra.mxu0 0
  %4277 = vmatpush.bf16.msra.mxu0 0
  %4278 = vmatpush.bf16.msra.mxu0 0
  %4279 = vmatpush.bf16.msra.mxu0 %v4264
  %4280 = vmatmul.bf16.gmra.mxu0 %v3661
  %v4281 = vpop.f32.mrf.mxu0
  %v4282 = vadd.f32 0.0, %v4281
  %v4283 = vpop.f32.mrf.mxu0
  %4284 = vdwg.mxu0
  %4285 = vmatpush.bf16.msra.mxu0 0
  %4286 = vmatpush.bf16.msra.mxu0 0
  %4287 = vmatpush.bf16.msra.mxu0 0
  %4288 = vmatpush.bf16.msra.mxu0 0
  %4289 = vmatpush.bf16.msra.mxu0 0
  %4290 = vmatpush.bf16.msra.mxu0 0
  %4291 = vmatpush.bf16.msra.mxu0 0
  %4292 = vmatpush.bf16.msra.mxu0 %v4267
  %4293 = vmatmul.bf16.gmra.mxu0 %v3661
  %v4294 = vpop.f32.mrf.mxu0
  %v4295 = vadd.f32 0.0, %v4294
  %v4296 = vpop.f32.mrf.mxu0
  %4297 = vdwg.mxu0
  %4298 = vmatpush.bf16.msra.mxu0 0
  %4299 = vmatpush.bf16.msra.mxu0 0
  %4300 = vmatpush.bf16.msra.mxu0 0
  %4301 = vmatpush.bf16.msra.mxu0 0
  %4302 = vmatpush.bf16.msra.mxu0 0
  %4303 = vmatpush.bf16.msra.mxu0 0
  %4304 = vmatpush.bf16.msra.mxu0 0
  %4305 = vmatpush.bf16.msra.mxu0 %v4270
  %4306 = vmatmul.bf16.gmra.mxu0 %v3661
  %v4307 = vpop.f32.mrf.mxu0
  %v4308 = vadd.f32 0.0, %v4307
  %v4309 = vpop.f32.mrf.mxu0
  %4310 = vdwg.mxu0
  %v4311 = vadd.f32 %v4243, %v4282
  %v4312 = vadd.f32 %v4244, %v4295
  %v4313 = vadd.f32 %v4245, %v4308
  %v4314 = vld [vmem:[%s3224] sm:$0x3f]
  %4316 = vst [vmem:[#allocation1] ss:$4 sm:$0xff] %v4314
  %v4317 = vld.sshfl [vmem:[#allocation1] sm:$0xff pattern:$0x73625140]
  %v4319 = vld.sshfl [vmem:[#allocation1 + $0x8] sm:$0xff pattern:$0x73625140]
  %v4321 = vld.sshfl [vmem:[#allocation1 + $0x10] sm:$0xff pattern:$0x73625140]
  %4323 = vrot.lane.b32.xlu0 %v4317, 91
  %v4324 = vpop.permute.xlu0 %4323
  %4325 = vrot.lane.b32.xlu0 %v4319, 91
  %v4326 = vpop.permute.xlu0 %4325
  %4327 = vrot.lane.b32.xlu0 %v4321, 91
  %v4328 = vpop.permute.xlu0 %4327
  %v4329 = vsel %vm1108, %v4324, %v4326
  %v4330 = vsel %vm1108, %v4326, %v4328
  %v4332 = vsel %vm329, %v4329, 0
  %v4335 = vsel %vm329, %v4330, 0
  %v4338 = vsel %vm329, %v4328, 0
  %4340 = vmatpush.bf16.msra.mxu0 0
  %4341 = vmatpush.bf16.msra.mxu0 0
  %4342 = vmatpush.bf16.msra.mxu0 0
  %4343 = vmatpush.bf16.msra.mxu0 0
  %4344 = vmatpush.bf16.msra.mxu0 0
  %4345 = vmatpush.bf16.msra.mxu0 0
  %4346 = vmatpush.bf16.msra.mxu0 0
  %4347 = vmatpush.bf16.msra.mxu0 %v4332
  %4348 = vmatmul.bf16.gmra.mxu0 %v3734
  %v4349 = vpop.f32.mrf.mxu0
  %v4350 = vadd.f32 0.0, %v4349
  %v4351 = vpop.f32.mrf.mxu0
  %4352 = vdwg.mxu0
  %4353 = vmatpush.bf16.msra.mxu0 0
  %4354 = vmatpush.bf16.msra.mxu0 0
  %4355 = vmatpush.bf16.msra.mxu0 0
  %4356 = vmatpush.bf16.msra.mxu0 0
  %4357 = vmatpush.bf16.msra.mxu0 0
  %4358 = vmatpush.bf16.msra.mxu0 0
  %4359 = vmatpush.bf16.msra.mxu0 0
  %4360 = vmatpush.bf16.msra.mxu0 %v4335
  %4361 = vmatmul.bf16.gmra.mxu0 %v3734
  %v4362 = vpop.f32.mrf.mxu0
  %v4363 = vadd.f32 0.0, %v4362
  %v4364 = vpop.f32.mrf.mxu0
  %4365 = vdwg.mxu0
  %4366 = vmatpush.bf16.msra.mxu0 0
  %4367 = vmatpush.bf16.msra.mxu0 0
  %4368 = vmatpush.bf16.msra.mxu0 0
  %4369 = vmatpush.bf16.msra.mxu0 0
  %4370 = vmatpush.bf16.msra.mxu0 0
  %4371 = vmatpush.bf16.msra.mxu0 0
  %4372 = vmatpush.bf16.msra.mxu0 0
  %4373 = vmatpush.bf16.msra.mxu0 %v4338
  %4374 = vmatmul.bf16.gmra.mxu0 %v3734
  %v4375 = vpop.f32.mrf.mxu0
  %v4376 = vadd.f32 0.0, %v4375
  %v4377 = vpop.f32.mrf.mxu0
  %4378 = vdwg.mxu0
  %v4379 = vadd.f32 %v4311, %v4350
  %v4380 = vadd.f32 %v4312, %v4363
  %v4381 = vadd.f32 %v4313, %v4376
  %v4382 = vld [vmem:[%s3224] sm:$0x3f]
  %4384 = vst [vmem:[#allocation1] ss:$4 sm:$0xff] %v4382
  %v4385 = vld.sshfl [vmem:[#allocation1] sm:$0xff pattern:$0x73625140]
  %v4387 = vld.sshfl [vmem:[#allocation1 + $0x8] sm:$0xff pattern:$0x73625140]
  %v4389 = vld.sshfl [vmem:[#allocation1 + $0x10] sm:$0xff pattern:$0x73625140]
  %4391 = vrot.lane.b32.xlu0 %v4385, 90
  %v4392 = vpop.permute.xlu0 %4391
  %4393 = vrot.lane.b32.xlu0 %v4387, 90
  %v4394 = vpop.permute.xlu0 %4393
  %4395 = vrot.lane.b32.xlu0 %v4389, 90
  %v4396 = vpop.permute.xlu0 %4395
  %v4397 = vsel %vm1182, %v4392, %v4394
  %v4398 = vsel %vm1182, %v4394, %v4396
  %v4400 = vsel %vm329, %v4397, 0
  %v4403 = vsel %vm329, %v4398, 0
  %v4406 = vsel %vm329, %v4396, 0
  %4408 = vmatpush.bf16.msra.mxu0 0
  %4409 = vmatpush.bf16.msra.mxu0 0
  %4410 = vmatpush.bf16.msra.mxu0 0
  %4411 = vmatpush.bf16.msra.mxu0 0
  %4412 = vmatpush.bf16.msra.mxu0 0
  %4413 = vmatpush.bf16.msra.mxu0 0
  %4414 = vmatpush.bf16.msra.mxu0 0
  %4415 = vmatpush.bf16.msra.mxu0 %v4400
  %4416 = vmatmul.bf16.gmra.mxu0 %v3807
  %v4417 = vpop.f32.mrf.mxu0
  %v4418 = vadd.f32 0.0, %v4417
  %v4419 = vpop.f32.mrf.mxu0
  %4420 = vdwg.mxu0
  %4421 = vmatpush.bf16.msra.mxu0 0
  %4422 = vmatpush.bf16.msra.mxu0 0
  %4423 = vmatpush.bf16.msra.mxu0 0
  %4424 = vmatpush.bf16.msra.mxu0 0
  %4425 = vmatpush.bf16.msra.mxu0 0
  %4426 = vmatpush.bf16.msra.mxu0 0
  %4427 = vmatpush.bf16.msra.mxu0 0
  %4428 = vmatpush.bf16.msra.mxu0 %v4403
  %4429 = vmatmul.bf16.gmra.mxu0 %v3807
  %v4430 = vpop.f32.mrf.mxu0
  %v4431 = vadd.f32 0.0, %v4430
  %v4432 = vpop.f32.mrf.mxu0
  %4433 = vdwg.mxu0
  %4434 = vmatpush.bf16.msra.mxu0 0
  %4435 = vmatpush.bf16.msra.mxu0 0
  %4436 = vmatpush.bf16.msra.mxu0 0
  %4437 = vmatpush.bf16.msra.mxu0 0
  %4438 = vmatpush.bf16.msra.mxu0 0
  %4439 = vmatpush.bf16.msra.mxu0 0
  %4440 = vmatpush.bf16.msra.mxu0 0
  %4441 = vmatpush.bf16.msra.mxu0 %v4406
  %4442 = vmatmul.bf16.gmra.mxu0 %v3807
  %v4443 = vpop.f32.mrf.mxu0
  %v4444 = vadd.f32 0.0, %v4443
  %v4445 = vpop.f32.mrf.mxu0
  %4446 = vdwg.mxu0
  %v4447 = vadd.f32 %v4379, %v4418
  %v4448 = vadd.f32 %v4380, %v4431
  %v4449 = vadd.f32 %v4381, %v4444
  %v4450 = vmul.f32 %v3857, %v3061
  %v4451 = vmul.f32 %v3858, %v3062
  %v4452 = vmul.f32 %v3859, %v3063
  %v4453 = vsel %vm79, %v4450, 0.0
  %v4454 = vsel %vm79, %v4451, 0.0
  %v4455 = vadd.f32 %v4453, %v4454
  %v4456 = vsel %vm3073, %v4452, 0.0
  %v4457 = vadd.f32 %v4455, %v4456
  %4458 = vadd.xlane.f32.xlu0 %v4457
  %v4459 = vpop.xlane.xlu0 %4458
  %v4460 = vadd.f32 %v4459, 0.0
  %v4461 = vmul.f32 %v4447, %v3061
  %v4462 = vmul.f32 %v4448, %v3062
  %v4463 = vmul.f32 %v4449, %v3063
  %v4464 = vsel %vm79, %v4461, 0.0
  %v4465 = vsel %vm79, %v4462, 0.0
  %v4466 = vadd.f32 %v4464, %v4465
  %v4467 = vsel %vm3073, %v4463, 0.0
  %v4468 = vadd.f32 %v4466, %v4467
  %4469 = vadd.xlane.f32.xlu0 %v4468
  %v4470 = vpop.xlane.xlu0 %4469
  %v4471 = vadd.f32 %v4460, %v4470
  %v4472 = vmul.f32 %v4471, %v3096
  %v4473 = vsub.f32 %v3857, %v4472
  %v4474 = vsub.f32 %v3858, %v4472
  %v4475 = vsub.f32 %v3859, %v4472
  %v4476 = vmul.f32 %v4473, %v4473
  %v4477 = vmul.f32 %v4474, %v4474
  %v4478 = vmul.f32 %v4475, %v4475
  %v4479 = vmul.f32 %v3061, %v4476
  %v4480 = vmul.f32 %v3062, %v4477
  %v4481 = vmul.f32 %v3063, %v4478
  %v4482 = vsel %vm79, %v4479, 0.0
  %v4483 = vsel %vm79, %v4480, 0.0
  %v4484 = vadd.f32 %v4482, %v4483
  %v4485 = vsel %vm3073, %v4481, 0.0
  %v4486 = vadd.f32 %v4484, %v4485
  %4487 = vadd.xlane.f32.xlu0 %v4486
  %v4488 = vpop.xlane.xlu0 %4487
  %v4489 = vadd.f32 %v4488, 0.0
  %v4490 = vsub.f32 %v4447, %v4472
  %v4491 = vsub.f32 %v4448, %v4472
  %v4492 = vsub.f32 %v4449, %v4472
  %v4493 = vmul.f32 %v4490, %v4490
  %v4494 = vmul.f32 %v4491, %v4491
  %v4495 = vmul.f32 %v4492, %v4492
  %v4496 = vmul.f32 %v3061, %v4493
  %v4497 = vmul.f32 %v3062, %v4494
  %v4498 = vmul.f32 %v3063, %v4495
  %v4499 = vsel %vm79, %v4496, 0.0
  %v4500 = vsel %vm79, %v4497, 0.0
  %v4501 = vadd.f32 %v4499, %v4500
  %v4502 = vsel %vm3073, %v4498, 0.0
  %v4503 = vadd.f32 %v4501, %v4502
  %4504 = vadd.xlane.f32.xlu0 %v4503
  %v4505 = vpop.xlane.xlu0 %4504
  %v4506 = vadd.f32 %v4489, %v4505
  %v4507 = vmul.f32 %v4506, %v3096
  %v4508 = vld [vmem:[%s10] sm:$0xf]
  %v4509 = vadd.f32 %v4507, 1e-05
  %v4510 = vrsqrt.pop %v4509
  %v4511 = vmul.f32 %v4510, %v4509
  %v4512 = vmul.f32 %v4511, %v4510
  %v4513 = vmul.f32 0.5, %v4512
  %v4514 = vsub.f32 1.5, %v4513
  %v4515 = vmul.f32 %v4510, %v4514
  %vm4516 = vweird.f32 %v4509
  %vm4517 = vweird.f32 %v4510
  %vm4518 = vmor %vm4516, %vm4517
  %v4519 = vsel %vm4518, %v4510, %v4515
  %v4520 = vmul.f32 %v4508, %v4519
  %v4521 = vld [vmem:[%s11] sm:$0xf]
  %v4522 = vmul.f32 %v4472, %v4520
  %v4523 = vsub.f32 %v4521, %v4522
  %4525 = vset.pattern.permute.xlu0 0
  %4526 = vperm.xlu0 %4525, %v4520
  %v4527 = vpop.permute.xlu0 %4526
  %v4529 = vmul.f32 %v3857, %v4527
  %v4530 = vmul.f32 %v3858, %v4527
  %v4531 = vmul.f32 %v3859, %v4527
  %4533 = vset.pattern.permute.xlu0 0
  %4534 = vperm.xlu0 %4533, %v4523
  %v4535 = vpop.permute.xlu0 %4534
  %v4537 = vadd.f32 %v4529, %v4535
  %v4538 = vadd.f32 %v4530, %v4535
  %v4539 = vadd.f32 %v4531, %v4535
  %v4540 = vmax.f32 %v4537, 0.0
  %v4541 = vmax.f32 %v4538, 0.0
  %v4542 = vmax.f32 %v4539, 0.0
  %v4543 = vmul.f32 %v3061, %v4540
  %v4544 = vmul.f32 %v3062, %v4541
  %v4545 = vmul.f32 %v3063, %v4542
  %v4546 = vmul.f32 %v4447, %v4527
  %v4547 = vmul.f32 %v4448, %v4527
  %v4548 = vmul.f32 %v4449, %v4527
  %v4549 = vadd.f32 %v4546, %v4535
  %v4550 = vadd.f32 %v4547, %v4535
  %v4551 = vadd.f32 %v4548, %v4535
  %v4552 = vmax.f32 %v4549, 0.0
  %v4553 = vmax.f32 %v4550, 0.0
  %v4554 = vmax.f32 %v4551, 0.0
  %v4555 = vmul.f32 %v3061, %v4552
  %v4556 = vmul.f32 %v3062, %v4553
  %v4557 = vmul.f32 %v3063, %v4554
  %v4560 = vrot.slane %v4544, 4
  %v4561 = vsel %vm79, %v4543, %v4560
  %4563 = vst [vmem:[%s12] sm:$0xff] %v4561
  %4564 = vst.msk [vmem:[%s12 + $0x8] sm:$0xf] %vm3073, %v4545
  %v4567 = vrot.slane %v4556, 4
  %v4568 = vsel %vm79, %v4555, %v4567
  %s4570 = scalar_lea.vmem %s12, 12
  %4571 = vst [vmem:[%s4570] sm:$0xff] %v4568
  %4572 = vst.msk [vmem:[%s4570 + $0x8] sm:$0xf] %vm3073, %v4557
  // Predicated region
  $region50: #{decoder_blocks_forward.3} parent=0 // pred_check
    _
  $region51: #{decoder_blocks_forward.3} parent=0 // pred_check_branch
    %4574 = sbr.rel (0) target = $region53
  $region52: #{decoder_blocks_forward.3} parent=0 // pred_region
    _
  $region53: #{decoder_blocks_forward.3} parent=0 // pred_fallthru
    _
  // Predicated region
  $region54: #{decoder_blocks_forward.3} parent=0 // pred_check
    _
  $region55: #{decoder_blocks_forward.3} parent=0 // pred_check_branch
    %4576 = sbr.rel (0) target = $region57
  $region56: #{decoder_blocks_forward.3} parent=0 // pred_region
    _
  $region57: #{decoder_blocks_forward.3} parent=0 // pred_fallthru
    _

</llo_original>
